<compile_context>
chip_gen: v6e
topology: v6e:2x2x1
jax: 0.10.0
libtpu: 0.0.40
codegen_flags: <defaults>
</compile_context>

<pallas_src>
import jax
import jax.numpy as jnp
import numpy as np
from jax import lax
from jax.experimental import pallas as pl
from jax.experimental.pallas import tpu as pltpu

# ----- train_config defaults reproduced from the PyTorch script -----
NUM_LAYER_CONV = 3
HIDDEN_SIZE_CONV = 5          # hidden conv channels
NUM_LAYER_FC = 3
HIDDEN_SIZE_FC = 512
IN_CHANNELS = 3
OUT_CHANNELS = 10             # conv out channels AND final class count
KERNEL_SIZE = 3
STRIDE = 1
PADDING = 0
IMG_SIZE = 32                 # FCN in_dim in the reference is derived from 32x32

CONV_CHANNELS = [IN_CHANNELS] + [HIDDEN_SIZE_CONV] * (NUM_LAYER_CONV - 1) + [OUT_CHANNELS]


def _spatial_after_convs():
    d = IMG_SIZE
    for _ in range(NUM_LAYER_CONV):
        d = int((d + 2 * PADDING - (KERNEL_SIZE - 1) - 1) / STRIDE + 1)
    return d


FINAL_SPATIAL = _spatial_after_convs()                # 26
FCN_IN = OUT_CHANNELS * FINAL_SPATIAL * FINAL_SPATIAL  # 6760
FC_DIMS = [FCN_IN] + [HIDDEN_SIZE_FC] * (NUM_LAYER_FC - 1) + [OUT_CHANNELS]


def _round_up(x, m):
    return (x + m - 1) // m * m


# ----- kernel layout constants -----
TK_FC = 1024                                 # fc0 contraction tile
FC_IN_PAD = _round_up(FCN_IN, TK_FC)         # 7168
NUM_CLASSES_PAD = 128                        # lane-dense classifier output
COUT_PAD_UNIT = 16                           # bf16 sublane-packed tile height
CKK_PAD_UNIT = 16                            # contraction padding unit
CONV_M_TILES = 2                             # parallel M tiles (2 TCs on v7x)


# ----------------------------- Pallas kernels --------------------------------
def _conv_mm_kernel(w_ref, p_ref, b_ref, o_ref):
    # w:(Cout_pad, CKK_pad) bf16, p:(CKK_pad, tm) bf16, b:(Cout_pad, 1) f32
    # o:(Cout_pad, tm) bf16  = sigmoid(w @ p + b)   (lane-dense along M)
    y = jnp.dot(w_ref[...], p_ref[...], preferred_element_type=jnp.float32)
    y = y + b_ref[...]
    o_ref[...] = jax.nn.sigmoid(y).astype(o_ref.dtype)


def conv_matmul_bias_sigmoid(w_mat, patches, b_col, tm):
    """Conv-as-matmul, tiled over the large M = N*Ho*Wo lane dimension."""
    co, ckk = w_mat.shape
    m_pad = patches.shape[1]
    return pl.pallas_call(
        _conv_mm_kernel,
        out_shape=jax.ShapeDtypeStruct((co, m_pad), jnp.bfloat16),
        grid=(m_pad // tm,),
        in_specs=[
            pl.BlockSpec((co, ckk), lambda j: (0, 0)),
            pl.BlockSpec((ckk, tm), lambda j: (0, j)),
            pl.BlockSpec((co, 1), lambda j: (0, 0)),
        ],
        out_specs=pl.BlockSpec((co, tm), lambda j: (0, j)),
        compiler_params=pltpu.CompilerParams(
            dimension_semantics=("parallel",)),
    )(w_mat, patches, b_col)


def _fcn_fused_kernel(x_ref, w0_ref, b0_ref, w1_ref, b1_ref, w2_ref, b2_ref,
                      o_ref, acc_ref):
    """Three Linear+sigmoid layers fused in one kernel.

    fc0's contraction is K-tiled over the grid and accumulated in VMEM
    (acc_ref); fc1/fc2 weights have constant index_maps so they are DMA'd once
    and stay VMEM-resident; the epilogue runs only on the last grid step.
    """
    k = pl.program_id(0)

    @pl.when(k == 0)
    def _init():
        acc_ref[...] = jnp.zeros_like(acc_ref)

    acc_ref[...] += jnp.dot(x_ref[...], w0_ref[...],
                            preferred_element_type=jnp.float32)

    @pl.when(k == pl.num_programs(0) - 1)
    def _finalize():
        h0 = jax.nn.sigmoid(acc_ref[...] + b0_ref[...])                 # (B, H)
        h1 = jax.nn.sigmoid(
            jnp.dot(h0.astype(jnp.bfloat16), w1_ref[...],
                    preferred_element_type=jnp.float32) + b1_ref[...])  # (B, H)
        y = jnp.dot(h1.astype(jnp.bfloat16), w2_ref[...],
                    preferred_element_type=jnp.float32) + b2_ref[...]   # (B, 128)
        o_ref[...] = jax.nn.sigmoid(y).astype(o_ref.dtype)


def fcn_fused(x_flat, prep):
    """One pallas_call for the whole FCN head. x_flat: (B, FC_IN_PAD) bf16."""
    bsz, kin = x_flat.shape
    w0, b0 = prep['fc0_w'], prep['fc0_b']
    w1, b1 = prep['fc1_w'], prep['fc1_b']
    w2, b2 = prep['fc2_w'], prep['fc2_b']
    h = w0.shape[1]
    ncls = w2.shape[1]
    return pl.pallas_call(
        _fcn_fused_kernel,
        out_shape=jax.ShapeDtypeStruct((bsz, ncls), jnp.float32),
        grid=(kin // TK_FC,),
        in_specs=[
            pl.BlockSpec((bsz, TK_FC), lambda k: (0, k)),
            pl.BlockSpec((TK_FC, h), lambda k: (k, 0)),
            pl.BlockSpec((1, h), lambda k: (0, 0)),
            pl.BlockSpec((h, h), lambda k: (0, 0)),
            pl.BlockSpec((1, h), lambda k: (0, 0)),
            pl.BlockSpec((h, ncls), lambda k: (0, 0)),
            pl.BlockSpec((1, ncls), lambda k: (0, 0)),
        ],
        out_specs=pl.BlockSpec((bsz, ncls), lambda k: (0, 0)),
        scratch_shapes=[pltpu.VMEM((bsz, h), jnp.float32)],
        compiler_params=pltpu.CompilerParams(
            dimension_semantics=("arbitrary",)),
    )(x_flat.astype(jnp.bfloat16), w0, b0, w1, b1, w2, b2)


# ------------------------------ conv wrapper ---------------------------------
def conv_layer(act_cnhw, w_mat, b_col, cin):
    """Valid conv, stride 1, sigmoid activation, channel-major activations.

    act_cnhw : (C_pad, Nb, H, W) bf16 activation ("CNHW")
    w_mat    : (Cout_pad, CKK_pad) bf16 prepared weight matrix
    b_col    : (Cout_pad, 1) f32 bias column
    returns  : (Cout_pad, Nb, Ho, Wo) bf16
    """
    # TODO(synk): build the im2col patch tile inside the kernel from a
    # VMEM-resident activation tile to avoid the HBM patch matrix; kept as
    # plain-JAX strided-slice glue here for robust Mosaic lowering.
    _, nb, hh, ww = act_cnhw.shape
    k = KERNEL_SIZE
    ho, wo = hh - k + 1, ww - k + 1
    m = nb * ho * wo
    rows = []
    for ci in range(cin):
        for ki in range(k):
            for kj in range(k):
                rows.append(act_cnhw[ci, :, ki:ki + ho, kj:kj + wo].reshape(m))
    patches = jnp.stack(rows, axis=0)                       # (cin*k*k, m) bf16
    ckk_pad = w_mat.shape[1]
    tm = _round_up(-(-m // CONV_M_TILES), 128)              # lane-aligned M tile
    m_pad = CONV_M_TILES * tm
    patches = jnp.pad(patches,
                      ((0, ckk_pad - patches.shape[0]), (0, m_pad - m)))
    out = conv_matmul_bias_sigmoid(w_mat, patches, b_col, tm)  # (Cout_pad, m_pad)
    return out[:, :m].reshape(w_mat.shape[0], nb, ho, wo)


# --------------------------- parameter creation -------------------------------
def init_params(key):
    """PyTorch-style uniform(-1/sqrt(fan_in), 1/sqrt(fan_in)) init (raw layout)."""
    params = {}
    keys = jax.random.split(key, 2 * (NUM_LAYER_CONV + NUM_LAYER_FC))
    kidx = 0
    for i in range(NUM_LAYER_CONV):
        cin, cout = CONV_CHANNELS[i], CONV_CHANNELS[i + 1]
        fan_in = cin * KERNEL_SIZE * KERNEL_SIZE
        bound = 1.0 / np.sqrt(fan_in)
        params[f'conv{i}_w'] = jax.random.uniform(
            keys[kidx], (cout, cin, KERNEL_SIZE, KERNEL_SIZE),
            minval=-bound, maxval=bound, dtype=jnp.float32); kidx += 1
        params[f'conv{i}_b'] = jax.random.uniform(
            keys[kidx], (cout,), minval=-bound, maxval=bound,
            dtype=jnp.float32); kidx += 1
    for i in range(NUM_LAYER_FC):
        din, dout = FC_DIMS[i], FC_DIMS[i + 1]
        bound = 1.0 / np.sqrt(din)
        params[f'fc{i}_w'] = jax.random.uniform(
            keys[kidx], (dout, din), minval=-bound, maxval=bound,
            dtype=jnp.float32); kidx += 1
        params[f'fc{i}_b'] = jax.random.uniform(
            keys[kidx], (dout,), minval=-bound, maxval=bound,
            dtype=jnp.float32); kidx += 1
    return params


def prepare_params(params):
    """One-time kernel-layout prep (hoisted out of the forward pass):
    reshape conv OIHW -> matmul matrix, pre-transpose FC weights to (din,dout),
    zero-pad to tile-friendly sizes, cast matmul operands to bf16."""
    prep = {}
    for i in range(NUM_LAYER_CONV):
        cin, cout = CONV_CHANNELS[i], CONV_CHANNELS[i + 1]
        ckk = cin * KERNEL_SIZE * KERNEL_SIZE
        ckk_pad = _round_up(ckk, CKK_PAD_UNIT)
        cout_pad = _round_up(cout, COUT_PAD_UNIT)
        w = params[f'conv{i}_w'].reshape(cout, ckk)
        prep[f'conv{i}_w'] = jnp.pad(
            w, ((0, cout_pad - cout), (0, ckk_pad - ckk))).astype(jnp.bfloat16)
        prep[f'conv{i}_b'] = jnp.pad(
            params[f'conv{i}_b'], (0, cout_pad - cout)
        ).reshape(cout_pad, 1).astype(jnp.float32)
    for i in range(NUM_LAYER_FC):
        din, dout = FC_DIMS[i], FC_DIMS[i + 1]
        din_pad = FC_IN_PAD if i == 0 else din
        dout_pad = NUM_CLASSES_PAD if i == NUM_LAYER_FC - 1 else dout
        wt = params[f'fc{i}_w'].T                               # (din, dout)
        prep[f'fc{i}_w'] = jnp.pad(
            wt, ((0, din_pad - din), (0, dout_pad - dout))).astype(jnp.bfloat16)
        prep[f'fc{i}_b'] = jnp.pad(
            params[f'fc{i}_b'], (0, dout_pad - dout)
        ).reshape(1, dout_pad).astype(jnp.float32)
    return prep


# ------------------------------ model forward ---------------------------------
def cnn_forward(prep, x):
    """Forward pass matching torch CNN.forward (sigmoid conv stack + FCN head)."""
    nb = x.shape[0]
    # channel-major activations through the conv stack (single tiny transpose in)
    act = jnp.transpose(x, (1, 0, 2, 3)).astype(jnp.bfloat16)      # (C, Nb, H, W)
    for i in range(NUM_LAYER_CONV):
        act = conv_layer(act, prep[f'conv{i}_w'], prep[f'conv{i}_b'],
                         cin=CONV_CHANNELS[i])
    # restore torch's NCHW C-major flatten, then pad to fc0's K-tile boundary
    act = act[:OUT_CHANNELS]                                       # drop pad rows
    flat = jnp.transpose(act, (1, 0, 2, 3)).reshape(nb, -1)        # (Nb, 6760)
    flat = jnp.pad(flat, ((0, 0), (0, FC_IN_PAD - flat.shape[1])))
    logits = fcn_fused(flat, prep)                                 # (Nb, 128) f32
    return logits[:, :OUT_CHANNELS]


def cnn_reference(params, x):
    """Pure-JAX f32 reference (mirrors the PyTorch module) for validation."""
    for i in range(NUM_LAYER_CONV):
        w = params[f'conv{i}_w']
        b = params[f'conv{i}_b']
        x = lax.conv_general_dilated(
            x, w, window_strides=(1, 1), padding='VALID',
            dimension_numbers=('NCHW', 'OIHW', 'NCHW'))
        x = jax.nn.sigmoid(x + b[None, :, None, None])
    x = x.reshape(x.shape[0], -1)
    for i in range(NUM_LAYER_FC):
        x = jax.nn.sigmoid(x @ params[f'fc{i}_w'].T + params[f'fc{i}_b'])
    return x


if __name__ == "__main__":
    key = jax.random.PRNGKey(0)
    k_param, k_input = jax.random.split(key)
    params = init_params(k_param)
    prep = prepare_params(params)     # hoisted transposes / padding / bf16 casts

    # batch=2, channels=3, spatial=32 (spatial must be 32: the reference module
    # derives the FCN in_dim from a 32x32 input).
    x = jax.random.normal(k_input, (2, IN_CHANNELS, IMG_SIZE, IMG_SIZE),
                          dtype=jnp.float32)

    fwd = jax.jit(cnn_forward)
    out = jax.block_until_ready(fwd(prep, x))

    ref = jax.block_until_ready(cnn_reference(params, x))
    assert out.shape == (2, OUT_CHANNELS), out.shape
    # bf16 matmul operands vs pure-f32 reference: tolerance sized for bf16.
    np.testing.assert_allclose(np.asarray(out), np.asarray(ref),
                               atol=3e-2, rtol=3e-2)
    print("KERNEL_OK")
</pallas_src>

<mosaic_0001>
module attributes {stable_mosaic.version = 11 : i64} {
  func.func @_conv_mm_kernel(%arg0: i32, %arg1: memref<16x32xbf16, #tpu.memory_space<vmem>>, %arg2: memref<32x1024xbf16, #tpu.memory_space<vmem>>, %arg3: memref<16x1xf32, #tpu.memory_space<vmem>>, %arg4: memref<16x1024xbf16, #tpu.memory_space<vmem>>) attributes {dimension_semantics = [#tpu.dimension_semantics<parallel>], iteration_bounds = array<i64: 2>, scalar_prefetch = 0 : i64, scratch_operands = 0 : i64, tpu.core_type = #tpu.core_type<tc>, window_params = [{pipeline_mode = #tpu.pipeline_mode<synchronous>, transform_indices = @transform_0, window_bounds = array<i64: 16, 32>}, {transform_indices = @transform_1, window_bounds = array<i64: 32, 1024>}, {pipeline_mode = #tpu.pipeline_mode<synchronous>, transform_indices = @transform_2, window_bounds = array<i64: 16, 1>}, {transform_indices = @transform_3, window_bounds = array<i64: 16, 1024>}]} {
    %c0 = arith.constant 0 : index
    %c0_0 = arith.constant 0 : index
    %0 = vector.load %arg1[%c0, %c0_0] : memref<16x32xbf16, #tpu.memory_space<vmem>>, vector<16x32xbf16>
    %c0_1 = arith.constant 0 : index
    %c0_2 = arith.constant 0 : index
    %1 = vector.load %arg2[%c0_1, %c0_2] : memref<32x1024xbf16, #tpu.memory_space<vmem>>, vector<32x1024xbf16>
    %cst = arith.constant dense<0.000000e+00> : vector<16x1024xf32>
    %2 = tpu.matmul %0, %1, %cst {dimension_numbers = #tpu.dot_dimension_numbers<[1], [0], [0], [1], [0, 0, 1, 1], [], []>} : vector<16x32xbf16>, vector<32x1024xbf16>, vector<16x1024xf32> -> vector<16x1024xf32>
    %c0_3 = arith.constant 0 : index
    %c0_4 = arith.constant 0 : index
    %3 = vector.load %arg3[%c0_3, %c0_4] : memref<16x1xf32, #tpu.memory_space<vmem>>, vector<16x1xf32>
    %4 = vector.broadcast %3 : vector<16x1xf32> to vector<16x1024xf32>
    %5 = arith.addf %2, %4 : vector<16x1024xf32>
    %6 = arith.negf %5 : vector<16x1024xf32>
    %7 = math.exp %6 : vector<16x1024xf32>
    %cst_5 = arith.constant 1.000000e+00 : f32
    %8 = vector.broadcast %cst_5 : f32 to vector<16x1024xf32>
    %9 = arith.addf %8, %7 : vector<16x1024xf32>
    %10 = arith.divf %8, %9 : vector<16x1024xf32>
    %11 = arith.truncf %10 : vector<16x1024xf32> to vector<16x1024xbf16>
    %c0_6 = arith.constant 0 : index
    %c0_7 = arith.constant 0 : index
    %12 = vector.load %arg4[%c0_6, %c0_7] : memref<16x1024xbf16, #tpu.memory_space<vmem>>, vector<16x1024xbf16>
    tpu.vector_store %arg4[%c0_6, %c0_7], %11 {strides = array<i32>} : memref<16x1024xbf16, #tpu.memory_space<vmem>>, vector<16x1024xbf16>,
    return
  }
  func.func @transform_0(%arg0: i32) -> (i32, i32) {
    %c0_i32 = arith.constant 0 : i32
    %c0_i32_0 = arith.constant 0 : i32
    %c0_i32_1 = arith.constant 0 : i32
    return %c0_i32, %c0_i32_0 : i32, i32
  }
  func.func @transform_1(%arg0: i32) -> (i32, i32) {
    %c0_i32 = arith.constant 0 : i32
    %c0_i32_0 = arith.constant 0 : i32
    return %c0_i32, %arg0 : i32, i32
  }
  func.func @transform_2(%arg0: i32) -> (i32, i32) {
    %c0_i32 = arith.constant 0 : i32
    %c0_i32_0 = arith.constant 0 : i32
    %c0_i32_1 = arith.constant 0 : i32
    return %c0_i32, %c0_i32_0 : i32, i32
  }
  func.func @transform_3(%arg0: i32) -> (i32, i32) {
    %c0_i32 = arith.constant 0 : i32
    %c0_i32_0 = arith.constant 0 : i32
    return %c0_i32, %arg0 : i32, i32
  }
}

module attributes {stable_mosaic.version = 11 : i64} {
  func.func @_conv_mm_kernel(%arg0: i32, %arg1: memref<16x48xbf16, #tpu.memory_space<vmem>>, %arg2: memref<48x896xbf16, #tpu.memory_space<vmem>>, %arg3: memref<16x1xf32, #tpu.memory_space<vmem>>, %arg4: memref<16x896xbf16, #tpu.memory_space<vmem>>) attributes {dimension_semantics = [#tpu.dimension_semantics<parallel>], iteration_bounds = array<i64: 2>, scalar_prefetch = 0 : i64, scratch_operands = 0 : i64, tpu.core_type = #tpu.core_type<tc>, window_params = [{pipeline_mode = #tpu.pipeline_mode<synchronous>, transform_indices = @transform_0, window_bounds = array<i64: 16, 48>}, {transform_indices = @transform_1, window_bounds = array<i64: 48, 896>}, {pipeline_mode = #tpu.pipeline_mode<synchronous>, transform_indices = @transform_2, window_bounds = array<i64: 16, 1>}, {transform_indices = @transform_3, window_bounds = array<i64: 16, 896>}]} {
    %c0 = arith.constant 0 : index
    %c0_0 = arith.constant 0 : index
    %0 = vector.load %arg1[%c0, %c0_0] : memref<16x48xbf16, #tpu.memory_space<vmem>>, vector<16x48xbf16>
    %c0_1 = arith.constant 0 : index
    %c0_2 = arith.constant 0 : index
    %1 = vector.load %arg2[%c0_1, %c0_2] : memref<48x896xbf16, #tpu.memory_space<vmem>>, vector<48x896xbf16>
    %cst = arith.constant dense<0.000000e+00> : vector<16x896xf32>
    %2 = tpu.matmul %0, %1, %cst {dimension_numbers = #tpu.dot_dimension_numbers<[1], [0], [0], [1], [0, 0, 1, 1], [], []>} : vector<16x48xbf16>, vector<48x896xbf16>, vector<16x896xf32> -> vector<16x896xf32>
    %c0_3 = arith.constant 0 : index
    %c0_4 = arith.constant 0 : index
    %3 = vector.load %arg3[%c0_3, %c0_4] : memref<16x1xf32, #tpu.memory_space<vmem>>, vector<16x1xf32>
    %4 = vector.broadcast %3 : vector<16x1xf32> to vector<16x896xf32>
    %5 = arith.addf %2, %4 : vector<16x896xf32>
    %6 = arith.negf %5 : vector<16x896xf32>
    %7 = math.exp %6 : vector<16x896xf32>
    %cst_5 = arith.constant 1.000000e+00 : f32
    %8 = vector.broadcast %cst_5 : f32 to vector<16x896xf32>
    %9 = arith.addf %8, %7 : vector<16x896xf32>
    %10 = arith.divf %8, %9 : vector<16x896xf32>
    %11 = arith.truncf %10 : vector<16x896xf32> to vector<16x896xbf16>
    %c0_6 = arith.constant 0 : index
    %c0_7 = arith.constant 0 : index
    %12 = vector.load %arg4[%c0_6, %c0_7] : memref<16x896xbf16, #tpu.memory_space<vmem>>, vector<16x896xbf16>
    tpu.vector_store %arg4[%c0_6, %c0_7], %11 {strides = array<i32>} : memref<16x896xbf16, #tpu.memory_space<vmem>>, vector<16x896xbf16>,
    return
  }
  func.func @transform_0(%arg0: i32) -> (i32, i32) {
    %c0_i32 = arith.constant 0 : i32
    %c0_i32_0 = arith.constant 0 : i32
    %c0_i32_1 = arith.constant 0 : i32
    return %c0_i32, %c0_i32_0 : i32, i32
  }
  func.func @transform_1(%arg0: i32) -> (i32, i32) {
    %c0_i32 = arith.constant 0 : i32
    %c0_i32_0 = arith.constant 0 : i32
    return %c0_i32, %arg0 : i32, i32
  }
  func.func @transform_2(%arg0: i32) -> (i32, i32) {
    %c0_i32 = arith.constant 0 : i32
    %c0_i32_0 = arith.constant 0 : i32
    %c0_i32_1 = arith.constant 0 : i32
    return %c0_i32, %c0_i32_0 : i32, i32
  }
  func.func @transform_3(%arg0: i32) -> (i32, i32) {
    %c0_i32 = arith.constant 0 : i32
    %c0_i32_0 = arith.constant 0 : i32
    return %c0_i32, %arg0 : i32, i32
  }
}

module attributes {stable_mosaic.version = 11 : i64} {
  func.func @_conv_mm_kernel(%arg0: i32, %arg1: memref<16x48xbf16, #tpu.memory_space<vmem>>, %arg2: memref<48x768xbf16, #tpu.memory_space<vmem>>, %arg3: memref<16x1xf32, #tpu.memory_space<vmem>>, %arg4: memref<16x768xbf16, #tpu.memory_space<vmem>>) attributes {dimension_semantics = [#tpu.dimension_semantics<parallel>], iteration_bounds = array<i64: 2>, scalar_prefetch = 0 : i64, scratch_operands = 0 : i64, tpu.core_type = #tpu.core_type<tc>, window_params = [{pipeline_mode = #tpu.pipeline_mode<synchronous>, transform_indices = @transform_0, window_bounds = array<i64: 16, 48>}, {transform_indices = @transform_1, window_bounds = array<i64: 48, 768>}, {pipeline_mode = #tpu.pipeline_mode<synchronous>, transform_indices = @transform_2, window_bounds = array<i64: 16, 1>}, {transform_indices = @transform_3, window_bounds = array<i64: 16, 768>}]} {
    %c0 = arith.constant 0 : index
    %c0_0 = arith.constant 0 : index
    %0 = vector.load %arg1[%c0, %c0_0] : memref<16x48xbf16, #tpu.memory_space<vmem>>, vector<16x48xbf16>
    %c0_1 = arith.constant 0 : index
    %c0_2 = arith.constant 0 : index
    %1 = vector.load %arg2[%c0_1, %c0_2] : memref<48x768xbf16, #tpu.memory_space<vmem>>, vector<48x768xbf16>
    %cst = arith.constant dense<0.000000e+00> : vector<16x768xf32>
    %2 = tpu.matmul %0, %1, %cst {dimension_numbers = #tpu.dot_dimension_numbers<[1], [0], [0], [1], [0, 0, 1, 1], [], []>} : vector<16x48xbf16>, vector<48x768xbf16>, vector<16x768xf32> -> vector<16x768xf32>
    %c0_3 = arith.constant 0 : index
    %c0_4 = arith.constant 0 : index
    %3 = vector.load %arg3[%c0_3, %c0_4] : memref<16x1xf32, #tpu.memory_space<vmem>>, vector<16x1xf32>
    %4 = vector.broadcast %3 : vector<16x1xf32> to vector<16x768xf32>
    %5 = arith.addf %2, %4 : vector<16x768xf32>
    %6 = arith.negf %5 : vector<16x768xf32>
    %7 = math.exp %6 : vector<16x768xf32>
    %cst_5 = arith.constant 1.000000e+00 : f32
    %8 = vector.broadcast %cst_5 : f32 to vector<16x768xf32>
    %9 = arith.addf %8, %7 : vector<16x768xf32>
    %10 = arith.divf %8, %9 : vector<16x768xf32>
    %11 = arith.truncf %10 : vector<16x768xf32> to vector<16x768xbf16>
    %c0_6 = arith.constant 0 : index
    %c0_7 = arith.constant 0 : index
    %12 = vector.load %arg4[%c0_6, %c0_7] : memref<16x768xbf16, #tpu.memory_space<vmem>>, vector<16x768xbf16>
    tpu.vector_store %arg4[%c0_6, %c0_7], %11 {strides = array<i32>} : memref<16x768xbf16, #tpu.memory_space<vmem>>, vector<16x768xbf16>,
    return
  }
  func.func @transform_0(%arg0: i32) -> (i32, i32) {
    %c0_i32 = arith.constant 0 : i32
    %c0_i32_0 = arith.constant 0 : i32
    %c0_i32_1 = arith.constant 0 : i32
    return %c0_i32, %c0_i32_0 : i32, i32
  }
  func.func @transform_1(%arg0: i32) -> (i32, i32) {
    %c0_i32 = arith.constant 0 : i32
    %c0_i32_0 = arith.constant 0 : i32
    return %c0_i32, %arg0 : i32, i32
  }
  func.func @transform_2(%arg0: i32) -> (i32, i32) {
    %c0_i32 = arith.constant 0 : i32
    %c0_i32_0 = arith.constant 0 : i32
    %c0_i32_1 = arith.constant 0 : i32
    return %c0_i32, %c0_i32_0 : i32, i32
  }
  func.func @transform_3(%arg0: i32) -> (i32, i32) {
    %c0_i32 = arith.constant 0 : i32
    %c0_i32_0 = arith.constant 0 : i32
    return %c0_i32, %arg0 : i32, i32
  }
}

module attributes {stable_mosaic.version = 11 : i64} {
  func.func @_fcn_fused_kernel(%arg0: i32, %arg1: memref<2x1024xbf16, #tpu.memory_space<vmem>>, %arg2: memref<1024x512xbf16, #tpu.memory_space<vmem>>, %arg3: memref<1x512xf32, #tpu.memory_space<vmem>>, %arg4: memref<512x512xbf16, #tpu.memory_space<vmem>>, %arg5: memref<1x512xf32, #tpu.memory_space<vmem>>, %arg6: memref<512x128xbf16, #tpu.memory_space<vmem>>, %arg7: memref<1x128xf32, #tpu.memory_space<vmem>>, %arg8: memref<2x128xf32, #tpu.memory_space<vmem>>, %arg9: memref<2x512xf32, #tpu.memory_space<vmem>>) attributes {dimension_semantics = [#tpu.dimension_semantics<arbitrary>], iteration_bounds = array<i64: 7>, scalar_prefetch = 0 : i64, scratch_operands = 1 : i64, tpu.core_type = #tpu.core_type<tc>, window_params = [{transform_indices = @transform_0, window_bounds = array<i64: 2, 1024>}, {transform_indices = @transform_1, window_bounds = array<i64: 1024, 512>}, {pipeline_mode = #tpu.pipeline_mode<synchronous>, transform_indices = @transform_2, window_bounds = array<i64: 1, 512>}, {pipeline_mode = #tpu.pipeline_mode<synchronous>, transform_indices = @transform_3, window_bounds = array<i64: 512, 512>}, {pipeline_mode = #tpu.pipeline_mode<synchronous>, transform_indices = @transform_4, window_bounds = array<i64: 1, 512>}, {pipeline_mode = #tpu.pipeline_mode<synchronous>, transform_indices = @transform_5, window_bounds = array<i64: 512, 128>}, {pipeline_mode = #tpu.pipeline_mode<synchronous>, transform_indices = @transform_6, window_bounds = array<i64: 1, 128>}, {pipeline_mode = #tpu.pipeline_mode<synchronous>, transform_indices = @transform_7, window_bounds = array<i64: 2, 128>}]} {
    %c0_i32 = arith.constant 0 : i32
    %0 = arith.cmpi eq, %arg0, %c0_i32 : i32
    %1 = arith.extui %0 : i1 to i32
    %c0_i32_0 = arith.constant 0 : i32
    %2 = arith.cmpi ne, %1, %c0_i32_0 : i32
    scf.if %2 {
      %cst_9 = arith.constant 0.000000e+00 : f32
      %12 = vector.broadcast %cst_9 : f32 to vector<2x512xf32>
      %c0_10 = arith.constant 0 : index
      %c0_11 = arith.constant 0 : index
      %13 = vector.load %arg9[%c0_10, %c0_11] : memref<2x512xf32, #tpu.memory_space<vmem>>, vector<2x512xf32>
      tpu.vector_store %arg9[%c0_10, %c0_11], %12 {strides = array<i32>} : memref<2x512xf32, #tpu.memory_space<vmem>>, vector<2x512xf32>,
    } else {
    }
    %c0 = arith.constant 0 : index
    %c0_1 = arith.constant 0 : index
    %3 = vector.load %arg9[%c0, %c0_1] : memref<2x512xf32, #tpu.memory_space<vmem>>, vector<2x512xf32>
    %c0_2 = arith.constant 0 : index
    %c0_3 = arith.constant 0 : index
    %4 = vector.load %arg1[%c0_2, %c0_3] : memref<2x1024xbf16, #tpu.memory_space<vmem>>, vector<2x1024xbf16>
    %c0_4 = arith.constant 0 : index
    %c0_5 = arith.constant 0 : index
    %5 = vector.load %arg2[%c0_4, %c0_5] : memref<1024x512xbf16, #tpu.memory_space<vmem>>, vector<1024x512xbf16>
    %cst = arith.constant dense<0.000000e+00> : vector<2x512xf32>
    %6 = tpu.matmul %4, %5, %cst {dimension_numbers = #tpu.dot_dimension_numbers<[1], [0], [0], [1], [0, 0, 1, 1], [], []>} : vector<2x1024xbf16>, vector<1024x512xbf16>, vector<2x512xf32> -> vector<2x512xf32>
    %7 = arith.addf %3, %6 : vector<2x512xf32>
    %c0_6 = arith.constant 0 : index
    %c0_7 = arith.constant 0 : index
    %8 = vector.load %arg9[%c0_6, %c0_7] : memref<2x512xf32, #tpu.memory_space<vmem>>, vector<2x512xf32>
    tpu.vector_store %arg9[%c0_6, %c0_7], %7 {strides = array<i32>} : memref<2x512xf32, #tpu.memory_space<vmem>>, vector<2x512xf32>,
    %c6_i32 = arith.constant 6 : i32
    %9 = arith.cmpi eq, %arg0, %c6_i32 : i32
    %10 = arith.extui %9 : i1 to i32
    %c0_i32_8 = arith.constant 0 : i32
    %11 = arith.cmpi ne, %10, %c0_i32_8 : i32
    scf.if %11 {
      %c0_9 = arith.constant 0 : index
      %c0_10 = arith.constant 0 : index
      %12 = vector.load %arg9[%c0_9, %c0_10] : memref<2x512xf32, #tpu.memory_space<vmem>>, vector<2x512xf32>
      %c0_11 = arith.constant 0 : index
      %c0_12 = arith.constant 0 : index
      %13 = vector.load %arg3[%c0_11, %c0_12] : memref<1x512xf32, #tpu.memory_space<vmem>>, vector<1x512xf32>
      %14 = vector.broadcast %13 : vector<1x512xf32> to vector<2x512xf32>
      %15 = arith.addf %12, %14 : vector<2x512xf32>
      %16 = arith.negf %15 : vector<2x512xf32>
      %17 = math.exp %16 : vector<2x512xf32>
      %cst_13 = arith.constant 1.000000e+00 : f32
      %18 = vector.broadcast %cst_13 : f32 to vector<2x512xf32>
      %19 = arith.addf %18, %17 : vector<2x512xf32>
      %20 = arith.divf %18, %19 : vector<2x512xf32>
      %21 = arith.truncf %20 : vector<2x512xf32> to vector<2x512xbf16>
      %c0_14 = arith.constant 0 : index
      %c0_15 = arith.constant 0 : index
      %22 = vector.load %arg4[%c0_14, %c0_15] : memref<512x512xbf16, #tpu.memory_space<vmem>>, vector<512x512xbf16>
      %cst_16 = arith.constant dense<0.000000e+00> : vector<2x512xf32>
      %23 = tpu.matmul %21, %22, %cst_16 {dimension_numbers = #tpu.dot_dimension_numbers<[1], [0], [0], [1], [0, 0, 1, 1], [], []>} : vector<2x512xbf16>, vector<512x512xbf16>, vector<2x512xf32> -> vector<2x512xf32>
      %c0_17 = arith.constant 0 : index
      %c0_18 = arith.constant 0 : index
      %24 = vector.load %arg5[%c0_17, %c0_18] : memref<1x512xf32, #tpu.memory_space<vmem>>, vector<1x512xf32>
      %25 = vector.broadcast %24 : vector<1x512xf32> to vector<2x512xf32>
      %26 = arith.addf %23, %25 : vector<2x512xf32>
      %27 = arith.negf %26 : vector<2x512xf32>
      %28 = math.exp %27 : vector<2x512xf32>
      %cst_19 = arith.constant 1.000000e+00 : f32
      %29 = vector.broadcast %cst_19 : f32 to vector<2x512xf32>
      %30 = arith.addf %29, %28 : vector<2x512xf32>
      %31 = arith.divf %29, %30 : vector<2x512xf32>
      %32 = arith.truncf %31 : vector<2x512xf32> to vector<2x512xbf16>
      %c0_20 = arith.constant 0 : index
      %c0_21 = arith.constant 0 : index
      %33 = vector.load %arg6[%c0_20, %c0_21] : memref<512x128xbf16, #tpu.memory_space<vmem>>, vector<512x128xbf16>
      %cst_22 = arith.constant dense<0.000000e+00> : vector<2x128xf32>
      %34 = tpu.matmul %32, %33, %cst_22 {dimension_numbers = #tpu.dot_dimension_numbers<[1], [0], [0], [1], [0, 0, 1, 1], [], []>} : vector<2x512xbf16>, vector<512x128xbf16>, vector<2x128xf32> -> vector<2x128xf32>
      %c0_23 = arith.constant 0 : index
      %c0_24 = arith.constant 0 : index
      %35 = vector.load %arg7[%c0_23, %c0_24] : memref<1x128xf32, #tpu.memory_space<vmem>>, vector<1x128xf32>
      %36 = vector.broadcast %35 : vector<1x128xf32> to vector<2x128xf32>
      %37 = arith.addf %34, %36 : vector<2x128xf32>
      %38 = arith.negf %37 : vector<2x128xf32>
      %39 = math.exp %38 : vector<2x128xf32>
      %cst_25 = arith.constant 1.000000e+00 : f32
      %40 = vector.broadcast %cst_25 : f32 to vector<2x128xf32>
      %41 = arith.addf %40, %39 : vector<2x128xf32>
      %42 = arith.divf %40, %41 : vector<2x128xf32>
      %c0_26 = arith.constant 0 : index
      %c0_27 = arith.constant 0 : index
      %43 = vector.load %arg8[%c0_26, %c0_27] : memref<2x128xf32, #tpu.memory_space<vmem>>, vector<2x128xf32>
      tpu.vector_store %arg8[%c0_26, %c0_27], %42 {strides = array<i32>} : memref<2x128xf32, #tpu.memory_space<vmem>>, vector<2x128xf32>,
    } else {
    }
    return
  }
  func.func @transform_0(%arg0: i32) -> (i32, i32) {
    %c0_i32 = arith.constant 0 : i32
    %c0_i32_0 = arith.constant 0 : i32
    return %c0_i32, %arg0 : i32, i32
  }
  func.func @transform_1(%arg0: i32) -> (i32, i32) {
    %c0_i32 = arith.constant 0 : i32
    %c0_i32_0 = arith.constant 0 : i32
    return %arg0, %c0_i32 : i32, i32
  }
  func.func @transform_2(%arg0: i32) -> (i32, i32) {
    %c0_i32 = arith.constant 0 : i32
    %c0_i32_0 = arith.constant 0 : i32
    %c0_i32_1 = arith.constant 0 : i32
    return %c0_i32, %c0_i32_0 : i32, i32
  }
  func.func @transform_3(%arg0: i32) -> (i32, i32) {
    %c0_i32 = arith.constant 0 : i32
    %c0_i32_0 = arith.constant 0 : i32
    %c0_i32_1 = arith.constant 0 : i32
    return %c0_i32, %c0_i32_0 : i32, i32
  }
  func.func @transform_4(%arg0: i32) -> (i32, i32) {
    %c0_i32 = arith.constant 0 : i32
    %c0_i32_0 = arith.constant 0 : i32
    %c0_i32_1 = arith.constant 0 : i32
    return %c0_i32, %c0_i32_0 : i32, i32
  }
  func.func @transform_5(%arg0: i32) -> (i32, i32) {
    %c0_i32 = arith.constant 0 : i32
    %c0_i32_0 = arith.constant 0 : i32
    %c0_i32_1 = arith.constant 0 : i32
    return %c0_i32, %c0_i32_0 : i32, i32
  }
  func.func @transform_6(%arg0: i32) -> (i32, i32) {
    %c0_i32 = arith.constant 0 : i32
    %c0_i32_0 = arith.constant 0 : i32
    %c0_i32_1 = arith.constant 0 : i32
    return %c0_i32, %c0_i32_0 : i32, i32
  }
  func.func @transform_7(%arg0: i32) -> (i32, i32) {
    %c0_i32 = arith.constant 0 : i32
    %c0_i32_0 = arith.constant 0 : i32
    %c0_i32_1 = arith.constant 0 : i32
    return %c0_i32, %c0_i32_0 : i32, i32
  }
}

</mosaic_0001>

<llo_original>
// kernel: squeeze.125
$region0: #{squeeze.125}
  %s0 = inlined_call_operand.vmem [shape: bf16[1,2,30,30], index: 0, kind: input, shape index: {}]
  %s1 = inlined_call_operand.vmem [shape: bf16[1,1800], index: 1, kind: output, shape index: {}]
  $region1: #{squeeze.125} parent=0
    #allocation0 [shape = 'u8[61440]{0}', space=vmem, size = 0xf000, scoped, tag = 'scoped mem for output reshape']
    #allocation1 [shape = 'u8[32768]{0}', space=vmem, size = 0x8000, scoped, tag = 'scoped mem for input reshape']
    %s3 = smul.u32 4, 2
    %s4 = sshll.u32 1, %s3
    %s5 = ssub.s32 %s4, 1
    %s6 = smul.addr 4, 7
    %s7 = scalar_lea.vmem %s0, %s6
    %s8 = sshrl.u32 %s5, 1
    %s9 = sor.u32 %s5, %s8
    %s10 = sand.u32 %s9, 85
    %s11 = sshrl.u32 %s10, 1
    %s12 = sor.u32 %s10, %s11
    %s13 = sand.u32 51, %s12
    %s14 = sshrl.u32 %s13, 2
    %s15 = sor.u32 %s13, %s14
    %s16 = sand.u32 15, %s15
    %v17 = vld [vmem:[%s7] sm:%s16]
    %v18 = vunpack.c.l.bf16 %v17
    %v19 = vunpack.c.h.bf16 %v17
    %s20 = scalar_lea.vmem [#allocation1], 56
    %21 = vst [vmem:[%s20] sm:%s5] %v18
    %s22 = smul.addr 4, 6
    %s23 = scalar_lea.vmem %s0, %s22
    %s24 = sshrl.u32 %s5, 1
    %s25 = sor.u32 %s5, %s24
    %s26 = sand.u32 %s25, 85
    %s27 = sshrl.u32 %s26, 1
    %s28 = sor.u32 %s26, %s27
    %s29 = sand.u32 51, %s28
    %s30 = sshrl.u32 %s29, 2
    %s31 = sor.u32 %s29, %s30
    %s32 = sand.u32 15, %s31
    %v33 = vld [vmem:[%s23] sm:%s32]
    %v34 = vunpack.c.l.bf16 %v33
    %v35 = vunpack.c.h.bf16 %v33
    %s36 = scalar_lea.vmem [#allocation1], 48
    %37 = vst [vmem:[%s36] sm:%s5] %v34
    %s38 = smul.addr 4, 5
    %s39 = scalar_lea.vmem %s0, %s38
    %s40 = sshrl.u32 %s5, 1
    %s41 = sor.u32 %s5, %s40
    %s42 = sand.u32 %s41, 85
    %s43 = sshrl.u32 %s42, 1
    %s44 = sor.u32 %s42, %s43
    %s45 = sand.u32 51, %s44
    %s46 = sshrl.u32 %s45, 2
    %s47 = sor.u32 %s45, %s46
    %s48 = sand.u32 15, %s47
    %v49 = vld [vmem:[%s39] sm:%s48]
    %v50 = vunpack.c.l.bf16 %v49
    %v51 = vunpack.c.h.bf16 %v49
    %s52 = scalar_lea.vmem [#allocation1], 40
    %53 = vst [vmem:[%s52] sm:%s5] %v50
    %s54 = smul.addr 4, 4
    %s55 = scalar_lea.vmem %s0, %s54
    %s56 = sshrl.u32 %s5, 1
    %s57 = sor.u32 %s5, %s56
    %s58 = sand.u32 %s57, 85
    %s59 = sshrl.u32 %s58, 1
    %s60 = sor.u32 %s58, %s59
    %s61 = sand.u32 51, %s60
    %s62 = sshrl.u32 %s61, 2
    %s63 = sor.u32 %s61, %s62
    %s64 = sand.u32 15, %s63
    %v65 = vld [vmem:[%s55] sm:%s64]
    %v66 = vunpack.c.l.bf16 %v65
    %v67 = vunpack.c.h.bf16 %v65
    %s68 = scalar_lea.vmem [#allocation1], 32
    %69 = vst [vmem:[%s68] sm:%s5] %v66
    %s70 = smul.addr 4, 3
    %s71 = scalar_lea.vmem %s0, %s70
    %s72 = sshrl.u32 %s5, 1
    %s73 = sor.u32 %s5, %s72
    %s74 = sand.u32 %s73, 85
    %s75 = sshrl.u32 %s74, 1
    %s76 = sor.u32 %s74, %s75
    %s77 = sand.u32 51, %s76
    %s78 = sshrl.u32 %s77, 2
    %s79 = sor.u32 %s77, %s78
    %s80 = sand.u32 15, %s79
    %v81 = vld [vmem:[%s71] sm:%s80]
    %v82 = vunpack.c.l.bf16 %v81
    %v83 = vunpack.c.h.bf16 %v81
    %s84 = scalar_lea.vmem [#allocation1], 24
    %85 = vst [vmem:[%s84] sm:%s5] %v82
    %s86 = smul.addr 4, 2
    %s87 = scalar_lea.vmem %s0, %s86
    %s88 = sshrl.u32 %s5, 1
    %s89 = sor.u32 %s5, %s88
    %s90 = sand.u32 %s89, 85
    %s91 = sshrl.u32 %s90, 1
    %s92 = sor.u32 %s90, %s91
    %s93 = sand.u32 51, %s92
    %s94 = sshrl.u32 %s93, 2
    %s95 = sor.u32 %s93, %s94
    %s96 = sand.u32 15, %s95
    %v97 = vld [vmem:[%s87] sm:%s96]
    %v98 = vunpack.c.l.bf16 %v97
    %v99 = vunpack.c.h.bf16 %v97
    %s100 = scalar_lea.vmem [#allocation1], 16
    %101 = vst [vmem:[%s100] sm:%s5] %v98
    %s102 = scalar_lea.vmem %s0, 4
    %s103 = sshrl.u32 %s5, 1
    %s104 = sor.u32 %s5, %s103
    %s105 = sand.u32 %s104, 85
    %s106 = sshrl.u32 %s105, 1
    %s107 = sor.u32 %s105, %s106
    %s108 = sand.u32 51, %s107
    %s109 = sshrl.u32 %s108, 2
    %s110 = sor.u32 %s108, %s109
    %s111 = sand.u32 15, %s110
    %v112 = vld [vmem:[%s102] sm:%s111]
    %v113 = vunpack.c.l.bf16 %v112
    %v114 = vunpack.c.h.bf16 %v112
    %s115 = scalar_lea.vmem [#allocation1], 8
    %116 = vst [vmem:[%s115] sm:%s5] %v113
    %s117 = sshrl.u32 %s5, 1
    %s118 = sor.u32 %s5, %s117
    %s119 = sand.u32 %s118, 85
    %s120 = sshrl.u32 %s119, 1
    %s121 = sor.u32 %s119, %s120
    %s122 = sand.u32 51, %s121
    %s123 = sshrl.u32 %s122, 2
    %s124 = sor.u32 %s122, %s123
    %s125 = sand.u32 15, %s124
    %v126 = vld [vmem:[%s0] sm:%s125]
    %v127 = vunpack.c.l.bf16 %v126
    %v128 = vunpack.c.h.bf16 %v126
    %129 = vst [vmem:[#allocation1] sm:%s5] %v127
    %v130 = vld [vmem:[#allocation1] sm:$0x1]
    %vm131 = vcmask 244736
    %132 = vst.msk [vmem:[#allocation0] sm:$0x1] %vm131, %v130
    %s133 = scalar_lea.vmem [#allocation1], 17
    %v134 = vld [vmem:[%s133] sm:$0x1]
    %s135 = scalar_lea.vmem [#allocation1], 17
    %v136 = vld [vmem:[%s135] sm:$0x1]
    %vm137 = vcmask 15360
    %v138 = vsel %vm137, %v136, %v134
    %139 = vrot.lane.b32.xlu0 %v138, 126
    %v140 = vpop.permute.xlu0 %139
    %vm141 = vcmask 228352
    %s142 = scalar_lea.vmem [#allocation0], 32
    %143 = vst.msk [vmem:[%s142] sm:$0x1] %vm141, %v140
    %vm144 = vcmask 1048560
    %s145 = scalar_lea.vmem [#allocation0], 24
    %146 = vst.msk [vmem:[%s145] sm:$0x1] %vm144, %v140
    %s147 = scalar_lea.vmem [#allocation1], 36
    %v148 = vld [vmem:[%s147] sm:$0x1]
    %s149 = scalar_lea.vmem [#allocation1], 36
    %v150 = vld [vmem:[%s149] sm:$0x1]
    %vm151 = vcmask 31744
    %v152 = vsel %vm151, %v150, %v148
    %153 = vrot.lane.b32.xlu0 %v152, 124
    %v154 = vpop.permute.xlu0 %153
    %vm155 = vcmask 211968
    %s156 = scalar_lea.vmem [#allocation0], 64
    %157 = vst.msk [vmem:[%s156] sm:$0x1] %vm155, %v154
    %vm158 = vcmask 1048544
    %s159 = scalar_lea.vmem [#allocation0], 56
    %160 = vst.msk [vmem:[%s159] sm:$0x1] %vm158, %v154
    %s161 = scalar_lea.vmem [#allocation1], 53
    %v162 = vld [vmem:[%s161] sm:$0x1]
    %s163 = scalar_lea.vmem [#allocation1], 53
    %v164 = vld [vmem:[%s163] sm:$0x1]
    %vm165 = vcmask 48128
    %v166 = vsel %vm165, %v164, %v162
    %167 = vrot.lane.b32.xlu0 %v166, 122
    %v168 = vpop.permute.xlu0 %167
    %vm169 = vcmask 195584
    %s170 = scalar_lea.vmem [#allocation0], 96
    %171 = vst.msk [vmem:[%s170] sm:$0x1] %vm169, %v168
    %vm172 = vcmask 1048528
    %s173 = scalar_lea.vmem [#allocation0], 88
    %174 = vst.msk [vmem:[%s173] sm:$0x1] %vm172, %v168
    %s175 = scalar_lea.vmem [#allocation1], 4
    %v176 = vld [vmem:[%s175] sm:$0x1]
    %s177 = scalar_lea.vmem [#allocation1], 4
    %v178 = vld [vmem:[%s177] sm:$0x1]
    %vm179 = vcmask 64512
    %v180 = vsel %vm179, %v178, %v176
    %181 = vrot.lane.b32.xlu0 %v180, 120
    %v182 = vpop.permute.xlu0 %181
    %vm183 = vcmask 179200
    %s184 = scalar_lea.vmem [#allocation0], 8
    %185 = vst.msk [vmem:[%s184] sm:$0x1] %vm183, %v182
    %vm186 = vcmask 1048512
    %187 = vst.msk [vmem:[#allocation0] sm:$0x1] %vm186, %v182
    %s188 = scalar_lea.vmem [#allocation1], 21
    %v189 = vld [vmem:[%s188] sm:$0x1]
    %s190 = scalar_lea.vmem [#allocation1], 21
    %v191 = vld [vmem:[%s190] sm:$0x1]
    %vm192 = vcmask 80896
    %v193 = vsel %vm192, %v191, %v189
    %194 = vrot.lane.b32.xlu0 %v193, 118
    %v195 = vpop.permute.xlu0 %194
    %vm196 = vcmask 162816
    %s197 = scalar_lea.vmem [#allocation0], 40
    %198 = vst.msk [vmem:[%s197] sm:$0x1] %vm196, %v195
    %vm199 = vcmask 1048496
    %s200 = scalar_lea.vmem [#allocation0], 32
    %201 = vst.msk [vmem:[%s200] sm:$0x1] %vm199, %v195
    %s202 = scalar_lea.vmem [#allocation1], 40
    %v203 = vld [vmem:[%s202] sm:$0x1]
    %s204 = scalar_lea.vmem [#allocation1], 40
    %v205 = vld [vmem:[%s204] sm:$0x1]
    %vm206 = vcmask 97280
    %v207 = vsel %vm206, %v205, %v203
    %208 = vrot.lane.b32.xlu0 %v207, 116
    %v209 = vpop.permute.xlu0 %208
    %vm210 = vcmask 146432
    %s211 = scalar_lea.vmem [#allocation0], 72
    %212 = vst.msk [vmem:[%s211] sm:$0x1] %vm210, %v209
    %vm213 = vcmask 1048480
    %s214 = scalar_lea.vmem [#allocation0], 64
    %215 = vst.msk [vmem:[%s214] sm:$0x1] %vm213, %v209
    %s216 = scalar_lea.vmem [#allocation1], 57
    %v217 = vld [vmem:[%s216] sm:$0x1]
    %s218 = scalar_lea.vmem [#allocation1], 57
    %v219 = vld [vmem:[%s218] sm:$0x1]
    %vm220 = vcmask 113664
    %v221 = vsel %vm220, %v219, %v217
    %222 = vrot.lane.b32.xlu0 %v221, 114
    %v223 = vpop.permute.xlu0 %222
    %vm224 = vcmask 130048
    %s225 = scalar_lea.vmem [#allocation0], 104
    %226 = vst.msk [vmem:[%s225] sm:$0x1] %vm224, %v223
    %vm227 = vcmask 1048464
    %s228 = scalar_lea.vmem [#allocation0], 96
    %229 = vst.msk [vmem:[%s228] sm:$0x1] %vm227, %v223
    %s230 = scalar_lea.vmem [#allocation1], 8
    %v231 = vld [vmem:[%s230] sm:$0x1]
    %s232 = scalar_lea.vmem [#allocation1], 8
    %v233 = vld [vmem:[%s232] sm:$0x1]
    %vm234 = vcmask 130048
    %v235 = vsel %vm234, %v233, %v231
    %236 = vrot.lane.b32.xlu0 %v235, 112
    %v237 = vpop.permute.xlu0 %236
    %vm238 = vcmask 113664
    %s239 = scalar_lea.vmem [#allocation0], 16
    %240 = vst.msk [vmem:[%s239] sm:$0x1] %vm238, %v237
    %vm241 = vcmask 1048448
    %s242 = scalar_lea.vmem [#allocation0], 8
    %243 = vst.msk [vmem:[%s242] sm:$0x1] %vm241, %v237
    %s244 = scalar_lea.vmem [#allocation1], 25
    %v245 = vld [vmem:[%s244] sm:$0x1]
    %s246 = scalar_lea.vmem [#allocation1], 25
    %v247 = vld [vmem:[%s246] sm:$0x1]
    %vm248 = vcmask 146432
    %v249 = vsel %vm248, %v247, %v245
    %250 = vrot.lane.b32.xlu0 %v249, 110
    %v251 = vpop.permute.xlu0 %250
    %vm252 = vcmask 97280
    %s253 = scalar_lea.vmem [#allocation0], 48
    %254 = vst.msk [vmem:[%s253] sm:$0x1] %vm252, %v251
    %vm255 = vcmask 1048432
    %s256 = scalar_lea.vmem [#allocation0], 40
    %257 = vst.msk [vmem:[%s256] sm:$0x1] %vm255, %v251
    %s258 = scalar_lea.vmem [#allocation1], 44
    %v259 = vld [vmem:[%s258] sm:$0x1]
    %s260 = scalar_lea.vmem [#allocation1], 44
    %v261 = vld [vmem:[%s260] sm:$0x1]
    %vm262 = vcmask 162816
    %v263 = vsel %vm262, %v261, %v259
    %264 = vrot.lane.b32.xlu0 %v263, 108
    %v265 = vpop.permute.xlu0 %264
    %vm266 = vcmask 80896
    %s267 = scalar_lea.vmem [#allocation0], 80
    %268 = vst.msk [vmem:[%s267] sm:$0x1] %vm266, %v265
    %vm269 = vcmask 1048416
    %s270 = scalar_lea.vmem [#allocation0], 72
    %271 = vst.msk [vmem:[%s270] sm:$0x1] %vm269, %v265
    %s272 = scalar_lea.vmem [#allocation1], 61
    %v273 = vld [vmem:[%s272] sm:$0x1]
    %s274 = scalar_lea.vmem [#allocation1], 61
    %v275 = vld [vmem:[%s274] sm:$0x1]
    %vm276 = vcmask 179200
    %v277 = vsel %vm276, %v275, %v273
    %278 = vrot.lane.b32.xlu0 %v277, 106
    %v279 = vpop.permute.xlu0 %278
    %vm280 = vcmask 64512
    %s281 = scalar_lea.vmem [#allocation0], 112
    %282 = vst.msk [vmem:[%s281] sm:$0x1] %vm280, %v279
    %vm283 = vcmask 1048400
    %s284 = scalar_lea.vmem [#allocation0], 104
    %285 = vst.msk [vmem:[%s284] sm:$0x1] %vm283, %v279
    %s286 = scalar_lea.vmem [#allocation1], 12
    %v287 = vld [vmem:[%s286] sm:$0x1]
    %s288 = scalar_lea.vmem [#allocation1], 12
    %v289 = vld [vmem:[%s288] sm:$0x1]
    %vm290 = vcmask 195584
    %v291 = vsel %vm290, %v289, %v287
    %292 = vrot.lane.b32.xlu0 %v291, 104
    %v293 = vpop.permute.xlu0 %292
    %vm294 = vcmask 48128
    %s295 = scalar_lea.vmem [#allocation0], 24
    %296 = vst.msk [vmem:[%s295] sm:$0x1] %vm294, %v293
    %vm297 = vcmask 1048384
    %s298 = scalar_lea.vmem [#allocation0], 16
    %299 = vst.msk [vmem:[%s298] sm:$0x1] %vm297, %v293
    %s300 = scalar_lea.vmem [#allocation1], 29
    %v301 = vld [vmem:[%s300] sm:$0x1]
    %s302 = scalar_lea.vmem [#allocation1], 29
    %v303 = vld [vmem:[%s302] sm:$0x1]
    %vm304 = vcmask 211968
    %v305 = vsel %vm304, %v303, %v301
    %306 = vrot.lane.b32.xlu0 %v305, 102
    %v307 = vpop.permute.xlu0 %306
    %vm308 = vcmask 31744
    %s309 = scalar_lea.vmem [#allocation0], 56
    %310 = vst.msk [vmem:[%s309] sm:$0x1] %vm308, %v307
    %vm311 = vcmask 1048368
    %s312 = scalar_lea.vmem [#allocation0], 48
    %313 = vst.msk [vmem:[%s312] sm:$0x1] %vm311, %v307
    %s314 = scalar_lea.vmem [#allocation1], 48
    %v315 = vld [vmem:[%s314] sm:$0x1]
    %s316 = scalar_lea.vmem [#allocation1], 48
    %v317 = vld [vmem:[%s316] sm:$0x1]
    %vm318 = vcmask 228352
    %v319 = vsel %vm318, %v317, %v315
    %320 = vrot.lane.b32.xlu0 %v319, 100
    %v321 = vpop.permute.xlu0 %320
    %vm322 = vcmask 15360
    %s323 = scalar_lea.vmem [#allocation0], 88
    %324 = vst.msk [vmem:[%s323] sm:$0x1] %vm322, %v321
    %vm325 = vcmask 1048352
    %s326 = scalar_lea.vmem [#allocation0], 80
    %327 = vst.msk [vmem:[%s326] sm:$0x1] %vm325, %v321
    %s328 = scalar_lea.vmem [#allocation1], 16
    %v329 = vld [vmem:[%s328] sm:$0x1]
    %330 = vrot.lane.b32.xlu0 %v329, 96
    %v331 = vpop.permute.xlu0 %330
    %vm332 = vcmask 1031936
    %s333 = scalar_lea.vmem [#allocation0], 24
    %334 = vst.msk [vmem:[%s333] sm:$0x1] %vm332, %v331
    %s335 = scalar_lea.vmem [#allocation1], 35
    %v336 = vld [vmem:[%s335] sm:$0x1]
    %337 = vrot.lane.b32.xlu0 %v336, 94
    %v338 = vpop.permute.xlu0 %337
    %vm339 = vcmask 1015536
    %s340 = scalar_lea.vmem [#allocation0], 56
    %341 = vst.msk [vmem:[%s340] sm:$0x1] %vm339, %v338
    %s342 = scalar_lea.vmem [#allocation1], 52
    %v343 = vld [vmem:[%s342] sm:$0x1]
    %344 = vrot.lane.b32.xlu0 %v343, 92
    %v345 = vpop.permute.xlu0 %344
    %vm346 = vcmask 999136
    %s347 = scalar_lea.vmem [#allocation0], 88
    %348 = vst.msk [vmem:[%s347] sm:$0x1] %vm346, %v345
    %s349 = scalar_lea.vmem [#allocation1], 3
    %v350 = vld [vmem:[%s349] sm:$0x1]
    %351 = vrot.lane.b32.xlu0 %v350, 90
    %v352 = vpop.permute.xlu0 %351
    %vm353 = vcmask 982736
    %354 = vst.msk [vmem:[#allocation0] sm:$0x1] %vm353, %v352
    %s355 = scalar_lea.vmem [#allocation1], 20
    %v356 = vld [vmem:[%s355] sm:$0x1]
    %357 = vrot.lane.b32.xlu0 %v356, 88
    %v358 = vpop.permute.xlu0 %357
    %vm359 = vcmask 966336
    %s360 = scalar_lea.vmem [#allocation0], 32
    %361 = vst.msk [vmem:[%s360] sm:$0x1] %vm359, %v358
    %s362 = scalar_lea.vmem [#allocation1], 39
    %v363 = vld [vmem:[%s362] sm:$0x1]
    %364 = vrot.lane.b32.xlu0 %v363, 86
    %v365 = vpop.permute.xlu0 %364
    %vm366 = vcmask 949936
    %s367 = scalar_lea.vmem [#allocation0], 64
    %368 = vst.msk [vmem:[%s367] sm:$0x1] %vm366, %v365
    %s369 = scalar_lea.vmem [#allocation1], 56
    %v370 = vld [vmem:[%s369] sm:$0x1]
    %371 = vrot.lane.b32.xlu0 %v370, 84
    %v372 = vpop.permute.xlu0 %371
    %vm373 = vcmask 933536
    %s374 = scalar_lea.vmem [#allocation0], 96
    %375 = vst.msk [vmem:[%s374] sm:$0x1] %vm373, %v372
    %s376 = scalar_lea.vmem [#allocation1], 7
    %v377 = vld [vmem:[%s376] sm:$0x1]
    %378 = vrot.lane.b32.xlu0 %v377, 82
    %v379 = vpop.permute.xlu0 %378
    %vm380 = vcmask 917136
    %s381 = scalar_lea.vmem [#allocation0], 8
    %382 = vst.msk [vmem:[%s381] sm:$0x1] %vm380, %v379
    %s383 = scalar_lea.vmem [#allocation1], 24
    %v384 = vld [vmem:[%s383] sm:$0x1]
    %385 = vrot.lane.b32.xlu0 %v384, 80
    %v386 = vpop.permute.xlu0 %385
    %vm387 = vcmask 900736
    %s388 = scalar_lea.vmem [#allocation0], 40
    %389 = vst.msk [vmem:[%s388] sm:$0x1] %vm387, %v386
    %s390 = scalar_lea.vmem [#allocation1], 43
    %v391 = vld [vmem:[%s390] sm:$0x1]
    %392 = vrot.lane.b32.xlu0 %v391, 78
    %v393 = vpop.permute.xlu0 %392
    %vm394 = vcmask 884336
    %s395 = scalar_lea.vmem [#allocation0], 72
    %396 = vst.msk [vmem:[%s395] sm:$0x1] %vm394, %v393
    %s397 = scalar_lea.vmem [#allocation1], 60
    %v398 = vld [vmem:[%s397] sm:$0x1]
    %399 = vrot.lane.b32.xlu0 %v398, 76
    %v400 = vpop.permute.xlu0 %399
    %vm401 = vcmask 867936
    %s402 = scalar_lea.vmem [#allocation0], 104
    %403 = vst.msk [vmem:[%s402] sm:$0x1] %vm401, %v400
    %s404 = scalar_lea.vmem [#allocation1], 11
    %v405 = vld [vmem:[%s404] sm:$0x1]
    %406 = vrot.lane.b32.xlu0 %v405, 74
    %v407 = vpop.permute.xlu0 %406
    %vm408 = vcmask 851536
    %s409 = scalar_lea.vmem [#allocation0], 16
    %410 = vst.msk [vmem:[%s409] sm:$0x1] %vm408, %v407
    %s411 = scalar_lea.vmem [#allocation1], 28
    %v412 = vld [vmem:[%s411] sm:$0x1]
    %413 = vrot.lane.b32.xlu0 %v412, 72
    %v414 = vpop.permute.xlu0 %413
    %vm415 = vcmask 835136
    %s416 = scalar_lea.vmem [#allocation0], 48
    %417 = vst.msk [vmem:[%s416] sm:$0x1] %vm415, %v414
    %s418 = scalar_lea.vmem [#allocation1], 47
    %v419 = vld [vmem:[%s418] sm:$0x1]
    %420 = vrot.lane.b32.xlu0 %v419, 70
    %v421 = vpop.permute.xlu0 %420
    %vm422 = vcmask 818736
    %s423 = scalar_lea.vmem [#allocation0], 80
    %424 = vst.msk [vmem:[%s423] sm:$0x1] %vm422, %v421
    %s425 = scalar_lea.vmem [#allocation1], 15
    %v426 = vld [vmem:[%s425] sm:$0x1]
    %427 = vrot.lane.b32.xlu0 %v426, 66
    %v428 = vpop.permute.xlu0 %427
    %vm429 = vcmask 785936
    %s430 = scalar_lea.vmem [#allocation0], 24
    %431 = vst.msk [vmem:[%s430] sm:$0x1] %vm429, %v428
    %s432 = scalar_lea.vmem [#allocation1], 34
    %v433 = vld [vmem:[%s432] sm:$0x1]
    %434 = vrot.lane.b32.xlu0 %v433, 64
    %v435 = vpop.permute.xlu0 %434
    %vm436 = vcmask 769536
    %s437 = scalar_lea.vmem [#allocation0], 56
    %438 = vst.msk [vmem:[%s437] sm:$0x1] %vm436, %v435
    %s439 = scalar_lea.vmem [#allocation1], 51
    %v440 = vld [vmem:[%s439] sm:$0x1]
    %441 = vrot.lane.b32.xlu0 %v440, 62
    %v442 = vpop.permute.xlu0 %441
    %vm443 = vcmask 753136
    %s444 = scalar_lea.vmem [#allocation0], 88
    %445 = vst.msk [vmem:[%s444] sm:$0x1] %vm443, %v442
    %s446 = scalar_lea.vmem [#allocation1], 2
    %v447 = vld [vmem:[%s446] sm:$0x1]
    %448 = vrot.lane.b32.xlu0 %v447, 60
    %v449 = vpop.permute.xlu0 %448
    %vm450 = vcmask 736736
    %451 = vst.msk [vmem:[#allocation0] sm:$0x1] %vm450, %v449
    %s452 = scalar_lea.vmem [#allocation1], 19
    %v453 = vld [vmem:[%s452] sm:$0x1]
    %454 = vrot.lane.b32.xlu0 %v453, 58
    %v455 = vpop.permute.xlu0 %454
    %vm456 = vcmask 720336
    %s457 = scalar_lea.vmem [#allocation0], 32
    %458 = vst.msk [vmem:[%s457] sm:$0x1] %vm456, %v455
    %s459 = scalar_lea.vmem [#allocation1], 38
    %v460 = vld [vmem:[%s459] sm:$0x1]
    %461 = vrot.lane.b32.xlu0 %v460, 56
    %v462 = vpop.permute.xlu0 %461
    %vm463 = vcmask 703936
    %s464 = scalar_lea.vmem [#allocation0], 64
    %465 = vst.msk [vmem:[%s464] sm:$0x1] %vm463, %v462
    %s466 = scalar_lea.vmem [#allocation1], 55
    %v467 = vld [vmem:[%s466] sm:$0x1]
    %468 = vrot.lane.b32.xlu0 %v467, 54
    %v469 = vpop.permute.xlu0 %468
    %vm470 = vcmask 687536
    %s471 = scalar_lea.vmem [#allocation0], 96
    %472 = vst.msk [vmem:[%s471] sm:$0x1] %vm470, %v469
    %s473 = scalar_lea.vmem [#allocation1], 6
    %v474 = vld [vmem:[%s473] sm:$0x1]
    %475 = vrot.lane.b32.xlu0 %v474, 52
    %v476 = vpop.permute.xlu0 %475
    %vm477 = vcmask 671136
    %s478 = scalar_lea.vmem [#allocation0], 8
    %479 = vst.msk [vmem:[%s478] sm:$0x1] %vm477, %v476
    %s480 = scalar_lea.vmem [#allocation1], 23
    %v481 = vld [vmem:[%s480] sm:$0x1]
    %482 = vrot.lane.b32.xlu0 %v481, 50
    %v483 = vpop.permute.xlu0 %482
    %vm484 = vcmask 654736
    %s485 = scalar_lea.vmem [#allocation0], 40
    %486 = vst.msk [vmem:[%s485] sm:$0x1] %vm484, %v483
    %s487 = scalar_lea.vmem [#allocation1], 42
    %v488 = vld [vmem:[%s487] sm:$0x1]
    %489 = vrot.lane.b32.xlu0 %v488, 48
    %v490 = vpop.permute.xlu0 %489
    %vm491 = vcmask 638336
    %s492 = scalar_lea.vmem [#allocation0], 72
    %493 = vst.msk [vmem:[%s492] sm:$0x1] %vm491, %v490
    %s494 = scalar_lea.vmem [#allocation1], 59
    %v495 = vld [vmem:[%s494] sm:$0x1]
    %496 = vrot.lane.b32.xlu0 %v495, 46
    %v497 = vpop.permute.xlu0 %496
    %vm498 = vcmask 621936
    %s499 = scalar_lea.vmem [#allocation0], 104
    %500 = vst.msk [vmem:[%s499] sm:$0x1] %vm498, %v497
    %s501 = scalar_lea.vmem [#allocation1], 10
    %v502 = vld [vmem:[%s501] sm:$0x1]
    %503 = vrot.lane.b32.xlu0 %v502, 44
    %v504 = vpop.permute.xlu0 %503
    %vm505 = vcmask 605536
    %s506 = scalar_lea.vmem [#allocation0], 16
    %507 = vst.msk [vmem:[%s506] sm:$0x1] %vm505, %v504
    %s508 = scalar_lea.vmem [#allocation1], 27
    %v509 = vld [vmem:[%s508] sm:$0x1]
    %510 = vrot.lane.b32.xlu0 %v509, 42
    %v511 = vpop.permute.xlu0 %510
    %vm512 = vcmask 589136
    %s513 = scalar_lea.vmem [#allocation0], 48
    %514 = vst.msk [vmem:[%s513] sm:$0x1] %vm512, %v511
    %s515 = scalar_lea.vmem [#allocation1], 46
    %v516 = vld [vmem:[%s515] sm:$0x1]
    %517 = vrot.lane.b32.xlu0 %v516, 40
    %v518 = vpop.permute.xlu0 %517
    %vm519 = vcmask 572736
    %s520 = scalar_lea.vmem [#allocation0], 80
    %521 = vst.msk [vmem:[%s520] sm:$0x1] %vm519, %v518
    %s522 = scalar_lea.vmem [#allocation1], 14
    %v523 = vld [vmem:[%s522] sm:$0x1]
    %524 = vrot.lane.b32.xlu0 %v523, 36
    %v525 = vpop.permute.xlu0 %524
    %vm526 = vcmask 539936
    %s527 = scalar_lea.vmem [#allocation0], 24
    %528 = vst.msk [vmem:[%s527] sm:$0x1] %vm526, %v525
    %s529 = scalar_lea.vmem [#allocation1], 33
    %v530 = vld [vmem:[%s529] sm:$0x1]
    %531 = vrot.lane.b32.xlu0 %v530, 34
    %v532 = vpop.permute.xlu0 %531
    %vm533 = vcmask 523536
    %s534 = scalar_lea.vmem [#allocation0], 56
    %535 = vst.msk [vmem:[%s534] sm:$0x1] %vm533, %v532
    %s536 = scalar_lea.vmem [#allocation1], 50
    %v537 = vld [vmem:[%s536] sm:$0x1]
    %538 = vrot.lane.b32.xlu0 %v537, 32
    %v539 = vpop.permute.xlu0 %538
    %vm540 = vcmask 507136
    %s541 = scalar_lea.vmem [#allocation0], 88
    %542 = vst.msk [vmem:[%s541] sm:$0x1] %vm540, %v539
    %s543 = scalar_lea.vmem [#allocation1], 1
    %v544 = vld [vmem:[%s543] sm:$0x1]
    %545 = vrot.lane.b32.xlu0 %v544, 30
    %v546 = vpop.permute.xlu0 %545
    %vm547 = vcmask 490736
    %548 = vst.msk [vmem:[#allocation0] sm:$0x1] %vm547, %v546
    %s549 = scalar_lea.vmem [#allocation1], 18
    %v550 = vld [vmem:[%s549] sm:$0x1]
    %551 = vrot.lane.b32.xlu0 %v550, 28
    %v552 = vpop.permute.xlu0 %551
    %vm553 = vcmask 474336
    %s554 = scalar_lea.vmem [#allocation0], 32
    %555 = vst.msk [vmem:[%s554] sm:$0x1] %vm553, %v552
    %s556 = scalar_lea.vmem [#allocation1], 37
    %v557 = vld [vmem:[%s556] sm:$0x1]
    %558 = vrot.lane.b32.xlu0 %v557, 26
    %v559 = vpop.permute.xlu0 %558
    %vm560 = vcmask 457936
    %s561 = scalar_lea.vmem [#allocation0], 64
    %562 = vst.msk [vmem:[%s561] sm:$0x1] %vm560, %v559
    %s563 = scalar_lea.vmem [#allocation1], 54
    %v564 = vld [vmem:[%s563] sm:$0x1]
    %565 = vrot.lane.b32.xlu0 %v564, 24
    %v566 = vpop.permute.xlu0 %565
    %vm567 = vcmask 441536
    %s568 = scalar_lea.vmem [#allocation0], 96
    %569 = vst.msk [vmem:[%s568] sm:$0x1] %vm567, %v566
    %s570 = scalar_lea.vmem [#allocation1], 5
    %v571 = vld [vmem:[%s570] sm:$0x1]
    %572 = vrot.lane.b32.xlu0 %v571, 22
    %v573 = vpop.permute.xlu0 %572
    %vm574 = vcmask 425136
    %s575 = scalar_lea.vmem [#allocation0], 8
    %576 = vst.msk [vmem:[%s575] sm:$0x1] %vm574, %v573
    %s577 = scalar_lea.vmem [#allocation1], 22
    %v578 = vld [vmem:[%s577] sm:$0x1]
    %579 = vrot.lane.b32.xlu0 %v578, 20
    %v580 = vpop.permute.xlu0 %579
    %vm581 = vcmask 408736
    %s582 = scalar_lea.vmem [#allocation0], 40
    %583 = vst.msk [vmem:[%s582] sm:$0x1] %vm581, %v580
    %s584 = scalar_lea.vmem [#allocation1], 41
    %v585 = vld [vmem:[%s584] sm:$0x1]
    %586 = vrot.lane.b32.xlu0 %v585, 18
    %v587 = vpop.permute.xlu0 %586
    %vm588 = vcmask 392336
    %s589 = scalar_lea.vmem [#allocation0], 72
    %590 = vst.msk [vmem:[%s589] sm:$0x1] %vm588, %v587
    %s591 = scalar_lea.vmem [#allocation1], 58
    %v592 = vld [vmem:[%s591] sm:$0x1]
    %593 = vrot.lane.b32.xlu0 %v592, 16
    %v594 = vpop.permute.xlu0 %593
    %vm595 = vcmask 375936
    %s596 = scalar_lea.vmem [#allocation0], 104
    %597 = vst.msk [vmem:[%s596] sm:$0x1] %vm595, %v594
    %s598 = scalar_lea.vmem [#allocation1], 9
    %v599 = vld [vmem:[%s598] sm:$0x1]
    %600 = vrot.lane.b32.xlu0 %v599, 14
    %v601 = vpop.permute.xlu0 %600
    %vm602 = vcmask 359536
    %s603 = scalar_lea.vmem [#allocation0], 16
    %604 = vst.msk [vmem:[%s603] sm:$0x1] %vm602, %v601
    %s605 = scalar_lea.vmem [#allocation1], 26
    %v606 = vld [vmem:[%s605] sm:$0x1]
    %607 = vrot.lane.b32.xlu0 %v606, 12
    %v608 = vpop.permute.xlu0 %607
    %vm609 = vcmask 343136
    %s610 = scalar_lea.vmem [#allocation0], 48
    %611 = vst.msk [vmem:[%s610] sm:$0x1] %vm609, %v608
    %s612 = scalar_lea.vmem [#allocation1], 45
    %v613 = vld [vmem:[%s612] sm:$0x1]
    %614 = vrot.lane.b32.xlu0 %v613, 10
    %v615 = vpop.permute.xlu0 %614
    %vm616 = vcmask 326736
    %s617 = scalar_lea.vmem [#allocation0], 80
    %618 = vst.msk [vmem:[%s617] sm:$0x1] %vm616, %v615
    %s619 = scalar_lea.vmem [#allocation1], 13
    %v620 = vld [vmem:[%s619] sm:$0x1]
    %621 = vrot.lane.b32.xlu0 %v620, 6
    %v622 = vpop.permute.xlu0 %621
    %vm623 = vcmask 293936
    %s624 = scalar_lea.vmem [#allocation0], 24
    %625 = vst.msk [vmem:[%s624] sm:$0x1] %vm623, %v622
    %s626 = scalar_lea.vmem [#allocation1], 32
    %v627 = vld [vmem:[%s626] sm:$0x1]
    %628 = vrot.lane.b32.xlu0 %v627, 4
    %v629 = vpop.permute.xlu0 %628
    %vm630 = vcmask 277536
    %s631 = scalar_lea.vmem [#allocation0], 56
    %632 = vst.msk [vmem:[%s631] sm:$0x1] %vm630, %v629
    %s633 = scalar_lea.vmem [#allocation1], 49
    %v634 = vld [vmem:[%s633] sm:$0x1]
    %635 = vrot.lane.b32.xlu0 %v634, 2
    %v636 = vpop.permute.xlu0 %635
    %vm637 = vcmask 261136
    %s638 = scalar_lea.vmem [#allocation0], 88
    %639 = vst.msk [vmem:[%s638] sm:$0x1] %vm637, %v636
    %s641 = smul.u32 1, 2
    %s642 = sshll.u32 1, %s641
    %s643 = ssub.s32 %s642, 1
    %s644 = sshrl.u32 %s641, 1
    %v645 = vld [vmem:[#allocation0] sm:%s643]
    %v646 = vpack.c.bf16 0.0, %v645
    %s647 = sshll.u32 1, %s644
    %s648 = ssub.s32 %s647, 1
    %649 = vst [vmem:[%s1] sm:%s648] %v646
    %s650 = scalar_lea.vmem [#allocation0], 8
    %v651 = vld [vmem:[%s650] sm:%s643]
    %v652 = vpack.c.bf16 0.0, %v651
    %s653 = sshll.u32 1, %s644
    %s654 = ssub.s32 %s653, 1
    %s655 = scalar_lea.vmem %s1, 1
    %656 = vst [vmem:[%s655] sm:%s654] %v652
    %s657 = scalar_lea.vmem [#allocation0], 16
    %v658 = vld [vmem:[%s657] sm:%s643]
    %v659 = vpack.c.bf16 0.0, %v658
    %s660 = sshll.u32 1, %s644
    %s661 = ssub.s32 %s660, 1
    %s662 = smul.addr 1, 2
    %s663 = scalar_lea.vmem %s1, %s662
    %664 = vst [vmem:[%s663] sm:%s661] %v659
    %s665 = scalar_lea.vmem [#allocation0], 24
    %v666 = vld [vmem:[%s665] sm:%s643]
    %v667 = vpack.c.bf16 0.0, %v666
    %s668 = sshll.u32 1, %s644
    %s669 = ssub.s32 %s668, 1
    %s670 = smul.addr 1, 3
    %s671 = scalar_lea.vmem %s1, %s670
    %672 = vst [vmem:[%s671] sm:%s669] %v667
    %s673 = scalar_lea.vmem [#allocation0], 32
    %v674 = vld [vmem:[%s673] sm:%s643]
    %v675 = vpack.c.bf16 0.0, %v674
    %s676 = sshll.u32 1, %s644
    %s677 = ssub.s32 %s676, 1
    %s678 = smul.addr 1, 4
    %s679 = scalar_lea.vmem %s1, %s678
    %680 = vst [vmem:[%s679] sm:%s677] %v675
    %s681 = scalar_lea.vmem [#allocation0], 40
    %v682 = vld [vmem:[%s681] sm:%s643]
    %v683 = vpack.c.bf16 0.0, %v682
    %s684 = sshll.u32 1, %s644
    %s685 = ssub.s32 %s684, 1
    %s686 = smul.addr 1, 5
    %s687 = scalar_lea.vmem %s1, %s686
    %688 = vst [vmem:[%s687] sm:%s685] %v683
    %s689 = scalar_lea.vmem [#allocation0], 48
    %v690 = vld [vmem:[%s689] sm:%s643]
    %v691 = vpack.c.bf16 0.0, %v690
    %s692 = sshll.u32 1, %s644
    %s693 = ssub.s32 %s692, 1
    %s694 = smul.addr 1, 6
    %s695 = scalar_lea.vmem %s1, %s694
    %696 = vst [vmem:[%s695] sm:%s693] %v691
    %s697 = scalar_lea.vmem [#allocation0], 56
    %v698 = vld [vmem:[%s697] sm:%s643]
    %v699 = vpack.c.bf16 0.0, %v698
    %s700 = sshll.u32 1, %s644
    %s701 = ssub.s32 %s700, 1
    %s702 = smul.addr 1, 7
    %s703 = scalar_lea.vmem %s1, %s702
    %704 = vst [vmem:[%s703] sm:%s701] %v699
    %s705 = scalar_lea.vmem [#allocation0], 64
    %v706 = vld [vmem:[%s705] sm:%s643]
    %v707 = vpack.c.bf16 0.0, %v706
    %s708 = sshll.u32 1, %s644
    %s709 = ssub.s32 %s708, 1
    %s710 = smul.addr 1, 8
    %s711 = scalar_lea.vmem %s1, %s710
    %712 = vst [vmem:[%s711] sm:%s709] %v707
    %s713 = scalar_lea.vmem [#allocation0], 72
    %v714 = vld [vmem:[%s713] sm:%s643]
    %v715 = vpack.c.bf16 0.0, %v714
    %s716 = sshll.u32 1, %s644
    %s717 = ssub.s32 %s716, 1
    %s718 = smul.addr 1, 9
    %s719 = scalar_lea.vmem %s1, %s718
    %720 = vst [vmem:[%s719] sm:%s717] %v715
    %s721 = scalar_lea.vmem [#allocation0], 80
    %v722 = vld [vmem:[%s721] sm:%s643]
    %v723 = vpack.c.bf16 0.0, %v722
    %s724 = sshll.u32 1, %s644
    %s725 = ssub.s32 %s724, 1
    %s726 = smul.addr 1, 10
    %s727 = scalar_lea.vmem %s1, %s726
    %728 = vst [vmem:[%s727] sm:%s725] %v723
    %s729 = scalar_lea.vmem [#allocation0], 88
    %v730 = vld [vmem:[%s729] sm:%s643]
    %v731 = vpack.c.bf16 0.0, %v730
    %s732 = sshll.u32 1, %s644
    %s733 = ssub.s32 %s732, 1
    %s734 = smul.addr 1, 11
    %s735 = scalar_lea.vmem %s1, %s734
    %736 = vst [vmem:[%s735] sm:%s733] %v731
    %s737 = scalar_lea.vmem [#allocation0], 96
    %v738 = vld [vmem:[%s737] sm:%s643]
    %v739 = vpack.c.bf16 0.0, %v738
    %s740 = sshll.u32 1, %s644
    %s741 = ssub.s32 %s740, 1
    %s742 = smul.addr 1, 12
    %s743 = scalar_lea.vmem %s1, %s742
    %744 = vst [vmem:[%s743] sm:%s741] %v739
    %s745 = scalar_lea.vmem [#allocation0], 104
    %v746 = vld [vmem:[%s745] sm:%s643]
    %v747 = vpack.c.bf16 0.0, %v746
    %s748 = sshll.u32 1, %s644
    %s749 = ssub.s32 %s748, 1
    %s750 = smul.addr 1, 13
    %s751 = scalar_lea.vmem %s1, %s750
    %752 = vst [vmem:[%s751] sm:%s749] %v747
    %s753 = scalar_lea.vmem [#allocation0], 112
    %v754 = vld [vmem:[%s753] sm:%s643]
    %v755 = vpack.c.bf16 0.0, %v754
    %s756 = sshll.u32 1, %s644
    %s757 = ssub.s32 %s756, 1
    %s758 = smul.addr 1, 14
    %s759 = scalar_lea.vmem %s1, %s758
    %760 = vst [vmem:[%s759] sm:%s757] %v755

// kernel: squeeze.151
$region0: #{squeeze.151}
  %s0 = inlined_call_operand.vmem [shape: bf16[1,2,28,28], index: 0, kind: input, shape index: {}]
  %s1 = inlined_call_operand.vmem [shape: bf16[1,1568], index: 1, kind: output, shape index: {}]
  $region1: #{squeeze.151} parent=0
    #allocation0 [shape = 'u8[53248]{0}', space=vmem, size = 0xd000, scoped, tag = 'scoped mem for output reshape']
    #allocation1 [shape = 'u8[32768]{0}', space=vmem, size = 0x8000, scoped, tag = 'scoped mem for input reshape']
    %s3 = smul.u32 4, 2
    %s4 = sshll.u32 1, %s3
    %s5 = ssub.s32 %s4, 1
    %s6 = smul.addr 4, 7
    %s7 = scalar_lea.vmem %s0, %s6
    %s8 = sshrl.u32 %s5, 1
    %s9 = sor.u32 %s5, %s8
    %s10 = sand.u32 %s9, 85
    %s11 = sshrl.u32 %s10, 1
    %s12 = sor.u32 %s10, %s11
    %s13 = sand.u32 51, %s12
    %s14 = sshrl.u32 %s13, 2
    %s15 = sor.u32 %s13, %s14
    %s16 = sand.u32 15, %s15
    %v17 = vld [vmem:[%s7] sm:%s16]
    %v18 = vunpack.c.l.bf16 %v17
    %v19 = vunpack.c.h.bf16 %v17
    %s20 = scalar_lea.vmem [#allocation1], 56
    %21 = vst [vmem:[%s20] sm:%s5] %v18
    %s22 = smul.addr 4, 6
    %s23 = scalar_lea.vmem %s0, %s22
    %s24 = sshrl.u32 %s5, 1
    %s25 = sor.u32 %s5, %s24
    %s26 = sand.u32 %s25, 85
    %s27 = sshrl.u32 %s26, 1
    %s28 = sor.u32 %s26, %s27
    %s29 = sand.u32 51, %s28
    %s30 = sshrl.u32 %s29, 2
    %s31 = sor.u32 %s29, %s30
    %s32 = sand.u32 15, %s31
    %v33 = vld [vmem:[%s23] sm:%s32]
    %v34 = vunpack.c.l.bf16 %v33
    %v35 = vunpack.c.h.bf16 %v33
    %s36 = scalar_lea.vmem [#allocation1], 48
    %37 = vst [vmem:[%s36] sm:%s5] %v34
    %s38 = smul.addr 4, 5
    %s39 = scalar_lea.vmem %s0, %s38
    %s40 = sshrl.u32 %s5, 1
    %s41 = sor.u32 %s5, %s40
    %s42 = sand.u32 %s41, 85
    %s43 = sshrl.u32 %s42, 1
    %s44 = sor.u32 %s42, %s43
    %s45 = sand.u32 51, %s44
    %s46 = sshrl.u32 %s45, 2
    %s47 = sor.u32 %s45, %s46
    %s48 = sand.u32 15, %s47
    %v49 = vld [vmem:[%s39] sm:%s48]
    %v50 = vunpack.c.l.bf16 %v49
    %v51 = vunpack.c.h.bf16 %v49
    %s52 = scalar_lea.vmem [#allocation1], 40
    %53 = vst [vmem:[%s52] sm:%s5] %v50
    %s54 = smul.addr 4, 4
    %s55 = scalar_lea.vmem %s0, %s54
    %s56 = sshrl.u32 %s5, 1
    %s57 = sor.u32 %s5, %s56
    %s58 = sand.u32 %s57, 85
    %s59 = sshrl.u32 %s58, 1
    %s60 = sor.u32 %s58, %s59
    %s61 = sand.u32 51, %s60
    %s62 = sshrl.u32 %s61, 2
    %s63 = sor.u32 %s61, %s62
    %s64 = sand.u32 15, %s63
    %v65 = vld [vmem:[%s55] sm:%s64]
    %v66 = vunpack.c.l.bf16 %v65
    %v67 = vunpack.c.h.bf16 %v65
    %s68 = scalar_lea.vmem [#allocation1], 32
    %69 = vst [vmem:[%s68] sm:%s5] %v66
    %s70 = smul.addr 4, 3
    %s71 = scalar_lea.vmem %s0, %s70
    %s72 = sshrl.u32 %s5, 1
    %s73 = sor.u32 %s5, %s72
    %s74 = sand.u32 %s73, 85
    %s75 = sshrl.u32 %s74, 1
    %s76 = sor.u32 %s74, %s75
    %s77 = sand.u32 51, %s76
    %s78 = sshrl.u32 %s77, 2
    %s79 = sor.u32 %s77, %s78
    %s80 = sand.u32 15, %s79
    %v81 = vld [vmem:[%s71] sm:%s80]
    %v82 = vunpack.c.l.bf16 %v81
    %v83 = vunpack.c.h.bf16 %v81
    %s84 = scalar_lea.vmem [#allocation1], 24
    %85 = vst [vmem:[%s84] sm:%s5] %v82
    %s86 = smul.addr 4, 2
    %s87 = scalar_lea.vmem %s0, %s86
    %s88 = sshrl.u32 %s5, 1
    %s89 = sor.u32 %s5, %s88
    %s90 = sand.u32 %s89, 85
    %s91 = sshrl.u32 %s90, 1
    %s92 = sor.u32 %s90, %s91
    %s93 = sand.u32 51, %s92
    %s94 = sshrl.u32 %s93, 2
    %s95 = sor.u32 %s93, %s94
    %s96 = sand.u32 15, %s95
    %v97 = vld [vmem:[%s87] sm:%s96]
    %v98 = vunpack.c.l.bf16 %v97
    %v99 = vunpack.c.h.bf16 %v97
    %s100 = scalar_lea.vmem [#allocation1], 16
    %101 = vst [vmem:[%s100] sm:%s5] %v98
    %s102 = scalar_lea.vmem %s0, 4
    %s103 = sshrl.u32 %s5, 1
    %s104 = sor.u32 %s5, %s103
    %s105 = sand.u32 %s104, 85
    %s106 = sshrl.u32 %s105, 1
    %s107 = sor.u32 %s105, %s106
    %s108 = sand.u32 51, %s107
    %s109 = sshrl.u32 %s108, 2
    %s110 = sor.u32 %s108, %s109
    %s111 = sand.u32 15, %s110
    %v112 = vld [vmem:[%s102] sm:%s111]
    %v113 = vunpack.c.l.bf16 %v112
    %v114 = vunpack.c.h.bf16 %v112
    %s115 = scalar_lea.vmem [#allocation1], 8
    %116 = vst [vmem:[%s115] sm:%s5] %v113
    %s117 = sshrl.u32 %s5, 1
    %s118 = sor.u32 %s5, %s117
    %s119 = sand.u32 %s118, 85
    %s120 = sshrl.u32 %s119, 1
    %s121 = sor.u32 %s119, %s120
    %s122 = sand.u32 51, %s121
    %s123 = sshrl.u32 %s122, 2
    %s124 = sor.u32 %s122, %s123
    %s125 = sand.u32 15, %s124
    %v126 = vld [vmem:[%s0] sm:%s125]
    %v127 = vunpack.c.l.bf16 %v126
    %v128 = vunpack.c.h.bf16 %v126
    %129 = vst [vmem:[#allocation1] sm:%s5] %v127
    %s130 = smov 3
    %v131 = vld [vmem:[#allocation1] ss:$36 sm:%s130]
    %vm132 = vcmask 228352
    %133 = vst.msk [vmem:[#allocation0] ss:$56 sm:$0x3] %vm132, %v131
    %s134 = scalar_lea.vmem [#allocation1], 45
    %s135 = smov 3
    %v136 = vld [vmem:[%s134] ss:$-36 sm:%s135]
    %s137 = scalar_lea.vmem [#allocation1], 45
    %s138 = smov 3
    %v139 = vld [vmem:[%s137] ss:$-36 sm:%s138]
    %vm140 = vcmask 31744
    %v141 = vsel %vm140, %v139, %v136
    %142 = vrot.lane.b32.xlu0 %v141, 124
    %v143 = vpop.permute.xlu0 %142
    %vm144 = vcmask 195584
    %s145 = scalar_lea.vmem [#allocation0], 72
    %146 = vst.msk [vmem:[%s145] ss:$-56 sm:$0x3] %vm144, %v143
    %vm147 = vcmask 1048544
    %s148 = scalar_lea.vmem [#allocation0], 64
    %149 = vst.msk [vmem:[%s148] ss:$-56 sm:$0x3] %vm147, %v143
    %s150 = scalar_lea.vmem [#allocation1], 18
    %s151 = smov 3
    %v152 = vld [vmem:[%s150] ss:$36 sm:%s151]
    %s153 = scalar_lea.vmem [#allocation1], 54
    %s154 = smov 3
    %v155 = vld [vmem:[%s153] ss:$-36 sm:%s154]
    %vm156 = vcmask 64512
    %v157 = vsel %vm156, %v155, %v152
    %158 = vrot.lane.b32.xlu0 %v157, 120
    %v159 = vpop.permute.xlu0 %158
    %vm160 = vcmask 162816
    %s161 = scalar_lea.vmem [#allocation0], 32
    %162 = vst.msk [vmem:[%s161] ss:$56 sm:$0x3] %vm160, %v159
    %vm163 = vcmask 1048512
    %s164 = scalar_lea.vmem [#allocation0], 80
    %165 = vst.msk [vmem:[%s164] ss:$-56 sm:$0x3] %vm163, %v159
    %s166 = scalar_lea.vmem [#allocation1], 27
    %v167 = vld [vmem:[%s166] sm:$0x1]
    %s168 = scalar_lea.vmem [#allocation1], 27
    %v169 = vld [vmem:[%s168] sm:$0x1]
    %vm170 = vcmask 97280
    %v171 = vsel %vm170, %v169, %v167
    %172 = vrot.lane.b32.xlu0 %v171, 116
    %v173 = vpop.permute.xlu0 %172
    %vm174 = vcmask 130048
    %s175 = scalar_lea.vmem [#allocation0], 48
    %176 = vst.msk [vmem:[%s175] sm:$0x1] %vm174, %v173
    %vm177 = vcmask 1048480
    %s178 = scalar_lea.vmem [#allocation0], 40
    %179 = vst.msk [vmem:[%s178] sm:$0x1] %vm177, %v173
    %s180 = scalar_lea.vmem [#allocation1], 40
    %s181 = smov 3
    %v182 = vld [vmem:[%s180] ss:$-36 sm:%s181]
    %s183 = scalar_lea.vmem [#allocation1], 4
    %s184 = smov 3
    %v185 = vld [vmem:[%s183] ss:$36 sm:%s184]
    %vm186 = vcmask 130048
    %v187 = vsel %vm186, %v185, %v182
    %188 = vrot.lane.b32.xlu0 %v187, 112
    %v189 = vpop.permute.xlu0 %188
    %vm190 = vcmask 97280
    %s191 = scalar_lea.vmem [#allocation0], 64
    %192 = vst.msk [vmem:[%s191] ss:$-56 sm:$0x3] %vm190, %v189
    %vm193 = vcmask 1048448
    %194 = vst.msk [vmem:[#allocation0] ss:$56 sm:$0x3] %vm193, %v189
    %s195 = scalar_lea.vmem [#allocation1], 49
    %s196 = smov 3
    %v197 = vld [vmem:[%s195] ss:$-36 sm:%s196]
    %s198 = scalar_lea.vmem [#allocation1], 49
    %s199 = smov 3
    %v200 = vld [vmem:[%s198] ss:$-36 sm:%s199]
    %vm201 = vcmask 162816
    %v202 = vsel %vm201, %v200, %v197
    %203 = vrot.lane.b32.xlu0 %v202, 108
    %v204 = vpop.permute.xlu0 %203
    %vm205 = vcmask 64512
    %s206 = scalar_lea.vmem [#allocation0], 80
    %207 = vst.msk [vmem:[%s206] ss:$-56 sm:$0x3] %vm205, %v204
    %vm208 = vcmask 1048416
    %s209 = scalar_lea.vmem [#allocation0], 72
    %210 = vst.msk [vmem:[%s209] ss:$-56 sm:$0x3] %vm208, %v204
    %s211 = scalar_lea.vmem [#allocation1], 58
    %s212 = smov 3
    %v213 = vld [vmem:[%s211] ss:$-36 sm:%s212]
    %s214 = scalar_lea.vmem [#allocation1], 22
    %s215 = smov 3
    %v216 = vld [vmem:[%s214] ss:$36 sm:%s215]
    %vm217 = vcmask 195584
    %v218 = vsel %vm217, %v216, %v213
    %219 = vrot.lane.b32.xlu0 %v218, 104
    %v220 = vpop.permute.xlu0 %219
    %vm221 = vcmask 31744
    %s222 = scalar_lea.vmem [#allocation0], 96
    %223 = vst.msk [vmem:[%s222] ss:$-56 sm:$0x3] %vm221, %v220
    %vm224 = vcmask 1048384
    %s225 = scalar_lea.vmem [#allocation0], 32
    %226 = vst.msk [vmem:[%s225] ss:$56 sm:$0x3] %vm224, %v220
    %s227 = scalar_lea.vmem [#allocation1], 35
    %v228 = vld [vmem:[%s227] sm:$0x1]
    %229 = vrot.lane.b32.xlu0 %v228, 100
    %v230 = vpop.permute.xlu0 %229
    %vm231 = vcmask 1048352
    %s232 = scalar_lea.vmem [#allocation0], 48
    %233 = vst.msk [vmem:[%s232] sm:$0x1] %vm231, %v230
    %s234 = scalar_lea.vmem [#allocation1], 44
    %s235 = smov 3
    %v236 = vld [vmem:[%s234] ss:$-36 sm:%s235]
    %237 = vrot.lane.b32.xlu0 %v236, 96
    %v238 = vpop.permute.xlu0 %237
    %vm239 = vcmask 1015552
    %s240 = scalar_lea.vmem [#allocation0], 64
    %241 = vst.msk [vmem:[%s240] ss:$-56 sm:$0x3] %vm239, %v238
    %s242 = scalar_lea.vmem [#allocation1], 53
    %s243 = smov 3
    %v244 = vld [vmem:[%s242] ss:$-36 sm:%s243]
    %245 = vrot.lane.b32.xlu0 %v244, 92
    %v246 = vpop.permute.xlu0 %245
    %vm247 = vcmask 982752
    %s248 = scalar_lea.vmem [#allocation0], 80
    %249 = vst.msk [vmem:[%s248] ss:$-56 sm:$0x3] %vm247, %v246
    %s250 = scalar_lea.vmem [#allocation1], 26
    %v251 = vld [vmem:[%s250] sm:$0x1]
    %252 = vrot.lane.b32.xlu0 %v251, 88
    %v253 = vpop.permute.xlu0 %252
    %vm254 = vcmask 949952
    %s255 = scalar_lea.vmem [#allocation0], 40
    %256 = vst.msk [vmem:[%s255] sm:$0x1] %vm254, %v253
    %s257 = scalar_lea.vmem [#allocation1], 3
    %s258 = smov 3
    %v259 = vld [vmem:[%s257] ss:$36 sm:%s258]
    %260 = vrot.lane.b32.xlu0 %v259, 84
    %v261 = vpop.permute.xlu0 %260
    %vm262 = vcmask 917152
    %263 = vst.msk [vmem:[#allocation0] ss:$56 sm:$0x3] %vm262, %v261
    %s264 = scalar_lea.vmem [#allocation1], 48
    %s265 = smov 3
    %v266 = vld [vmem:[%s264] ss:$-36 sm:%s265]
    %267 = vrot.lane.b32.xlu0 %v266, 80
    %v268 = vpop.permute.xlu0 %267
    %vm269 = vcmask 884352
    %s270 = scalar_lea.vmem [#allocation0], 72
    %271 = vst.msk [vmem:[%s270] ss:$-56 sm:$0x3] %vm269, %v268
    %s272 = scalar_lea.vmem [#allocation1], 21
    %s273 = smov 3
    %v274 = vld [vmem:[%s272] ss:$36 sm:%s273]
    %275 = vrot.lane.b32.xlu0 %v274, 76
    %v276 = vpop.permute.xlu0 %275
    %vm277 = vcmask 851552
    %s278 = scalar_lea.vmem [#allocation0], 32
    %279 = vst.msk [vmem:[%s278] ss:$56 sm:$0x3] %vm277, %v276
    %s280 = scalar_lea.vmem [#allocation1], 34
    %v281 = vld [vmem:[%s280] sm:$0x1]
    %282 = vrot.lane.b32.xlu0 %v281, 72
    %v283 = vpop.permute.xlu0 %282
    %vm284 = vcmask 818752
    %s285 = scalar_lea.vmem [#allocation0], 48
    %286 = vst.msk [vmem:[%s285] sm:$0x1] %vm284, %v283
    %s287 = scalar_lea.vmem [#allocation1], 43
    %s288 = smov 3
    %v289 = vld [vmem:[%s287] ss:$-36 sm:%s288]
    %290 = vrot.lane.b32.xlu0 %v289, 68
    %v291 = vpop.permute.xlu0 %290
    %vm292 = vcmask 785952
    %s293 = scalar_lea.vmem [#allocation0], 64
    %294 = vst.msk [vmem:[%s293] ss:$-56 sm:$0x3] %vm292, %v291
    %s295 = scalar_lea.vmem [#allocation1], 52
    %s296 = smov 3
    %v297 = vld [vmem:[%s295] ss:$-36 sm:%s296]
    %298 = vrot.lane.b32.xlu0 %v297, 64
    %v299 = vpop.permute.xlu0 %298
    %vm300 = vcmask 753152
    %s301 = scalar_lea.vmem [#allocation0], 80
    %302 = vst.msk [vmem:[%s301] ss:$-56 sm:$0x3] %vm300, %v299
    %s303 = scalar_lea.vmem [#allocation1], 25
    %v304 = vld [vmem:[%s303] sm:$0x1]
    %305 = vrot.lane.b32.xlu0 %v304, 60
    %v306 = vpop.permute.xlu0 %305
    %vm307 = vcmask 720352
    %s308 = scalar_lea.vmem [#allocation0], 40
    %309 = vst.msk [vmem:[%s308] sm:$0x1] %vm307, %v306
    %s310 = scalar_lea.vmem [#allocation1], 2
    %s311 = smov 3
    %v312 = vld [vmem:[%s310] ss:$36 sm:%s311]
    %313 = vrot.lane.b32.xlu0 %v312, 56
    %v314 = vpop.permute.xlu0 %313
    %vm315 = vcmask 687552
    %316 = vst.msk [vmem:[#allocation0] ss:$56 sm:$0x3] %vm315, %v314
    %s317 = scalar_lea.vmem [#allocation1], 47
    %s318 = smov 3
    %v319 = vld [vmem:[%s317] ss:$-36 sm:%s318]
    %320 = vrot.lane.b32.xlu0 %v319, 52
    %v321 = vpop.permute.xlu0 %320
    %vm322 = vcmask 654752
    %s323 = scalar_lea.vmem [#allocation0], 72
    %324 = vst.msk [vmem:[%s323] ss:$-56 sm:$0x3] %vm322, %v321
    %s325 = scalar_lea.vmem [#allocation1], 20
    %s326 = smov 3
    %v327 = vld [vmem:[%s325] ss:$36 sm:%s326]
    %328 = vrot.lane.b32.xlu0 %v327, 48
    %v329 = vpop.permute.xlu0 %328
    %vm330 = vcmask 621952
    %s331 = scalar_lea.vmem [#allocation0], 32
    %332 = vst.msk [vmem:[%s331] ss:$56 sm:$0x3] %vm330, %v329
    %s333 = scalar_lea.vmem [#allocation1], 33
    %v334 = vld [vmem:[%s333] sm:$0x1]
    %335 = vrot.lane.b32.xlu0 %v334, 44
    %v336 = vpop.permute.xlu0 %335
    %vm337 = vcmask 589152
    %s338 = scalar_lea.vmem [#allocation0], 48
    %339 = vst.msk [vmem:[%s338] sm:$0x1] %vm337, %v336
    %s340 = scalar_lea.vmem [#allocation1], 42
    %s341 = smov 3
    %v342 = vld [vmem:[%s340] ss:$-36 sm:%s341]
    %343 = vrot.lane.b32.xlu0 %v342, 40
    %v344 = vpop.permute.xlu0 %343
    %vm345 = vcmask 556352
    %s346 = scalar_lea.vmem [#allocation0], 64
    %347 = vst.msk [vmem:[%s346] ss:$-56 sm:$0x3] %vm345, %v344
    %s348 = scalar_lea.vmem [#allocation1], 51
    %s349 = smov 3
    %v350 = vld [vmem:[%s348] ss:$-36 sm:%s349]
    %351 = vrot.lane.b32.xlu0 %v350, 36
    %v352 = vpop.permute.xlu0 %351
    %vm353 = vcmask 523552
    %s354 = scalar_lea.vmem [#allocation0], 80
    %355 = vst.msk [vmem:[%s354] ss:$-56 sm:$0x3] %vm353, %v352
    %s356 = scalar_lea.vmem [#allocation1], 24
    %v357 = vld [vmem:[%s356] sm:$0x1]
    %358 = vrot.lane.b32.xlu0 %v357, 32
    %v359 = vpop.permute.xlu0 %358
    %vm360 = vcmask 490752
    %s361 = scalar_lea.vmem [#allocation0], 40
    %362 = vst.msk [vmem:[%s361] sm:$0x1] %vm360, %v359
    %s363 = scalar_lea.vmem [#allocation1], 1
    %s364 = smov 3
    %v365 = vld [vmem:[%s363] ss:$36 sm:%s364]
    %366 = vrot.lane.b32.xlu0 %v365, 28
    %v367 = vpop.permute.xlu0 %366
    %vm368 = vcmask 457952
    %369 = vst.msk [vmem:[#allocation0] ss:$56 sm:$0x3] %vm368, %v367
    %s370 = scalar_lea.vmem [#allocation1], 46
    %s371 = smov 3
    %v372 = vld [vmem:[%s370] ss:$-36 sm:%s371]
    %373 = vrot.lane.b32.xlu0 %v372, 24
    %v374 = vpop.permute.xlu0 %373
    %vm375 = vcmask 425152
    %s376 = scalar_lea.vmem [#allocation0], 72
    %377 = vst.msk [vmem:[%s376] ss:$-56 sm:$0x3] %vm375, %v374
    %s378 = scalar_lea.vmem [#allocation1], 19
    %s379 = smov 3
    %v380 = vld [vmem:[%s378] ss:$36 sm:%s379]
    %381 = vrot.lane.b32.xlu0 %v380, 20
    %v382 = vpop.permute.xlu0 %381
    %vm383 = vcmask 392352
    %s384 = scalar_lea.vmem [#allocation0], 32
    %385 = vst.msk [vmem:[%s384] ss:$56 sm:$0x3] %vm383, %v382
    %s386 = scalar_lea.vmem [#allocation1], 32
    %v387 = vld [vmem:[%s386] sm:$0x1]
    %388 = vrot.lane.b32.xlu0 %v387, 16
    %v389 = vpop.permute.xlu0 %388
    %vm390 = vcmask 359552
    %s391 = scalar_lea.vmem [#allocation0], 48
    %392 = vst.msk [vmem:[%s391] sm:$0x1] %vm390, %v389
    %s393 = scalar_lea.vmem [#allocation1], 41
    %s394 = smov 3
    %v395 = vld [vmem:[%s393] ss:$-36 sm:%s394]
    %396 = vrot.lane.b32.xlu0 %v395, 12
    %v397 = vpop.permute.xlu0 %396
    %vm398 = vcmask 326752
    %s399 = scalar_lea.vmem [#allocation0], 64
    %400 = vst.msk [vmem:[%s399] ss:$-56 sm:$0x3] %vm398, %v397
    %s401 = scalar_lea.vmem [#allocation1], 50
    %s402 = smov 3
    %v403 = vld [vmem:[%s401] ss:$-36 sm:%s402]
    %404 = vrot.lane.b32.xlu0 %v403, 8
    %v405 = vpop.permute.xlu0 %404
    %vm406 = vcmask 293952
    %s407 = scalar_lea.vmem [#allocation0], 80
    %408 = vst.msk [vmem:[%s407] ss:$-56 sm:$0x3] %vm406, %v405
    %s409 = scalar_lea.vmem [#allocation1], 59
    %s410 = smov 3
    %v411 = vld [vmem:[%s409] ss:$-36 sm:%s410]
    %412 = vrot.lane.b32.xlu0 %v411, 4
    %v413 = vpop.permute.xlu0 %412
    %vm414 = vcmask 261152
    %s415 = scalar_lea.vmem [#allocation0], 96
    %416 = vst.msk [vmem:[%s415] ss:$-56 sm:$0x3] %vm414, %v413
    %s418 = smul.u32 1, 2
    %s419 = sshll.u32 1, %s418
    %s420 = ssub.s32 %s419, 1
    %s421 = sshrl.u32 %s418, 1
    %v422 = vld [vmem:[#allocation0] sm:%s420]
    %v423 = vpack.c.bf16 0.0, %v422
    %s424 = sshll.u32 1, %s421
    %s425 = ssub.s32 %s424, 1
    %426 = vst [vmem:[%s1] sm:%s425] %v423
    %s427 = scalar_lea.vmem [#allocation0], 8
    %v428 = vld [vmem:[%s427] sm:%s420]
    %v429 = vpack.c.bf16 0.0, %v428
    %s430 = sshll.u32 1, %s421
    %s431 = ssub.s32 %s430, 1
    %s432 = scalar_lea.vmem %s1, 1
    %433 = vst [vmem:[%s432] sm:%s431] %v429
    %s434 = scalar_lea.vmem [#allocation0], 16
    %v435 = vld [vmem:[%s434] sm:%s420]
    %v436 = vpack.c.bf16 0.0, %v435
    %s437 = sshll.u32 1, %s421
    %s438 = ssub.s32 %s437, 1
    %s439 = smul.addr 1, 2
    %s440 = scalar_lea.vmem %s1, %s439
    %441 = vst [vmem:[%s440] sm:%s438] %v436
    %s442 = scalar_lea.vmem [#allocation0], 24
    %v443 = vld [vmem:[%s442] sm:%s420]
    %v444 = vpack.c.bf16 0.0, %v443
    %s445 = sshll.u32 1, %s421
    %s446 = ssub.s32 %s445, 1
    %s447 = smul.addr 1, 3
    %s448 = scalar_lea.vmem %s1, %s447
    %449 = vst [vmem:[%s448] sm:%s446] %v444
    %s450 = scalar_lea.vmem [#allocation0], 32
    %v451 = vld [vmem:[%s450] sm:%s420]
    %v452 = vpack.c.bf16 0.0, %v451
    %s453 = sshll.u32 1, %s421
    %s454 = ssub.s32 %s453, 1
    %s455 = smul.addr 1, 4
    %s456 = scalar_lea.vmem %s1, %s455
    %457 = vst [vmem:[%s456] sm:%s454] %v452
    %s458 = scalar_lea.vmem [#allocation0], 40
    %v459 = vld [vmem:[%s458] sm:%s420]
    %v460 = vpack.c.bf16 0.0, %v459
    %s461 = sshll.u32 1, %s421
    %s462 = ssub.s32 %s461, 1
    %s463 = smul.addr 1, 5
    %s464 = scalar_lea.vmem %s1, %s463
    %465 = vst [vmem:[%s464] sm:%s462] %v460
    %s466 = scalar_lea.vmem [#allocation0], 48
    %v467 = vld [vmem:[%s466] sm:%s420]
    %v468 = vpack.c.bf16 0.0, %v467
    %s469 = sshll.u32 1, %s421
    %s470 = ssub.s32 %s469, 1
    %s471 = smul.addr 1, 6
    %s472 = scalar_lea.vmem %s1, %s471
    %473 = vst [vmem:[%s472] sm:%s470] %v468
    %s474 = scalar_lea.vmem [#allocation0], 56
    %v475 = vld [vmem:[%s474] sm:%s420]
    %v476 = vpack.c.bf16 0.0, %v475
    %s477 = sshll.u32 1, %s421
    %s478 = ssub.s32 %s477, 1
    %s479 = smul.addr 1, 7
    %s480 = scalar_lea.vmem %s1, %s479
    %481 = vst [vmem:[%s480] sm:%s478] %v476
    %s482 = scalar_lea.vmem [#allocation0], 64
    %v483 = vld [vmem:[%s482] sm:%s420]
    %v484 = vpack.c.bf16 0.0, %v483
    %s485 = sshll.u32 1, %s421
    %s486 = ssub.s32 %s485, 1
    %s487 = smul.addr 1, 8
    %s488 = scalar_lea.vmem %s1, %s487
    %489 = vst [vmem:[%s488] sm:%s486] %v484
    %s490 = scalar_lea.vmem [#allocation0], 72
    %v491 = vld [vmem:[%s490] sm:%s420]
    %v492 = vpack.c.bf16 0.0, %v491
    %s493 = sshll.u32 1, %s421
    %s494 = ssub.s32 %s493, 1
    %s495 = smul.addr 1, 9
    %s496 = scalar_lea.vmem %s1, %s495
    %497 = vst [vmem:[%s496] sm:%s494] %v492
    %s498 = scalar_lea.vmem [#allocation0], 80
    %v499 = vld [vmem:[%s498] sm:%s420]
    %v500 = vpack.c.bf16 0.0, %v499
    %s501 = sshll.u32 1, %s421
    %s502 = ssub.s32 %s501, 1
    %s503 = smul.addr 1, 10
    %s504 = scalar_lea.vmem %s1, %s503
    %505 = vst [vmem:[%s504] sm:%s502] %v500
    %s506 = scalar_lea.vmem [#allocation0], 88
    %v507 = vld [vmem:[%s506] sm:%s420]
    %v508 = vpack.c.bf16 0.0, %v507
    %s509 = sshll.u32 1, %s421
    %s510 = ssub.s32 %s509, 1
    %s511 = smul.addr 1, 11
    %s512 = scalar_lea.vmem %s1, %s511
    %513 = vst [vmem:[%s512] sm:%s510] %v508
    %s514 = scalar_lea.vmem [#allocation0], 96
    %v515 = vld [vmem:[%s514] sm:%s420]
    %v516 = vpack.c.bf16 0.0, %v515
    %s517 = sshll.u32 1, %s421
    %s518 = ssub.s32 %s517, 1
    %s519 = smul.addr 1, 12
    %s520 = scalar_lea.vmem %s1, %s519
    %521 = vst [vmem:[%s520] sm:%s518] %v516

// kernel: cnn_forward.4
$region0: #{cnn_forward.4}
  #allocation0 [shape = 'u32[]', space=smem, size = 0x4, offset = 0x4, fixed_abs, tag = 'smem constant byte address 0x4 - core index']
  #allocation1 [shape = 'u32[144,128]{1,0:T(1,128)}', space=vmem, size = 0x12000, scoped, tag = 'internal scratch']
  %s0 = inlined_call_operand.hbm [shape: bf16[16,32], index: 0, kind: input, shape index: {}]
  %s1 = inlined_call_operand.vmem [shape: bf16[32,2048], index: 1, kind: input, shape index: {}]
  %s2 = inlined_call_operand.vmem [shape: f32[16,1], index: 2, kind: input, shape index: {}]
  %s3 = inlined_call_operand.vmem [shape: bf16[16,2048], index: 3, kind: output, shape index: {}]
  %s4 = sld [smem:[#allocation0]]
  $region91: #{cnn_forward.4} parent=0
    _
  %s6 = ssub.s32 1, %s4
  %s7 = scalar_select 0, %s6, %s4
  $region1: #{cnn_forward.4} parent=0
    #allocation2 [shape = 'u8[4096]{0}', space=vmem, size = 0x1000, scoped, tag = 'input window, operand 0, single buffered']
    #allocation3 [shape = 's32[2]{0}', space=sflag, size = 0x8, scoped, tag = 'scoped memory for cnn_forward.4']
    #allocation4 [shape = 'u8[131072]{0}', space=vmem, size = 0x20000, scoped, tag = 'input window, operand 1']
    #allocation5 [shape = 'u8[65536]{0}', space=vmem, size = 0x10000, scoped, tag = 'output window, operand 0']
    %8 = vsyncpa [#allocation3], 0
    loop: start=0, step=1, limit=4
    $region2: #{cnn_forward.4} parent=1 // loop_pre_header
      _
    $region3: #{cnn_forward.4} parent=1 // loop_header
      %s10 = sphi 0, %s14
      %p11 = scmp.ge.s32.totalorder %s10, 4
      %s18 = sphi 0, %s18
      %s20 = sphi 0, %s18
      %s21 = sphi 0, %s20
      %s35 = sphi 0, %s21
      %s41 = sphi 0, %s43
      %s44 = sphi 0, %s41
      %s45 = sphi 0, %s44
      %s61 = sphi 0, %s45
      %s65 = sphi 0, %s65
      %s67 = sphi 0, %s65
      %s68 = sphi 0, %s67
      %s82 = sphi 0, %s68
      %s88 = sphi 0, %s90
      %s91 = sphi 0, %s88
      %s92 = sphi 0, %s91
      %s108 = sphi 0, %s92
    $region4: #{cnn_forward.4} parent=1 // loop_header_branch
      %13 = sbr.rel (%p11) target = $region8
    $region5: #{cnn_forward.4} parent=1 // loop_body
      %s15 = ssub.s32 %s10, 1
      %s16 = ssub.s32 %s10, 2
      %s17 = sadd.s32 %s10, 1
      %s19 = sadd.s32 %s18, 1
      %p22 = scmp.eq.s32.totalorder %s10, 1
      %p23 = scmp.ne.s32.totalorder %s18, %s20
      %p24 = scmp.eq.s32.totalorder %s10, 0
      %p25 = por %p23, %p24
      %p26 = scmp.ne.s32.totalorder %s18, %s20
      %p27 = scmp.eq.s32.totalorder %s15, 1
      %p28 = por %p26, %p27
      %p29 = scmp.ne.s32.totalorder %s20, %s21
      %p30 = scmp.eq.s32.totalorder %s15, 0
      %p31 = por %p29, %p30
      %p32 = scmp.ne.s32.totalorder %s20, %s21
      %p33 = scmp.eq.s32.totalorder %s16, 1
      %p34 = por %p32, %p33
      %p36 = scmp.ne.s32.totalorder %s21, %s35
      %p37 = scmp.eq.s32.totalorder %s16, 0
      %p38 = por %p36, %p37
      %s39 = ssub.s32 %s10, %s17
      %p40 = scmp.eq.s32.totalorder %s39, 0
      %s42 = sadd.s32 %s41, 1
      %s43 = scalar_select %p40, %s41, %s42
      %p46 = pneg %p40
      %p47 = scmp.eq.s32.totalorder %s10, 1
      %p48 = por %p46, %p47
      %p49 = scmp.ne.s32.totalorder %s41, %s44
      %p50 = scmp.eq.s32.totalorder %s10, 0
      %p51 = por %p49, %p50
      %p52 = scmp.ne.s32.totalorder %s41, %s44
      %p53 = scmp.eq.s32.totalorder %s15, 1
      %p54 = por %p52, %p53
      %p55 = scmp.ne.s32.totalorder %s44, %s45
      %p56 = scmp.eq.s32.totalorder %s15, 0
      %p57 = por %p55, %p56
      %p58 = scmp.ne.s32.totalorder %s44, %s45
      %p59 = scmp.eq.s32.totalorder %s16, 1
      %p60 = por %p58, %p59
      %p62 = scmp.ne.s32.totalorder %s45, %s61
      %p63 = scmp.eq.s32.totalorder %s16, 0
      %p64 = por %p62, %p63
      %s66 = sadd.s32 %s65, 1
      %p69 = scmp.eq.s32.totalorder %s10, 1
      %p70 = scmp.ne.s32.totalorder %s65, %s67
      %p71 = scmp.eq.s32.totalorder %s10, 0
      %p72 = por %p70, %p71
      %p73 = scmp.ne.s32.totalorder %s65, %s67
      %p74 = scmp.eq.s32.totalorder %s15, 1
      %p75 = por %p73, %p74
      %p76 = scmp.ne.s32.totalorder %s67, %s68
      %p77 = scmp.eq.s32.totalorder %s15, 0
      %p78 = por %p76, %p77
      %p79 = scmp.ne.s32.totalorder %s67, %s68
      %p80 = scmp.eq.s32.totalorder %s16, 1
      %p81 = por %p79, %p80
      %p83 = scmp.ne.s32.totalorder %s68, %s82
      %p84 = scmp.eq.s32.totalorder %s16, 0
      %p85 = por %p83, %p84
      %s86 = ssub.s32 %s10, %s17
      %p87 = scmp.eq.s32.totalorder %s86, 0
      %s89 = sadd.s32 %s88, 1
      %s90 = scalar_select %p87, %s88, %s89
      %p93 = pneg %p87
      %p94 = scmp.eq.s32.totalorder %s10, 1
      %p95 = por %p93, %p94
      %p96 = scmp.ne.s32.totalorder %s88, %s91
      %p97 = scmp.eq.s32.totalorder %s10, 0
      %p98 = por %p96, %p97
      %p99 = scmp.ne.s32.totalorder %s88, %s91
      %p100 = scmp.eq.s32.totalorder %s15, 1
      %p101 = por %p99, %p100
      %p102 = scmp.ne.s32.totalorder %s91, %s92
      %p103 = scmp.eq.s32.totalorder %s15, 0
      %p104 = por %p102, %p103
      %p105 = scmp.ne.s32.totalorder %s91, %s92
      %p106 = scmp.eq.s32.totalorder %s16, 1
      %p107 = por %p105, %p106
      %p109 = scmp.ne.s32.totalorder %s92, %s108
      %p110 = scmp.eq.s32.totalorder %s16, 0
      %p111 = por %p109, %p110
      %p112 = scmp.le.s32.totalorder 1, %s10
      %p113 = scmp.lt.s32.totalorder %s10, 3
      %p114 = pnand %p112, %p113
      %p115 = pneg %p114
      // Predicated region
      $region9: #{cnn_forward.4} parent=5 // pred_check
        _
      $region10: #{cnn_forward.4} parent=5 // pred_check_branch
        %117 = sbr.rel (%p114) target = $region12
      $region11: #{cnn_forward.4} parent=5 // pred_region
        %s118 = ssub.s32 %s10, 1
        // Predicated region
        $region13: #{cnn_forward.4} parent=11 // pred_check
          %p119 = pneg %p31
        $region14: #{cnn_forward.4} parent=11 // pred_check_branch
          %121 = sbr.rel (%p119) target = $region16
        $region15: #{cnn_forward.4} parent=11 // pred_region
          %s123 = ssub.s32 128, 128
          %124 = vsyncadd [#allocation3], %s123
          %s125 = sshll.u32 [#allocation2], 4
          %s126 = int_to_ptr.vmem [resolvable:$true] %s125
          %131 = dma.hbm_to_vmem [thread:$0]  %s0, 128, %s126, [#allocation3], 64, 64, 4
        $region16: #{cnn_forward.4} parent=11 // pred_fallthru
          _
        // Predicated region
        $region17: #{cnn_forward.4} parent=11 // pred_check
          %p132 = pneg %p78
        $region18: #{cnn_forward.4} parent=11 // pred_check_branch
          %134 = sbr.rel (%p132) target = $region20
        $region19: #{cnn_forward.4} parent=11 // pred_region
          _
        $region20: #{cnn_forward.4} parent=11 // pred_fallthru
          _
      $region12: #{cnn_forward.4} parent=5 // pred_fallthru
        _
      %p135 = scmp.lt.s32.totalorder %s10, 2
      // Predicated region
      $region21: #{cnn_forward.4} parent=5 // pred_check
        %p136 = pneg %p135
      $region22: #{cnn_forward.4} parent=5 // pred_check_branch
        %138 = sbr.rel (%p136) target = $region24
      $region23: #{cnn_forward.4} parent=5 // pred_region
        // Predicated region
        $region25: #{cnn_forward.4} parent=23 // pred_check
          %p139 = pneg %p51
        $region26: #{cnn_forward.4} parent=23 // pred_check_branch
          %141 = sbr.rel (%p139) target = $region28
        $region27: #{cnn_forward.4} parent=23 // pred_region
          %s142 = sand.u32 %s41, 1
          %s143 = sand.u32 %s41, 1
          %s144 = smul.addr %s143, 128
          %s145 = scalar_lea.vmem [#allocation4], %s144
          %s146 = smul.u32 8, %s10
          %s147 = smul.addr %s146, 4
          %s148 = scalar_lea.vmem %s1, %s147
          // Predicated region
          $region29: #{cnn_forward.4} parent=27 // pred_check
            _
          $region30: #{cnn_forward.4} parent=27 // pred_check_branch
            %150 = sbr.rel (0) target = $region32
          $region31: #{cnn_forward.4} parent=27 // pred_region
            // Predicated region
            $region33: #{cnn_forward.4} parent=31 // pred_check
              _
            $region34: #{cnn_forward.4} parent=31 // pred_check_branch
              %152 = sbr.rel (0) target = $region36
            $region35: #{cnn_forward.4} parent=31 // pred_region
              loop: start=0, step=1, limit=1
              $region37: #{cnn_forward.4} parent=35 // loop_pre_header
                _
              $region38: #{cnn_forward.4} parent=35 // loop_header
                %s154 = sphi 0, %s158
                %p155 = scmp.ge.s32.totalorder %s154, 1
                %s159 = sphi %s148, %s148
                %s160 = sphi %s145, %s145
              $region39: #{cnn_forward.4} parent=35 // loop_header_branch
                %157 = sbr.rel (%p155) target = $region43
              $region40: #{cnn_forward.4} parent=35 // loop_body
                %v161 = vld [vmem:[%s159] sm:$0xff]
                %162 = vst [vmem:[%s160] sm:$0xff] %v161
                %v163 = vld [vmem:[%s159 + $0x8] sm:$0xff]
                %164 = vst [vmem:[%s160 + $0x8] sm:$0xff] %v163
                %v165 = vld [vmem:[%s159 + $0x10] sm:$0xff]
                %166 = vst [vmem:[%s160 + $0x10] sm:$0xff] %v165
                %v167 = vld [vmem:[%s159 + $0x18] sm:$0xff]
                %168 = vst [vmem:[%s160 + $0x18] sm:$0xff] %v167
                %v169 = vld [vmem:[%s159 + $0x40] sm:$0xff]
                %170 = vst [vmem:[%s160 + $0x20] sm:$0xff] %v169
                %v171 = vld [vmem:[%s159 + $0x48] sm:$0xff]
                %172 = vst [vmem:[%s160 + $0x28] sm:$0xff] %v171
                %v173 = vld [vmem:[%s159 + $0x50] sm:$0xff]
                %174 = vst [vmem:[%s160 + $0x30] sm:$0xff] %v173
                %v175 = vld [vmem:[%s159 + $0x58] sm:$0xff]
                %176 = vst [vmem:[%s160 + $0x38] sm:$0xff] %v175
                %v177 = vld [vmem:[%s159 + $0x80] sm:$0xff]
                %178 = vst [vmem:[%s160 + $0x40] sm:$0xff] %v177
                %v179 = vld [vmem:[%s159 + $0x88] sm:$0xff]
                %180 = vst [vmem:[%s160 + $0x48] sm:$0xff] %v179
                %v181 = vld [vmem:[%s159 + $0x90] sm:$0xff]
                %182 = vst [vmem:[%s160 + $0x50] sm:$0xff] %v181
                %v183 = vld [vmem:[%s159 + $0x98] sm:$0xff]
                %184 = vst [vmem:[%s160 + $0x58] sm:$0xff] %v183
                %v185 = vld [vmem:[%s159 + $0xc0] sm:$0xff]
                %186 = vst [vmem:[%s160 + $0x60] sm:$0xff] %v185
                %v187 = vld [vmem:[%s159 + $0xc8] sm:$0xff]
                %188 = vst [vmem:[%s160 + $0x68] sm:$0xff] %v187
                %v189 = vld [vmem:[%s159 + $0xd0] sm:$0xff]
                %190 = vst [vmem:[%s160 + $0x70] sm:$0xff] %v189
                %v191 = vld [vmem:[%s159 + $0xd8] sm:$0xff]
                %192 = vst [vmem:[%s160 + $0x78] sm:$0xff] %v191
              $region41: #{cnn_forward.4} parent=35 // loop_footer
                %s158 = sadd.s32 1, %s154
              $region42: #{cnn_forward.4} parent=35 // loop_footer_branch
                %153 = sbr.rel target = $region38
              $region43: #{cnn_forward.4} parent=35 // loop_exit
                _
            $region36: #{cnn_forward.4} parent=31 // pred_fallthru
              _
            // Predicated region
            $region44: #{cnn_forward.4} parent=31 // pred_check
              _
            $region45: #{cnn_forward.4} parent=31 // pred_check_branch
              %194 = sbr.rel target = $region47
            $region46: #{cnn_forward.4} parent=31 // pred_region
              _
            $region47: #{cnn_forward.4} parent=31 // pred_fallthru
              _
          $region32: #{cnn_forward.4} parent=27 // pred_fallthru
            _
          %195 = vnop
        $region28: #{cnn_forward.4} parent=23 // pred_fallthru
          _
      $region24: #{cnn_forward.4} parent=5 // pred_fallthru
        _
      %p196 = scmp.le.s32.totalorder 1, %s10
      %p197 = scmp.lt.s32.totalorder %s10, 3
      %p198 = pnand %p196, %p197
      %p199 = pneg %p198
      // Predicated region
      $region48: #{cnn_forward.4} parent=5 // pred_check
        _
      $region49: #{cnn_forward.4} parent=5 // pred_check_branch
        %201 = sbr.rel (%p198) target = $region51
      $region50: #{cnn_forward.4} parent=5 // pred_region
        %s202 = ssub.s32 %s10, 1
        // Predicated region
        $region52: #{cnn_forward.4} parent=50 // pred_check
          %p203 = pneg %p31
        $region53: #{cnn_forward.4} parent=50 // pred_check_branch
          %205 = sbr.rel (%p203) target = $region55
        $region54: #{cnn_forward.4} parent=50 // pred_region
          %206 = dma.done [#allocation3], 128
        $region55: #{cnn_forward.4} parent=50 // pred_fallthru
          _
        %s207 = sand.u32 %s44, 1
        %s208 = sand.u32 %s44, 1
        %s209 = smul.addr %s208, 128
        %s210 = scalar_lea.vmem [#allocation4], %s209
        // Predicated region
        $region56: #{cnn_forward.4} parent=50 // pred_check
          %p211 = pneg %p57
        $region57: #{cnn_forward.4} parent=50 // pred_check_branch
          %213 = sbr.rel (%p211) target = $region59
        $region58: #{cnn_forward.4} parent=50 // pred_region
          _
        $region59: #{cnn_forward.4} parent=50 // pred_fallthru
          _
        %p214 = pneg %p31
        %p215 = pneg %p28
        %s216 = sand.u32 %s44, 1
        %s217 = sand.u32 %s44, 1
        %s218 = smul.addr %s217, 128
        %s219 = scalar_lea.vmem [#allocation4], %s218
        %p220 = pneg %p57
        %p221 = pneg %p54
        %p222 = pneg %p78
        %p223 = pneg %p75
        %p224 = pneg %p104
        %p225 = pneg %p101
        %s226 = sand.u32 %s91, 1
        %s227 = sand.u32 %s91, 1
        %s228 = smul.addr %s227, 64
        %s229 = scalar_lea.vmem [#allocation5], %s228
        %s230 = smul.u32 8, %s15
        %s231 = smul.u32 8, %s15
        %v233 = vld [vmem:[#allocation2] sm:$0xf]
        %v234 = vld [vmem:[#allocation2 + $0x4] sm:$0xf]
        %v235 = vld [vmem:[%s210] sm:$0xff]
        %v236 = vld [vmem:[%s210 + $0x8] sm:$0xff]
        %v237 = vld [vmem:[%s210 + $0x10] sm:$0xff]
        %v238 = vld [vmem:[%s210 + $0x18] sm:$0xff]
        %v239 = vld [vmem:[%s210 + $0x20] sm:$0xff]
        %v240 = vld [vmem:[%s210 + $0x28] sm:$0xff]
        %v241 = vld [vmem:[%s210 + $0x30] sm:$0xff]
        %v242 = vld [vmem:[%s210 + $0x38] sm:$0xff]
        %v243 = vld [vmem:[%s210 + $0x40] sm:$0xff]
        %v244 = vld [vmem:[%s210 + $0x48] sm:$0xff]
        %v245 = vld [vmem:[%s210 + $0x50] sm:$0xff]
        %v246 = vld [vmem:[%s210 + $0x58] sm:$0xff]
        %v247 = vld [vmem:[%s210 + $0x60] sm:$0xff]
        %v248 = vld [vmem:[%s210 + $0x68] sm:$0xff]
        %v249 = vld [vmem:[%s210 + $0x70] sm:$0xff]
        %v250 = vld [vmem:[%s210 + $0x78] sm:$0xff]
        %v251 = vld [vmem:[%s2] sm:$0xff]
        %v252 = vld [vmem:[%s2 + $0x8] sm:$0xff]
        %254 = vset.pattern.permute.xlu0 0
        %255 = vperm.xlu0 %254, %v251
        %v256 = vpop.permute.xlu0 %255
        %259 = vset.pattern.permute.xlu0 0
        %260 = vperm.xlu0 %259, %v252
        %v261 = vpop.permute.xlu0 %260
        %v265 = vunpack.c.l.b16 %v233
        %v266 = vunpack.c.l.b16 %v234
        %v267 = vpack.c.b16 %v266, %v265
        %v284 = vunpack.c.l.b16 %v235
        %v285 = vunpack.c.h.b16 %v235
        %v286 = vunpack.c.l.b16 %v236
        %v287 = vunpack.c.h.b16 %v236
        %v288 = vunpack.c.l.b16 %v237
        %v289 = vunpack.c.h.b16 %v237
        %v290 = vunpack.c.l.b16 %v238
        %v291 = vunpack.c.h.b16 %v238
        %v292 = vunpack.c.l.b16 %v239
        %v293 = vunpack.c.h.b16 %v239
        %v294 = vunpack.c.l.b16 %v240
        %v295 = vunpack.c.h.b16 %v240
        %v296 = vunpack.c.l.b16 %v241
        %v297 = vunpack.c.h.b16 %v241
        %v298 = vunpack.c.l.b16 %v242
        %v299 = vunpack.c.h.b16 %v242
        %v300 = vunpack.c.l.b16 %v243
        %v301 = vunpack.c.h.b16 %v243
        %v302 = vunpack.c.l.b16 %v244
        %v303 = vunpack.c.h.b16 %v244
        %v304 = vunpack.c.l.b16 %v245
        %v305 = vunpack.c.h.b16 %v245
        %v306 = vunpack.c.l.b16 %v246
        %v307 = vunpack.c.h.b16 %v246
        %v308 = vunpack.c.l.b16 %v247
        %v309 = vunpack.c.h.b16 %v247
        %v310 = vunpack.c.l.b16 %v248
        %v311 = vunpack.c.h.b16 %v248
        %v312 = vunpack.c.l.b16 %v249
        %v313 = vunpack.c.h.b16 %v249
        %v314 = vunpack.c.l.b16 %v250
        %v315 = vunpack.c.h.b16 %v250
        %v316 = vpack.c.b16 %v292, %v284
        %v317 = vpack.c.b16 %v293, %v285
        %v318 = vpack.c.b16 %v294, %v286
        %v319 = vpack.c.b16 %v295, %v287
        %v320 = vpack.c.b16 %v296, %v288
        %v321 = vpack.c.b16 %v297, %v289
        %v322 = vpack.c.b16 %v298, %v290
        %v323 = vpack.c.b16 %v299, %v291
        %v324 = vpack.c.b16 %v308, %v300
        %v325 = vpack.c.b16 %v309, %v301
        %v326 = vpack.c.b16 %v310, %v302
        %v327 = vpack.c.b16 %v311, %v303
        %v328 = vpack.c.b16 %v312, %v304
        %v329 = vpack.c.b16 %v313, %v305
        %v330 = vpack.c.b16 %v314, %v306
        %v331 = vpack.c.b16 %v315, %v307
        %vm348 = vcmask 261120
        %v350 = vsel %vm348, %v267, 0
        %352 = vmatprep.subr.bf16.mxu0 0
        %353 = vmatpush1.bf16.msra.mxu0 0
        %354 = vmatprep.subr.bf16.mxu0 0
        %355 = vmatpush1.bf16.msra.mxu0 0
        %356 = vmatprep.subr.bf16.mxu0 0
        %357 = vmatpush1.bf16.msra.mxu0 0
        %358 = vmatprep.subr.bf16.mxu0 0
        %359 = vmatpush1.bf16.msra.mxu0 0
        %360 = vmatprep.subr.bf16.mxu0 0
        %361 = vmatpush1.bf16.msra.mxu0 0
        %362 = vmatprep.subr.bf16.mxu0 0
        %363 = vmatpush1.bf16.msra.mxu0 0
        %364 = vmatprep.subr.bf16.mxu0 %v325
        %365 = vmatpush1.bf16.msra.mxu0 %v324
        %366 = vmatprep.subr.bf16.mxu0 %v317
        %367 = vmatpush1.bf16.msra.mxu0 %v316
        %368 = vmatprep.subr.bf16.mxu0 0
        %369 = vmatpush2.bf16.msra.mxu0 0
        %370 = vmatprep.subr.bf16.mxu0 0
        %371 = vmatpush2.bf16.msra.mxu0 0
        %372 = vmatprep.subr.bf16.mxu0 0
        %373 = vmatpush2.bf16.msra.mxu0 0
        %374 = vmatprep.subr.bf16.mxu0 0
        %375 = vmatpush2.bf16.msra.mxu0 0
        %376 = vmatprep.subr.bf16.mxu0 0
        %377 = vmatpush2.bf16.msra.mxu0 0
        %378 = vmatprep.subr.bf16.mxu0 0
        %379 = vmatpush2.bf16.msra.mxu0 0
        %380 = vmatprep.subr.bf16.mxu0 0
        %381 = vmatpush2.bf16.msra.mxu0 0
        %382 = vmatprep.subr.bf16.mxu0 0
        %383 = vmatpush2.bf16.msra.mxu0 0
        %384 = vmatprep.mubr.bf16.mxu0 0
        %385 = vmatmul.mubr.bf16.gmra.mxu0 %v350
        %v386 = vpop.f32.mrf.mxu0
        %v387 = vadd.f32 %v256, %v386
        %v388 = vpop.f32.mrf.mxu0
        %v389 = vadd.f32 %v256, %v388
        %v390 = vpop.f32.mrf.mxu0
        %v391 = vadd.f32 %v261, %v390
        %v392 = vpop.f32.mrf.mxu0
        %v393 = vadd.f32 %v261, %v392
        %394 = vdwg.mxu0
        %395 = vmatprep.subr.bf16.mxu0 0
        %396 = vmatpush1.bf16.msra.mxu0 0
        %397 = vmatprep.subr.bf16.mxu0 0
        %398 = vmatpush1.bf16.msra.mxu0 0
        %399 = vmatprep.subr.bf16.mxu0 0
        %400 = vmatpush1.bf16.msra.mxu0 0
        %401 = vmatprep.subr.bf16.mxu0 0
        %402 = vmatpush1.bf16.msra.mxu0 0
        %403 = vmatprep.subr.bf16.mxu0 0
        %404 = vmatpush1.bf16.msra.mxu0 0
        %405 = vmatprep.subr.bf16.mxu0 0
        %406 = vmatpush1.bf16.msra.mxu0 0
        %407 = vmatprep.subr.bf16.mxu0 %v327
        %408 = vmatpush1.bf16.msra.mxu0 %v326
        %409 = vmatprep.subr.bf16.mxu0 %v319
        %410 = vmatpush1.bf16.msra.mxu0 %v318
        %411 = vmatprep.subr.bf16.mxu0 0
        %412 = vmatpush2.bf16.msra.mxu0 0
        %413 = vmatprep.subr.bf16.mxu0 0
        %414 = vmatpush2.bf16.msra.mxu0 0
        %415 = vmatprep.subr.bf16.mxu0 0
        %416 = vmatpush2.bf16.msra.mxu0 0
        %417 = vmatprep.subr.bf16.mxu0 0
        %418 = vmatpush2.bf16.msra.mxu0 0
        %419 = vmatprep.subr.bf16.mxu0 0
        %420 = vmatpush2.bf16.msra.mxu0 0
        %421 = vmatprep.subr.bf16.mxu0 0
        %422 = vmatpush2.bf16.msra.mxu0 0
        %423 = vmatprep.subr.bf16.mxu0 0
        %424 = vmatpush2.bf16.msra.mxu0 0
        %425 = vmatprep.subr.bf16.mxu0 0
        %426 = vmatpush2.bf16.msra.mxu0 0
        %427 = vmatprep.mubr.bf16.mxu0 0
        %428 = vmatmul.mubr.bf16.gmra.mxu0 %v350
        %v429 = vpop.f32.mrf.mxu0
        %v430 = vadd.f32 %v256, %v429
        %v431 = vpop.f32.mrf.mxu0
        %v432 = vadd.f32 %v256, %v431
        %v433 = vpop.f32.mrf.mxu0
        %v434 = vadd.f32 %v261, %v433
        %v435 = vpop.f32.mrf.mxu0
        %v436 = vadd.f32 %v261, %v435
        %437 = vdwg.mxu0
        %438 = vmatprep.subr.bf16.mxu0 0
        %439 = vmatpush1.bf16.msra.mxu0 0
        %440 = vmatprep.subr.bf16.mxu0 0
        %441 = vmatpush1.bf16.msra.mxu0 0
        %442 = vmatprep.subr.bf16.mxu0 0
        %443 = vmatpush1.bf16.msra.mxu0 0
        %444 = vmatprep.subr.bf16.mxu0 0
        %445 = vmatpush1.bf16.msra.mxu0 0
        %446 = vmatprep.subr.bf16.mxu0 0
        %447 = vmatpush1.bf16.msra.mxu0 0
        %448 = vmatprep.subr.bf16.mxu0 0
        %449 = vmatpush1.bf16.msra.mxu0 0
        %450 = vmatprep.subr.bf16.mxu0 %v329
        %451 = vmatpush1.bf16.msra.mxu0 %v328
        %452 = vmatprep.subr.bf16.mxu0 %v321
        %453 = vmatpush1.bf16.msra.mxu0 %v320
        %454 = vmatprep.subr.bf16.mxu0 0
        %455 = vmatpush2.bf16.msra.mxu0 0
        %456 = vmatprep.subr.bf16.mxu0 0
        %457 = vmatpush2.bf16.msra.mxu0 0
        %458 = vmatprep.subr.bf16.mxu0 0
        %459 = vmatpush2.bf16.msra.mxu0 0
        %460 = vmatprep.subr.bf16.mxu0 0
        %461 = vmatpush2.bf16.msra.mxu0 0
        %462 = vmatprep.subr.bf16.mxu0 0
        %463 = vmatpush2.bf16.msra.mxu0 0
        %464 = vmatprep.subr.bf16.mxu0 0
        %465 = vmatpush2.bf16.msra.mxu0 0
        %466 = vmatprep.subr.bf16.mxu0 0
        %467 = vmatpush2.bf16.msra.mxu0 0
        %468 = vmatprep.subr.bf16.mxu0 0
        %469 = vmatpush2.bf16.msra.mxu0 0
        %470 = vmatprep.mubr.bf16.mxu0 0
        %471 = vmatmul.mubr.bf16.gmra.mxu0 %v350
        %v472 = vpop.f32.mrf.mxu0
        %v473 = vadd.f32 %v256, %v472
        %v474 = vpop.f32.mrf.mxu0
        %v475 = vadd.f32 %v256, %v474
        %v476 = vpop.f32.mrf.mxu0
        %v477 = vadd.f32 %v261, %v476
        %v478 = vpop.f32.mrf.mxu0
        %v479 = vadd.f32 %v261, %v478
        %480 = vdwg.mxu0
        %481 = vmatprep.subr.bf16.mxu0 0
        %482 = vmatpush1.bf16.msra.mxu0 0
        %483 = vmatprep.subr.bf16.mxu0 0
        %484 = vmatpush1.bf16.msra.mxu0 0
        %485 = vmatprep.subr.bf16.mxu0 0
        %486 = vmatpush1.bf16.msra.mxu0 0
        %487 = vmatprep.subr.bf16.mxu0 0
        %488 = vmatpush1.bf16.msra.mxu0 0
        %489 = vmatprep.subr.bf16.mxu0 0
        %490 = vmatpush1.bf16.msra.mxu0 0
        %491 = vmatprep.subr.bf16.mxu0 0
        %492 = vmatpush1.bf16.msra.mxu0 0
        %493 = vmatprep.subr.bf16.mxu0 %v331
        %494 = vmatpush1.bf16.msra.mxu0 %v330
        %495 = vmatprep.subr.bf16.mxu0 %v323
        %496 = vmatpush1.bf16.msra.mxu0 %v322
        %497 = vmatprep.subr.bf16.mxu0 0
        %498 = vmatpush2.bf16.msra.mxu0 0
        %499 = vmatprep.subr.bf16.mxu0 0
        %500 = vmatpush2.bf16.msra.mxu0 0
        %501 = vmatprep.subr.bf16.mxu0 0
        %502 = vmatpush2.bf16.msra.mxu0 0
        %503 = vmatprep.subr.bf16.mxu0 0
        %504 = vmatpush2.bf16.msra.mxu0 0
        %505 = vmatprep.subr.bf16.mxu0 0
        %506 = vmatpush2.bf16.msra.mxu0 0
        %507 = vmatprep.subr.bf16.mxu0 0
        %508 = vmatpush2.bf16.msra.mxu0 0
        %509 = vmatprep.subr.bf16.mxu0 0
        %510 = vmatpush2.bf16.msra.mxu0 0
        %511 = vmatprep.subr.bf16.mxu0 0
        %512 = vmatpush2.bf16.msra.mxu0 0
        %513 = vmatprep.mubr.bf16.mxu0 0
        %514 = vmatmul.mubr.bf16.gmra.mxu0 %v350
        %v515 = vpop.f32.mrf.mxu0
        %v516 = vadd.f32 %v256, %v515
        %v517 = vpop.f32.mrf.mxu0
        %v518 = vadd.f32 %v256, %v517
        %v519 = vpop.f32.mrf.mxu0
        %v520 = vadd.f32 %v261, %v519
        %v521 = vpop.f32.mrf.mxu0
        %v522 = vadd.f32 %v261, %v521
        %523 = vdwg.mxu0
        %v524 = vxor.u32 %v387, 2147483648
        %v525 = vxor.u32 %v389, 2147483648
        %v526 = vxor.u32 %v430, 2147483648
        %v527 = vxor.u32 %v432, 2147483648
        %v528 = vxor.u32 %v473, 2147483648
        %v529 = vxor.u32 %v475, 2147483648
        %v530 = vxor.u32 %v516, 2147483648
        %v531 = vxor.u32 %v518, 2147483648
        %v532 = vxor.u32 %v391, 2147483648
        %v533 = vxor.u32 %v393, 2147483648
        %v534 = vxor.u32 %v434, 2147483648
        %v535 = vxor.u32 %v436, 2147483648
        %v536 = vxor.u32 %v477, 2147483648
        %v537 = vxor.u32 %v479, 2147483648
        %v538 = vxor.u32 %v520, 2147483648
        %v539 = vxor.u32 %v522, 2147483648
        %v540 = vmul.f32 %v524, 1.442695
        %v541 = vpow.pop %v540
        %v542 = vmul.f32 %v525, 1.442695
        %v543 = vpow.pop %v542
        %v544 = vmul.f32 %v526, 1.442695
        %v545 = vpow.pop %v544
        %v546 = vmul.f32 %v527, 1.442695
        %v547 = vpow.pop %v546
        %v548 = vmul.f32 %v528, 1.442695
        %v549 = vpow.pop %v548
        %v550 = vmul.f32 %v529, 1.442695
        %v551 = vpow.pop %v550
        %v552 = vmul.f32 %v530, 1.442695
        %v553 = vpow.pop %v552
        %v554 = vmul.f32 %v531, 1.442695
        %v555 = vpow.pop %v554
        %v556 = vmul.f32 %v532, 1.442695
        %v557 = vpow.pop %v556
        %v558 = vmul.f32 %v533, 1.442695
        %v559 = vpow.pop %v558
        %v560 = vmul.f32 %v534, 1.442695
        %v561 = vpow.pop %v560
        %v562 = vmul.f32 %v535, 1.442695
        %v563 = vpow.pop %v562
        %v564 = vmul.f32 %v536, 1.442695
        %v565 = vpow.pop %v564
        %v566 = vmul.f32 %v537, 1.442695
        %v567 = vpow.pop %v566
        %v568 = vmul.f32 %v538, 1.442695
        %v569 = vpow.pop %v568
        %v570 = vmul.f32 %v539, 1.442695
        %v571 = vpow.pop %v570
        %v572 = vadd.f32 %v541, 1.0
        %v573 = vadd.f32 %v543, 1.0
        %v574 = vadd.f32 %v545, 1.0
        %v575 = vadd.f32 %v547, 1.0
        %v576 = vadd.f32 %v549, 1.0
        %v577 = vadd.f32 %v551, 1.0
        %v578 = vadd.f32 %v553, 1.0
        %v579 = vadd.f32 %v555, 1.0
        %v580 = vadd.f32 %v557, 1.0
        %v581 = vadd.f32 %v559, 1.0
        %v582 = vadd.f32 %v561, 1.0
        %v583 = vadd.f32 %v563, 1.0
        %v584 = vadd.f32 %v565, 1.0
        %v585 = vadd.f32 %v567, 1.0
        %v586 = vadd.f32 %v569, 1.0
        %v587 = vadd.f32 %v571, 1.0
        %v588 = vrcp.pop %v572
        %v589 = vmul.f32 1.0, %v588
        %v590 = vrcp.pop %v573
        %v591 = vmul.f32 1.0, %v590
        %v592 = vrcp.pop %v574
        %v593 = vmul.f32 1.0, %v592
        %v594 = vrcp.pop %v575
        %v595 = vmul.f32 1.0, %v594
        %v596 = vrcp.pop %v576
        %v597 = vmul.f32 1.0, %v596
        %v598 = vrcp.pop %v577
        %v599 = vmul.f32 1.0, %v598
        %v600 = vrcp.pop %v578
        %v601 = vmul.f32 1.0, %v600
        %v602 = vrcp.pop %v579
        %v603 = vmul.f32 1.0, %v602
        %v604 = vrcp.pop %v580
        %v605 = vmul.f32 1.0, %v604
        %v606 = vrcp.pop %v581
        %v607 = vmul.f32 1.0, %v606
        %v608 = vrcp.pop %v582
        %v609 = vmul.f32 1.0, %v608
        %v610 = vrcp.pop %v583
        %v611 = vmul.f32 1.0, %v610
        %v612 = vrcp.pop %v584
        %v613 = vmul.f32 1.0, %v612
        %v614 = vrcp.pop %v585
        %v615 = vmul.f32 1.0, %v614
        %v616 = vrcp.pop %v586
        %v617 = vmul.f32 1.0, %v616
        %v618 = vrcp.pop %v587
        %v619 = vmul.f32 1.0, %v618
        %v620 = vpack.c.bf16 %v605, %v589
        %v621 = vpack.c.bf16 %v607, %v591
        %v622 = vpack.c.bf16 %v609, %v593
        %v623 = vpack.c.bf16 %v611, %v595
        %v624 = vpack.c.bf16 %v613, %v597
        %v625 = vpack.c.bf16 %v615, %v599
        %v626 = vpack.c.bf16 %v617, %v601
        %v627 = vpack.c.bf16 %v619, %v603
        %v636 = vunpack.c.l.b16 %v620
        %v637 = vunpack.c.l.b16 %v621
        %v638 = vunpack.c.l.b16 %v622
        %v639 = vunpack.c.l.b16 %v623
        %v640 = vunpack.c.l.b16 %v624
        %v641 = vunpack.c.l.b16 %v625
        %v642 = vunpack.c.l.b16 %v626
        %v643 = vunpack.c.l.b16 %v627
        %v644 = vunpack.c.h.b16 %v620
        %v645 = vunpack.c.h.b16 %v621
        %v646 = vunpack.c.h.b16 %v622
        %v647 = vunpack.c.h.b16 %v623
        %v648 = vunpack.c.h.b16 %v624
        %v649 = vunpack.c.h.b16 %v625
        %v650 = vunpack.c.h.b16 %v626
        %v651 = vunpack.c.h.b16 %v627
        %v652 = vpack.c.b16 %v637, %v636
        %v653 = vpack.c.b16 %v639, %v638
        %v654 = vpack.c.b16 %v641, %v640
        %v655 = vpack.c.b16 %v643, %v642
        %v656 = vpack.c.b16 %v645, %v644
        %v657 = vpack.c.b16 %v647, %v646
        %v658 = vpack.c.b16 %v649, %v648
        %v659 = vpack.c.b16 %v651, %v650
        %668 = vst [vmem:[%s229] sm:$0xff] %v652
        %669 = vst [vmem:[%s229 + $0x8] sm:$0xff] %v653
        %670 = vst [vmem:[%s229 + $0x10] sm:$0xff] %v654
        %671 = vst [vmem:[%s229 + $0x18] sm:$0xff] %v655
        %672 = vst [vmem:[%s229 + $0x20] sm:$0xff] %v656
        %673 = vst [vmem:[%s229 + $0x28] sm:$0xff] %v657
        %674 = vst [vmem:[%s229 + $0x30] sm:$0xff] %v658
        %675 = vst [vmem:[%s229 + $0x38] sm:$0xff] %v659
        %s676 = sand.u32 %s91, 1
        %s677 = sand.u32 %s91, 1
        %s678 = smul.addr %s677, 64
        %s679 = scalar_lea.vmem [#allocation5], %s678
        // Predicated region
        $region60: #{cnn_forward.4} parent=50 // pred_check
          %p680 = pneg %p101
        $region61: #{cnn_forward.4} parent=50 // pred_check_branch
          %682 = sbr.rel (%p680) target = $region63
        $region62: #{cnn_forward.4} parent=50 // pred_region
          %s683 = smul.u32 8, %s15
          %s684 = smul.addr %s683, 4
          %s685 = scalar_lea.vmem %s3, %s684
          // Predicated region
          $region64: #{cnn_forward.4} parent=62 // pred_check
            _
          $region65: #{cnn_forward.4} parent=62 // pred_check_branch
            %687 = sbr.rel (0) target = $region67
          $region66: #{cnn_forward.4} parent=62 // pred_region
            // Predicated region
            $region68: #{cnn_forward.4} parent=66 // pred_check
              _
            $region69: #{cnn_forward.4} parent=66 // pred_check_branch
              %689 = sbr.rel (0) target = $region71
            $region70: #{cnn_forward.4} parent=66 // pred_region
              loop: start=0, step=1, limit=1
              $region72: #{cnn_forward.4} parent=70 // loop_pre_header
                _
              $region73: #{cnn_forward.4} parent=70 // loop_header
                %s691 = sphi 0, %s695
                %p692 = scmp.ge.s32.totalorder %s691, 1
                %s696 = sphi %s679, %s679
                %s697 = sphi %s685, %s685
              $region74: #{cnn_forward.4} parent=70 // loop_header_branch
                %694 = sbr.rel (%p692) target = $region78
              $region75: #{cnn_forward.4} parent=70 // loop_body
                %v698 = vld [vmem:[%s696] sm:$0xff]
                %699 = vst [vmem:[%s697] sm:$0xff] %v698
                %v700 = vld [vmem:[%s696 + $0x8] sm:$0xff]
                %701 = vst [vmem:[%s697 + $0x8] sm:$0xff] %v700
                %v702 = vld [vmem:[%s696 + $0x10] sm:$0xff]
                %703 = vst [vmem:[%s697 + $0x10] sm:$0xff] %v702
                %v704 = vld [vmem:[%s696 + $0x18] sm:$0xff]
                %705 = vst [vmem:[%s697 + $0x18] sm:$0xff] %v704
                %v706 = vld [vmem:[%s696 + $0x20] sm:$0xff]
                %707 = vst [vmem:[%s697 + $0x40] sm:$0xff] %v706
                %v708 = vld [vmem:[%s696 + $0x28] sm:$0xff]
                %709 = vst [vmem:[%s697 + $0x48] sm:$0xff] %v708
                %v710 = vld [vmem:[%s696 + $0x30] sm:$0xff]
                %711 = vst [vmem:[%s697 + $0x50] sm:$0xff] %v710
                %v712 = vld [vmem:[%s696 + $0x38] sm:$0xff]
                %713 = vst [vmem:[%s697 + $0x58] sm:$0xff] %v712
              $region76: #{cnn_forward.4} parent=70 // loop_footer
                %s695 = sadd.s32 1, %s691
              $region77: #{cnn_forward.4} parent=70 // loop_footer_branch
                %690 = sbr.rel target = $region73
              $region78: #{cnn_forward.4} parent=70 // loop_exit
                _
            $region71: #{cnn_forward.4} parent=66 // pred_fallthru
              _
            // Predicated region
            $region79: #{cnn_forward.4} parent=66 // pred_check
              _
            $region80: #{cnn_forward.4} parent=66 // pred_check_branch
              %715 = sbr.rel target = $region82
            $region81: #{cnn_forward.4} parent=66 // pred_region
              _
            $region82: #{cnn_forward.4} parent=66 // pred_fallthru
              _
          $region67: #{cnn_forward.4} parent=62 // pred_fallthru
            _
          %716 = vnop
        $region63: #{cnn_forward.4} parent=50 // pred_fallthru
          _
      $region51: #{cnn_forward.4} parent=5 // pred_fallthru
        _
      %p717 = scmp.le.s32.totalorder 2, %s10
      // Predicated region
      $region83: #{cnn_forward.4} parent=5 // pred_check
        %p718 = pneg %p717
      $region84: #{cnn_forward.4} parent=5 // pred_check_branch
        %720 = sbr.rel (%p718) target = $region86
      $region85: #{cnn_forward.4} parent=5 // pred_region
        %s721 = ssub.s32 %s10, 2
        // Predicated region
        $region87: #{cnn_forward.4} parent=85 // pred_check
          %p722 = pneg %p107
        $region88: #{cnn_forward.4} parent=85 // pred_check_branch
          %724 = sbr.rel (%p722) target = $region90
        $region89: #{cnn_forward.4} parent=85 // pred_region
          %s725 = sand.u32 %s92, 1
          %s726 = sand.u32 %s92, 1
          %s727 = smul.addr %s726, 64
          %s728 = scalar_lea.vmem [#allocation5], %s727
        $region90: #{cnn_forward.4} parent=85 // pred_fallthru
          _
      $region86: #{cnn_forward.4} parent=5 // pred_fallthru
        _
    $region6: #{cnn_forward.4} parent=1 // loop_footer
      %s14 = sadd.s32 1, %s10
    $region7: #{cnn_forward.4} parent=1 // loop_footer_branch
      %9 = sbr.rel target = $region3
    $region8: #{cnn_forward.4} parent=1 // loop_exit
      _
    %729 = vsyncpa [#allocation3], 1
    %s730 = scalar_lea.sflag [#allocation3], 1
    %731 = vsyncpa %s730, 1

// kernel: squeeze.196
$region0: #{squeeze.196}
  %s0 = inlined_call_operand.vmem [shape: bf16[1,2,26,26], index: 0, kind: input, shape index: {}]
  %s1 = inlined_call_operand.vmem [shape: bf16[1,1352], index: 1, kind: output, shape index: {}]
  $region1: #{squeeze.196} parent=0
    #allocation0 [shape = 'u8[45056]{0}', space=vmem, size = 0xb000, scoped, tag = 'scoped mem for output reshape']
    #allocation1 [shape = 'u8[32768]{0}', space=vmem, size = 0x8000, scoped, tag = 'scoped mem for input reshape']
    %s3 = smul.u32 4, 2
    %s4 = sshll.u32 1, %s3
    %s5 = ssub.s32 %s4, 1
    %s6 = smul.addr 4, 7
    %s7 = scalar_lea.vmem %s0, %s6
    %s8 = sshrl.u32 %s5, 1
    %s9 = sor.u32 %s5, %s8
    %s10 = sand.u32 %s9, 85
    %s11 = sshrl.u32 %s10, 1
    %s12 = sor.u32 %s10, %s11
    %s13 = sand.u32 51, %s12
    %s14 = sshrl.u32 %s13, 2
    %s15 = sor.u32 %s13, %s14
    %s16 = sand.u32 15, %s15
    %v17 = vld [vmem:[%s7] sm:%s16]
    %v18 = vunpack.c.l.bf16 %v17
    %v19 = vunpack.c.h.bf16 %v17
    %s20 = scalar_lea.vmem [#allocation1], 56
    %21 = vst [vmem:[%s20] sm:%s5] %v18
    %s22 = smul.addr 4, 6
    %s23 = scalar_lea.vmem %s0, %s22
    %s24 = sshrl.u32 %s5, 1
    %s25 = sor.u32 %s5, %s24
    %s26 = sand.u32 %s25, 85
    %s27 = sshrl.u32 %s26, 1
    %s28 = sor.u32 %s26, %s27
    %s29 = sand.u32 51, %s28
    %s30 = sshrl.u32 %s29, 2
    %s31 = sor.u32 %s29, %s30
    %s32 = sand.u32 15, %s31
    %v33 = vld [vmem:[%s23] sm:%s32]
    %v34 = vunpack.c.l.bf16 %v33
    %v35 = vunpack.c.h.bf16 %v33
    %s36 = scalar_lea.vmem [#allocation1], 48
    %37 = vst [vmem:[%s36] sm:%s5] %v34
    %s38 = smul.addr 4, 5
    %s39 = scalar_lea.vmem %s0, %s38
    %s40 = sshrl.u32 %s5, 1
    %s41 = sor.u32 %s5, %s40
    %s42 = sand.u32 %s41, 85
    %s43 = sshrl.u32 %s42, 1
    %s44 = sor.u32 %s42, %s43
    %s45 = sand.u32 51, %s44
    %s46 = sshrl.u32 %s45, 2
    %s47 = sor.u32 %s45, %s46
    %s48 = sand.u32 15, %s47
    %v49 = vld [vmem:[%s39] sm:%s48]
    %v50 = vunpack.c.l.bf16 %v49
    %v51 = vunpack.c.h.bf16 %v49
    %s52 = scalar_lea.vmem [#allocation1], 40
    %53 = vst [vmem:[%s52] sm:%s5] %v50
    %s54 = smul.addr 4, 4
    %s55 = scalar_lea.vmem %s0, %s54
    %s56 = sshrl.u32 %s5, 1
    %s57 = sor.u32 %s5, %s56
    %s58 = sand.u32 %s57, 85
    %s59 = sshrl.u32 %s58, 1
    %s60 = sor.u32 %s58, %s59
    %s61 = sand.u32 51, %s60
    %s62 = sshrl.u32 %s61, 2
    %s63 = sor.u32 %s61, %s62
    %s64 = sand.u32 15, %s63
    %v65 = vld [vmem:[%s55] sm:%s64]
    %v66 = vunpack.c.l.bf16 %v65
    %v67 = vunpack.c.h.bf16 %v65
    %s68 = scalar_lea.vmem [#allocation1], 32
    %69 = vst [vmem:[%s68] sm:%s5] %v66
    %s70 = smul.addr 4, 3
    %s71 = scalar_lea.vmem %s0, %s70
    %s72 = sshrl.u32 %s5, 1
    %s73 = sor.u32 %s5, %s72
    %s74 = sand.u32 %s73, 85
    %s75 = sshrl.u32 %s74, 1
    %s76 = sor.u32 %s74, %s75
    %s77 = sand.u32 51, %s76
    %s78 = sshrl.u32 %s77, 2
    %s79 = sor.u32 %s77, %s78
    %s80 = sand.u32 15, %s79
    %v81 = vld [vmem:[%s71] sm:%s80]
    %v82 = vunpack.c.l.bf16 %v81
    %v83 = vunpack.c.h.bf16 %v81
    %s84 = scalar_lea.vmem [#allocation1], 24
    %85 = vst [vmem:[%s84] sm:%s5] %v82
    %s86 = smul.addr 4, 2
    %s87 = scalar_lea.vmem %s0, %s86
    %s88 = sshrl.u32 %s5, 1
    %s89 = sor.u32 %s5, %s88
    %s90 = sand.u32 %s89, 85
    %s91 = sshrl.u32 %s90, 1
    %s92 = sor.u32 %s90, %s91
    %s93 = sand.u32 51, %s92
    %s94 = sshrl.u32 %s93, 2
    %s95 = sor.u32 %s93, %s94
    %s96 = sand.u32 15, %s95
    %v97 = vld [vmem:[%s87] sm:%s96]
    %v98 = vunpack.c.l.bf16 %v97
    %v99 = vunpack.c.h.bf16 %v97
    %s100 = scalar_lea.vmem [#allocation1], 16
    %101 = vst [vmem:[%s100] sm:%s5] %v98
    %s102 = scalar_lea.vmem %s0, 4
    %s103 = sshrl.u32 %s5, 1
    %s104 = sor.u32 %s5, %s103
    %s105 = sand.u32 %s104, 85
    %s106 = sshrl.u32 %s105, 1
    %s107 = sor.u32 %s105, %s106
    %s108 = sand.u32 51, %s107
    %s109 = sshrl.u32 %s108, 2
    %s110 = sor.u32 %s108, %s109
    %s111 = sand.u32 15, %s110
    %v112 = vld [vmem:[%s102] sm:%s111]
    %v113 = vunpack.c.l.bf16 %v112
    %v114 = vunpack.c.h.bf16 %v112
    %s115 = scalar_lea.vmem [#allocation1], 8
    %116 = vst [vmem:[%s115] sm:%s5] %v113
    %s117 = sshrl.u32 %s5, 1
    %s118 = sor.u32 %s5, %s117
    %s119 = sand.u32 %s118, 85
    %s120 = sshrl.u32 %s119, 1
    %s121 = sor.u32 %s119, %s120
    %s122 = sand.u32 51, %s121
    %s123 = sshrl.u32 %s122, 2
    %s124 = sor.u32 %s122, %s123
    %s125 = sand.u32 15, %s124
    %v126 = vld [vmem:[%s0] sm:%s125]
    %v127 = vunpack.c.l.bf16 %v126
    %v128 = vunpack.c.h.bf16 %v126
    %129 = vst [vmem:[#allocation1] sm:%s5] %v127
    %v130 = vld [vmem:[#allocation1] sm:$0x1]
    %vm131 = vcmask 211968
    %132 = vst.msk [vmem:[#allocation0] sm:$0x1] %vm131, %v130
    %s133 = scalar_lea.vmem [#allocation1], 55
    %v134 = vld [vmem:[%s133] sm:$0x1]
    %s135 = scalar_lea.vmem [#allocation1], 55
    %v136 = vld [vmem:[%s135] sm:$0x1]
    %vm137 = vcmask 48128
    %v138 = vsel %vm137, %v136, %v134
    %139 = vrot.lane.b32.xlu0 %v138, 122
    %v140 = vpop.permute.xlu0 %139
    %vm141 = vcmask 162816
    %s142 = scalar_lea.vmem [#allocation0], 80
    %143 = vst.msk [vmem:[%s142] sm:$0x1] %vm141, %v140
    %vm144 = vcmask 1048528
    %s145 = scalar_lea.vmem [#allocation0], 72
    %146 = vst.msk [vmem:[%s145] sm:$0x1] %vm144, %v140
    %s147 = scalar_lea.vmem [#allocation1], 50
    %v148 = vld [vmem:[%s147] sm:$0x1]
    %s149 = scalar_lea.vmem [#allocation1], 50
    %v150 = vld [vmem:[%s149] sm:$0x1]
    %vm151 = vcmask 64512
    %v152 = vsel %vm151, %v150, %v148
    %153 = vrot.lane.b32.xlu0 %v152, 120
    %v154 = vpop.permute.xlu0 %153
    %vm155 = vcmask 146432
    %s156 = scalar_lea.vmem [#allocation0], 72
    %157 = vst.msk [vmem:[%s156] sm:$0x1] %vm155, %v154
    %vm158 = vcmask 1048512
    %s159 = scalar_lea.vmem [#allocation0], 64
    %160 = vst.msk [vmem:[%s159] sm:$0x1] %vm158, %v154
    %s161 = scalar_lea.vmem [#allocation1], 45
    %v162 = vld [vmem:[%s161] sm:$0x1]
    %s163 = scalar_lea.vmem [#allocation1], 45
    %v164 = vld [vmem:[%s163] sm:$0x1]
    %vm165 = vcmask 80896
    %v166 = vsel %vm165, %v164, %v162
    %167 = vrot.lane.b32.xlu0 %v166, 118
    %v168 = vpop.permute.xlu0 %167
    %vm169 = vcmask 130048
    %s170 = scalar_lea.vmem [#allocation0], 64
    %171 = vst.msk [vmem:[%s170] sm:$0x1] %vm169, %v168
    %vm172 = vcmask 1048496
    %s173 = scalar_lea.vmem [#allocation0], 56
    %174 = vst.msk [vmem:[%s173] sm:$0x1] %vm172, %v168
    %s175 = scalar_lea.vmem [#allocation1], 40
    %v176 = vld [vmem:[%s175] sm:$0x1]
    %s177 = scalar_lea.vmem [#allocation1], 40
    %v178 = vld [vmem:[%s177] sm:$0x1]
    %vm179 = vcmask 97280
    %v180 = vsel %vm179, %v178, %v176
    %181 = vrot.lane.b32.xlu0 %v180, 116
    %v182 = vpop.permute.xlu0 %181
    %vm183 = vcmask 113664
    %s184 = scalar_lea.vmem [#allocation0], 56
    %185 = vst.msk [vmem:[%s184] sm:$0x1] %vm183, %v182
    %vm186 = vcmask 1048480
    %s187 = scalar_lea.vmem [#allocation0], 48
    %188 = vst.msk [vmem:[%s187] sm:$0x1] %vm186, %v182
    %s189 = scalar_lea.vmem [#allocation1], 35
    %v190 = vld [vmem:[%s189] sm:$0x1]
    %s191 = scalar_lea.vmem [#allocation1], 35
    %v192 = vld [vmem:[%s191] sm:$0x1]
    %vm193 = vcmask 113664
    %v194 = vsel %vm193, %v192, %v190
    %195 = vrot.lane.b32.xlu0 %v194, 114
    %v196 = vpop.permute.xlu0 %195
    %vm197 = vcmask 97280
    %s198 = scalar_lea.vmem [#allocation0], 48
    %199 = vst.msk [vmem:[%s198] sm:$0x1] %vm197, %v196
    %vm200 = vcmask 1048464
    %s201 = scalar_lea.vmem [#allocation0], 40
    %202 = vst.msk [vmem:[%s201] sm:$0x1] %vm200, %v196
    %s203 = scalar_lea.vmem [#allocation1], 24
    %v204 = vld [vmem:[%s203] sm:$0x1]
    %s205 = scalar_lea.vmem [#allocation1], 24
    %v206 = vld [vmem:[%s205] sm:$0x1]
    %vm207 = vcmask 130048
    %v208 = vsel %vm207, %v206, %v204
    %209 = vrot.lane.b32.xlu0 %v208, 112
    %v210 = vpop.permute.xlu0 %209
    %vm211 = vcmask 80896
    %s212 = scalar_lea.vmem [#allocation0], 40
    %213 = vst.msk [vmem:[%s212] sm:$0x1] %vm211, %v210
    %vm214 = vcmask 1048448
    %s215 = scalar_lea.vmem [#allocation0], 32
    %216 = vst.msk [vmem:[%s215] sm:$0x1] %vm214, %v210
    %s217 = scalar_lea.vmem [#allocation1], 19
    %v218 = vld [vmem:[%s217] sm:$0x1]
    %s219 = scalar_lea.vmem [#allocation1], 19
    %v220 = vld [vmem:[%s219] sm:$0x1]
    %vm221 = vcmask 146432
    %v222 = vsel %vm221, %v220, %v218
    %223 = vrot.lane.b32.xlu0 %v222, 110
    %v224 = vpop.permute.xlu0 %223
    %vm225 = vcmask 64512
    %s226 = scalar_lea.vmem [#allocation0], 32
    %227 = vst.msk [vmem:[%s226] sm:$0x1] %vm225, %v224
    %vm228 = vcmask 1048432
    %s229 = scalar_lea.vmem [#allocation0], 24
    %230 = vst.msk [vmem:[%s229] sm:$0x1] %vm228, %v224
    %s231 = scalar_lea.vmem [#allocation1], 14
    %v232 = vld [vmem:[%s231] sm:$0x1]
    %s233 = scalar_lea.vmem [#allocation1], 14
    %v234 = vld [vmem:[%s233] sm:$0x1]
    %vm235 = vcmask 162816
    %v236 = vsel %vm235, %v234, %v232
    %237 = vrot.lane.b32.xlu0 %v236, 108
    %v238 = vpop.permute.xlu0 %237
    %vm239 = vcmask 48128
    %s240 = scalar_lea.vmem [#allocation0], 24
    %241 = vst.msk [vmem:[%s240] sm:$0x1] %vm239, %v238
    %vm242 = vcmask 1048416
    %s243 = scalar_lea.vmem [#allocation0], 16
    %244 = vst.msk [vmem:[%s243] sm:$0x1] %vm242, %v238
    %s245 = scalar_lea.vmem [#allocation1], 9
    %v246 = vld [vmem:[%s245] sm:$0x1]
    %s247 = scalar_lea.vmem [#allocation1], 9
    %v248 = vld [vmem:[%s247] sm:$0x1]
    %vm249 = vcmask 179200
    %v250 = vsel %vm249, %v248, %v246
    %251 = vrot.lane.b32.xlu0 %v250, 106
    %v252 = vpop.permute.xlu0 %251
    %vm253 = vcmask 31744
    %s254 = scalar_lea.vmem [#allocation0], 16
    %255 = vst.msk [vmem:[%s254] sm:$0x1] %vm253, %v252
    %vm256 = vcmask 1048400
    %s257 = scalar_lea.vmem [#allocation0], 8
    %258 = vst.msk [vmem:[%s257] sm:$0x1] %vm256, %v252
    %s259 = scalar_lea.vmem [#allocation1], 4
    %v260 = vld [vmem:[%s259] sm:$0x1]
    %s261 = scalar_lea.vmem [#allocation1], 4
    %v262 = vld [vmem:[%s261] sm:$0x1]
    %vm263 = vcmask 195584
    %v264 = vsel %vm263, %v262, %v260
    %265 = vrot.lane.b32.xlu0 %v264, 104
    %v266 = vpop.permute.xlu0 %265
    %vm267 = vcmask 15360
    %s268 = scalar_lea.vmem [#allocation0], 8
    %269 = vst.msk [vmem:[%s268] sm:$0x1] %vm267, %v266
    %vm270 = vcmask 1048384
    %271 = vst.msk [vmem:[#allocation0] sm:$0x1] %vm270, %v266
    %s272 = scalar_lea.vmem [#allocation1], 54
    %v273 = vld [vmem:[%s272] sm:$0x1]
    %274 = vrot.lane.b32.xlu0 %v273, 96
    %v275 = vpop.permute.xlu0 %274
    %vm276 = vcmask 999168
    %s277 = scalar_lea.vmem [#allocation0], 72
    %278 = vst.msk [vmem:[%s277] sm:$0x1] %vm276, %v275
    %s279 = scalar_lea.vmem [#allocation1], 49
    %v280 = vld [vmem:[%s279] sm:$0x1]
    %281 = vrot.lane.b32.xlu0 %v280, 94
    %v282 = vpop.permute.xlu0 %281
    %vm283 = vcmask 982768
    %s284 = scalar_lea.vmem [#allocation0], 64
    %285 = vst.msk [vmem:[%s284] sm:$0x1] %vm283, %v282
    %s286 = scalar_lea.vmem [#allocation1], 44
    %v287 = vld [vmem:[%s286] sm:$0x1]
    %288 = vrot.lane.b32.xlu0 %v287, 92
    %v289 = vpop.permute.xlu0 %288
    %vm290 = vcmask 966368
    %s291 = scalar_lea.vmem [#allocation0], 56
    %292 = vst.msk [vmem:[%s291] sm:$0x1] %vm290, %v289
    %s293 = scalar_lea.vmem [#allocation1], 39
    %v294 = vld [vmem:[%s293] sm:$0x1]
    %295 = vrot.lane.b32.xlu0 %v294, 90
    %v296 = vpop.permute.xlu0 %295
    %vm297 = vcmask 949968
    %s298 = scalar_lea.vmem [#allocation0], 48
    %299 = vst.msk [vmem:[%s298] sm:$0x1] %vm297, %v296
    %s300 = scalar_lea.vmem [#allocation1], 34
    %v301 = vld [vmem:[%s300] sm:$0x1]
    %302 = vrot.lane.b32.xlu0 %v301, 88
    %v303 = vpop.permute.xlu0 %302
    %vm304 = vcmask 933568
    %s305 = scalar_lea.vmem [#allocation0], 40
    %306 = vst.msk [vmem:[%s305] sm:$0x1] %vm304, %v303
    %s307 = scalar_lea.vmem [#allocation1], 23
    %v308 = vld [vmem:[%s307] sm:$0x1]
    %309 = vrot.lane.b32.xlu0 %v308, 86
    %v310 = vpop.permute.xlu0 %309
    %vm311 = vcmask 917168
    %s312 = scalar_lea.vmem [#allocation0], 32
    %313 = vst.msk [vmem:[%s312] sm:$0x1] %vm311, %v310
    %s314 = scalar_lea.vmem [#allocation1], 18
    %v315 = vld [vmem:[%s314] sm:$0x1]
    %316 = vrot.lane.b32.xlu0 %v315, 84
    %v317 = vpop.permute.xlu0 %316
    %vm318 = vcmask 900768
    %s319 = scalar_lea.vmem [#allocation0], 24
    %320 = vst.msk [vmem:[%s319] sm:$0x1] %vm318, %v317
    %s321 = scalar_lea.vmem [#allocation1], 13
    %v322 = vld [vmem:[%s321] sm:$0x1]
    %323 = vrot.lane.b32.xlu0 %v322, 82
    %v324 = vpop.permute.xlu0 %323
    %vm325 = vcmask 884368
    %s326 = scalar_lea.vmem [#allocation0], 16
    %327 = vst.msk [vmem:[%s326] sm:$0x1] %vm325, %v324
    %s328 = scalar_lea.vmem [#allocation1], 8
    %v329 = vld [vmem:[%s328] sm:$0x1]
    %330 = vrot.lane.b32.xlu0 %v329, 80
    %v331 = vpop.permute.xlu0 %330
    %vm332 = vcmask 867968
    %s333 = scalar_lea.vmem [#allocation0], 8
    %334 = vst.msk [vmem:[%s333] sm:$0x1] %vm332, %v331
    %s335 = scalar_lea.vmem [#allocation1], 3
    %v336 = vld [vmem:[%s335] sm:$0x1]
    %337 = vrot.lane.b32.xlu0 %v336, 78
    %v338 = vpop.permute.xlu0 %337
    %vm339 = vcmask 851568
    %340 = vst.msk [vmem:[#allocation0] sm:$0x1] %vm339, %v338
    %s341 = scalar_lea.vmem [#allocation1], 53
    %v342 = vld [vmem:[%s341] sm:$0x1]
    %343 = vrot.lane.b32.xlu0 %v342, 70
    %v344 = vpop.permute.xlu0 %343
    %vm345 = vcmask 785968
    %s346 = scalar_lea.vmem [#allocation0], 72
    %347 = vst.msk [vmem:[%s346] sm:$0x1] %vm345, %v344
    %s348 = scalar_lea.vmem [#allocation1], 48
    %v349 = vld [vmem:[%s348] sm:$0x1]
    %350 = vrot.lane.b32.xlu0 %v349, 68
    %v351 = vpop.permute.xlu0 %350
    %vm352 = vcmask 769568
    %s353 = scalar_lea.vmem [#allocation0], 64
    %354 = vst.msk [vmem:[%s353] sm:$0x1] %vm352, %v351
    %s355 = scalar_lea.vmem [#allocation1], 43
    %v356 = vld [vmem:[%s355] sm:$0x1]
    %357 = vrot.lane.b32.xlu0 %v356, 66
    %v358 = vpop.permute.xlu0 %357
    %vm359 = vcmask 753168
    %s360 = scalar_lea.vmem [#allocation0], 56
    %361 = vst.msk [vmem:[%s360] sm:$0x1] %vm359, %v358
    %s362 = scalar_lea.vmem [#allocation1], 38
    %v363 = vld [vmem:[%s362] sm:$0x1]
    %364 = vrot.lane.b32.xlu0 %v363, 64
    %v365 = vpop.permute.xlu0 %364
    %vm366 = vcmask 736768
    %s367 = scalar_lea.vmem [#allocation0], 48
    %368 = vst.msk [vmem:[%s367] sm:$0x1] %vm366, %v365
    %s369 = scalar_lea.vmem [#allocation1], 33
    %v370 = vld [vmem:[%s369] sm:$0x1]
    %371 = vrot.lane.b32.xlu0 %v370, 62
    %v372 = vpop.permute.xlu0 %371
    %vm373 = vcmask 720368
    %s374 = scalar_lea.vmem [#allocation0], 40
    %375 = vst.msk [vmem:[%s374] sm:$0x1] %vm373, %v372
    %s376 = scalar_lea.vmem [#allocation1], 22
    %v377 = vld [vmem:[%s376] sm:$0x1]
    %378 = vrot.lane.b32.xlu0 %v377, 60
    %v379 = vpop.permute.xlu0 %378
    %vm380 = vcmask 703968
    %s381 = scalar_lea.vmem [#allocation0], 32
    %382 = vst.msk [vmem:[%s381] sm:$0x1] %vm380, %v379
    %s383 = scalar_lea.vmem [#allocation1], 17
    %v384 = vld [vmem:[%s383] sm:$0x1]
    %385 = vrot.lane.b32.xlu0 %v384, 58
    %v386 = vpop.permute.xlu0 %385
    %vm387 = vcmask 687568
    %s388 = scalar_lea.vmem [#allocation0], 24
    %389 = vst.msk [vmem:[%s388] sm:$0x1] %vm387, %v386
    %s390 = scalar_lea.vmem [#allocation1], 12
    %v391 = vld [vmem:[%s390] sm:$0x1]
    %392 = vrot.lane.b32.xlu0 %v391, 56
    %v393 = vpop.permute.xlu0 %392
    %vm394 = vcmask 671168
    %s395 = scalar_lea.vmem [#allocation0], 16
    %396 = vst.msk [vmem:[%s395] sm:$0x1] %vm394, %v393
    %s397 = scalar_lea.vmem [#allocation1], 7
    %v398 = vld [vmem:[%s397] sm:$0x1]
    %399 = vrot.lane.b32.xlu0 %v398, 54
    %v400 = vpop.permute.xlu0 %399
    %vm401 = vcmask 654768
    %s402 = scalar_lea.vmem [#allocation0], 8
    %403 = vst.msk [vmem:[%s402] sm:$0x1] %vm401, %v400
    %s404 = scalar_lea.vmem [#allocation1], 2
    %v405 = vld [vmem:[%s404] sm:$0x1]
    %406 = vrot.lane.b32.xlu0 %v405, 52
    %v407 = vpop.permute.xlu0 %406
    %vm408 = vcmask 638368
    %409 = vst.msk [vmem:[#allocation0] sm:$0x1] %vm408, %v407
    %s410 = scalar_lea.vmem [#allocation1], 57
    %v411 = vld [vmem:[%s410] sm:$0x1]
    %412 = vrot.lane.b32.xlu0 %v411, 46
    %v413 = vpop.permute.xlu0 %412
    %vm414 = vcmask 589168
    %s415 = scalar_lea.vmem [#allocation0], 80
    %416 = vst.msk [vmem:[%s415] sm:$0x1] %vm414, %v413
    %s417 = scalar_lea.vmem [#allocation1], 52
    %v418 = vld [vmem:[%s417] sm:$0x1]
    %419 = vrot.lane.b32.xlu0 %v418, 44
    %v420 = vpop.permute.xlu0 %419
    %vm421 = vcmask 572768
    %s422 = scalar_lea.vmem [#allocation0], 72
    %423 = vst.msk [vmem:[%s422] sm:$0x1] %vm421, %v420
    %s424 = scalar_lea.vmem [#allocation1], 47
    %v425 = vld [vmem:[%s424] sm:$0x1]
    %426 = vrot.lane.b32.xlu0 %v425, 42
    %v427 = vpop.permute.xlu0 %426
    %vm428 = vcmask 556368
    %s429 = scalar_lea.vmem [#allocation0], 64
    %430 = vst.msk [vmem:[%s429] sm:$0x1] %vm428, %v427
    %s431 = scalar_lea.vmem [#allocation1], 42
    %v432 = vld [vmem:[%s431] sm:$0x1]
    %433 = vrot.lane.b32.xlu0 %v432, 40
    %v434 = vpop.permute.xlu0 %433
    %vm435 = vcmask 539968
    %s436 = scalar_lea.vmem [#allocation0], 56
    %437 = vst.msk [vmem:[%s436] sm:$0x1] %vm435, %v434
    %s438 = scalar_lea.vmem [#allocation1], 37
    %v439 = vld [vmem:[%s438] sm:$0x1]
    %440 = vrot.lane.b32.xlu0 %v439, 38
    %v441 = vpop.permute.xlu0 %440
    %vm442 = vcmask 523568
    %s443 = scalar_lea.vmem [#allocation0], 48
    %444 = vst.msk [vmem:[%s443] sm:$0x1] %vm442, %v441
    %s445 = scalar_lea.vmem [#allocation1], 32
    %v446 = vld [vmem:[%s445] sm:$0x1]
    %447 = vrot.lane.b32.xlu0 %v446, 36
    %v448 = vpop.permute.xlu0 %447
    %vm449 = vcmask 507168
    %s450 = scalar_lea.vmem [#allocation0], 40
    %451 = vst.msk [vmem:[%s450] sm:$0x1] %vm449, %v448
    %s452 = scalar_lea.vmem [#allocation1], 21
    %v453 = vld [vmem:[%s452] sm:$0x1]
    %454 = vrot.lane.b32.xlu0 %v453, 34
    %v455 = vpop.permute.xlu0 %454
    %vm456 = vcmask 490768
    %s457 = scalar_lea.vmem [#allocation0], 32
    %458 = vst.msk [vmem:[%s457] sm:$0x1] %vm456, %v455
    %s459 = scalar_lea.vmem [#allocation1], 16
    %v460 = vld [vmem:[%s459] sm:$0x1]
    %461 = vrot.lane.b32.xlu0 %v460, 32
    %v462 = vpop.permute.xlu0 %461
    %vm463 = vcmask 474368
    %s464 = scalar_lea.vmem [#allocation0], 24
    %465 = vst.msk [vmem:[%s464] sm:$0x1] %vm463, %v462
    %s466 = scalar_lea.vmem [#allocation1], 11
    %v467 = vld [vmem:[%s466] sm:$0x1]
    %468 = vrot.lane.b32.xlu0 %v467, 30
    %v469 = vpop.permute.xlu0 %468
    %vm470 = vcmask 457968
    %s471 = scalar_lea.vmem [#allocation0], 16
    %472 = vst.msk [vmem:[%s471] sm:$0x1] %vm470, %v469
    %s473 = scalar_lea.vmem [#allocation1], 6
    %v474 = vld [vmem:[%s473] sm:$0x1]
    %475 = vrot.lane.b32.xlu0 %v474, 28
    %v476 = vpop.permute.xlu0 %475
    %vm477 = vcmask 441568
    %s478 = scalar_lea.vmem [#allocation0], 8
    %479 = vst.msk [vmem:[%s478] sm:$0x1] %vm477, %v476
    %s480 = scalar_lea.vmem [#allocation1], 1
    %v481 = vld [vmem:[%s480] sm:$0x1]
    %482 = vrot.lane.b32.xlu0 %v481, 26
    %v483 = vpop.permute.xlu0 %482
    %vm484 = vcmask 425168
    %485 = vst.msk [vmem:[#allocation0] sm:$0x1] %vm484, %v483
    %s486 = scalar_lea.vmem [#allocation1], 56
    %v487 = vld [vmem:[%s486] sm:$0x1]
    %488 = vrot.lane.b32.xlu0 %v487, 20
    %v489 = vpop.permute.xlu0 %488
    %vm490 = vcmask 375968
    %s491 = scalar_lea.vmem [#allocation0], 80
    %492 = vst.msk [vmem:[%s491] sm:$0x1] %vm490, %v489
    %s493 = scalar_lea.vmem [#allocation1], 51
    %v494 = vld [vmem:[%s493] sm:$0x1]
    %495 = vrot.lane.b32.xlu0 %v494, 18
    %v496 = vpop.permute.xlu0 %495
    %vm497 = vcmask 359568
    %s498 = scalar_lea.vmem [#allocation0], 72
    %499 = vst.msk [vmem:[%s498] sm:$0x1] %vm497, %v496
    %s500 = scalar_lea.vmem [#allocation1], 46
    %v501 = vld [vmem:[%s500] sm:$0x1]
    %502 = vrot.lane.b32.xlu0 %v501, 16
    %v503 = vpop.permute.xlu0 %502
    %vm504 = vcmask 343168
    %s505 = scalar_lea.vmem [#allocation0], 64
    %506 = vst.msk [vmem:[%s505] sm:$0x1] %vm504, %v503
    %s507 = scalar_lea.vmem [#allocation1], 41
    %v508 = vld [vmem:[%s507] sm:$0x1]
    %509 = vrot.lane.b32.xlu0 %v508, 14
    %v510 = vpop.permute.xlu0 %509
    %vm511 = vcmask 326768
    %s512 = scalar_lea.vmem [#allocation0], 56
    %513 = vst.msk [vmem:[%s512] sm:$0x1] %vm511, %v510
    %s514 = scalar_lea.vmem [#allocation1], 36
    %v515 = vld [vmem:[%s514] sm:$0x1]
    %516 = vrot.lane.b32.xlu0 %v515, 12
    %v517 = vpop.permute.xlu0 %516
    %vm518 = vcmask 310368
    %s519 = scalar_lea.vmem [#allocation0], 48
    %520 = vst.msk [vmem:[%s519] sm:$0x1] %vm518, %v517
    %s521 = scalar_lea.vmem [#allocation1], 25
    %v522 = vld [vmem:[%s521] sm:$0x1]
    %523 = vrot.lane.b32.xlu0 %v522, 10
    %v524 = vpop.permute.xlu0 %523
    %vm525 = vcmask 293968
    %s526 = scalar_lea.vmem [#allocation0], 40
    %527 = vst.msk [vmem:[%s526] sm:$0x1] %vm525, %v524
    %s528 = scalar_lea.vmem [#allocation1], 20
    %v529 = vld [vmem:[%s528] sm:$0x1]
    %530 = vrot.lane.b32.xlu0 %v529, 8
    %v531 = vpop.permute.xlu0 %530
    %vm532 = vcmask 277568
    %s533 = scalar_lea.vmem [#allocation0], 32
    %534 = vst.msk [vmem:[%s533] sm:$0x1] %vm532, %v531
    %s535 = scalar_lea.vmem [#allocation1], 15
    %v536 = vld [vmem:[%s535] sm:$0x1]
    %537 = vrot.lane.b32.xlu0 %v536, 6
    %v538 = vpop.permute.xlu0 %537
    %vm539 = vcmask 261168
    %s540 = scalar_lea.vmem [#allocation0], 24
    %541 = vst.msk [vmem:[%s540] sm:$0x1] %vm539, %v538
    %s542 = scalar_lea.vmem [#allocation1], 10
    %v543 = vld [vmem:[%s542] sm:$0x1]
    %544 = vrot.lane.b32.xlu0 %v543, 4
    %v545 = vpop.permute.xlu0 %544
    %vm546 = vcmask 244768
    %s547 = scalar_lea.vmem [#allocation0], 16
    %548 = vst.msk [vmem:[%s547] sm:$0x1] %vm546, %v545
    %s549 = scalar_lea.vmem [#allocation1], 5
    %v550 = vld [vmem:[%s549] sm:$0x1]
    %551 = vrot.lane.b32.xlu0 %v550, 2
    %v552 = vpop.permute.xlu0 %551
    %vm553 = vcmask 228368
    %s554 = scalar_lea.vmem [#allocation0], 8
    %555 = vst.msk [vmem:[%s554] sm:$0x1] %vm553, %v552
    %s557 = smul.u32 1, 2
    %s558 = sshll.u32 1, %s557
    %s559 = ssub.s32 %s558, 1
    %s560 = sshrl.u32 %s557, 1
    %v561 = vld [vmem:[#allocation0] sm:%s559]
    %v562 = vpack.c.bf16 0.0, %v561
    %s563 = sshll.u32 1, %s560
    %s564 = ssub.s32 %s563, 1
    %565 = vst [vmem:[%s1] sm:%s564] %v562
    %s566 = scalar_lea.vmem [#allocation0], 8
    %v567 = vld [vmem:[%s566] sm:%s559]
    %v568 = vpack.c.bf16 0.0, %v567
    %s569 = sshll.u32 1, %s560
    %s570 = ssub.s32 %s569, 1
    %s571 = scalar_lea.vmem %s1, 1
    %572 = vst [vmem:[%s571] sm:%s570] %v568
    %s573 = scalar_lea.vmem [#allocation0], 16
    %v574 = vld [vmem:[%s573] sm:%s559]
    %v575 = vpack.c.bf16 0.0, %v574
    %s576 = sshll.u32 1, %s560
    %s577 = ssub.s32 %s576, 1
    %s578 = smul.addr 1, 2
    %s579 = scalar_lea.vmem %s1, %s578
    %580 = vst [vmem:[%s579] sm:%s577] %v575
    %s581 = scalar_lea.vmem [#allocation0], 24
    %v582 = vld [vmem:[%s581] sm:%s559]
    %v583 = vpack.c.bf16 0.0, %v582
    %s584 = sshll.u32 1, %s560
    %s585 = ssub.s32 %s584, 1
    %s586 = smul.addr 1, 3
    %s587 = scalar_lea.vmem %s1, %s586
    %588 = vst [vmem:[%s587] sm:%s585] %v583
    %s589 = scalar_lea.vmem [#allocation0], 32
    %v590 = vld [vmem:[%s589] sm:%s559]
    %v591 = vpack.c.bf16 0.0, %v590
    %s592 = sshll.u32 1, %s560
    %s593 = ssub.s32 %s592, 1
    %s594 = smul.addr 1, 4
    %s595 = scalar_lea.vmem %s1, %s594
    %596 = vst [vmem:[%s595] sm:%s593] %v591
    %s597 = scalar_lea.vmem [#allocation0], 40
    %v598 = vld [vmem:[%s597] sm:%s559]
    %v599 = vpack.c.bf16 0.0, %v598
    %s600 = sshll.u32 1, %s560
    %s601 = ssub.s32 %s600, 1
    %s602 = smul.addr 1, 5
    %s603 = scalar_lea.vmem %s1, %s602
    %604 = vst [vmem:[%s603] sm:%s601] %v599
    %s605 = scalar_lea.vmem [#allocation0], 48
    %v606 = vld [vmem:[%s605] sm:%s559]
    %v607 = vpack.c.bf16 0.0, %v606
    %s608 = sshll.u32 1, %s560
    %s609 = ssub.s32 %s608, 1
    %s610 = smul.addr 1, 6
    %s611 = scalar_lea.vmem %s1, %s610
    %612 = vst [vmem:[%s611] sm:%s609] %v607
    %s613 = scalar_lea.vmem [#allocation0], 56
    %v614 = vld [vmem:[%s613] sm:%s559]
    %v615 = vpack.c.bf16 0.0, %v614
    %s616 = sshll.u32 1, %s560
    %s617 = ssub.s32 %s616, 1
    %s618 = smul.addr 1, 7
    %s619 = scalar_lea.vmem %s1, %s618
    %620 = vst [vmem:[%s619] sm:%s617] %v615
    %s621 = scalar_lea.vmem [#allocation0], 64
    %v622 = vld [vmem:[%s621] sm:%s559]
    %v623 = vpack.c.bf16 0.0, %v622
    %s624 = sshll.u32 1, %s560
    %s625 = ssub.s32 %s624, 1
    %s626 = smul.addr 1, 8
    %s627 = scalar_lea.vmem %s1, %s626
    %628 = vst [vmem:[%s627] sm:%s625] %v623
    %s629 = scalar_lea.vmem [#allocation0], 72
    %v630 = vld [vmem:[%s629] sm:%s559]
    %v631 = vpack.c.bf16 0.0, %v630
    %s632 = sshll.u32 1, %s560
    %s633 = ssub.s32 %s632, 1
    %s634 = smul.addr 1, 9
    %s635 = scalar_lea.vmem %s1, %s634
    %636 = vst [vmem:[%s635] sm:%s633] %v631
    %s637 = scalar_lea.vmem [#allocation0], 80
    %v638 = vld [vmem:[%s637] sm:%s559]
    %v639 = vpack.c.bf16 0.0, %v638
    %s640 = sshll.u32 1, %s560
    %s641 = ssub.s32 %s640, 1
    %s642 = smul.addr 1, 10
    %s643 = scalar_lea.vmem %s1, %s642
    %644 = vst [vmem:[%s643] sm:%s641] %v639

// kernel: cnn_forward.5
$region0: #{cnn_forward.5}
  #allocation0 [shape = 'u32[]', space=smem, size = 0x4, offset = 0x4, fixed_abs, tag = 'smem constant byte address 0x4 - core index']
  #allocation1 [shape = 'u32[144,128]{1,0:T(1,128)}', space=vmem, size = 0x12000, scoped, tag = 'internal scratch']
  %s0 = inlined_call_operand.hbm [shape: bf16[16,48], index: 0, kind: input, shape index: {}]
  %s1 = inlined_call_operand.vmem [shape: bf16[48,1792], index: 1, kind: input, shape index: {}]
  %s2 = inlined_call_operand.vmem [shape: f32[16,1], index: 2, kind: input, shape index: {}]
  %s3 = inlined_call_operand.vmem [shape: bf16[16,1792], index: 3, kind: output, shape index: {}]
  %s4 = sld [smem:[#allocation0]]
  $region97: #{cnn_forward.5} parent=0
    _
  %s6 = ssub.s32 1, %s4
  %s7 = scalar_select 0, %s6, %s4
  $region1: #{cnn_forward.5} parent=0
    #allocation2 [shape = 'u8[4096]{0}', space=vmem, size = 0x1000, scoped, tag = 'input window, operand 0, single buffered']
    #allocation3 [shape = 's32[2]{0}', space=sflag, size = 0x8, scoped, tag = 'scoped memory for cnn_forward.5']
    #allocation4 [shape = 'u8[172032]{0}', space=vmem, size = 0x2a000, scoped, tag = 'input window, operand 1']
    #allocation5 [shape = 'u8[57344]{0}', space=vmem, size = 0xe000, scoped, tag = 'output window, operand 0']
    %8 = vsyncpa [#allocation3], 0
    loop: start=0, step=1, limit=4
    $region2: #{cnn_forward.5} parent=1 // loop_pre_header
      _
    $region3: #{cnn_forward.5} parent=1 // loop_header
      %s10 = sphi 0, %s14
      %p11 = scmp.ge.s32.totalorder %s10, 4
      %s18 = sphi 0, %s18
      %s20 = sphi 0, %s18
      %s21 = sphi 0, %s20
      %s35 = sphi 0, %s21
      %s41 = sphi 0, %s43
      %s44 = sphi 0, %s41
      %s45 = sphi 0, %s44
      %s61 = sphi 0, %s45
      %s65 = sphi 0, %s65
      %s67 = sphi 0, %s65
      %s68 = sphi 0, %s67
      %s82 = sphi 0, %s68
      %s88 = sphi 0, %s90
      %s91 = sphi 0, %s88
      %s92 = sphi 0, %s91
      %s108 = sphi 0, %s92
    $region4: #{cnn_forward.5} parent=1 // loop_header_branch
      %13 = sbr.rel (%p11) target = $region8
    $region5: #{cnn_forward.5} parent=1 // loop_body
      %s15 = ssub.s32 %s10, 1
      %s16 = ssub.s32 %s10, 2
      %s17 = sadd.s32 %s10, 1
      %s19 = sadd.s32 %s18, 1
      %p22 = scmp.eq.s32.totalorder %s10, 1
      %p23 = scmp.ne.s32.totalorder %s18, %s20
      %p24 = scmp.eq.s32.totalorder %s10, 0
      %p25 = por %p23, %p24
      %p26 = scmp.ne.s32.totalorder %s18, %s20
      %p27 = scmp.eq.s32.totalorder %s15, 1
      %p28 = por %p26, %p27
      %p29 = scmp.ne.s32.totalorder %s20, %s21
      %p30 = scmp.eq.s32.totalorder %s15, 0
      %p31 = por %p29, %p30
      %p32 = scmp.ne.s32.totalorder %s20, %s21
      %p33 = scmp.eq.s32.totalorder %s16, 1
      %p34 = por %p32, %p33
      %p36 = scmp.ne.s32.totalorder %s21, %s35
      %p37 = scmp.eq.s32.totalorder %s16, 0
      %p38 = por %p36, %p37
      %s39 = ssub.s32 %s10, %s17
      %p40 = scmp.eq.s32.totalorder %s39, 0
      %s42 = sadd.s32 %s41, 1
      %s43 = scalar_select %p40, %s41, %s42
      %p46 = pneg %p40
      %p47 = scmp.eq.s32.totalorder %s10, 1
      %p48 = por %p46, %p47
      %p49 = scmp.ne.s32.totalorder %s41, %s44
      %p50 = scmp.eq.s32.totalorder %s10, 0
      %p51 = por %p49, %p50
      %p52 = scmp.ne.s32.totalorder %s41, %s44
      %p53 = scmp.eq.s32.totalorder %s15, 1
      %p54 = por %p52, %p53
      %p55 = scmp.ne.s32.totalorder %s44, %s45
      %p56 = scmp.eq.s32.totalorder %s15, 0
      %p57 = por %p55, %p56
      %p58 = scmp.ne.s32.totalorder %s44, %s45
      %p59 = scmp.eq.s32.totalorder %s16, 1
      %p60 = por %p58, %p59
      %p62 = scmp.ne.s32.totalorder %s45, %s61
      %p63 = scmp.eq.s32.totalorder %s16, 0
      %p64 = por %p62, %p63
      %s66 = sadd.s32 %s65, 1
      %p69 = scmp.eq.s32.totalorder %s10, 1
      %p70 = scmp.ne.s32.totalorder %s65, %s67
      %p71 = scmp.eq.s32.totalorder %s10, 0
      %p72 = por %p70, %p71
      %p73 = scmp.ne.s32.totalorder %s65, %s67
      %p74 = scmp.eq.s32.totalorder %s15, 1
      %p75 = por %p73, %p74
      %p76 = scmp.ne.s32.totalorder %s67, %s68
      %p77 = scmp.eq.s32.totalorder %s15, 0
      %p78 = por %p76, %p77
      %p79 = scmp.ne.s32.totalorder %s67, %s68
      %p80 = scmp.eq.s32.totalorder %s16, 1
      %p81 = por %p79, %p80
      %p83 = scmp.ne.s32.totalorder %s68, %s82
      %p84 = scmp.eq.s32.totalorder %s16, 0
      %p85 = por %p83, %p84
      %s86 = ssub.s32 %s10, %s17
      %p87 = scmp.eq.s32.totalorder %s86, 0
      %s89 = sadd.s32 %s88, 1
      %s90 = scalar_select %p87, %s88, %s89
      %p93 = pneg %p87
      %p94 = scmp.eq.s32.totalorder %s10, 1
      %p95 = por %p93, %p94
      %p96 = scmp.ne.s32.totalorder %s88, %s91
      %p97 = scmp.eq.s32.totalorder %s10, 0
      %p98 = por %p96, %p97
      %p99 = scmp.ne.s32.totalorder %s88, %s91
      %p100 = scmp.eq.s32.totalorder %s15, 1
      %p101 = por %p99, %p100
      %p102 = scmp.ne.s32.totalorder %s91, %s92
      %p103 = scmp.eq.s32.totalorder %s15, 0
      %p104 = por %p102, %p103
      %p105 = scmp.ne.s32.totalorder %s91, %s92
      %p106 = scmp.eq.s32.totalorder %s16, 1
      %p107 = por %p105, %p106
      %p109 = scmp.ne.s32.totalorder %s92, %s108
      %p110 = scmp.eq.s32.totalorder %s16, 0
      %p111 = por %p109, %p110
      %p112 = scmp.le.s32.totalorder 1, %s10
      %p113 = scmp.lt.s32.totalorder %s10, 3
      %p114 = pnand %p112, %p113
      %p115 = pneg %p114
      // Predicated region
      $region9: #{cnn_forward.5} parent=5 // pred_check
        _
      $region10: #{cnn_forward.5} parent=5 // pred_check_branch
        %117 = sbr.rel (%p114) target = $region12
      $region11: #{cnn_forward.5} parent=5 // pred_region
        %s118 = ssub.s32 %s10, 1
        // Predicated region
        $region13: #{cnn_forward.5} parent=11 // pred_check
          %p119 = pneg %p31
        $region14: #{cnn_forward.5} parent=11 // pred_check_branch
          %121 = sbr.rel (%p119) target = $region16
        $region15: #{cnn_forward.5} parent=11 // pred_region
          %s123 = ssub.s32 128, 128
          %124 = vsyncadd [#allocation3], %s123
          %s125 = sshll.u32 [#allocation2], 4
          %s126 = int_to_ptr.vmem [resolvable:$true] %s125
          %131 = dma.hbm_to_vmem [thread:$0]  %s0, 128, %s126, [#allocation3], 64, 64, 4
        $region16: #{cnn_forward.5} parent=11 // pred_fallthru
          _
        // Predicated region
        $region17: #{cnn_forward.5} parent=11 // pred_check
          %p132 = pneg %p78
        $region18: #{cnn_forward.5} parent=11 // pred_check_branch
          %134 = sbr.rel (%p132) target = $region20
        $region19: #{cnn_forward.5} parent=11 // pred_region
          _
        $region20: #{cnn_forward.5} parent=11 // pred_fallthru
          _
      $region12: #{cnn_forward.5} parent=5 // pred_fallthru
        _
      %p135 = scmp.lt.s32.totalorder %s10, 2
      // Predicated region
      $region21: #{cnn_forward.5} parent=5 // pred_check
        %p136 = pneg %p135
      $region22: #{cnn_forward.5} parent=5 // pred_check_branch
        %138 = sbr.rel (%p136) target = $region24
      $region23: #{cnn_forward.5} parent=5 // pred_region
        // Predicated region
        $region25: #{cnn_forward.5} parent=23 // pred_check
          %p139 = pneg %p51
        $region26: #{cnn_forward.5} parent=23 // pred_check_branch
          %141 = sbr.rel (%p139) target = $region28
        $region27: #{cnn_forward.5} parent=23 // pred_region
          %s142 = sand.u32 %s41, 1
          %s143 = sand.u32 %s41, 1
          %s144 = smul.addr %s143, 168
          %s145 = scalar_lea.vmem [#allocation4], %s144
          %s146 = smul.u32 7, %s10
          %s147 = smul.addr %s146, 4
          %s148 = scalar_lea.vmem %s1, %s147
          // Predicated region
          $region29: #{cnn_forward.5} parent=27 // pred_check
            _
          $region30: #{cnn_forward.5} parent=27 // pred_check_branch
            %150 = sbr.rel (0) target = $region32
          $region31: #{cnn_forward.5} parent=27 // pred_region
            // Predicated region
            $region33: #{cnn_forward.5} parent=31 // pred_check
              _
            $region34: #{cnn_forward.5} parent=31 // pred_check_branch
              %152 = sbr.rel (0) target = $region36
            $region35: #{cnn_forward.5} parent=31 // pred_region
              %s153 = scalar_lea.vmem %s148, 24
              %s154 = scalar_lea.vmem %s145, 24 [#allocation4]
              loop: start=0, step=1, limit=1
              $region37: #{cnn_forward.5} parent=35 // loop_pre_header
                _
              $region38: #{cnn_forward.5} parent=35 // loop_header
                %s156 = sphi 0, %s160
                %p157 = scmp.ge.s32.totalorder %s156, 1
                %s161 = sphi %s148, %s148
                %s162 = sphi %s145, %s145
              $region39: #{cnn_forward.5} parent=35 // loop_header_branch
                %159 = sbr.rel (%p157) target = $region43
              $region40: #{cnn_forward.5} parent=35 // loop_body
                %v163 = vld [vmem:[%s161] sm:$0xff]
                %164 = vst [vmem:[%s162] sm:$0xff] %v163
                %v165 = vld [vmem:[%s161 + $0x8] sm:$0xff]
                %166 = vst [vmem:[%s162 + $0x8] sm:$0xff] %v165
                %v167 = vld [vmem:[%s161 + $0x10] sm:$0xff]
                %168 = vst [vmem:[%s162 + $0x10] sm:$0xff] %v167
                %v169 = vld [vmem:[%s161 + $0x38] sm:$0xff]
                %170 = vst [vmem:[%s162 + $0x1c] sm:$0xff] %v169
                %v171 = vld [vmem:[%s161 + $0x40] sm:$0xff]
                %172 = vst [vmem:[%s162 + $0x24] sm:$0xff] %v171
                %v173 = vld [vmem:[%s161 + $0x48] sm:$0xff]
                %174 = vst [vmem:[%s162 + $0x2c] sm:$0xff] %v173
                %v175 = vld [vmem:[%s161 + $0x70] sm:$0xff]
                %176 = vst [vmem:[%s162 + $0x38] sm:$0xff] %v175
                %v177 = vld [vmem:[%s161 + $0x78] sm:$0xff]
                %178 = vst [vmem:[%s162 + $0x40] sm:$0xff] %v177
                %v179 = vld [vmem:[%s161 + $0x80] sm:$0xff]
                %180 = vst [vmem:[%s162 + $0x48] sm:$0xff] %v179
                %v181 = vld [vmem:[%s161 + $0xa8] sm:$0xff]
                %182 = vst [vmem:[%s162 + $0x54] sm:$0xff] %v181
                %v183 = vld [vmem:[%s161 + $0xb0] sm:$0xff]
                %184 = vst [vmem:[%s162 + $0x5c] sm:$0xff] %v183
                %v185 = vld [vmem:[%s161 + $0xb8] sm:$0xff]
                %186 = vst [vmem:[%s162 + $0x64] sm:$0xff] %v185
                %v187 = vld [vmem:[%s161 + $0xe0] sm:$0xff]
                %188 = vst [vmem:[%s162 + $0x70] sm:$0xff] %v187
                %v189 = vld [vmem:[%s161 + $0xe8] sm:$0xff]
                %190 = vst [vmem:[%s162 + $0x78] sm:$0xff] %v189
                %v191 = vld [vmem:[%s161 + $0xf0] sm:$0xff]
                %192 = vst [vmem:[%s162 + $0x80] sm:$0xff] %v191
                %v193 = vld [vmem:[%s161 + $0x118] sm:$0xff]
                %194 = vst [vmem:[%s162 + $0x8c] sm:$0xff] %v193
                %v195 = vld [vmem:[%s161 + $0x120] sm:$0xff]
                %196 = vst [vmem:[%s162 + $0x94] sm:$0xff] %v195
                %v197 = vld [vmem:[%s161 + $0x128] sm:$0xff]
                %198 = vst [vmem:[%s162 + $0x9c] sm:$0xff] %v197
              $region41: #{cnn_forward.5} parent=35 // loop_footer
                %s160 = sadd.s32 1, %s156
              $region42: #{cnn_forward.5} parent=35 // loop_footer_branch
                %155 = sbr.rel target = $region38
              $region43: #{cnn_forward.5} parent=35 // loop_exit
                _
              %s200 = ssub.s32 16, 1
              loop: start=0, step=1, limit=1
              $region44: #{cnn_forward.5} parent=35 // loop_pre_header
                _
              $region45: #{cnn_forward.5} parent=35 // loop_header
                %s202 = sphi 0, %s206
                %p203 = scmp.ge.s32.totalorder %s202, 1
                %s207 = sphi %s153, %s153
                %s208 = sphi %s154, %s154
              $region46: #{cnn_forward.5} parent=35 // loop_header_branch
                %205 = sbr.rel (%p203) target = $region50
              $region47: #{cnn_forward.5} parent=35 // loop_body
                %v209 = vld [vmem:[%s207] sm:%s200]
                %210 = vst [vmem:[%s208] sm:%s200] %v209
                %v211 = vld [vmem:[%s207 + $0x38] sm:%s200]
                %212 = vst [vmem:[%s208 + $0x1c] sm:%s200] %v211
                %v213 = vld [vmem:[%s207 + $0x70] sm:%s200]
                %214 = vst [vmem:[%s208 + $0x38] sm:%s200] %v213
                %v215 = vld [vmem:[%s207 + $0xa8] sm:%s200]
                %216 = vst [vmem:[%s208 + $0x54] sm:%s200] %v215
                %v217 = vld [vmem:[%s207 + $0xe0] sm:%s200]
                %218 = vst [vmem:[%s208 + $0x70] sm:%s200] %v217
                %v219 = vld [vmem:[%s207 + $0x118] sm:%s200]
                %220 = vst [vmem:[%s208 + $0x8c] sm:%s200] %v219
              $region48: #{cnn_forward.5} parent=35 // loop_footer
                %s206 = sadd.s32 1, %s202
              $region49: #{cnn_forward.5} parent=35 // loop_footer_branch
                %201 = sbr.rel target = $region45
              $region50: #{cnn_forward.5} parent=35 // loop_exit
                _
            $region36: #{cnn_forward.5} parent=31 // pred_fallthru
              _
          $region32: #{cnn_forward.5} parent=27 // pred_fallthru
            _
          %221 = vnop
        $region28: #{cnn_forward.5} parent=23 // pred_fallthru
          _
      $region24: #{cnn_forward.5} parent=5 // pred_fallthru
        _
      %p222 = scmp.le.s32.totalorder 1, %s10
      %p223 = scmp.lt.s32.totalorder %s10, 3
      %p224 = pnand %p222, %p223
      %p225 = pneg %p224
      // Predicated region
      $region51: #{cnn_forward.5} parent=5 // pred_check
        _
      $region52: #{cnn_forward.5} parent=5 // pred_check_branch
        %227 = sbr.rel (%p224) target = $region54
      $region53: #{cnn_forward.5} parent=5 // pred_region
        %s228 = ssub.s32 %s10, 1
        // Predicated region
        $region55: #{cnn_forward.5} parent=53 // pred_check
          %p229 = pneg %p31
        $region56: #{cnn_forward.5} parent=53 // pred_check_branch
          %231 = sbr.rel (%p229) target = $region58
        $region57: #{cnn_forward.5} parent=53 // pred_region
          %232 = dma.done [#allocation3], 128
        $region58: #{cnn_forward.5} parent=53 // pred_fallthru
          _
        %s233 = sand.u32 %s44, 1
        %s234 = sand.u32 %s44, 1
        %s235 = smul.addr %s234, 168
        %s236 = scalar_lea.vmem [#allocation4], %s235
        // Predicated region
        $region59: #{cnn_forward.5} parent=53 // pred_check
          %p237 = pneg %p57
        $region60: #{cnn_forward.5} parent=53 // pred_check_branch
          %239 = sbr.rel (%p237) target = $region62
        $region61: #{cnn_forward.5} parent=53 // pred_region
          _
        $region62: #{cnn_forward.5} parent=53 // pred_fallthru
          _
        %p240 = pneg %p31
        %p241 = pneg %p28
        %s242 = sand.u32 %s44, 1
        %s243 = sand.u32 %s44, 1
        %s244 = smul.addr %s243, 168
        %s245 = scalar_lea.vmem [#allocation4], %s244
        %p246 = pneg %p57
        %p247 = pneg %p54
        %p248 = pneg %p78
        %p249 = pneg %p75
        %p250 = pneg %p104
        %p251 = pneg %p101
        %s252 = sand.u32 %s91, 1
        %s253 = sand.u32 %s91, 1
        %s254 = smul.addr %s253, 56
        %s255 = scalar_lea.vmem [#allocation5], %s254
        %s256 = smul.u32 7, %s15
        %s257 = smul.u32 7, %s15
        %v259 = vld [vmem:[#allocation2] sm:$0xf]
        %v260 = vld [vmem:[#allocation2 + $0x4] sm:$0xf]
        %v261 = vld [vmem:[%s236] sm:$0xff]
        %v262 = vld [vmem:[%s236 + $0x8] sm:$0xff]
        %v263 = vld [vmem:[%s236 + $0x10] sm:$0xff]
        %v264 = vld [vmem:[%s236 + $0x18] sm:$0xf]
        %v265 = vld [vmem:[%s236 + $0x1c] sm:$0xff]
        %v266 = vld [vmem:[%s236 + $0x24] sm:$0xff]
        %v267 = vld [vmem:[%s236 + $0x2c] sm:$0xff]
        %v268 = vld [vmem:[%s236 + $0x34] sm:$0xf]
        %v269 = vld [vmem:[%s236 + $0x38] sm:$0xff]
        %v270 = vld [vmem:[%s236 + $0x40] sm:$0xff]
        %v271 = vld [vmem:[%s236 + $0x48] sm:$0xff]
        %v272 = vld [vmem:[%s236 + $0x50] sm:$0xf]
        %v273 = vld [vmem:[%s236 + $0x54] sm:$0xff]
        %v274 = vld [vmem:[%s236 + $0x5c] sm:$0xff]
        %v275 = vld [vmem:[%s236 + $0x64] sm:$0xff]
        %v276 = vld [vmem:[%s236 + $0x6c] sm:$0xf]
        %v277 = vld [vmem:[%s236 + $0x70] sm:$0xff]
        %v278 = vld [vmem:[%s236 + $0x78] sm:$0xff]
        %v279 = vld [vmem:[%s236 + $0x80] sm:$0xff]
        %v280 = vld [vmem:[%s236 + $0x88] sm:$0xf]
        %v281 = vld [vmem:[%s236 + $0x8c] sm:$0xff]
        %v282 = vld [vmem:[%s236 + $0x94] sm:$0xff]
        %v283 = vld [vmem:[%s236 + $0x9c] sm:$0xff]
        %v284 = vld [vmem:[%s236 + $0xa4] sm:$0xf]
        %v285 = vld [vmem:[%s2] sm:$0xff]
        %v286 = vld [vmem:[%s2 + $0x8] sm:$0xff]
        %288 = vset.pattern.permute.xlu0 0
        %289 = vperm.xlu0 %288, %v285
        %v290 = vpop.permute.xlu0 %289
        %293 = vset.pattern.permute.xlu0 0
        %294 = vperm.xlu0 %293, %v286
        %v295 = vpop.permute.xlu0 %294
        %v299 = vunpack.c.l.b16 %v259
        %v300 = vunpack.c.l.b16 %v260
        %v301 = vpack.c.b16 %v300, %v299
        %v326 = vunpack.c.l.b16 %v261
        %v327 = vunpack.c.h.b16 %v261
        %v328 = vunpack.c.l.b16 %v262
        %v329 = vunpack.c.h.b16 %v262
        %v330 = vunpack.c.l.b16 %v263
        %v331 = vunpack.c.h.b16 %v263
        %v332 = vunpack.c.l.b16 %v264
        %v333 = vunpack.c.l.b16 %v265
        %v334 = vunpack.c.h.b16 %v265
        %v335 = vunpack.c.l.b16 %v266
        %v336 = vunpack.c.h.b16 %v266
        %v337 = vunpack.c.l.b16 %v267
        %v338 = vunpack.c.h.b16 %v267
        %v339 = vunpack.c.l.b16 %v268
        %v340 = vunpack.c.l.b16 %v269
        %v341 = vunpack.c.h.b16 %v269
        %v342 = vunpack.c.l.b16 %v270
        %v343 = vunpack.c.h.b16 %v270
        %v344 = vunpack.c.l.b16 %v271
        %v345 = vunpack.c.h.b16 %v271
        %v346 = vunpack.c.l.b16 %v272
        %v347 = vunpack.c.l.b16 %v273
        %v348 = vunpack.c.h.b16 %v273
        %v349 = vunpack.c.l.b16 %v274
        %v350 = vunpack.c.h.b16 %v274
        %v351 = vunpack.c.l.b16 %v275
        %v352 = vunpack.c.h.b16 %v275
        %v353 = vunpack.c.l.b16 %v276
        %v354 = vunpack.c.l.b16 %v277
        %v355 = vunpack.c.h.b16 %v277
        %v356 = vunpack.c.l.b16 %v278
        %v357 = vunpack.c.h.b16 %v278
        %v358 = vunpack.c.l.b16 %v279
        %v359 = vunpack.c.h.b16 %v279
        %v360 = vunpack.c.l.b16 %v280
        %v361 = vunpack.c.l.b16 %v281
        %v362 = vunpack.c.h.b16 %v281
        %v363 = vunpack.c.l.b16 %v282
        %v364 = vunpack.c.h.b16 %v282
        %v365 = vunpack.c.l.b16 %v283
        %v366 = vunpack.c.h.b16 %v283
        %v367 = vunpack.c.l.b16 %v284
        %v368 = vpack.c.b16 %v333, %v326
        %v369 = vpack.c.b16 %v334, %v327
        %v370 = vpack.c.b16 %v335, %v328
        %v371 = vpack.c.b16 %v336, %v329
        %v372 = vpack.c.b16 %v337, %v330
        %v373 = vpack.c.b16 %v338, %v331
        %v374 = vpack.c.b16 %v339, %v332
        %v375 = vpack.c.b16 %v347, %v340
        %v376 = vpack.c.b16 %v348, %v341
        %v377 = vpack.c.b16 %v349, %v342
        %v378 = vpack.c.b16 %v350, %v343
        %v379 = vpack.c.b16 %v351, %v344
        %v380 = vpack.c.b16 %v352, %v345
        %v381 = vpack.c.b16 %v353, %v346
        %v382 = vpack.c.b16 %v361, %v354
        %v383 = vpack.c.b16 %v362, %v355
        %v384 = vpack.c.b16 %v363, %v356
        %v385 = vpack.c.b16 %v364, %v357
        %v386 = vpack.c.b16 %v365, %v358
        %v387 = vpack.c.b16 %v366, %v359
        %v388 = vpack.c.b16 %v367, %v360
        %vm410 = vcmask 392192
        %v412 = vsel %vm410, %v301, 0
        %414 = vmatprep.subr.bf16.mxu0 0
        %415 = vmatpush1.bf16.msra.mxu0 0
        %416 = vmatprep.subr.bf16.mxu0 0
        %417 = vmatpush1.bf16.msra.mxu0 0
        %418 = vmatprep.subr.bf16.mxu0 0
        %419 = vmatpush1.bf16.msra.mxu0 0
        %420 = vmatprep.subr.bf16.mxu0 0
        %421 = vmatpush1.bf16.msra.mxu0 0
        %422 = vmatprep.subr.bf16.mxu0 0
        %423 = vmatpush1.bf16.msra.mxu0 0
        %424 = vmatprep.subr.bf16.mxu0 %v383
        %425 = vmatpush1.bf16.msra.mxu0 %v382
        %426 = vmatprep.subr.bf16.mxu0 %v376
        %427 = vmatpush1.bf16.msra.mxu0 %v375
        %428 = vmatprep.subr.bf16.mxu0 %v369
        %429 = vmatpush1.bf16.msra.mxu0 %v368
        %430 = vmatprep.subr.bf16.mxu0 0
        %431 = vmatpush2.bf16.msra.mxu0 0
        %432 = vmatprep.subr.bf16.mxu0 0
        %433 = vmatpush2.bf16.msra.mxu0 0
        %434 = vmatprep.subr.bf16.mxu0 0
        %435 = vmatpush2.bf16.msra.mxu0 0
        %436 = vmatprep.subr.bf16.mxu0 0
        %437 = vmatpush2.bf16.msra.mxu0 0
        %438 = vmatprep.subr.bf16.mxu0 0
        %439 = vmatpush2.bf16.msra.mxu0 0
        %440 = vmatprep.subr.bf16.mxu0 0
        %441 = vmatpush2.bf16.msra.mxu0 0
        %442 = vmatprep.subr.bf16.mxu0 0
        %443 = vmatpush2.bf16.msra.mxu0 0
        %444 = vmatprep.subr.bf16.mxu0 0
        %445 = vmatpush2.bf16.msra.mxu0 0
        %446 = vmatprep.mubr.bf16.mxu0 0
        %447 = vmatmul.mubr.bf16.gmra.mxu0 %v412
        %v448 = vpop.f32.mrf.mxu0
        %v449 = vadd.f32 %v290, %v448
        %v450 = vpop.f32.mrf.mxu0
        %v451 = vadd.f32 %v290, %v450
        %v452 = vpop.f32.mrf.mxu0
        %v453 = vadd.f32 %v295, %v452
        %v454 = vpop.f32.mrf.mxu0
        %v455 = vadd.f32 %v295, %v454
        %456 = vdwg.mxu0
        %457 = vmatprep.subr.bf16.mxu0 0
        %458 = vmatpush1.bf16.msra.mxu0 0
        %459 = vmatprep.subr.bf16.mxu0 0
        %460 = vmatpush1.bf16.msra.mxu0 0
        %461 = vmatprep.subr.bf16.mxu0 0
        %462 = vmatpush1.bf16.msra.mxu0 0
        %463 = vmatprep.subr.bf16.mxu0 0
        %464 = vmatpush1.bf16.msra.mxu0 0
        %465 = vmatprep.subr.bf16.mxu0 0
        %466 = vmatpush1.bf16.msra.mxu0 0
        %467 = vmatprep.subr.bf16.mxu0 %v385
        %468 = vmatpush1.bf16.msra.mxu0 %v384
        %469 = vmatprep.subr.bf16.mxu0 %v378
        %470 = vmatpush1.bf16.msra.mxu0 %v377
        %471 = vmatprep.subr.bf16.mxu0 %v371
        %472 = vmatpush1.bf16.msra.mxu0 %v370
        %473 = vmatprep.subr.bf16.mxu0 0
        %474 = vmatpush2.bf16.msra.mxu0 0
        %475 = vmatprep.subr.bf16.mxu0 0
        %476 = vmatpush2.bf16.msra.mxu0 0
        %477 = vmatprep.subr.bf16.mxu0 0
        %478 = vmatpush2.bf16.msra.mxu0 0
        %479 = vmatprep.subr.bf16.mxu0 0
        %480 = vmatpush2.bf16.msra.mxu0 0
        %481 = vmatprep.subr.bf16.mxu0 0
        %482 = vmatpush2.bf16.msra.mxu0 0
        %483 = vmatprep.subr.bf16.mxu0 0
        %484 = vmatpush2.bf16.msra.mxu0 0
        %485 = vmatprep.subr.bf16.mxu0 0
        %486 = vmatpush2.bf16.msra.mxu0 0
        %487 = vmatprep.subr.bf16.mxu0 0
        %488 = vmatpush2.bf16.msra.mxu0 0
        %489 = vmatprep.mubr.bf16.mxu0 0
        %490 = vmatmul.mubr.bf16.gmra.mxu0 %v412
        %v491 = vpop.f32.mrf.mxu0
        %v492 = vadd.f32 %v290, %v491
        %v493 = vpop.f32.mrf.mxu0
        %v494 = vadd.f32 %v290, %v493
        %v495 = vpop.f32.mrf.mxu0
        %v496 = vadd.f32 %v295, %v495
        %v497 = vpop.f32.mrf.mxu0
        %v498 = vadd.f32 %v295, %v497
        %499 = vdwg.mxu0
        %500 = vmatprep.subr.bf16.mxu0 0
        %501 = vmatpush1.bf16.msra.mxu0 0
        %502 = vmatprep.subr.bf16.mxu0 0
        %503 = vmatpush1.bf16.msra.mxu0 0
        %504 = vmatprep.subr.bf16.mxu0 0
        %505 = vmatpush1.bf16.msra.mxu0 0
        %506 = vmatprep.subr.bf16.mxu0 0
        %507 = vmatpush1.bf16.msra.mxu0 0
        %508 = vmatprep.subr.bf16.mxu0 0
        %509 = vmatpush1.bf16.msra.mxu0 0
        %510 = vmatprep.subr.bf16.mxu0 %v387
        %511 = vmatpush1.bf16.msra.mxu0 %v386
        %512 = vmatprep.subr.bf16.mxu0 %v380
        %513 = vmatpush1.bf16.msra.mxu0 %v379
        %514 = vmatprep.subr.bf16.mxu0 %v373
        %515 = vmatpush1.bf16.msra.mxu0 %v372
        %516 = vmatprep.subr.bf16.mxu0 0
        %517 = vmatpush2.bf16.msra.mxu0 0
        %518 = vmatprep.subr.bf16.mxu0 0
        %519 = vmatpush2.bf16.msra.mxu0 0
        %520 = vmatprep.subr.bf16.mxu0 0
        %521 = vmatpush2.bf16.msra.mxu0 0
        %522 = vmatprep.subr.bf16.mxu0 0
        %523 = vmatpush2.bf16.msra.mxu0 0
        %524 = vmatprep.subr.bf16.mxu0 0
        %525 = vmatpush2.bf16.msra.mxu0 0
        %526 = vmatprep.subr.bf16.mxu0 0
        %527 = vmatpush2.bf16.msra.mxu0 0
        %528 = vmatprep.subr.bf16.mxu0 0
        %529 = vmatpush2.bf16.msra.mxu0 0
        %530 = vmatprep.subr.bf16.mxu0 0
        %531 = vmatpush2.bf16.msra.mxu0 0
        %532 = vmatprep.mubr.bf16.mxu0 0
        %533 = vmatmul.mubr.bf16.gmra.mxu0 %v412
        %v534 = vpop.f32.mrf.mxu0
        %v535 = vadd.f32 %v290, %v534
        %v536 = vpop.f32.mrf.mxu0
        %v537 = vadd.f32 %v290, %v536
        %v538 = vpop.f32.mrf.mxu0
        %v539 = vadd.f32 %v295, %v538
        %v540 = vpop.f32.mrf.mxu0
        %v541 = vadd.f32 %v295, %v540
        %542 = vdwg.mxu0
        %543 = vmatprep.subr.bf16.mxu0 0
        %544 = vmatpush1.bf16.msra.mxu0 0
        %545 = vmatprep.subr.bf16.mxu0 0
        %546 = vmatpush1.bf16.msra.mxu0 0
        %547 = vmatprep.subr.bf16.mxu0 0
        %548 = vmatpush1.bf16.msra.mxu0 0
        %549 = vmatprep.subr.bf16.mxu0 0
        %550 = vmatpush1.bf16.msra.mxu0 0
        %551 = vmatprep.subr.bf16.mxu0 0
        %552 = vmatpush1.bf16.msra.mxu0 0
        %553 = vmatprep.subr.bf16.mxu0 0
        %554 = vmatpush1.bf16.msra.mxu0 %v388
        %555 = vmatprep.subr.bf16.mxu0 0
        %556 = vmatpush1.bf16.msra.mxu0 %v381
        %557 = vmatprep.subr.bf16.mxu0 0
        %558 = vmatpush1.bf16.msra.mxu0 %v374
        %559 = vmatprep.subr.bf16.mxu0 0
        %560 = vmatpush2.bf16.msra.mxu0 0
        %561 = vmatprep.subr.bf16.mxu0 0
        %562 = vmatpush2.bf16.msra.mxu0 0
        %563 = vmatprep.subr.bf16.mxu0 0
        %564 = vmatpush2.bf16.msra.mxu0 0
        %565 = vmatprep.subr.bf16.mxu0 0
        %566 = vmatpush2.bf16.msra.mxu0 0
        %567 = vmatprep.subr.bf16.mxu0 0
        %568 = vmatpush2.bf16.msra.mxu0 0
        %569 = vmatprep.subr.bf16.mxu0 0
        %570 = vmatpush2.bf16.msra.mxu0 0
        %571 = vmatprep.subr.bf16.mxu0 0
        %572 = vmatpush2.bf16.msra.mxu0 0
        %573 = vmatprep.subr.bf16.mxu0 0
        %574 = vmatpush2.bf16.msra.mxu0 0
        %575 = vmatprep.mubr.bf16.mxu0 0
        %576 = vmatmul.mubr.bf16.gmra.mxu0 %v412
        %v577 = vpop.f32.mrf.mxu0
        %v578 = vadd.f32 %v290, %v577
        %v579 = vpop.f32.mrf.mxu0
        %v580 = vpop.f32.mrf.mxu0
        %v581 = vadd.f32 %v295, %v580
        %v582 = vpop.f32.mrf.mxu0
        %583 = vdwg.mxu0
        %v584 = vxor.u32 %v449, 2147483648
        %v585 = vxor.u32 %v451, 2147483648
        %v586 = vxor.u32 %v492, 2147483648
        %v587 = vxor.u32 %v494, 2147483648
        %v588 = vxor.u32 %v535, 2147483648
        %v589 = vxor.u32 %v537, 2147483648
        %v590 = vxor.u32 %v578, 2147483648
        %v591 = vxor.u32 %v453, 2147483648
        %v592 = vxor.u32 %v455, 2147483648
        %v593 = vxor.u32 %v496, 2147483648
        %v594 = vxor.u32 %v498, 2147483648
        %v595 = vxor.u32 %v539, 2147483648
        %v596 = vxor.u32 %v541, 2147483648
        %v597 = vxor.u32 %v581, 2147483648
        %v598 = vmul.f32 %v584, 1.442695
        %v599 = vpow.pop %v598
        %v600 = vmul.f32 %v585, 1.442695
        %v601 = vpow.pop %v600
        %v602 = vmul.f32 %v586, 1.442695
        %v603 = vpow.pop %v602
        %v604 = vmul.f32 %v587, 1.442695
        %v605 = vpow.pop %v604
        %v606 = vmul.f32 %v588, 1.442695
        %v607 = vpow.pop %v606
        %v608 = vmul.f32 %v589, 1.442695
        %v609 = vpow.pop %v608
        %v610 = vmul.f32 %v590, 1.442695
        %v611 = vpow.pop %v610
        %v612 = vmul.f32 %v591, 1.442695
        %v613 = vpow.pop %v612
        %v614 = vmul.f32 %v592, 1.442695
        %v615 = vpow.pop %v614
        %v616 = vmul.f32 %v593, 1.442695
        %v617 = vpow.pop %v616
        %v618 = vmul.f32 %v594, 1.442695
        %v619 = vpow.pop %v618
        %v620 = vmul.f32 %v595, 1.442695
        %v621 = vpow.pop %v620
        %v622 = vmul.f32 %v596, 1.442695
        %v623 = vpow.pop %v622
        %v624 = vmul.f32 %v597, 1.442695
        %v625 = vpow.pop %v624
        %v626 = vadd.f32 %v599, 1.0
        %v627 = vadd.f32 %v601, 1.0
        %v628 = vadd.f32 %v603, 1.0
        %v629 = vadd.f32 %v605, 1.0
        %v630 = vadd.f32 %v607, 1.0
        %v631 = vadd.f32 %v609, 1.0
        %v632 = vadd.f32 %v611, 1.0
        %v633 = vadd.f32 %v613, 1.0
        %v634 = vadd.f32 %v615, 1.0
        %v635 = vadd.f32 %v617, 1.0
        %v636 = vadd.f32 %v619, 1.0
        %v637 = vadd.f32 %v621, 1.0
        %v638 = vadd.f32 %v623, 1.0
        %v639 = vadd.f32 %v625, 1.0
        %v640 = vrcp.pop %v626
        %v641 = vmul.f32 1.0, %v640
        %v642 = vrcp.pop %v627
        %v643 = vmul.f32 1.0, %v642
        %v644 = vrcp.pop %v628
        %v645 = vmul.f32 1.0, %v644
        %v646 = vrcp.pop %v629
        %v647 = vmul.f32 1.0, %v646
        %v648 = vrcp.pop %v630
        %v649 = vmul.f32 1.0, %v648
        %v650 = vrcp.pop %v631
        %v651 = vmul.f32 1.0, %v650
        %v652 = vrcp.pop %v632
        %v653 = vmul.f32 1.0, %v652
        %v654 = vrcp.pop %v633
        %v655 = vmul.f32 1.0, %v654
        %v656 = vrcp.pop %v634
        %v657 = vmul.f32 1.0, %v656
        %v658 = vrcp.pop %v635
        %v659 = vmul.f32 1.0, %v658
        %v660 = vrcp.pop %v636
        %v661 = vmul.f32 1.0, %v660
        %v662 = vrcp.pop %v637
        %v663 = vmul.f32 1.0, %v662
        %v664 = vrcp.pop %v638
        %v665 = vmul.f32 1.0, %v664
        %v666 = vrcp.pop %v639
        %v667 = vmul.f32 1.0, %v666
        %v668 = vpack.c.bf16 %v655, %v641
        %v669 = vpack.c.bf16 %v657, %v643
        %v670 = vpack.c.bf16 %v659, %v645
        %v671 = vpack.c.bf16 %v661, %v647
        %v672 = vpack.c.bf16 %v663, %v649
        %v673 = vpack.c.bf16 %v665, %v651
        %v674 = vpack.c.bf16 %v667, %v653
        %v682 = vunpack.c.l.b16 %v668
        %v683 = vunpack.c.l.b16 %v669
        %v684 = vunpack.c.l.b16 %v670
        %v685 = vunpack.c.l.b16 %v671
        %v686 = vunpack.c.l.b16 %v672
        %v687 = vunpack.c.l.b16 %v673
        %v688 = vunpack.c.l.b16 %v674
        %v689 = vunpack.c.h.b16 %v668
        %v690 = vunpack.c.h.b16 %v669
        %v691 = vunpack.c.h.b16 %v670
        %v692 = vunpack.c.h.b16 %v671
        %v693 = vunpack.c.h.b16 %v672
        %v694 = vunpack.c.h.b16 %v673
        %v695 = vunpack.c.h.b16 %v674
        %v696 = vpack.c.b16 %v683, %v682
        %v697 = vpack.c.b16 %v685, %v684
        %v698 = vpack.c.b16 %v687, %v686
        %v699 = vpack.c.b16 %v688, %v688
        %v700 = vpack.c.b16 %v690, %v689
        %v701 = vpack.c.b16 %v692, %v691
        %v702 = vpack.c.b16 %v694, %v693
        %v703 = vpack.c.b16 %v695, %v695
        %712 = vst [vmem:[%s255] sm:$0xff] %v696
        %713 = vst [vmem:[%s255 + $0x8] sm:$0xff] %v697
        %714 = vst [vmem:[%s255 + $0x10] sm:$0xff] %v698
        %715 = vst [vmem:[%s255 + $0x18] sm:$0xf] %v699
        %716 = vst [vmem:[%s255 + $0x1c] sm:$0xff] %v700
        %717 = vst [vmem:[%s255 + $0x24] sm:$0xff] %v701
        %718 = vst [vmem:[%s255 + $0x2c] sm:$0xff] %v702
        %719 = vst [vmem:[%s255 + $0x34] sm:$0xf] %v703
        %s720 = sand.u32 %s91, 1
        %s721 = sand.u32 %s91, 1
        %s722 = smul.addr %s721, 56
        %s723 = scalar_lea.vmem [#allocation5], %s722
        // Predicated region
        $region63: #{cnn_forward.5} parent=53 // pred_check
          %p724 = pneg %p101
        $region64: #{cnn_forward.5} parent=53 // pred_check_branch
          %726 = sbr.rel (%p724) target = $region66
        $region65: #{cnn_forward.5} parent=53 // pred_region
          %s727 = smul.u32 7, %s15
          %s728 = smul.addr %s727, 4
          %s729 = scalar_lea.vmem %s3, %s728
          // Predicated region
          $region67: #{cnn_forward.5} parent=65 // pred_check
            _
          $region68: #{cnn_forward.5} parent=65 // pred_check_branch
            %731 = sbr.rel (0) target = $region70
          $region69: #{cnn_forward.5} parent=65 // pred_region
            // Predicated region
            $region71: #{cnn_forward.5} parent=69 // pred_check
              _
            $region72: #{cnn_forward.5} parent=69 // pred_check_branch
              %733 = sbr.rel (0) target = $region74
            $region73: #{cnn_forward.5} parent=69 // pred_region
              %s734 = scalar_lea.vmem %s723, 24 [#allocation5]
              %s735 = scalar_lea.vmem %s729, 24
              loop: start=0, step=1, limit=1
              $region75: #{cnn_forward.5} parent=73 // loop_pre_header
                _
              $region76: #{cnn_forward.5} parent=73 // loop_header
                %s737 = sphi 0, %s741
                %p738 = scmp.ge.s32.totalorder %s737, 1
                %s742 = sphi %s723, %s723
                %s743 = sphi %s729, %s729
              $region77: #{cnn_forward.5} parent=73 // loop_header_branch
                %740 = sbr.rel (%p738) target = $region81
              $region78: #{cnn_forward.5} parent=73 // loop_body
                %v744 = vld [vmem:[%s742] sm:$0xff]
                %745 = vst [vmem:[%s743] sm:$0xff] %v744
                %v746 = vld [vmem:[%s742 + $0x8] sm:$0xff]
                %747 = vst [vmem:[%s743 + $0x8] sm:$0xff] %v746
                %v748 = vld [vmem:[%s742 + $0x10] sm:$0xff]
                %749 = vst [vmem:[%s743 + $0x10] sm:$0xff] %v748
                %v750 = vld [vmem:[%s742 + $0x1c] sm:$0xff]
                %751 = vst [vmem:[%s743 + $0x38] sm:$0xff] %v750
                %v752 = vld [vmem:[%s742 + $0x24] sm:$0xff]
                %753 = vst [vmem:[%s743 + $0x40] sm:$0xff] %v752
                %v754 = vld [vmem:[%s742 + $0x2c] sm:$0xff]
                %755 = vst [vmem:[%s743 + $0x48] sm:$0xff] %v754
              $region79: #{cnn_forward.5} parent=73 // loop_footer
                %s741 = sadd.s32 1, %s737
              $region80: #{cnn_forward.5} parent=73 // loop_footer_branch
                %736 = sbr.rel target = $region76
              $region81: #{cnn_forward.5} parent=73 // loop_exit
                _
              %s757 = ssub.s32 16, 1
              loop: start=0, step=1, limit=1
              $region82: #{cnn_forward.5} parent=73 // loop_pre_header
                _
              $region83: #{cnn_forward.5} parent=73 // loop_header
                %s759 = sphi 0, %s763
                %p760 = scmp.ge.s32.totalorder %s759, 1
                %s764 = sphi %s734, %s734
                %s765 = sphi %s735, %s735
              $region84: #{cnn_forward.5} parent=73 // loop_header_branch
                %762 = sbr.rel (%p760) target = $region88
              $region85: #{cnn_forward.5} parent=73 // loop_body
                %v766 = vld [vmem:[%s764] sm:%s757]
                %767 = vst [vmem:[%s765] sm:%s757] %v766
                %v768 = vld [vmem:[%s764 + $0x1c] sm:%s757]
                %769 = vst [vmem:[%s765 + $0x38] sm:%s757] %v768
              $region86: #{cnn_forward.5} parent=73 // loop_footer
                %s763 = sadd.s32 1, %s759
              $region87: #{cnn_forward.5} parent=73 // loop_footer_branch
                %758 = sbr.rel target = $region83
              $region88: #{cnn_forward.5} parent=73 // loop_exit
                _
            $region74: #{cnn_forward.5} parent=69 // pred_fallthru
              _
          $region70: #{cnn_forward.5} parent=65 // pred_fallthru
            _
          %770 = vnop
        $region66: #{cnn_forward.5} parent=53 // pred_fallthru
          _
      $region54: #{cnn_forward.5} parent=5 // pred_fallthru
        _
      %p771 = scmp.le.s32.totalorder 2, %s10
      // Predicated region
      $region89: #{cnn_forward.5} parent=5 // pred_check
        %p772 = pneg %p771
      $region90: #{cnn_forward.5} parent=5 // pred_check_branch
        %774 = sbr.rel (%p772) target = $region92
      $region91: #{cnn_forward.5} parent=5 // pred_region
        %s775 = ssub.s32 %s10, 2
        // Predicated region
        $region93: #{cnn_forward.5} parent=91 // pred_check
          %p776 = pneg %p107
        $region94: #{cnn_forward.5} parent=91 // pred_check_branch
          %778 = sbr.rel (%p776) target = $region96
        $region95: #{cnn_forward.5} parent=91 // pred_region
          %s779 = sand.u32 %s92, 1
          %s780 = sand.u32 %s92, 1
          %s781 = smul.addr %s780, 56
          %s782 = scalar_lea.vmem [#allocation5], %s781
        $region96: #{cnn_forward.5} parent=91 // pred_fallthru
          _
      $region92: #{cnn_forward.5} parent=5 // pred_fallthru
        _
    $region6: #{cnn_forward.5} parent=1 // loop_footer
      %s14 = sadd.s32 1, %s10
    $region7: #{cnn_forward.5} parent=1 // loop_footer_branch
      %9 = sbr.rel target = $region3
    $region8: #{cnn_forward.5} parent=1 // loop_exit
      _
    %783 = vsyncpa [#allocation3], 1
    %s784 = scalar_lea.sflag [#allocation3], 1
    %785 = vsyncpa %s784, 1

// kernel: cnn_forward.6
$region0: #{cnn_forward.6}
  #allocation0 [shape = 'u32[]', space=smem, size = 0x4, offset = 0x4, fixed_abs, tag = 'smem constant byte address 0x4 - core index']
  #allocation1 [shape = 'u32[144,128]{1,0:T(1,128)}', space=vmem, size = 0x12000, scoped, tag = 'internal scratch']
  %s0 = inlined_call_operand.vmem [shape: bf16[16,48], index: 0, kind: input, shape index: {}]
  %s1 = inlined_call_operand.vmem [shape: bf16[48,1536], index: 1, kind: input, shape index: {}]
  %s2 = inlined_call_operand.vmem [shape: f32[16,1], index: 2, kind: input, shape index: {}]
  %s3 = inlined_call_operand.vmem [shape: bf16[16,1536], index: 3, kind: output, shape index: {}]
  %s4 = sld [smem:[#allocation0]]
  $region87: #{cnn_forward.6} parent=0
    _
  %s6 = ssub.s32 1, %s4
  %s7 = scalar_select 0, %s6, %s4
  $region1: #{cnn_forward.6} parent=0
    #allocation2 [shape = 'u8[147456]{0}', space=vmem, size = 0x24000, scoped, tag = 'input window, operand 1']
    #allocation3 [shape = 'u8[49152]{0}', space=vmem, size = 0xc000, scoped, tag = 'output window, operand 0']
    loop: start=0, step=1, limit=4
    $region2: #{cnn_forward.6} parent=1 // loop_pre_header
      _
    $region3: #{cnn_forward.6} parent=1 // loop_header
      %s9 = sphi 0, %s13
      %p10 = scmp.ge.s32.totalorder %s9, 4
      %s17 = sphi 0, %s17
      %s19 = sphi 0, %s17
      %s20 = sphi 0, %s19
      %s34 = sphi 0, %s20
      %s40 = sphi 0, %s42
      %s43 = sphi 0, %s40
      %s44 = sphi 0, %s43
      %s60 = sphi 0, %s44
      %s64 = sphi 0, %s64
      %s66 = sphi 0, %s64
      %s67 = sphi 0, %s66
      %s81 = sphi 0, %s67
      %s87 = sphi 0, %s89
      %s90 = sphi 0, %s87
      %s91 = sphi 0, %s90
      %s107 = sphi 0, %s91
    $region4: #{cnn_forward.6} parent=1 // loop_header_branch
      %12 = sbr.rel (%p10) target = $region8
    $region5: #{cnn_forward.6} parent=1 // loop_body
      %s14 = ssub.s32 %s9, 1
      %s15 = ssub.s32 %s9, 2
      %s16 = sadd.s32 %s9, 1
      %s18 = sadd.s32 %s17, 1
      %p21 = scmp.eq.s32.totalorder %s9, 1
      %p22 = scmp.ne.s32.totalorder %s17, %s19
      %p23 = scmp.eq.s32.totalorder %s9, 0
      %p24 = por %p22, %p23
      %p25 = scmp.ne.s32.totalorder %s17, %s19
      %p26 = scmp.eq.s32.totalorder %s14, 1
      %p27 = por %p25, %p26
      %p28 = scmp.ne.s32.totalorder %s19, %s20
      %p29 = scmp.eq.s32.totalorder %s14, 0
      %p30 = por %p28, %p29
      %p31 = scmp.ne.s32.totalorder %s19, %s20
      %p32 = scmp.eq.s32.totalorder %s15, 1
      %p33 = por %p31, %p32
      %p35 = scmp.ne.s32.totalorder %s20, %s34
      %p36 = scmp.eq.s32.totalorder %s15, 0
      %p37 = por %p35, %p36
      %s38 = ssub.s32 %s9, %s16
      %p39 = scmp.eq.s32.totalorder %s38, 0
      %s41 = sadd.s32 %s40, 1
      %s42 = scalar_select %p39, %s40, %s41
      %p45 = pneg %p39
      %p46 = scmp.eq.s32.totalorder %s9, 1
      %p47 = por %p45, %p46
      %p48 = scmp.ne.s32.totalorder %s40, %s43
      %p49 = scmp.eq.s32.totalorder %s9, 0
      %p50 = por %p48, %p49
      %p51 = scmp.ne.s32.totalorder %s40, %s43
      %p52 = scmp.eq.s32.totalorder %s14, 1
      %p53 = por %p51, %p52
      %p54 = scmp.ne.s32.totalorder %s43, %s44
      %p55 = scmp.eq.s32.totalorder %s14, 0
      %p56 = por %p54, %p55
      %p57 = scmp.ne.s32.totalorder %s43, %s44
      %p58 = scmp.eq.s32.totalorder %s15, 1
      %p59 = por %p57, %p58
      %p61 = scmp.ne.s32.totalorder %s44, %s60
      %p62 = scmp.eq.s32.totalorder %s15, 0
      %p63 = por %p61, %p62
      %s65 = sadd.s32 %s64, 1
      %p68 = scmp.eq.s32.totalorder %s9, 1
      %p69 = scmp.ne.s32.totalorder %s64, %s66
      %p70 = scmp.eq.s32.totalorder %s9, 0
      %p71 = por %p69, %p70
      %p72 = scmp.ne.s32.totalorder %s64, %s66
      %p73 = scmp.eq.s32.totalorder %s14, 1
      %p74 = por %p72, %p73
      %p75 = scmp.ne.s32.totalorder %s66, %s67
      %p76 = scmp.eq.s32.totalorder %s14, 0
      %p77 = por %p75, %p76
      %p78 = scmp.ne.s32.totalorder %s66, %s67
      %p79 = scmp.eq.s32.totalorder %s15, 1
      %p80 = por %p78, %p79
      %p82 = scmp.ne.s32.totalorder %s67, %s81
      %p83 = scmp.eq.s32.totalorder %s15, 0
      %p84 = por %p82, %p83
      %s85 = ssub.s32 %s9, %s16
      %p86 = scmp.eq.s32.totalorder %s85, 0
      %s88 = sadd.s32 %s87, 1
      %s89 = scalar_select %p86, %s87, %s88
      %p92 = pneg %p86
      %p93 = scmp.eq.s32.totalorder %s9, 1
      %p94 = por %p92, %p93
      %p95 = scmp.ne.s32.totalorder %s87, %s90
      %p96 = scmp.eq.s32.totalorder %s9, 0
      %p97 = por %p95, %p96
      %p98 = scmp.ne.s32.totalorder %s87, %s90
      %p99 = scmp.eq.s32.totalorder %s14, 1
      %p100 = por %p98, %p99
      %p101 = scmp.ne.s32.totalorder %s90, %s91
      %p102 = scmp.eq.s32.totalorder %s14, 0
      %p103 = por %p101, %p102
      %p104 = scmp.ne.s32.totalorder %s90, %s91
      %p105 = scmp.eq.s32.totalorder %s15, 1
      %p106 = por %p104, %p105
      %p108 = scmp.ne.s32.totalorder %s91, %s107
      %p109 = scmp.eq.s32.totalorder %s15, 0
      %p110 = por %p108, %p109
      %p111 = scmp.le.s32.totalorder 1, %s9
      %p112 = scmp.lt.s32.totalorder %s9, 3
      %p113 = pnand %p111, %p112
      %p114 = pneg %p113
      // Predicated region
      $region9: #{cnn_forward.6} parent=5 // pred_check
        _
      $region10: #{cnn_forward.6} parent=5 // pred_check_branch
        %116 = sbr.rel (%p113) target = $region12
      $region11: #{cnn_forward.6} parent=5 // pred_region
        %s117 = ssub.s32 %s9, 1
        // Predicated region
        $region13: #{cnn_forward.6} parent=11 // pred_check
          %p118 = pneg %p30
        $region14: #{cnn_forward.6} parent=11 // pred_check_branch
          %120 = sbr.rel (%p118) target = $region16
        $region15: #{cnn_forward.6} parent=11 // pred_region
          _
        $region16: #{cnn_forward.6} parent=11 // pred_fallthru
          _
        // Predicated region
        $region17: #{cnn_forward.6} parent=11 // pred_check
          %p121 = pneg %p77
        $region18: #{cnn_forward.6} parent=11 // pred_check_branch
          %123 = sbr.rel (%p121) target = $region20
        $region19: #{cnn_forward.6} parent=11 // pred_region
          _
        $region20: #{cnn_forward.6} parent=11 // pred_fallthru
          _
      $region12: #{cnn_forward.6} parent=5 // pred_fallthru
        _
      %p124 = scmp.lt.s32.totalorder %s9, 2
      // Predicated region
      $region21: #{cnn_forward.6} parent=5 // pred_check
        %p125 = pneg %p124
      $region22: #{cnn_forward.6} parent=5 // pred_check_branch
        %127 = sbr.rel (%p125) target = $region24
      $region23: #{cnn_forward.6} parent=5 // pred_region
        // Predicated region
        $region25: #{cnn_forward.6} parent=23 // pred_check
          %p128 = pneg %p50
        $region26: #{cnn_forward.6} parent=23 // pred_check_branch
          %130 = sbr.rel (%p128) target = $region28
        $region27: #{cnn_forward.6} parent=23 // pred_region
          %s131 = sand.u32 %s40, 1
          %s132 = sand.u32 %s40, 1
          %s133 = smul.addr %s132, 144
          %s134 = scalar_lea.vmem [#allocation2], %s133
          %s135 = smul.u32 6, %s9
          %s136 = smul.addr %s135, 4
          %s137 = scalar_lea.vmem %s1, %s136
          // Predicated region
          $region29: #{cnn_forward.6} parent=27 // pred_check
            _
          $region30: #{cnn_forward.6} parent=27 // pred_check_branch
            %139 = sbr.rel (0) target = $region32
          $region31: #{cnn_forward.6} parent=27 // pred_region
            // Predicated region
            $region33: #{cnn_forward.6} parent=31 // pred_check
              _
            $region34: #{cnn_forward.6} parent=31 // pred_check_branch
              %141 = sbr.rel (0) target = $region36
            $region35: #{cnn_forward.6} parent=31 // pred_region
              loop: start=0, step=1, limit=1
              $region37: #{cnn_forward.6} parent=35 // loop_pre_header
                _
              $region38: #{cnn_forward.6} parent=35 // loop_header
                %s143 = sphi 0, %s147
                %p144 = scmp.ge.s32.totalorder %s143, 1
                %s148 = sphi %s137, %s137
                %s149 = sphi %s134, %s134
              $region39: #{cnn_forward.6} parent=35 // loop_header_branch
                %146 = sbr.rel (%p144) target = $region43
              $region40: #{cnn_forward.6} parent=35 // loop_body
                %v150 = vld [vmem:[%s148] sm:$0xff]
                %151 = vst [vmem:[%s149] sm:$0xff] %v150
                %v152 = vld [vmem:[%s148 + $0x8] sm:$0xff]
                %153 = vst [vmem:[%s149 + $0x8] sm:$0xff] %v152
                %v154 = vld [vmem:[%s148 + $0x10] sm:$0xff]
                %155 = vst [vmem:[%s149 + $0x10] sm:$0xff] %v154
                %v156 = vld [vmem:[%s148 + $0x30] sm:$0xff]
                %157 = vst [vmem:[%s149 + $0x18] sm:$0xff] %v156
                %v158 = vld [vmem:[%s148 + $0x38] sm:$0xff]
                %159 = vst [vmem:[%s149 + $0x20] sm:$0xff] %v158
                %v160 = vld [vmem:[%s148 + $0x40] sm:$0xff]
                %161 = vst [vmem:[%s149 + $0x28] sm:$0xff] %v160
                %v162 = vld [vmem:[%s148 + $0x60] sm:$0xff]
                %163 = vst [vmem:[%s149 + $0x30] sm:$0xff] %v162
                %v164 = vld [vmem:[%s148 + $0x68] sm:$0xff]
                %165 = vst [vmem:[%s149 + $0x38] sm:$0xff] %v164
                %v166 = vld [vmem:[%s148 + $0x70] sm:$0xff]
                %167 = vst [vmem:[%s149 + $0x40] sm:$0xff] %v166
                %v168 = vld [vmem:[%s148 + $0x90] sm:$0xff]
                %169 = vst [vmem:[%s149 + $0x48] sm:$0xff] %v168
                %v170 = vld [vmem:[%s148 + $0x98] sm:$0xff]
                %171 = vst [vmem:[%s149 + $0x50] sm:$0xff] %v170
                %v172 = vld [vmem:[%s148 + $0xa0] sm:$0xff]
                %173 = vst [vmem:[%s149 + $0x58] sm:$0xff] %v172
                %v174 = vld [vmem:[%s148 + $0xc0] sm:$0xff]
                %175 = vst [vmem:[%s149 + $0x60] sm:$0xff] %v174
                %v176 = vld [vmem:[%s148 + $0xc8] sm:$0xff]
                %177 = vst [vmem:[%s149 + $0x68] sm:$0xff] %v176
                %v178 = vld [vmem:[%s148 + $0xd0] sm:$0xff]
                %179 = vst [vmem:[%s149 + $0x70] sm:$0xff] %v178
                %v180 = vld [vmem:[%s148 + $0xf0] sm:$0xff]
                %181 = vst [vmem:[%s149 + $0x78] sm:$0xff] %v180
                %v182 = vld [vmem:[%s148 + $0xf8] sm:$0xff]
                %183 = vst [vmem:[%s149 + $0x80] sm:$0xff] %v182
                %v184 = vld [vmem:[%s148 + $0x100] sm:$0xff]
                %185 = vst [vmem:[%s149 + $0x88] sm:$0xff] %v184
              $region41: #{cnn_forward.6} parent=35 // loop_footer
                %s147 = sadd.s32 1, %s143
              $region42: #{cnn_forward.6} parent=35 // loop_footer_branch
                %142 = sbr.rel target = $region38
              $region43: #{cnn_forward.6} parent=35 // loop_exit
                _
            $region36: #{cnn_forward.6} parent=31 // pred_fallthru
              _
            // Predicated region
            $region44: #{cnn_forward.6} parent=31 // pred_check
              _
            $region45: #{cnn_forward.6} parent=31 // pred_check_branch
              %187 = sbr.rel target = $region47
            $region46: #{cnn_forward.6} parent=31 // pred_region
              _
            $region47: #{cnn_forward.6} parent=31 // pred_fallthru
              _
          $region32: #{cnn_forward.6} parent=27 // pred_fallthru
            _
          %188 = vnop
        $region28: #{cnn_forward.6} parent=23 // pred_fallthru
          _
      $region24: #{cnn_forward.6} parent=5 // pred_fallthru
        _
      %p189 = scmp.le.s32.totalorder 1, %s9
      %p190 = scmp.lt.s32.totalorder %s9, 3
      %p191 = pnand %p189, %p190
      %p192 = pneg %p191
      // Predicated region
      $region48: #{cnn_forward.6} parent=5 // pred_check
        _
      $region49: #{cnn_forward.6} parent=5 // pred_check_branch
        %194 = sbr.rel (%p191) target = $region51
      $region50: #{cnn_forward.6} parent=5 // pred_region
        %s195 = ssub.s32 %s9, 1
        %s196 = sand.u32 %s43, 1
        %s197 = sand.u32 %s43, 1
        %s198 = smul.addr %s197, 144
        %s199 = scalar_lea.vmem [#allocation2], %s198
        // Predicated region
        $region52: #{cnn_forward.6} parent=50 // pred_check
          %p200 = pneg %p56
        $region53: #{cnn_forward.6} parent=50 // pred_check_branch
          %202 = sbr.rel (%p200) target = $region55
        $region54: #{cnn_forward.6} parent=50 // pred_region
          _
        $region55: #{cnn_forward.6} parent=50 // pred_fallthru
          _
        %p203 = pneg %p30
        %p204 = pneg %p27
        %s205 = sand.u32 %s43, 1
        %s206 = sand.u32 %s43, 1
        %s207 = smul.addr %s206, 144
        %s208 = scalar_lea.vmem [#allocation2], %s207
        %p209 = pneg %p56
        %p210 = pneg %p53
        %p211 = pneg %p77
        %p212 = pneg %p74
        %p213 = pneg %p103
        %p214 = pneg %p100
        %s215 = sand.u32 %s90, 1
        %s216 = sand.u32 %s90, 1
        %s217 = smul.addr %s216, 48
        %s218 = scalar_lea.vmem [#allocation3], %s217
        %s219 = smul.u32 6, %s14
        %s220 = smul.u32 6, %s14
        %v222 = vld [vmem:[%s0] sm:$0xf]
        %v223 = vld [vmem:[%s0 + $0x4] sm:$0xf]
        %v224 = vld [vmem:[%s199] sm:$0xff]
        %v225 = vld [vmem:[%s199 + $0x8] sm:$0xff]
        %v226 = vld [vmem:[%s199 + $0x10] sm:$0xff]
        %v227 = vld [vmem:[%s199 + $0x18] sm:$0xff]
        %v228 = vld [vmem:[%s199 + $0x20] sm:$0xff]
        %v229 = vld [vmem:[%s199 + $0x28] sm:$0xff]
        %v230 = vld [vmem:[%s199 + $0x30] sm:$0xff]
        %v231 = vld [vmem:[%s199 + $0x38] sm:$0xff]
        %v232 = vld [vmem:[%s199 + $0x40] sm:$0xff]
        %v233 = vld [vmem:[%s199 + $0x48] sm:$0xff]
        %v234 = vld [vmem:[%s199 + $0x50] sm:$0xff]
        %v235 = vld [vmem:[%s199 + $0x58] sm:$0xff]
        %v236 = vld [vmem:[%s199 + $0x60] sm:$0xff]
        %v237 = vld [vmem:[%s199 + $0x68] sm:$0xff]
        %v238 = vld [vmem:[%s199 + $0x70] sm:$0xff]
        %v239 = vld [vmem:[%s199 + $0x78] sm:$0xff]
        %v240 = vld [vmem:[%s199 + $0x80] sm:$0xff]
        %v241 = vld [vmem:[%s199 + $0x88] sm:$0xff]
        %v242 = vld [vmem:[%s2] sm:$0xff]
        %v243 = vld [vmem:[%s2 + $0x8] sm:$0xff]
        %245 = vset.pattern.permute.xlu0 0
        %246 = vperm.xlu0 %245, %v242
        %v247 = vpop.permute.xlu0 %246
        %250 = vset.pattern.permute.xlu0 0
        %251 = vperm.xlu0 %250, %v243
        %v252 = vpop.permute.xlu0 %251
        %v256 = vunpack.c.l.b16 %v222
        %v257 = vunpack.c.l.b16 %v223
        %v258 = vpack.c.b16 %v257, %v256
        %v277 = vunpack.c.l.b16 %v224
        %v278 = vunpack.c.h.b16 %v224
        %v279 = vunpack.c.l.b16 %v225
        %v280 = vunpack.c.h.b16 %v225
        %v281 = vunpack.c.l.b16 %v226
        %v282 = vunpack.c.h.b16 %v226
        %v283 = vunpack.c.l.b16 %v227
        %v284 = vunpack.c.h.b16 %v227
        %v285 = vunpack.c.l.b16 %v228
        %v286 = vunpack.c.h.b16 %v228
        %v287 = vunpack.c.l.b16 %v229
        %v288 = vunpack.c.h.b16 %v229
        %v289 = vunpack.c.l.b16 %v230
        %v290 = vunpack.c.h.b16 %v230
        %v291 = vunpack.c.l.b16 %v231
        %v292 = vunpack.c.h.b16 %v231
        %v293 = vunpack.c.l.b16 %v232
        %v294 = vunpack.c.h.b16 %v232
        %v295 = vunpack.c.l.b16 %v233
        %v296 = vunpack.c.h.b16 %v233
        %v297 = vunpack.c.l.b16 %v234
        %v298 = vunpack.c.h.b16 %v234
        %v299 = vunpack.c.l.b16 %v235
        %v300 = vunpack.c.h.b16 %v235
        %v301 = vunpack.c.l.b16 %v236
        %v302 = vunpack.c.h.b16 %v236
        %v303 = vunpack.c.l.b16 %v237
        %v304 = vunpack.c.h.b16 %v237
        %v305 = vunpack.c.l.b16 %v238
        %v306 = vunpack.c.h.b16 %v238
        %v307 = vunpack.c.l.b16 %v239
        %v308 = vunpack.c.h.b16 %v239
        %v309 = vunpack.c.l.b16 %v240
        %v310 = vunpack.c.h.b16 %v240
        %v311 = vunpack.c.l.b16 %v241
        %v312 = vunpack.c.h.b16 %v241
        %v313 = vpack.c.b16 %v283, %v277
        %v314 = vpack.c.b16 %v284, %v278
        %v315 = vpack.c.b16 %v285, %v279
        %v316 = vpack.c.b16 %v286, %v280
        %v317 = vpack.c.b16 %v287, %v281
        %v318 = vpack.c.b16 %v288, %v282
        %v319 = vpack.c.b16 %v295, %v289
        %v320 = vpack.c.b16 %v296, %v290
        %v321 = vpack.c.b16 %v297, %v291
        %v322 = vpack.c.b16 %v298, %v292
        %v323 = vpack.c.b16 %v299, %v293
        %v324 = vpack.c.b16 %v300, %v294
        %v325 = vpack.c.b16 %v307, %v301
        %v326 = vpack.c.b16 %v308, %v302
        %v327 = vpack.c.b16 %v309, %v303
        %v328 = vpack.c.b16 %v310, %v304
        %v329 = vpack.c.b16 %v311, %v305
        %v330 = vpack.c.b16 %v312, %v306
        %vm349 = vcmask 392192
        %v351 = vsel %vm349, %v258, 0
        %353 = vmatprep.subr.bf16.mxu0 0
        %354 = vmatpush1.bf16.msra.mxu0 0
        %355 = vmatprep.subr.bf16.mxu0 0
        %356 = vmatpush1.bf16.msra.mxu0 0
        %357 = vmatprep.subr.bf16.mxu0 0
        %358 = vmatpush1.bf16.msra.mxu0 0
        %359 = vmatprep.subr.bf16.mxu0 0
        %360 = vmatpush1.bf16.msra.mxu0 0
        %361 = vmatprep.subr.bf16.mxu0 0
        %362 = vmatpush1.bf16.msra.mxu0 0
        %363 = vmatprep.subr.bf16.mxu0 %v326
        %364 = vmatpush1.bf16.msra.mxu0 %v325
        %365 = vmatprep.subr.bf16.mxu0 %v320
        %366 = vmatpush1.bf16.msra.mxu0 %v319
        %367 = vmatprep.subr.bf16.mxu0 %v314
        %368 = vmatpush1.bf16.msra.mxu0 %v313
        %369 = vmatprep.subr.bf16.mxu0 0
        %370 = vmatpush2.bf16.msra.mxu0 0
        %371 = vmatprep.subr.bf16.mxu0 0
        %372 = vmatpush2.bf16.msra.mxu0 0
        %373 = vmatprep.subr.bf16.mxu0 0
        %374 = vmatpush2.bf16.msra.mxu0 0
        %375 = vmatprep.subr.bf16.mxu0 0
        %376 = vmatpush2.bf16.msra.mxu0 0
        %377 = vmatprep.subr.bf16.mxu0 0
        %378 = vmatpush2.bf16.msra.mxu0 0
        %379 = vmatprep.subr.bf16.mxu0 0
        %380 = vmatpush2.bf16.msra.mxu0 0
        %381 = vmatprep.subr.bf16.mxu0 0
        %382 = vmatpush2.bf16.msra.mxu0 0
        %383 = vmatprep.subr.bf16.mxu0 0
        %384 = vmatpush2.bf16.msra.mxu0 0
        %385 = vmatprep.mubr.bf16.mxu0 0
        %386 = vmatmul.mubr.bf16.gmra.mxu0 %v351
        %v387 = vpop.f32.mrf.mxu0
        %v388 = vadd.f32 %v247, %v387
        %v389 = vpop.f32.mrf.mxu0
        %v390 = vadd.f32 %v247, %v389
        %v391 = vpop.f32.mrf.mxu0
        %v392 = vadd.f32 %v252, %v391
        %v393 = vpop.f32.mrf.mxu0
        %v394 = vadd.f32 %v252, %v393
        %395 = vdwg.mxu0
        %396 = vmatprep.subr.bf16.mxu0 0
        %397 = vmatpush1.bf16.msra.mxu0 0
        %398 = vmatprep.subr.bf16.mxu0 0
        %399 = vmatpush1.bf16.msra.mxu0 0
        %400 = vmatprep.subr.bf16.mxu0 0
        %401 = vmatpush1.bf16.msra.mxu0 0
        %402 = vmatprep.subr.bf16.mxu0 0
        %403 = vmatpush1.bf16.msra.mxu0 0
        %404 = vmatprep.subr.bf16.mxu0 0
        %405 = vmatpush1.bf16.msra.mxu0 0
        %406 = vmatprep.subr.bf16.mxu0 %v328
        %407 = vmatpush1.bf16.msra.mxu0 %v327
        %408 = vmatprep.subr.bf16.mxu0 %v322
        %409 = vmatpush1.bf16.msra.mxu0 %v321
        %410 = vmatprep.subr.bf16.mxu0 %v316
        %411 = vmatpush1.bf16.msra.mxu0 %v315
        %412 = vmatprep.subr.bf16.mxu0 0
        %413 = vmatpush2.bf16.msra.mxu0 0
        %414 = vmatprep.subr.bf16.mxu0 0
        %415 = vmatpush2.bf16.msra.mxu0 0
        %416 = vmatprep.subr.bf16.mxu0 0
        %417 = vmatpush2.bf16.msra.mxu0 0
        %418 = vmatprep.subr.bf16.mxu0 0
        %419 = vmatpush2.bf16.msra.mxu0 0
        %420 = vmatprep.subr.bf16.mxu0 0
        %421 = vmatpush2.bf16.msra.mxu0 0
        %422 = vmatprep.subr.bf16.mxu0 0
        %423 = vmatpush2.bf16.msra.mxu0 0
        %424 = vmatprep.subr.bf16.mxu0 0
        %425 = vmatpush2.bf16.msra.mxu0 0
        %426 = vmatprep.subr.bf16.mxu0 0
        %427 = vmatpush2.bf16.msra.mxu0 0
        %428 = vmatprep.mubr.bf16.mxu0 0
        %429 = vmatmul.mubr.bf16.gmra.mxu0 %v351
        %v430 = vpop.f32.mrf.mxu0
        %v431 = vadd.f32 %v247, %v430
        %v432 = vpop.f32.mrf.mxu0
        %v433 = vadd.f32 %v247, %v432
        %v434 = vpop.f32.mrf.mxu0
        %v435 = vadd.f32 %v252, %v434
        %v436 = vpop.f32.mrf.mxu0
        %v437 = vadd.f32 %v252, %v436
        %438 = vdwg.mxu0
        %439 = vmatprep.subr.bf16.mxu0 0
        %440 = vmatpush1.bf16.msra.mxu0 0
        %441 = vmatprep.subr.bf16.mxu0 0
        %442 = vmatpush1.bf16.msra.mxu0 0
        %443 = vmatprep.subr.bf16.mxu0 0
        %444 = vmatpush1.bf16.msra.mxu0 0
        %445 = vmatprep.subr.bf16.mxu0 0
        %446 = vmatpush1.bf16.msra.mxu0 0
        %447 = vmatprep.subr.bf16.mxu0 0
        %448 = vmatpush1.bf16.msra.mxu0 0
        %449 = vmatprep.subr.bf16.mxu0 %v330
        %450 = vmatpush1.bf16.msra.mxu0 %v329
        %451 = vmatprep.subr.bf16.mxu0 %v324
        %452 = vmatpush1.bf16.msra.mxu0 %v323
        %453 = vmatprep.subr.bf16.mxu0 %v318
        %454 = vmatpush1.bf16.msra.mxu0 %v317
        %455 = vmatprep.subr.bf16.mxu0 0
        %456 = vmatpush2.bf16.msra.mxu0 0
        %457 = vmatprep.subr.bf16.mxu0 0
        %458 = vmatpush2.bf16.msra.mxu0 0
        %459 = vmatprep.subr.bf16.mxu0 0
        %460 = vmatpush2.bf16.msra.mxu0 0
        %461 = vmatprep.subr.bf16.mxu0 0
        %462 = vmatpush2.bf16.msra.mxu0 0
        %463 = vmatprep.subr.bf16.mxu0 0
        %464 = vmatpush2.bf16.msra.mxu0 0
        %465 = vmatprep.subr.bf16.mxu0 0
        %466 = vmatpush2.bf16.msra.mxu0 0
        %467 = vmatprep.subr.bf16.mxu0 0
        %468 = vmatpush2.bf16.msra.mxu0 0
        %469 = vmatprep.subr.bf16.mxu0 0
        %470 = vmatpush2.bf16.msra.mxu0 0
        %471 = vmatprep.mubr.bf16.mxu0 0
        %472 = vmatmul.mubr.bf16.gmra.mxu0 %v351
        %v473 = vpop.f32.mrf.mxu0
        %v474 = vadd.f32 %v247, %v473
        %v475 = vpop.f32.mrf.mxu0
        %v476 = vadd.f32 %v247, %v475
        %v477 = vpop.f32.mrf.mxu0
        %v478 = vadd.f32 %v252, %v477
        %v479 = vpop.f32.mrf.mxu0
        %v480 = vadd.f32 %v252, %v479
        %481 = vdwg.mxu0
        %v482 = vxor.u32 %v388, 2147483648
        %v483 = vxor.u32 %v390, 2147483648
        %v484 = vxor.u32 %v431, 2147483648
        %v485 = vxor.u32 %v433, 2147483648
        %v486 = vxor.u32 %v474, 2147483648
        %v487 = vxor.u32 %v476, 2147483648
        %v488 = vxor.u32 %v392, 2147483648
        %v489 = vxor.u32 %v394, 2147483648
        %v490 = vxor.u32 %v435, 2147483648
        %v491 = vxor.u32 %v437, 2147483648
        %v492 = vxor.u32 %v478, 2147483648
        %v493 = vxor.u32 %v480, 2147483648
        %v494 = vmul.f32 %v482, 1.442695
        %v495 = vpow.pop %v494
        %v496 = vmul.f32 %v483, 1.442695
        %v497 = vpow.pop %v496
        %v498 = vmul.f32 %v484, 1.442695
        %v499 = vpow.pop %v498
        %v500 = vmul.f32 %v485, 1.442695
        %v501 = vpow.pop %v500
        %v502 = vmul.f32 %v486, 1.442695
        %v503 = vpow.pop %v502
        %v504 = vmul.f32 %v487, 1.442695
        %v505 = vpow.pop %v504
        %v506 = vmul.f32 %v488, 1.442695
        %v507 = vpow.pop %v506
        %v508 = vmul.f32 %v489, 1.442695
        %v509 = vpow.pop %v508
        %v510 = vmul.f32 %v490, 1.442695
        %v511 = vpow.pop %v510
        %v512 = vmul.f32 %v491, 1.442695
        %v513 = vpow.pop %v512
        %v514 = vmul.f32 %v492, 1.442695
        %v515 = vpow.pop %v514
        %v516 = vmul.f32 %v493, 1.442695
        %v517 = vpow.pop %v516
        %v518 = vadd.f32 %v495, 1.0
        %v519 = vadd.f32 %v497, 1.0
        %v520 = vadd.f32 %v499, 1.0
        %v521 = vadd.f32 %v501, 1.0
        %v522 = vadd.f32 %v503, 1.0
        %v523 = vadd.f32 %v505, 1.0
        %v524 = vadd.f32 %v507, 1.0
        %v525 = vadd.f32 %v509, 1.0
        %v526 = vadd.f32 %v511, 1.0
        %v527 = vadd.f32 %v513, 1.0
        %v528 = vadd.f32 %v515, 1.0
        %v529 = vadd.f32 %v517, 1.0
        %v530 = vrcp.pop %v518
        %v531 = vmul.f32 1.0, %v530
        %v532 = vrcp.pop %v519
        %v533 = vmul.f32 1.0, %v532
        %v534 = vrcp.pop %v520
        %v535 = vmul.f32 1.0, %v534
        %v536 = vrcp.pop %v521
        %v537 = vmul.f32 1.0, %v536
        %v538 = vrcp.pop %v522
        %v539 = vmul.f32 1.0, %v538
        %v540 = vrcp.pop %v523
        %v541 = vmul.f32 1.0, %v540
        %v542 = vrcp.pop %v524
        %v543 = vmul.f32 1.0, %v542
        %v544 = vrcp.pop %v525
        %v545 = vmul.f32 1.0, %v544
        %v546 = vrcp.pop %v526
        %v547 = vmul.f32 1.0, %v546
        %v548 = vrcp.pop %v527
        %v549 = vmul.f32 1.0, %v548
        %v550 = vrcp.pop %v528
        %v551 = vmul.f32 1.0, %v550
        %v552 = vrcp.pop %v529
        %v553 = vmul.f32 1.0, %v552
        %v554 = vpack.c.bf16 %v543, %v531
        %v555 = vpack.c.bf16 %v545, %v533
        %v556 = vpack.c.bf16 %v547, %v535
        %v557 = vpack.c.bf16 %v549, %v537
        %v558 = vpack.c.bf16 %v551, %v539
        %v559 = vpack.c.bf16 %v553, %v541
        %v566 = vunpack.c.l.b16 %v554
        %v567 = vunpack.c.l.b16 %v555
        %v568 = vunpack.c.l.b16 %v556
        %v569 = vunpack.c.l.b16 %v557
        %v570 = vunpack.c.l.b16 %v558
        %v571 = vunpack.c.l.b16 %v559
        %v572 = vunpack.c.h.b16 %v554
        %v573 = vunpack.c.h.b16 %v555
        %v574 = vunpack.c.h.b16 %v556
        %v575 = vunpack.c.h.b16 %v557
        %v576 = vunpack.c.h.b16 %v558
        %v577 = vunpack.c.h.b16 %v559
        %v578 = vpack.c.b16 %v567, %v566
        %v579 = vpack.c.b16 %v569, %v568
        %v580 = vpack.c.b16 %v571, %v570
        %v581 = vpack.c.b16 %v573, %v572
        %v582 = vpack.c.b16 %v575, %v574
        %v583 = vpack.c.b16 %v577, %v576
        %590 = vst [vmem:[%s218] sm:$0xff] %v578
        %591 = vst [vmem:[%s218 + $0x8] sm:$0xff] %v579
        %592 = vst [vmem:[%s218 + $0x10] sm:$0xff] %v580
        %593 = vst [vmem:[%s218 + $0x18] sm:$0xff] %v581
        %594 = vst [vmem:[%s218 + $0x20] sm:$0xff] %v582
        %595 = vst [vmem:[%s218 + $0x28] sm:$0xff] %v583
        %s596 = sand.u32 %s90, 1
        %s597 = sand.u32 %s90, 1
        %s598 = smul.addr %s597, 48
        %s599 = scalar_lea.vmem [#allocation3], %s598
        // Predicated region
        $region56: #{cnn_forward.6} parent=50 // pred_check
          %p600 = pneg %p100
        $region57: #{cnn_forward.6} parent=50 // pred_check_branch
          %602 = sbr.rel (%p600) target = $region59
        $region58: #{cnn_forward.6} parent=50 // pred_region
          %s603 = smul.u32 6, %s14
          %s604 = smul.addr %s603, 4
          %s605 = scalar_lea.vmem %s3, %s604
          // Predicated region
          $region60: #{cnn_forward.6} parent=58 // pred_check
            _
          $region61: #{cnn_forward.6} parent=58 // pred_check_branch
            %607 = sbr.rel (0) target = $region63
          $region62: #{cnn_forward.6} parent=58 // pred_region
            // Predicated region
            $region64: #{cnn_forward.6} parent=62 // pred_check
              _
            $region65: #{cnn_forward.6} parent=62 // pred_check_branch
              %609 = sbr.rel (0) target = $region67
            $region66: #{cnn_forward.6} parent=62 // pred_region
              loop: start=0, step=1, limit=1
              $region68: #{cnn_forward.6} parent=66 // loop_pre_header
                _
              $region69: #{cnn_forward.6} parent=66 // loop_header
                %s611 = sphi 0, %s615
                %p612 = scmp.ge.s32.totalorder %s611, 1
                %s616 = sphi %s599, %s599
                %s617 = sphi %s605, %s605
              $region70: #{cnn_forward.6} parent=66 // loop_header_branch
                %614 = sbr.rel (%p612) target = $region74
              $region71: #{cnn_forward.6} parent=66 // loop_body
                %v618 = vld [vmem:[%s616] sm:$0xff]
                %619 = vst [vmem:[%s617] sm:$0xff] %v618
                %v620 = vld [vmem:[%s616 + $0x8] sm:$0xff]
                %621 = vst [vmem:[%s617 + $0x8] sm:$0xff] %v620
                %v622 = vld [vmem:[%s616 + $0x10] sm:$0xff]
                %623 = vst [vmem:[%s617 + $0x10] sm:$0xff] %v622
                %v624 = vld [vmem:[%s616 + $0x18] sm:$0xff]
                %625 = vst [vmem:[%s617 + $0x30] sm:$0xff] %v624
                %v626 = vld [vmem:[%s616 + $0x20] sm:$0xff]
                %627 = vst [vmem:[%s617 + $0x38] sm:$0xff] %v626
                %v628 = vld [vmem:[%s616 + $0x28] sm:$0xff]
                %629 = vst [vmem:[%s617 + $0x40] sm:$0xff] %v628
              $region72: #{cnn_forward.6} parent=66 // loop_footer
                %s615 = sadd.s32 1, %s611
              $region73: #{cnn_forward.6} parent=66 // loop_footer_branch
                %610 = sbr.rel target = $region69
              $region74: #{cnn_forward.6} parent=66 // loop_exit
                _
            $region67: #{cnn_forward.6} parent=62 // pred_fallthru
              _
            // Predicated region
            $region75: #{cnn_forward.6} parent=62 // pred_check
              _
            $region76: #{cnn_forward.6} parent=62 // pred_check_branch
              %631 = sbr.rel target = $region78
            $region77: #{cnn_forward.6} parent=62 // pred_region
              _
            $region78: #{cnn_forward.6} parent=62 // pred_fallthru
              _
          $region63: #{cnn_forward.6} parent=58 // pred_fallthru
            _
          %632 = vnop
        $region59: #{cnn_forward.6} parent=50 // pred_fallthru
          _
      $region51: #{cnn_forward.6} parent=5 // pred_fallthru
        _
      %p633 = scmp.le.s32.totalorder 2, %s9
      // Predicated region
      $region79: #{cnn_forward.6} parent=5 // pred_check
        %p634 = pneg %p633
      $region80: #{cnn_forward.6} parent=5 // pred_check_branch
        %636 = sbr.rel (%p634) target = $region82
      $region81: #{cnn_forward.6} parent=5 // pred_region
        %s637 = ssub.s32 %s9, 2
        // Predicated region
        $region83: #{cnn_forward.6} parent=81 // pred_check
          %p638 = pneg %p106
        $region84: #{cnn_forward.6} parent=81 // pred_check_branch
          %640 = sbr.rel (%p638) target = $region86
        $region85: #{cnn_forward.6} parent=81 // pred_region
          %s641 = sand.u32 %s91, 1
          %s642 = sand.u32 %s91, 1
          %s643 = smul.addr %s642, 48
          %s644 = scalar_lea.vmem [#allocation3], %s643
        $region86: #{cnn_forward.6} parent=81 // pred_fallthru
          _
      $region82: #{cnn_forward.6} parent=5 // pred_fallthru
        _
    $region6: #{cnn_forward.6} parent=1 // loop_footer
      %s13 = sadd.s32 1, %s9
    $region7: #{cnn_forward.6} parent=1 // loop_footer_branch
      %8 = sbr.rel target = $region3
    $region8: #{cnn_forward.6} parent=1 // loop_exit
      _

// kernel: cnn_forward.7
$region0: #{cnn_forward.7}
  #allocation0 [shape = 'u32[]', space=smem, size = 0x4, offset = 0x4, fixed_abs, tag = 'smem constant byte address 0x4 - core index']
  #allocation1 [shape = 'u32[144,128]{1,0:T(1,128)}', space=vmem, size = 0x12000, scoped, tag = 'internal scratch']
  #allocation2 [shape = 'f32[2,512]{1,0:T(2,128)}', space=vmem, size = 0x1000, scoped, tag = 'scratch operand']
  %s0 = inlined_call_operand.vmem [shape: bf16[2,7168], index: 0, kind: input, shape index: {}]
  %s1 = inlined_call_operand.vmem [shape: bf16[7168,512], index: 1, kind: input, shape index: {}]
  %s2 = inlined_call_operand.vmem [shape: f32[1,512], index: 2, kind: input, shape index: {}]
  %s3 = inlined_call_operand.vmem [shape: bf16[512,512], index: 3, kind: input, shape index: {}]
  %s4 = inlined_call_operand.vmem [shape: f32[1,512], index: 4, kind: input, shape index: {}]
  %s5 = inlined_call_operand.vmem [shape: bf16[512,128], index: 5, kind: input, shape index: {}]
  %s6 = inlined_call_operand.vmem [shape: f32[1,128], index: 6, kind: input, shape index: {}]
  %s7 = inlined_call_operand.hbm [shape: f32[2,128], index: 7, kind: output, shape index: {}]
  %s8 = sld [smem:[#allocation0]]
  $region69: #{cnn_forward.7} parent=0
    _
  %s10 = ssub.s32 1, %s8
  %s11 = scalar_select 0, %s10, %s8
  $region1: #{cnn_forward.7} parent=0
    #allocation3 [shape = 'u8[1024]{0}', space=vmem, size = 0x400, scoped, tag = 'output window, operand 0, single buffered']
    #allocation4 [shape = 's32[2]{0}', space=sflag, size = 0x8, scoped, tag = 'scoped memory for cnn_forward.7']
    %12 = vsyncpa [#allocation4], 0
    loop: start=0, step=1, limit=9
    $region2: #{cnn_forward.7} parent=1 // loop_pre_header
      _
    $region3: #{cnn_forward.7} parent=1 // loop_header
      %s14 = sphi 0, %s18
      %p15 = scmp.ge.s32.totalorder %s14, 9
      %s24 = sphi 0, %s26
      %s27 = sphi 0, %s24
      %s28 = sphi 0, %s27
      %s44 = sphi 0, %s28
      %s50 = sphi 0, %s52
      %s53 = sphi 0, %s50
      %s54 = sphi 0, %s53
      %s70 = sphi 0, %s54
      %s74 = sphi 0, %s74
      %s76 = sphi 0, %s74
      %s77 = sphi 0, %s76
      %s91 = sphi 0, %s77
      %s95 = sphi 0, %s95
      %s97 = sphi 0, %s95
      %s98 = sphi 0, %s97
      %s112 = sphi 0, %s98
      %s116 = sphi 0, %s116
      %s118 = sphi 0, %s116
      %s119 = sphi 0, %s118
      %s133 = sphi 0, %s119
      %s137 = sphi 0, %s137
      %s139 = sphi 0, %s137
      %s140 = sphi 0, %s139
      %s154 = sphi 0, %s140
      %s158 = sphi 0, %s158
      %s160 = sphi 0, %s158
      %s161 = sphi 0, %s160
      %s175 = sphi 0, %s161
      %s179 = sphi 0, %s179
      %s181 = sphi 0, %s179
      %s182 = sphi 0, %s181
      %s196 = sphi 0, %s182
    $region4: #{cnn_forward.7} parent=1 // loop_header_branch
      %17 = sbr.rel (%p15) target = $region8
    $region5: #{cnn_forward.7} parent=1 // loop_body
      %s19 = ssub.s32 %s14, 1
      %s20 = ssub.s32 %s14, 2
      %s21 = sadd.s32 %s14, 1
      %s22 = ssub.s32 %s14, %s21
      %p23 = scmp.eq.s32.totalorder %s22, 0
      %s25 = sadd.s32 %s24, 1
      %s26 = scalar_select %p23, %s24, %s25
      %p29 = pneg %p23
      %p30 = scmp.eq.s32.totalorder %s14, 6
      %p31 = por %p29, %p30
      %p32 = scmp.ne.s32.totalorder %s24, %s27
      %p33 = scmp.eq.s32.totalorder %s14, 0
      %p34 = por %p32, %p33
      %p35 = scmp.ne.s32.totalorder %s24, %s27
      %p36 = scmp.eq.s32.totalorder %s19, 6
      %p37 = por %p35, %p36
      %p38 = scmp.ne.s32.totalorder %s27, %s28
      %p39 = scmp.eq.s32.totalorder %s19, 0
      %p40 = por %p38, %p39
      %p41 = scmp.ne.s32.totalorder %s27, %s28
      %p42 = scmp.eq.s32.totalorder %s20, 6
      %p43 = por %p41, %p42
      %p45 = scmp.ne.s32.totalorder %s28, %s44
      %p46 = scmp.eq.s32.totalorder %s20, 0
      %p47 = por %p45, %p46
      %s48 = ssub.s32 %s14, %s21
      %p49 = scmp.eq.s32.totalorder %s48, 0
      %s51 = sadd.s32 %s50, 1
      %s52 = scalar_select %p49, %s50, %s51
      %p55 = pneg %p49
      %p56 = scmp.eq.s32.totalorder %s14, 6
      %p57 = por %p55, %p56
      %p58 = scmp.ne.s32.totalorder %s50, %s53
      %p59 = scmp.eq.s32.totalorder %s14, 0
      %p60 = por %p58, %p59
      %p61 = scmp.ne.s32.totalorder %s50, %s53
      %p62 = scmp.eq.s32.totalorder %s19, 6
      %p63 = por %p61, %p62
      %p64 = scmp.ne.s32.totalorder %s53, %s54
      %p65 = scmp.eq.s32.totalorder %s19, 0
      %p66 = por %p64, %p65
      %p67 = scmp.ne.s32.totalorder %s53, %s54
      %p68 = scmp.eq.s32.totalorder %s20, 6
      %p69 = por %p67, %p68
      %p71 = scmp.ne.s32.totalorder %s54, %s70
      %p72 = scmp.eq.s32.totalorder %s20, 0
      %p73 = por %p71, %p72
      %s75 = sadd.s32 %s74, 1
      %p78 = scmp.eq.s32.totalorder %s14, 6
      %p79 = scmp.ne.s32.totalorder %s74, %s76
      %p80 = scmp.eq.s32.totalorder %s14, 0
      %p81 = por %p79, %p80
      %p82 = scmp.ne.s32.totalorder %s74, %s76
      %p83 = scmp.eq.s32.totalorder %s19, 6
      %p84 = por %p82, %p83
      %p85 = scmp.ne.s32.totalorder %s76, %s77
      %p86 = scmp.eq.s32.totalorder %s19, 0
      %p87 = por %p85, %p86
      %p88 = scmp.ne.s32.totalorder %s76, %s77
      %p89 = scmp.eq.s32.totalorder %s20, 6
      %p90 = por %p88, %p89
      %p92 = scmp.ne.s32.totalorder %s77, %s91
      %p93 = scmp.eq.s32.totalorder %s20, 0
      %p94 = por %p92, %p93
      %s96 = sadd.s32 %s95, 1
      %p99 = scmp.eq.s32.totalorder %s14, 6
      %p100 = scmp.ne.s32.totalorder %s95, %s97
      %p101 = scmp.eq.s32.totalorder %s14, 0
      %p102 = por %p100, %p101
      %p103 = scmp.ne.s32.totalorder %s95, %s97
      %p104 = scmp.eq.s32.totalorder %s19, 6
      %p105 = por %p103, %p104
      %p106 = scmp.ne.s32.totalorder %s97, %s98
      %p107 = scmp.eq.s32.totalorder %s19, 0
      %p108 = por %p106, %p107
      %p109 = scmp.ne.s32.totalorder %s97, %s98
      %p110 = scmp.eq.s32.totalorder %s20, 6
      %p111 = por %p109, %p110
      %p113 = scmp.ne.s32.totalorder %s98, %s112
      %p114 = scmp.eq.s32.totalorder %s20, 0
      %p115 = por %p113, %p114
      %s117 = sadd.s32 %s116, 1
      %p120 = scmp.eq.s32.totalorder %s14, 6
      %p121 = scmp.ne.s32.totalorder %s116, %s118
      %p122 = scmp.eq.s32.totalorder %s14, 0
      %p123 = por %p121, %p122
      %p124 = scmp.ne.s32.totalorder %s116, %s118
      %p125 = scmp.eq.s32.totalorder %s19, 6
      %p126 = por %p124, %p125
      %p127 = scmp.ne.s32.totalorder %s118, %s119
      %p128 = scmp.eq.s32.totalorder %s19, 0
      %p129 = por %p127, %p128
      %p130 = scmp.ne.s32.totalorder %s118, %s119
      %p131 = scmp.eq.s32.totalorder %s20, 6
      %p132 = por %p130, %p131
      %p134 = scmp.ne.s32.totalorder %s119, %s133
      %p135 = scmp.eq.s32.totalorder %s20, 0
      %p136 = por %p134, %p135
      %s138 = sadd.s32 %s137, 1
      %p141 = scmp.eq.s32.totalorder %s14, 6
      %p142 = scmp.ne.s32.totalorder %s137, %s139
      %p143 = scmp.eq.s32.totalorder %s14, 0
      %p144 = por %p142, %p143
      %p145 = scmp.ne.s32.totalorder %s137, %s139
      %p146 = scmp.eq.s32.totalorder %s19, 6
      %p147 = por %p145, %p146
      %p148 = scmp.ne.s32.totalorder %s139, %s140
      %p149 = scmp.eq.s32.totalorder %s19, 0
      %p150 = por %p148, %p149
      %p151 = scmp.ne.s32.totalorder %s139, %s140
      %p152 = scmp.eq.s32.totalorder %s20, 6
      %p153 = por %p151, %p152
      %p155 = scmp.ne.s32.totalorder %s140, %s154
      %p156 = scmp.eq.s32.totalorder %s20, 0
      %p157 = por %p155, %p156
      %s159 = sadd.s32 %s158, 1
      %p162 = scmp.eq.s32.totalorder %s14, 6
      %p163 = scmp.ne.s32.totalorder %s158, %s160
      %p164 = scmp.eq.s32.totalorder %s14, 0
      %p165 = por %p163, %p164
      %p166 = scmp.ne.s32.totalorder %s158, %s160
      %p167 = scmp.eq.s32.totalorder %s19, 6
      %p168 = por %p166, %p167
      %p169 = scmp.ne.s32.totalorder %s160, %s161
      %p170 = scmp.eq.s32.totalorder %s19, 0
      %p171 = por %p169, %p170
      %p172 = scmp.ne.s32.totalorder %s160, %s161
      %p173 = scmp.eq.s32.totalorder %s20, 6
      %p174 = por %p172, %p173
      %p176 = scmp.ne.s32.totalorder %s161, %s175
      %p177 = scmp.eq.s32.totalorder %s20, 0
      %p178 = por %p176, %p177
      %s180 = sadd.s32 %s179, 1
      %p183 = scmp.eq.s32.totalorder %s14, 6
      %p184 = scmp.ne.s32.totalorder %s179, %s181
      %p185 = scmp.eq.s32.totalorder %s14, 0
      %p186 = por %p184, %p185
      %p187 = scmp.ne.s32.totalorder %s179, %s181
      %p188 = scmp.eq.s32.totalorder %s19, 6
      %p189 = por %p187, %p188
      %p190 = scmp.ne.s32.totalorder %s181, %s182
      %p191 = scmp.eq.s32.totalorder %s19, 0
      %p192 = por %p190, %p191
      %p193 = scmp.ne.s32.totalorder %s181, %s182
      %p194 = scmp.eq.s32.totalorder %s20, 6
      %p195 = por %p193, %p194
      %p197 = scmp.ne.s32.totalorder %s182, %s196
      %p198 = scmp.eq.s32.totalorder %s20, 0
      %p199 = por %p197, %p198
      %p200 = scmp.le.s32.totalorder 1, %s14
      %p201 = scmp.lt.s32.totalorder %s14, 8
      %p202 = pnand %p200, %p201
      %p203 = pneg %p202
      // Predicated region
      $region9: #{cnn_forward.7} parent=5 // pred_check
        _
      $region10: #{cnn_forward.7} parent=5 // pred_check_branch
        %205 = sbr.rel (%p202) target = $region12
      $region11: #{cnn_forward.7} parent=5 // pred_region
        %s206 = ssub.s32 %s14, 1
        // Predicated region
        $region13: #{cnn_forward.7} parent=11 // pred_check
          %p207 = pneg %p87
        $region14: #{cnn_forward.7} parent=11 // pred_check_branch
          %209 = sbr.rel (%p207) target = $region16
        $region15: #{cnn_forward.7} parent=11 // pred_region
          _
        $region16: #{cnn_forward.7} parent=11 // pred_fallthru
          _
        // Predicated region
        $region17: #{cnn_forward.7} parent=11 // pred_check
          %p210 = pneg %p108
        $region18: #{cnn_forward.7} parent=11 // pred_check_branch
          %212 = sbr.rel (%p210) target = $region20
        $region19: #{cnn_forward.7} parent=11 // pred_region
          _
        $region20: #{cnn_forward.7} parent=11 // pred_fallthru
          _
        // Predicated region
        $region21: #{cnn_forward.7} parent=11 // pred_check
          %p213 = pneg %p129
        $region22: #{cnn_forward.7} parent=11 // pred_check_branch
          %215 = sbr.rel (%p213) target = $region24
        $region23: #{cnn_forward.7} parent=11 // pred_region
          _
        $region24: #{cnn_forward.7} parent=11 // pred_fallthru
          _
        // Predicated region
        $region25: #{cnn_forward.7} parent=11 // pred_check
          %p216 = pneg %p150
        $region26: #{cnn_forward.7} parent=11 // pred_check_branch
          %218 = sbr.rel (%p216) target = $region28
        $region27: #{cnn_forward.7} parent=11 // pred_region
          _
        $region28: #{cnn_forward.7} parent=11 // pred_fallthru
          _
        // Predicated region
        $region29: #{cnn_forward.7} parent=11 // pred_check
          %p219 = pneg %p171
        $region30: #{cnn_forward.7} parent=11 // pred_check_branch
          %221 = sbr.rel (%p219) target = $region32
        $region31: #{cnn_forward.7} parent=11 // pred_region
          _
        $region32: #{cnn_forward.7} parent=11 // pred_fallthru
          _
      $region12: #{cnn_forward.7} parent=5 // pred_fallthru
        _
      %p222 = scmp.lt.s32.totalorder %s14, 7
      // Predicated region
      $region33: #{cnn_forward.7} parent=5 // pred_check
        %p223 = pneg %p222
      $region34: #{cnn_forward.7} parent=5 // pred_check_branch
        %225 = sbr.rel (%p223) target = $region36
      $region35: #{cnn_forward.7} parent=5 // pred_region
        // Predicated region
        $region37: #{cnn_forward.7} parent=35 // pred_check
          %p226 = pneg %p34
        $region38: #{cnn_forward.7} parent=35 // pred_check_branch
          %228 = sbr.rel (%p226) target = $region40
        $region39: #{cnn_forward.7} parent=35 // pred_region
          %s229 = smul.u32 8, %s14
          %p230 = scmp.lt.s32.totalorder %s229, 55
          %s231 = scalar_select %p230, %s229, 55
          %s232 = scalar_lea.vmem %s0, %s231
          %s233 = smul.u32 8, %s14
        $region40: #{cnn_forward.7} parent=35 // pred_fallthru
          _
        // Predicated region
        $region41: #{cnn_forward.7} parent=35 // pred_check
          %p234 = pneg %p60
        $region42: #{cnn_forward.7} parent=35 // pred_check_branch
          %236 = sbr.rel (%p234) target = $region44
        $region43: #{cnn_forward.7} parent=35 // pred_region
          %s237 = smul.u32 128, %s14
          %p238 = scmp.lt.s32.totalorder %s237, 895
          %s239 = scalar_select %p238, %s237, 895
          %s240 = smul.addr %s239, 4
          %s241 = smul.addr %s240, 4
          %s242 = scalar_lea.vmem %s1, %s241
          %s243 = smul.u32 128, %s14
        $region44: #{cnn_forward.7} parent=35 // pred_fallthru
          _
      $region36: #{cnn_forward.7} parent=5 // pred_fallthru
        _
      %p244 = scmp.le.s32.totalorder 1, %s14
      %p245 = scmp.lt.s32.totalorder %s14, 8
      %p246 = pnand %p244, %p245
      %p247 = pneg %p246
      // Predicated region
      $region45: #{cnn_forward.7} parent=5 // pred_check
        _
      $region46: #{cnn_forward.7} parent=5 // pred_check_branch
        %249 = sbr.rel (%p246) target = $region48
      $region47: #{cnn_forward.7} parent=5 // pred_region
        %s250 = ssub.s32 %s14, 1
        %s251 = smul.u32 8, %s19
        %p252 = scmp.lt.s32.totalorder %s251, 55
        %s253 = scalar_select %p252, %s251, 55
        %s254 = scalar_lea.vmem %s0, %s253
        %p255 = pneg %p40
        %p256 = pneg %p37
        %s257 = smul.u32 128, %s19
        %p258 = scmp.lt.s32.totalorder %s257, 895
        %s259 = scalar_select %p258, %s257, 895
        %s260 = smul.addr %s259, 4
        %s261 = smul.addr %s260, 4
        %s262 = scalar_lea.vmem %s1, %s261
        %p263 = pneg %p66
        %p264 = pneg %p63
        %p265 = pneg %p87
        %p266 = pneg %p84
        %p267 = pneg %p108
        %p268 = pneg %p105
        %p269 = pneg %p129
        %p270 = pneg %p126
        %p271 = pneg %p150
        %p272 = pneg %p147
        %p273 = pneg %p171
        %p274 = pneg %p168
        %p275 = pneg %p192
        %p276 = pneg %p189
        %s277 = smul.u32 8, %s19
        %p278 = scmp.lt.s32.totalorder %s277, 55
        %s279 = scalar_select %p278, %s277, 55
        %s280 = scalar_lea.vmem %s0, %s279
        %s281 = smul.u32 8, %s19
        %s282 = smul.u32 128, %s19
        %p283 = scmp.lt.s32.totalorder %s282, 895
        %s284 = scalar_select %p283, %s282, 895
        %s285 = smul.addr %s284, 4
        %s286 = smul.addr %s285, 4
        %s287 = scalar_lea.vmem %s1, %s286
        %s288 = smul.u32 128, %s19
        %p290 = scmp.eq.s32.totalorder %s19, 0
        // Predicated region
        $region49: #{cnn_forward.7} parent=47 // pred_check
          %p291 = pneg %p290
        $region50: #{cnn_forward.7} parent=47 // pred_check_branch
          %293 = sbr.rel (%p291) target = $region52
        $region51: #{cnn_forward.7} parent=47 // pred_region
          %294 = vst [vmem:[#allocation2] sm:$0xff] 0.0
        $region52: #{cnn_forward.7} parent=47 // pred_fallthru
          _
        %v295 = vld [vmem:[#allocation2] sm:$0xff]
        %v296 = vld [vmem:[%s280] sm:$0xff]
        %v297 = vld [vmem:[%s287] sm:$0xff]
        %v298 = vld [vmem:[%s287 + $0x8] sm:$0xff]
        %v299 = vld [vmem:[%s287 + $0x10] sm:$0xff]
        %v300 = vld [vmem:[%s287 + $0x18] sm:$0xff]
        %v301 = vld [vmem:[%s287 + $0x20] sm:$0xff]
        %v302 = vld [vmem:[%s287 + $0x28] sm:$0xff]
        %v303 = vld [vmem:[%s287 + $0x30] sm:$0xff]
        %v304 = vld [vmem:[%s287 + $0x38] sm:$0xff]
        %v305 = vld [vmem:[%s287 + $0x40] sm:$0xff]
        %v306 = vld [vmem:[%s287 + $0x48] sm:$0xff]
        %v307 = vld [vmem:[%s287 + $0x50] sm:$0xff]
        %v308 = vld [vmem:[%s287 + $0x58] sm:$0xff]
        %v309 = vld [vmem:[%s287 + $0x60] sm:$0xff]
        %v310 = vld [vmem:[%s287 + $0x68] sm:$0xff]
        %v311 = vld [vmem:[%s287 + $0x70] sm:$0xff]
        %v312 = vld [vmem:[%s287 + $0x78] sm:$0xff]
        %v313 = vld [vmem:[%s287 + $0x80] sm:$0xff]
        %v314 = vld [vmem:[%s287 + $0x88] sm:$0xff]
        %v315 = vld [vmem:[%s287 + $0x90] sm:$0xff]
        %v316 = vld [vmem:[%s287 + $0x98] sm:$0xff]
        %v317 = vld [vmem:[%s287 + $0xa0] sm:$0xff]
        %v318 = vld [vmem:[%s287 + $0xa8] sm:$0xff]
        %v319 = vld [vmem:[%s287 + $0xb0] sm:$0xff]
        %v320 = vld [vmem:[%s287 + $0xb8] sm:$0xff]
        %v321 = vld [vmem:[%s287 + $0xc0] sm:$0xff]
        %v322 = vld [vmem:[%s287 + $0xc8] sm:$0xff]
        %v323 = vld [vmem:[%s287 + $0xd0] sm:$0xff]
        %v324 = vld [vmem:[%s287 + $0xd8] sm:$0xff]
        %v325 = vld [vmem:[%s287 + $0xe0] sm:$0xff]
        %v326 = vld [vmem:[%s287 + $0xe8] sm:$0xff]
        %v327 = vld [vmem:[%s287 + $0xf0] sm:$0xff]
        %v328 = vld [vmem:[%s287 + $0xf8] sm:$0xff]
        %v329 = vld [vmem:[%s287 + $0x100] sm:$0xff]
        %v330 = vld [vmem:[%s287 + $0x108] sm:$0xff]
        %v331 = vld [vmem:[%s287 + $0x110] sm:$0xff]
        %v332 = vld [vmem:[%s287 + $0x118] sm:$0xff]
        %v333 = vld [vmem:[%s287 + $0x120] sm:$0xff]
        %v334 = vld [vmem:[%s287 + $0x128] sm:$0xff]
        %v335 = vld [vmem:[%s287 + $0x130] sm:$0xff]
        %v336 = vld [vmem:[%s287 + $0x138] sm:$0xff]
        %v337 = vld [vmem:[%s287 + $0x140] sm:$0xff]
        %v338 = vld [vmem:[%s287 + $0x148] sm:$0xff]
        %v339 = vld [vmem:[%s287 + $0x150] sm:$0xff]
        %v340 = vld [vmem:[%s287 + $0x158] sm:$0xff]
        %v341 = vld [vmem:[%s287 + $0x160] sm:$0xff]
        %v342 = vld [vmem:[%s287 + $0x168] sm:$0xff]
        %v343 = vld [vmem:[%s287 + $0x170] sm:$0xff]
        %v344 = vld [vmem:[%s287 + $0x178] sm:$0xff]
        %v345 = vld [vmem:[%s287 + $0x180] sm:$0xff]
        %v346 = vld [vmem:[%s287 + $0x188] sm:$0xff]
        %v347 = vld [vmem:[%s287 + $0x190] sm:$0xff]
        %v348 = vld [vmem:[%s287 + $0x198] sm:$0xff]
        %v349 = vld [vmem:[%s287 + $0x1a0] sm:$0xff]
        %v350 = vld [vmem:[%s287 + $0x1a8] sm:$0xff]
        %v351 = vld [vmem:[%s287 + $0x1b0] sm:$0xff]
        %v352 = vld [vmem:[%s287 + $0x1b8] sm:$0xff]
        %v353 = vld [vmem:[%s287 + $0x1c0] sm:$0xff]
        %v354 = vld [vmem:[%s287 + $0x1c8] sm:$0xff]
        %v355 = vld [vmem:[%s287 + $0x1d0] sm:$0xff]
        %v356 = vld [vmem:[%s287 + $0x1d8] sm:$0xff]
        %v357 = vld [vmem:[%s287 + $0x1e0] sm:$0xff]
        %v358 = vld [vmem:[%s287 + $0x1e8] sm:$0xff]
        %v359 = vld [vmem:[%s287 + $0x1f0] sm:$0xff]
        %v360 = vld [vmem:[%s287 + $0x1f8] sm:$0xff]
        %v361 = vld [vmem:[%s287 + $0x200] sm:$0xff]
        %v362 = vld [vmem:[%s287 + $0x208] sm:$0xff]
        %v363 = vld [vmem:[%s287 + $0x210] sm:$0xff]
        %v364 = vld [vmem:[%s287 + $0x218] sm:$0xff]
        %v365 = vld [vmem:[%s287 + $0x220] sm:$0xff]
        %v366 = vld [vmem:[%s287 + $0x228] sm:$0xff]
        %v367 = vld [vmem:[%s287 + $0x230] sm:$0xff]
        %v368 = vld [vmem:[%s287 + $0x238] sm:$0xff]
        %v369 = vld [vmem:[%s287 + $0x240] sm:$0xff]
        %v370 = vld [vmem:[%s287 + $0x248] sm:$0xff]
        %v371 = vld [vmem:[%s287 + $0x250] sm:$0xff]
        %v372 = vld [vmem:[%s287 + $0x258] sm:$0xff]
        %v373 = vld [vmem:[%s287 + $0x260] sm:$0xff]
        %v374 = vld [vmem:[%s287 + $0x268] sm:$0xff]
        %v375 = vld [vmem:[%s287 + $0x270] sm:$0xff]
        %v376 = vld [vmem:[%s287 + $0x278] sm:$0xff]
        %v377 = vld [vmem:[%s287 + $0x280] sm:$0xff]
        %v378 = vld [vmem:[%s287 + $0x288] sm:$0xff]
        %v379 = vld [vmem:[%s287 + $0x290] sm:$0xff]
        %v380 = vld [vmem:[%s287 + $0x298] sm:$0xff]
        %v381 = vld [vmem:[%s287 + $0x2a0] sm:$0xff]
        %v382 = vld [vmem:[%s287 + $0x2a8] sm:$0xff]
        %v383 = vld [vmem:[%s287 + $0x2b0] sm:$0xff]
        %v384 = vld [vmem:[%s287 + $0x2b8] sm:$0xff]
        %v385 = vld [vmem:[%s287 + $0x2c0] sm:$0xff]
        %v386 = vld [vmem:[%s287 + $0x2c8] sm:$0xff]
        %v387 = vld [vmem:[%s287 + $0x2d0] sm:$0xff]
        %v388 = vld [vmem:[%s287 + $0x2d8] sm:$0xff]
        %v389 = vld [vmem:[%s287 + $0x2e0] sm:$0xff]
        %v390 = vld [vmem:[%s287 + $0x2e8] sm:$0xff]
        %v391 = vld [vmem:[%s287 + $0x2f0] sm:$0xff]
        %v392 = vld [vmem:[%s287 + $0x2f8] sm:$0xff]
        %v393 = vld [vmem:[%s287 + $0x300] sm:$0xff]
        %v394 = vld [vmem:[%s287 + $0x308] sm:$0xff]
        %v395 = vld [vmem:[%s287 + $0x310] sm:$0xff]
        %v396 = vld [vmem:[%s287 + $0x318] sm:$0xff]
        %v397 = vld [vmem:[%s287 + $0x320] sm:$0xff]
        %v398 = vld [vmem:[%s287 + $0x328] sm:$0xff]
        %v399 = vld [vmem:[%s287 + $0x330] sm:$0xff]
        %v400 = vld [vmem:[%s287 + $0x338] sm:$0xff]
        %v401 = vld [vmem:[%s287 + $0x340] sm:$0xff]
        %v402 = vld [vmem:[%s287 + $0x348] sm:$0xff]
        %v403 = vld [vmem:[%s287 + $0x350] sm:$0xff]
        %v404 = vld [vmem:[%s287 + $0x358] sm:$0xff]
        %v405 = vld [vmem:[%s287 + $0x360] sm:$0xff]
        %v406 = vld [vmem:[%s287 + $0x368] sm:$0xff]
        %v407 = vld [vmem:[%s287 + $0x370] sm:$0xff]
        %v408 = vld [vmem:[%s287 + $0x378] sm:$0xff]
        %v409 = vld [vmem:[%s287 + $0x380] sm:$0xff]
        %v410 = vld [vmem:[%s287 + $0x388] sm:$0xff]
        %v411 = vld [vmem:[%s287 + $0x390] sm:$0xff]
        %v412 = vld [vmem:[%s287 + $0x398] sm:$0xff]
        %v413 = vld [vmem:[%s287 + $0x3a0] sm:$0xff]
        %v414 = vld [vmem:[%s287 + $0x3a8] sm:$0xff]
        %v415 = vld [vmem:[%s287 + $0x3b0] sm:$0xff]
        %v416 = vld [vmem:[%s287 + $0x3b8] sm:$0xff]
        %v417 = vld [vmem:[%s287 + $0x3c0] sm:$0xff]
        %v418 = vld [vmem:[%s287 + $0x3c8] sm:$0xff]
        %v419 = vld [vmem:[%s287 + $0x3d0] sm:$0xff]
        %v420 = vld [vmem:[%s287 + $0x3d8] sm:$0xff]
        %v421 = vld [vmem:[%s287 + $0x3e0] sm:$0xff]
        %v422 = vld [vmem:[%s287 + $0x3e8] sm:$0xff]
        %v423 = vld [vmem:[%s287 + $0x3f0] sm:$0xff]
        %v424 = vld [vmem:[%s287 + $0x3f8] sm:$0xff]
        %v425 = vld [vmem:[%s287 + $0x400] sm:$0xff]
        %v426 = vld [vmem:[%s287 + $0x408] sm:$0xff]
        %v427 = vld [vmem:[%s287 + $0x410] sm:$0xff]
        %v428 = vld [vmem:[%s287 + $0x418] sm:$0xff]
        %v429 = vld [vmem:[%s287 + $0x420] sm:$0xff]
        %v430 = vld [vmem:[%s287 + $0x428] sm:$0xff]
        %v431 = vld [vmem:[%s287 + $0x430] sm:$0xff]
        %v432 = vld [vmem:[%s287 + $0x438] sm:$0xff]
        %v433 = vld [vmem:[%s287 + $0x440] sm:$0xff]
        %v434 = vld [vmem:[%s287 + $0x448] sm:$0xff]
        %v435 = vld [vmem:[%s287 + $0x450] sm:$0xff]
        %v436 = vld [vmem:[%s287 + $0x458] sm:$0xff]
        %v437 = vld [vmem:[%s287 + $0x460] sm:$0xff]
        %v438 = vld [vmem:[%s287 + $0x468] sm:$0xff]
        %v439 = vld [vmem:[%s287 + $0x470] sm:$0xff]
        %v440 = vld [vmem:[%s287 + $0x478] sm:$0xff]
        %v441 = vld [vmem:[%s287 + $0x480] sm:$0xff]
        %v442 = vld [vmem:[%s287 + $0x488] sm:$0xff]
        %v443 = vld [vmem:[%s287 + $0x490] sm:$0xff]
        %v444 = vld [vmem:[%s287 + $0x498] sm:$0xff]
        %v445 = vld [vmem:[%s287 + $0x4a0] sm:$0xff]
        %v446 = vld [vmem:[%s287 + $0x4a8] sm:$0xff]
        %v447 = vld [vmem:[%s287 + $0x4b0] sm:$0xff]
        %v448 = vld [vmem:[%s287 + $0x4b8] sm:$0xff]
        %v449 = vld [vmem:[%s287 + $0x4c0] sm:$0xff]
        %v450 = vld [vmem:[%s287 + $0x4c8] sm:$0xff]
        %v451 = vld [vmem:[%s287 + $0x4d0] sm:$0xff]
        %v452 = vld [vmem:[%s287 + $0x4d8] sm:$0xff]
        %v453 = vld [vmem:[%s287 + $0x4e0] sm:$0xff]
        %v454 = vld [vmem:[%s287 + $0x4e8] sm:$0xff]
        %v455 = vld [vmem:[%s287 + $0x4f0] sm:$0xff]
        %v456 = vld [vmem:[%s287 + $0x4f8] sm:$0xff]
        %v457 = vld [vmem:[%s287 + $0x500] sm:$0xff]
        %v458 = vld [vmem:[%s287 + $0x508] sm:$0xff]
        %v459 = vld [vmem:[%s287 + $0x510] sm:$0xff]
        %v460 = vld [vmem:[%s287 + $0x518] sm:$0xff]
        %v461 = vld [vmem:[%s287 + $0x520] sm:$0xff]
        %v462 = vld [vmem:[%s287 + $0x528] sm:$0xff]
        %v463 = vld [vmem:[%s287 + $0x530] sm:$0xff]
        %v464 = vld [vmem:[%s287 + $0x538] sm:$0xff]
        %v465 = vld [vmem:[%s287 + $0x540] sm:$0xff]
        %v466 = vld [vmem:[%s287 + $0x548] sm:$0xff]
        %v467 = vld [vmem:[%s287 + $0x550] sm:$0xff]
        %v468 = vld [vmem:[%s287 + $0x558] sm:$0xff]
        %v469 = vld [vmem:[%s287 + $0x560] sm:$0xff]
        %v470 = vld [vmem:[%s287 + $0x568] sm:$0xff]
        %v471 = vld [vmem:[%s287 + $0x570] sm:$0xff]
        %v472 = vld [vmem:[%s287 + $0x578] sm:$0xff]
        %v473 = vld [vmem:[%s287 + $0x580] sm:$0xff]
        %v474 = vld [vmem:[%s287 + $0x588] sm:$0xff]
        %v475 = vld [vmem:[%s287 + $0x590] sm:$0xff]
        %v476 = vld [vmem:[%s287 + $0x598] sm:$0xff]
        %v477 = vld [vmem:[%s287 + $0x5a0] sm:$0xff]
        %v478 = vld [vmem:[%s287 + $0x5a8] sm:$0xff]
        %v479 = vld [vmem:[%s287 + $0x5b0] sm:$0xff]
        %v480 = vld [vmem:[%s287 + $0x5b8] sm:$0xff]
        %v481 = vld [vmem:[%s287 + $0x5c0] sm:$0xff]
        %v482 = vld [vmem:[%s287 + $0x5c8] sm:$0xff]
        %v483 = vld [vmem:[%s287 + $0x5d0] sm:$0xff]
        %v484 = vld [vmem:[%s287 + $0x5d8] sm:$0xff]
        %v485 = vld [vmem:[%s287 + $0x5e0] sm:$0xff]
        %v486 = vld [vmem:[%s287 + $0x5e8] sm:$0xff]
        %v487 = vld [vmem:[%s287 + $0x5f0] sm:$0xff]
        %v488 = vld [vmem:[%s287 + $0x5f8] sm:$0xff]
        %v489 = vld [vmem:[%s287 + $0x600] sm:$0xff]
        %v490 = vld [vmem:[%s287 + $0x608] sm:$0xff]
        %v491 = vld [vmem:[%s287 + $0x610] sm:$0xff]
        %v492 = vld [vmem:[%s287 + $0x618] sm:$0xff]
        %v493 = vld [vmem:[%s287 + $0x620] sm:$0xff]
        %v494 = vld [vmem:[%s287 + $0x628] sm:$0xff]
        %v495 = vld [vmem:[%s287 + $0x630] sm:$0xff]
        %v496 = vld [vmem:[%s287 + $0x638] sm:$0xff]
        %v497 = vld [vmem:[%s287 + $0x640] sm:$0xff]
        %v498 = vld [vmem:[%s287 + $0x648] sm:$0xff]
        %v499 = vld [vmem:[%s287 + $0x650] sm:$0xff]
        %v500 = vld [vmem:[%s287 + $0x658] sm:$0xff]
        %v501 = vld [vmem:[%s287 + $0x660] sm:$0xff]
        %v502 = vld [vmem:[%s287 + $0x668] sm:$0xff]
        %v503 = vld [vmem:[%s287 + $0x670] sm:$0xff]
        %v504 = vld [vmem:[%s287 + $0x678] sm:$0xff]
        %v505 = vld [vmem:[%s287 + $0x680] sm:$0xff]
        %v506 = vld [vmem:[%s287 + $0x688] sm:$0xff]
        %v507 = vld [vmem:[%s287 + $0x690] sm:$0xff]
        %v508 = vld [vmem:[%s287 + $0x698] sm:$0xff]
        %v509 = vld [vmem:[%s287 + $0x6a0] sm:$0xff]
        %v510 = vld [vmem:[%s287 + $0x6a8] sm:$0xff]
        %v511 = vld [vmem:[%s287 + $0x6b0] sm:$0xff]
        %v512 = vld [vmem:[%s287 + $0x6b8] sm:$0xff]
        %v513 = vld [vmem:[%s287 + $0x6c0] sm:$0xff]
        %v514 = vld [vmem:[%s287 + $0x6c8] sm:$0xff]
        %v515 = vld [vmem:[%s287 + $0x6d0] sm:$0xff]
        %v516 = vld [vmem:[%s287 + $0x6d8] sm:$0xff]
        %v517 = vld [vmem:[%s287 + $0x6e0] sm:$0xff]
        %v518 = vld [vmem:[%s287 + $0x6e8] sm:$0xff]
        %v519 = vld [vmem:[%s287 + $0x6f0] sm:$0xff]
        %v520 = vld [vmem:[%s287 + $0x6f8] sm:$0xff]
        %v521 = vld [vmem:[%s287 + $0x700] sm:$0xff]
        %v522 = vld [vmem:[%s287 + $0x708] sm:$0xff]
        %v523 = vld [vmem:[%s287 + $0x710] sm:$0xff]
        %v524 = vld [vmem:[%s287 + $0x718] sm:$0xff]
        %v525 = vld [vmem:[%s287 + $0x720] sm:$0xff]
        %v526 = vld [vmem:[%s287 + $0x728] sm:$0xff]
        %v527 = vld [vmem:[%s287 + $0x730] sm:$0xff]
        %v528 = vld [vmem:[%s287 + $0x738] sm:$0xff]
        %v529 = vld [vmem:[%s287 + $0x740] sm:$0xff]
        %v530 = vld [vmem:[%s287 + $0x748] sm:$0xff]
        %v531 = vld [vmem:[%s287 + $0x750] sm:$0xff]
        %v532 = vld [vmem:[%s287 + $0x758] sm:$0xff]
        %v533 = vld [vmem:[%s287 + $0x760] sm:$0xff]
        %v534 = vld [vmem:[%s287 + $0x768] sm:$0xff]
        %v535 = vld [vmem:[%s287 + $0x770] sm:$0xff]
        %v536 = vld [vmem:[%s287 + $0x778] sm:$0xff]
        %v537 = vld [vmem:[%s287 + $0x780] sm:$0xff]
        %v538 = vld [vmem:[%s287 + $0x788] sm:$0xff]
        %v539 = vld [vmem:[%s287 + $0x790] sm:$0xff]
        %v540 = vld [vmem:[%s287 + $0x798] sm:$0xff]
        %v541 = vld [vmem:[%s287 + $0x7a0] sm:$0xff]
        %v542 = vld [vmem:[%s287 + $0x7a8] sm:$0xff]
        %v543 = vld [vmem:[%s287 + $0x7b0] sm:$0xff]
        %v544 = vld [vmem:[%s287 + $0x7b8] sm:$0xff]
        %v545 = vld [vmem:[%s287 + $0x7c0] sm:$0xff]
        %v546 = vld [vmem:[%s287 + $0x7c8] sm:$0xff]
        %v547 = vld [vmem:[%s287 + $0x7d0] sm:$0xff]
        %v548 = vld [vmem:[%s287 + $0x7d8] sm:$0xff]
        %v549 = vld [vmem:[%s287 + $0x7e0] sm:$0xff]
        %v550 = vld [vmem:[%s287 + $0x7e8] sm:$0xff]
        %v551 = vld [vmem:[%s287 + $0x7f0] sm:$0xff]
        %v552 = vld [vmem:[%s287 + $0x7f8] sm:$0xff]
        %v554 = vcombine.high %v296, %v296
        %v556 = vunpack.c.l.s4 1966171168
        %v557 = vunpack.c.0.s8 %v556
        %v558 = vlaneseq
        %v559 = vshrl.u32 %v558, 7
        %v560 = vsub.s32 %v557, %v559
        %v561 = vrot.slane %v296, %v560
        %v563 = vunpack.c.l.s4 1966171168
        %v564 = vunpack.c.0.s8 %v563
        %v565 = vlaneseq
        %v566 = vshrl.u32 %v565, 7
        %v567 = vsub.s32 %v564, %v566
        %v568 = vrot.slane %v554, %v567
        %v569 = vcombine.high %v561, %v561
        %v570 = vcombine.high %v568, %v568
        %v572 = vunpack.c.l.s4 1966171168
        %v573 = vunpack.c.0.s8 %v572
        %v574 = vlaneseq
        %v575 = vshrl.u32 %v574, 7
        %v576 = vsub.s32 %v573, %v575
        %v577 = vrot.slane %v561, %v576
        %v579 = vunpack.c.l.s4 1966171168
        %v580 = vunpack.c.0.s8 %v579
        %v581 = vlaneseq
        %v582 = vshrl.u32 %v581, 7
        %v583 = vsub.s32 %v580, %v582
        %v584 = vrot.slane %v568, %v583
        %v586 = vunpack.c.l.s4 1966171168
        %v587 = vunpack.c.0.s8 %v586
        %v588 = vlaneseq
        %v589 = vshrl.u32 %v588, 7
        %v590 = vsub.s32 %v587, %v589
        %v591 = vrot.slane %v569, %v590
        %v593 = vunpack.c.l.s4 1966171168
        %v594 = vunpack.c.0.s8 %v593
        %v595 = vlaneseq
        %v596 = vshrl.u32 %v595, 7
        %v597 = vsub.s32 %v594, %v596
        %v598 = vrot.slane %v570, %v597
        %v599 = vcombine.high %v577, %v577
        %v600 = vcombine.high %v584, %v584
        %v601 = vcombine.high %v591, %v591
        %v602 = vcombine.high %v598, %v598
        %v867 = vunpack.c.l.b16 %v297
        %v868 = vunpack.c.h.b16 %v297
        %v869 = vunpack.c.l.b16 %v298
        %v870 = vunpack.c.h.b16 %v298
        %v871 = vunpack.c.l.b16 %v299
        %v872 = vunpack.c.h.b16 %v299
        %v873 = vunpack.c.l.b16 %v300
        %v874 = vunpack.c.h.b16 %v300
        %v875 = vunpack.c.l.b16 %v301
        %v876 = vunpack.c.h.b16 %v301
        %v877 = vunpack.c.l.b16 %v302
        %v878 = vunpack.c.h.b16 %v302
        %v879 = vunpack.c.l.b16 %v303
        %v880 = vunpack.c.h.b16 %v303
        %v881 = vunpack.c.l.b16 %v304
        %v882 = vunpack.c.h.b16 %v304
        %v883 = vunpack.c.l.b16 %v305
        %v884 = vunpack.c.h.b16 %v305
        %v885 = vunpack.c.l.b16 %v306
        %v886 = vunpack.c.h.b16 %v306
        %v887 = vunpack.c.l.b16 %v307
        %v888 = vunpack.c.h.b16 %v307
        %v889 = vunpack.c.l.b16 %v308
        %v890 = vunpack.c.h.b16 %v308
        %v891 = vunpack.c.l.b16 %v309
        %v892 = vunpack.c.h.b16 %v309
        %v893 = vunpack.c.l.b16 %v310
        %v894 = vunpack.c.h.b16 %v310
        %v895 = vunpack.c.l.b16 %v311
        %v896 = vunpack.c.h.b16 %v311
        %v897 = vunpack.c.l.b16 %v312
        %v898 = vunpack.c.h.b16 %v312
        %v899 = vunpack.c.l.b16 %v313
        %v900 = vunpack.c.h.b16 %v313
        %v901 = vunpack.c.l.b16 %v314
        %v902 = vunpack.c.h.b16 %v314
        %v903 = vunpack.c.l.b16 %v315
        %v904 = vunpack.c.h.b16 %v315
        %v905 = vunpack.c.l.b16 %v316
        %v906 = vunpack.c.h.b16 %v316
        %v907 = vunpack.c.l.b16 %v317
        %v908 = vunpack.c.h.b16 %v317
        %v909 = vunpack.c.l.b16 %v318
        %v910 = vunpack.c.h.b16 %v318
        %v911 = vunpack.c.l.b16 %v319
        %v912 = vunpack.c.h.b16 %v319
        %v913 = vunpack.c.l.b16 %v320
        %v914 = vunpack.c.h.b16 %v320
        %v915 = vunpack.c.l.b16 %v321
        %v916 = vunpack.c.h.b16 %v321
        %v917 = vunpack.c.l.b16 %v322
        %v918 = vunpack.c.h.b16 %v322
        %v919 = vunpack.c.l.b16 %v323
        %v920 = vunpack.c.h.b16 %v323
        %v921 = vunpack.c.l.b16 %v324
        %v922 = vunpack.c.h.b16 %v324
        %v923 = vunpack.c.l.b16 %v325
        %v924 = vunpack.c.h.b16 %v325
        %v925 = vunpack.c.l.b16 %v326
        %v926 = vunpack.c.h.b16 %v326
        %v927 = vunpack.c.l.b16 %v327
        %v928 = vunpack.c.h.b16 %v327
        %v929 = vunpack.c.l.b16 %v328
        %v930 = vunpack.c.h.b16 %v328
        %v931 = vunpack.c.l.b16 %v329
        %v932 = vunpack.c.h.b16 %v329
        %v933 = vunpack.c.l.b16 %v330
        %v934 = vunpack.c.h.b16 %v330
        %v935 = vunpack.c.l.b16 %v331
        %v936 = vunpack.c.h.b16 %v331
        %v937 = vunpack.c.l.b16 %v332
        %v938 = vunpack.c.h.b16 %v332
        %v939 = vunpack.c.l.b16 %v333
        %v940 = vunpack.c.h.b16 %v333
        %v941 = vunpack.c.l.b16 %v334
        %v942 = vunpack.c.h.b16 %v334
        %v943 = vunpack.c.l.b16 %v335
        %v944 = vunpack.c.h.b16 %v335
        %v945 = vunpack.c.l.b16 %v336
        %v946 = vunpack.c.h.b16 %v336
        %v947 = vunpack.c.l.b16 %v337
        %v948 = vunpack.c.h.b16 %v337
        %v949 = vunpack.c.l.b16 %v338
        %v950 = vunpack.c.h.b16 %v338
        %v951 = vunpack.c.l.b16 %v339
        %v952 = vunpack.c.h.b16 %v339
        %v953 = vunpack.c.l.b16 %v340
        %v954 = vunpack.c.h.b16 %v340
        %v955 = vunpack.c.l.b16 %v341
        %v956 = vunpack.c.h.b16 %v341
        %v957 = vunpack.c.l.b16 %v342
        %v958 = vunpack.c.h.b16 %v342
        %v959 = vunpack.c.l.b16 %v343
        %v960 = vunpack.c.h.b16 %v343
        %v961 = vunpack.c.l.b16 %v344
        %v962 = vunpack.c.h.b16 %v344
        %v963 = vunpack.c.l.b16 %v345
        %v964 = vunpack.c.h.b16 %v345
        %v965 = vunpack.c.l.b16 %v346
        %v966 = vunpack.c.h.b16 %v346
        %v967 = vunpack.c.l.b16 %v347
        %v968 = vunpack.c.h.b16 %v347
        %v969 = vunpack.c.l.b16 %v348
        %v970 = vunpack.c.h.b16 %v348
        %v971 = vunpack.c.l.b16 %v349
        %v972 = vunpack.c.h.b16 %v349
        %v973 = vunpack.c.l.b16 %v350
        %v974 = vunpack.c.h.b16 %v350
        %v975 = vunpack.c.l.b16 %v351
        %v976 = vunpack.c.h.b16 %v351
        %v977 = vunpack.c.l.b16 %v352
        %v978 = vunpack.c.h.b16 %v352
        %v979 = vunpack.c.l.b16 %v353
        %v980 = vunpack.c.h.b16 %v353
        %v981 = vunpack.c.l.b16 %v354
        %v982 = vunpack.c.h.b16 %v354
        %v983 = vunpack.c.l.b16 %v355
        %v984 = vunpack.c.h.b16 %v355
        %v985 = vunpack.c.l.b16 %v356
        %v986 = vunpack.c.h.b16 %v356
        %v987 = vunpack.c.l.b16 %v357
        %v988 = vunpack.c.h.b16 %v357
        %v989 = vunpack.c.l.b16 %v358
        %v990 = vunpack.c.h.b16 %v358
        %v991 = vunpack.c.l.b16 %v359
        %v992 = vunpack.c.h.b16 %v359
        %v993 = vunpack.c.l.b16 %v360
        %v994 = vunpack.c.h.b16 %v360
        %v995 = vunpack.c.l.b16 %v361
        %v996 = vunpack.c.h.b16 %v361
        %v997 = vunpack.c.l.b16 %v362
        %v998 = vunpack.c.h.b16 %v362
        %v999 = vunpack.c.l.b16 %v363
        %v1000 = vunpack.c.h.b16 %v363
        %v1001 = vunpack.c.l.b16 %v364
        %v1002 = vunpack.c.h.b16 %v364
        %v1003 = vunpack.c.l.b16 %v365
        %v1004 = vunpack.c.h.b16 %v365
        %v1005 = vunpack.c.l.b16 %v366
        %v1006 = vunpack.c.h.b16 %v366
        %v1007 = vunpack.c.l.b16 %v367
        %v1008 = vunpack.c.h.b16 %v367
        %v1009 = vunpack.c.l.b16 %v368
        %v1010 = vunpack.c.h.b16 %v368
        %v1011 = vunpack.c.l.b16 %v369
        %v1012 = vunpack.c.h.b16 %v369
        %v1013 = vunpack.c.l.b16 %v370
        %v1014 = vunpack.c.h.b16 %v370
        %v1015 = vunpack.c.l.b16 %v371
        %v1016 = vunpack.c.h.b16 %v371
        %v1017 = vunpack.c.l.b16 %v372
        %v1018 = vunpack.c.h.b16 %v372
        %v1019 = vunpack.c.l.b16 %v373
        %v1020 = vunpack.c.h.b16 %v373
        %v1021 = vunpack.c.l.b16 %v374
        %v1022 = vunpack.c.h.b16 %v374
        %v1023 = vunpack.c.l.b16 %v375
        %v1024 = vunpack.c.h.b16 %v375
        %v1025 = vunpack.c.l.b16 %v376
        %v1026 = vunpack.c.h.b16 %v376
        %v1027 = vunpack.c.l.b16 %v377
        %v1028 = vunpack.c.h.b16 %v377
        %v1029 = vunpack.c.l.b16 %v378
        %v1030 = vunpack.c.h.b16 %v378
        %v1031 = vunpack.c.l.b16 %v379
        %v1032 = vunpack.c.h.b16 %v379
        %v1033 = vunpack.c.l.b16 %v380
        %v1034 = vunpack.c.h.b16 %v380
        %v1035 = vunpack.c.l.b16 %v381
        %v1036 = vunpack.c.h.b16 %v381
        %v1037 = vunpack.c.l.b16 %v382
        %v1038 = vunpack.c.h.b16 %v382
        %v1039 = vunpack.c.l.b16 %v383
        %v1040 = vunpack.c.h.b16 %v383
        %v1041 = vunpack.c.l.b16 %v384
        %v1042 = vunpack.c.h.b16 %v384
        %v1043 = vunpack.c.l.b16 %v385
        %v1044 = vunpack.c.h.b16 %v385
        %v1045 = vunpack.c.l.b16 %v386
        %v1046 = vunpack.c.h.b16 %v386
        %v1047 = vunpack.c.l.b16 %v387
        %v1048 = vunpack.c.h.b16 %v387
        %v1049 = vunpack.c.l.b16 %v388
        %v1050 = vunpack.c.h.b16 %v388
        %v1051 = vunpack.c.l.b16 %v389
        %v1052 = vunpack.c.h.b16 %v389
        %v1053 = vunpack.c.l.b16 %v390
        %v1054 = vunpack.c.h.b16 %v390
        %v1055 = vunpack.c.l.b16 %v391
        %v1056 = vunpack.c.h.b16 %v391
        %v1057 = vunpack.c.l.b16 %v392
        %v1058 = vunpack.c.h.b16 %v392
        %v1059 = vunpack.c.l.b16 %v393
        %v1060 = vunpack.c.h.b16 %v393
        %v1061 = vunpack.c.l.b16 %v394
        %v1062 = vunpack.c.h.b16 %v394
        %v1063 = vunpack.c.l.b16 %v395
        %v1064 = vunpack.c.h.b16 %v395
        %v1065 = vunpack.c.l.b16 %v396
        %v1066 = vunpack.c.h.b16 %v396
        %v1067 = vunpack.c.l.b16 %v397
        %v1068 = vunpack.c.h.b16 %v397
        %v1069 = vunpack.c.l.b16 %v398
        %v1070 = vunpack.c.h.b16 %v398
        %v1071 = vunpack.c.l.b16 %v399
        %v1072 = vunpack.c.h.b16 %v399
        %v1073 = vunpack.c.l.b16 %v400
        %v1074 = vunpack.c.h.b16 %v400
        %v1075 = vunpack.c.l.b16 %v401
        %v1076 = vunpack.c.h.b16 %v401
        %v1077 = vunpack.c.l.b16 %v402
        %v1078 = vunpack.c.h.b16 %v402
        %v1079 = vunpack.c.l.b16 %v403
        %v1080 = vunpack.c.h.b16 %v403
        %v1081 = vunpack.c.l.b16 %v404
        %v1082 = vunpack.c.h.b16 %v404
        %v1083 = vunpack.c.l.b16 %v405
        %v1084 = vunpack.c.h.b16 %v405
        %v1085 = vunpack.c.l.b16 %v406
        %v1086 = vunpack.c.h.b16 %v406
        %v1087 = vunpack.c.l.b16 %v407
        %v1088 = vunpack.c.h.b16 %v407
        %v1089 = vunpack.c.l.b16 %v408
        %v1090 = vunpack.c.h.b16 %v408
        %v1091 = vunpack.c.l.b16 %v409
        %v1092 = vunpack.c.h.b16 %v409
        %v1093 = vunpack.c.l.b16 %v410
        %v1094 = vunpack.c.h.b16 %v410
        %v1095 = vunpack.c.l.b16 %v411
        %v1096 = vunpack.c.h.b16 %v411
        %v1097 = vunpack.c.l.b16 %v412
        %v1098 = vunpack.c.h.b16 %v412
        %v1099 = vunpack.c.l.b16 %v413
        %v1100 = vunpack.c.h.b16 %v413
        %v1101 = vunpack.c.l.b16 %v414
        %v1102 = vunpack.c.h.b16 %v414
        %v1103 = vunpack.c.l.b16 %v415
        %v1104 = vunpack.c.h.b16 %v415
        %v1105 = vunpack.c.l.b16 %v416
        %v1106 = vunpack.c.h.b16 %v416
        %v1107 = vunpack.c.l.b16 %v417
        %v1108 = vunpack.c.h.b16 %v417
        %v1109 = vunpack.c.l.b16 %v418
        %v1110 = vunpack.c.h.b16 %v418
        %v1111 = vunpack.c.l.b16 %v419
        %v1112 = vunpack.c.h.b16 %v419
        %v1113 = vunpack.c.l.b16 %v420
        %v1114 = vunpack.c.h.b16 %v420
        %v1115 = vunpack.c.l.b16 %v421
        %v1116 = vunpack.c.h.b16 %v421
        %v1117 = vunpack.c.l.b16 %v422
        %v1118 = vunpack.c.h.b16 %v422
        %v1119 = vunpack.c.l.b16 %v423
        %v1120 = vunpack.c.h.b16 %v423
        %v1121 = vunpack.c.l.b16 %v424
        %v1122 = vunpack.c.h.b16 %v424
        %v1123 = vunpack.c.l.b16 %v425
        %v1124 = vunpack.c.h.b16 %v425
        %v1125 = vunpack.c.l.b16 %v426
        %v1126 = vunpack.c.h.b16 %v426
        %v1127 = vunpack.c.l.b16 %v427
        %v1128 = vunpack.c.h.b16 %v427
        %v1129 = vunpack.c.l.b16 %v428
        %v1130 = vunpack.c.h.b16 %v428
        %v1131 = vunpack.c.l.b16 %v429
        %v1132 = vunpack.c.h.b16 %v429
        %v1133 = vunpack.c.l.b16 %v430
        %v1134 = vunpack.c.h.b16 %v430
        %v1135 = vunpack.c.l.b16 %v431
        %v1136 = vunpack.c.h.b16 %v431
        %v1137 = vunpack.c.l.b16 %v432
        %v1138 = vunpack.c.h.b16 %v432
        %v1139 = vunpack.c.l.b16 %v433
        %v1140 = vunpack.c.h.b16 %v433
        %v1141 = vunpack.c.l.b16 %v434
        %v1142 = vunpack.c.h.b16 %v434
        %v1143 = vunpack.c.l.b16 %v435
        %v1144 = vunpack.c.h.b16 %v435
        %v1145 = vunpack.c.l.b16 %v436
        %v1146 = vunpack.c.h.b16 %v436
        %v1147 = vunpack.c.l.b16 %v437
        %v1148 = vunpack.c.h.b16 %v437
        %v1149 = vunpack.c.l.b16 %v438
        %v1150 = vunpack.c.h.b16 %v438
        %v1151 = vunpack.c.l.b16 %v439
        %v1152 = vunpack.c.h.b16 %v439
        %v1153 = vunpack.c.l.b16 %v440
        %v1154 = vunpack.c.h.b16 %v440
        %v1155 = vunpack.c.l.b16 %v441
        %v1156 = vunpack.c.h.b16 %v441
        %v1157 = vunpack.c.l.b16 %v442
        %v1158 = vunpack.c.h.b16 %v442
        %v1159 = vunpack.c.l.b16 %v443
        %v1160 = vunpack.c.h.b16 %v443
        %v1161 = vunpack.c.l.b16 %v444
        %v1162 = vunpack.c.h.b16 %v444
        %v1163 = vunpack.c.l.b16 %v445
        %v1164 = vunpack.c.h.b16 %v445
        %v1165 = vunpack.c.l.b16 %v446
        %v1166 = vunpack.c.h.b16 %v446
        %v1167 = vunpack.c.l.b16 %v447
        %v1168 = vunpack.c.h.b16 %v447
        %v1169 = vunpack.c.l.b16 %v448
        %v1170 = vunpack.c.h.b16 %v448
        %v1171 = vunpack.c.l.b16 %v449
        %v1172 = vunpack.c.h.b16 %v449
        %v1173 = vunpack.c.l.b16 %v450
        %v1174 = vunpack.c.h.b16 %v450
        %v1175 = vunpack.c.l.b16 %v451
        %v1176 = vunpack.c.h.b16 %v451
        %v1177 = vunpack.c.l.b16 %v452
        %v1178 = vunpack.c.h.b16 %v452
        %v1179 = vunpack.c.l.b16 %v453
        %v1180 = vunpack.c.h.b16 %v453
        %v1181 = vunpack.c.l.b16 %v454
        %v1182 = vunpack.c.h.b16 %v454
        %v1183 = vunpack.c.l.b16 %v455
        %v1184 = vunpack.c.h.b16 %v455
        %v1185 = vunpack.c.l.b16 %v456
        %v1186 = vunpack.c.h.b16 %v456
        %v1187 = vunpack.c.l.b16 %v457
        %v1188 = vunpack.c.h.b16 %v457
        %v1189 = vunpack.c.l.b16 %v458
        %v1190 = vunpack.c.h.b16 %v458
        %v1191 = vunpack.c.l.b16 %v459
        %v1192 = vunpack.c.h.b16 %v459
        %v1193 = vunpack.c.l.b16 %v460
        %v1194 = vunpack.c.h.b16 %v460
        %v1195 = vunpack.c.l.b16 %v461
        %v1196 = vunpack.c.h.b16 %v461
        %v1197 = vunpack.c.l.b16 %v462
        %v1198 = vunpack.c.h.b16 %v462
        %v1199 = vunpack.c.l.b16 %v463
        %v1200 = vunpack.c.h.b16 %v463
        %v1201 = vunpack.c.l.b16 %v464
        %v1202 = vunpack.c.h.b16 %v464
        %v1203 = vunpack.c.l.b16 %v465
        %v1204 = vunpack.c.h.b16 %v465
        %v1205 = vunpack.c.l.b16 %v466
        %v1206 = vunpack.c.h.b16 %v466
        %v1207 = vunpack.c.l.b16 %v467
        %v1208 = vunpack.c.h.b16 %v467
        %v1209 = vunpack.c.l.b16 %v468
        %v1210 = vunpack.c.h.b16 %v468
        %v1211 = vunpack.c.l.b16 %v469
        %v1212 = vunpack.c.h.b16 %v469
        %v1213 = vunpack.c.l.b16 %v470
        %v1214 = vunpack.c.h.b16 %v470
        %v1215 = vunpack.c.l.b16 %v471
        %v1216 = vunpack.c.h.b16 %v471
        %v1217 = vunpack.c.l.b16 %v472
        %v1218 = vunpack.c.h.b16 %v472
        %v1219 = vunpack.c.l.b16 %v473
        %v1220 = vunpack.c.h.b16 %v473
        %v1221 = vunpack.c.l.b16 %v474
        %v1222 = vunpack.c.h.b16 %v474
        %v1223 = vunpack.c.l.b16 %v475
        %v1224 = vunpack.c.h.b16 %v475
        %v1225 = vunpack.c.l.b16 %v476
        %v1226 = vunpack.c.h.b16 %v476
        %v1227 = vunpack.c.l.b16 %v477
        %v1228 = vunpack.c.h.b16 %v477
        %v1229 = vunpack.c.l.b16 %v478
        %v1230 = vunpack.c.h.b16 %v478
        %v1231 = vunpack.c.l.b16 %v479
        %v1232 = vunpack.c.h.b16 %v479
        %v1233 = vunpack.c.l.b16 %v480
        %v1234 = vunpack.c.h.b16 %v480
        %v1235 = vunpack.c.l.b16 %v481
        %v1236 = vunpack.c.h.b16 %v481
        %v1237 = vunpack.c.l.b16 %v482
        %v1238 = vunpack.c.h.b16 %v482
        %v1239 = vunpack.c.l.b16 %v483
        %v1240 = vunpack.c.h.b16 %v483
        %v1241 = vunpack.c.l.b16 %v484
        %v1242 = vunpack.c.h.b16 %v484
        %v1243 = vunpack.c.l.b16 %v485
        %v1244 = vunpack.c.h.b16 %v485
        %v1245 = vunpack.c.l.b16 %v486
        %v1246 = vunpack.c.h.b16 %v486
        %v1247 = vunpack.c.l.b16 %v487
        %v1248 = vunpack.c.h.b16 %v487
        %v1249 = vunpack.c.l.b16 %v488
        %v1250 = vunpack.c.h.b16 %v488
        %v1251 = vunpack.c.l.b16 %v489
        %v1252 = vunpack.c.h.b16 %v489
        %v1253 = vunpack.c.l.b16 %v490
        %v1254 = vunpack.c.h.b16 %v490
        %v1255 = vunpack.c.l.b16 %v491
        %v1256 = vunpack.c.h.b16 %v491
        %v1257 = vunpack.c.l.b16 %v492
        %v1258 = vunpack.c.h.b16 %v492
        %v1259 = vunpack.c.l.b16 %v493
        %v1260 = vunpack.c.h.b16 %v493
        %v1261 = vunpack.c.l.b16 %v494
        %v1262 = vunpack.c.h.b16 %v494
        %v1263 = vunpack.c.l.b16 %v495
        %v1264 = vunpack.c.h.b16 %v495
        %v1265 = vunpack.c.l.b16 %v496
        %v1266 = vunpack.c.h.b16 %v496
        %v1267 = vunpack.c.l.b16 %v497
        %v1268 = vunpack.c.h.b16 %v497
        %v1269 = vunpack.c.l.b16 %v498
        %v1270 = vunpack.c.h.b16 %v498
        %v1271 = vunpack.c.l.b16 %v499
        %v1272 = vunpack.c.h.b16 %v499
        %v1273 = vunpack.c.l.b16 %v500
        %v1274 = vunpack.c.h.b16 %v500
        %v1275 = vunpack.c.l.b16 %v501
        %v1276 = vunpack.c.h.b16 %v501
        %v1277 = vunpack.c.l.b16 %v502
        %v1278 = vunpack.c.h.b16 %v502
        %v1279 = vunpack.c.l.b16 %v503
        %v1280 = vunpack.c.h.b16 %v503
        %v1281 = vunpack.c.l.b16 %v504
        %v1282 = vunpack.c.h.b16 %v504
        %v1283 = vunpack.c.l.b16 %v505
        %v1284 = vunpack.c.h.b16 %v505
        %v1285 = vunpack.c.l.b16 %v506
        %v1286 = vunpack.c.h.b16 %v506
        %v1287 = vunpack.c.l.b16 %v507
        %v1288 = vunpack.c.h.b16 %v507
        %v1289 = vunpack.c.l.b16 %v508
        %v1290 = vunpack.c.h.b16 %v508
        %v1291 = vunpack.c.l.b16 %v509
        %v1292 = vunpack.c.h.b16 %v509
        %v1293 = vunpack.c.l.b16 %v510
        %v1294 = vunpack.c.h.b16 %v510
        %v1295 = vunpack.c.l.b16 %v511
        %v1296 = vunpack.c.h.b16 %v511
        %v1297 = vunpack.c.l.b16 %v512
        %v1298 = vunpack.c.h.b16 %v512
        %v1299 = vunpack.c.l.b16 %v513
        %v1300 = vunpack.c.h.b16 %v513
        %v1301 = vunpack.c.l.b16 %v514
        %v1302 = vunpack.c.h.b16 %v514
        %v1303 = vunpack.c.l.b16 %v515
        %v1304 = vunpack.c.h.b16 %v515
        %v1305 = vunpack.c.l.b16 %v516
        %v1306 = vunpack.c.h.b16 %v516
        %v1307 = vunpack.c.l.b16 %v517
        %v1308 = vunpack.c.h.b16 %v517
        %v1309 = vunpack.c.l.b16 %v518
        %v1310 = vunpack.c.h.b16 %v518
        %v1311 = vunpack.c.l.b16 %v519
        %v1312 = vunpack.c.h.b16 %v519
        %v1313 = vunpack.c.l.b16 %v520
        %v1314 = vunpack.c.h.b16 %v520
        %v1315 = vunpack.c.l.b16 %v521
        %v1316 = vunpack.c.h.b16 %v521
        %v1317 = vunpack.c.l.b16 %v522
        %v1318 = vunpack.c.h.b16 %v522
        %v1319 = vunpack.c.l.b16 %v523
        %v1320 = vunpack.c.h.b16 %v523
        %v1321 = vunpack.c.l.b16 %v524
        %v1322 = vunpack.c.h.b16 %v524
        %v1323 = vunpack.c.l.b16 %v525
        %v1324 = vunpack.c.h.b16 %v525
        %v1325 = vunpack.c.l.b16 %v526
        %v1326 = vunpack.c.h.b16 %v526
        %v1327 = vunpack.c.l.b16 %v527
        %v1328 = vunpack.c.h.b16 %v527
        %v1329 = vunpack.c.l.b16 %v528
        %v1330 = vunpack.c.h.b16 %v528
        %v1331 = vunpack.c.l.b16 %v529
        %v1332 = vunpack.c.h.b16 %v529
        %v1333 = vunpack.c.l.b16 %v530
        %v1334 = vunpack.c.h.b16 %v530
        %v1335 = vunpack.c.l.b16 %v531
        %v1336 = vunpack.c.h.b16 %v531
        %v1337 = vunpack.c.l.b16 %v532
        %v1338 = vunpack.c.h.b16 %v532
        %v1339 = vunpack.c.l.b16 %v533
        %v1340 = vunpack.c.h.b16 %v533
        %v1341 = vunpack.c.l.b16 %v534
        %v1342 = vunpack.c.h.b16 %v534
        %v1343 = vunpack.c.l.b16 %v535
        %v1344 = vunpack.c.h.b16 %v535
        %v1345 = vunpack.c.l.b16 %v536
        %v1346 = vunpack.c.h.b16 %v536
        %v1347 = vunpack.c.l.b16 %v537
        %v1348 = vunpack.c.h.b16 %v537
        %v1349 = vunpack.c.l.b16 %v538
        %v1350 = vunpack.c.h.b16 %v538
        %v1351 = vunpack.c.l.b16 %v539
        %v1352 = vunpack.c.h.b16 %v539
        %v1353 = vunpack.c.l.b16 %v540
        %v1354 = vunpack.c.h.b16 %v540
        %v1355 = vunpack.c.l.b16 %v541
        %v1356 = vunpack.c.h.b16 %v541
        %v1357 = vunpack.c.l.b16 %v542
        %v1358 = vunpack.c.h.b16 %v542
        %v1359 = vunpack.c.l.b16 %v543
        %v1360 = vunpack.c.h.b16 %v543
        %v1361 = vunpack.c.l.b16 %v544
        %v1362 = vunpack.c.h.b16 %v544
        %v1363 = vunpack.c.l.b16 %v545
        %v1364 = vunpack.c.h.b16 %v545
        %v1365 = vunpack.c.l.b16 %v546
        %v1366 = vunpack.c.h.b16 %v546
        %v1367 = vunpack.c.l.b16 %v547
        %v1368 = vunpack.c.h.b16 %v547
        %v1369 = vunpack.c.l.b16 %v548
        %v1370 = vunpack.c.h.b16 %v548
        %v1371 = vunpack.c.l.b16 %v549
        %v1372 = vunpack.c.h.b16 %v549
        %v1373 = vunpack.c.l.b16 %v550
        %v1374 = vunpack.c.h.b16 %v550
        %v1375 = vunpack.c.l.b16 %v551
        %v1376 = vunpack.c.h.b16 %v551
        %v1377 = vunpack.c.l.b16 %v552
        %v1378 = vunpack.c.h.b16 %v552
        %v1379 = vpack.c.b16 %v871, %v867
        %v1380 = vpack.c.b16 %v872, %v868
        %v1381 = vpack.c.b16 %v873, %v869
        %v1382 = vpack.c.b16 %v874, %v870
        %v1383 = vpack.c.b16 %v879, %v875
        %v1384 = vpack.c.b16 %v880, %v876
        %v1385 = vpack.c.b16 %v881, %v877
        %v1386 = vpack.c.b16 %v882, %v878
        %v1387 = vpack.c.b16 %v887, %v883
        %v1388 = vpack.c.b16 %v888, %v884
        %v1389 = vpack.c.b16 %v889, %v885
        %v1390 = vpack.c.b16 %v890, %v886
        %v1391 = vpack.c.b16 %v895, %v891
        %v1392 = vpack.c.b16 %v896, %v892
        %v1393 = vpack.c.b16 %v897, %v893
        %v1394 = vpack.c.b16 %v898, %v894
        %v1395 = vpack.c.b16 %v903, %v899
        %v1396 = vpack.c.b16 %v904, %v900
        %v1397 = vpack.c.b16 %v905, %v901
        %v1398 = vpack.c.b16 %v906, %v902
        %v1399 = vpack.c.b16 %v911, %v907
        %v1400 = vpack.c.b16 %v912, %v908
        %v1401 = vpack.c.b16 %v913, %v909
        %v1402 = vpack.c.b16 %v914, %v910
        %v1403 = vpack.c.b16 %v919, %v915
        %v1404 = vpack.c.b16 %v920, %v916
        %v1405 = vpack.c.b16 %v921, %v917
        %v1406 = vpack.c.b16 %v922, %v918
        %v1407 = vpack.c.b16 %v927, %v923
        %v1408 = vpack.c.b16 %v928, %v924
        %v1409 = vpack.c.b16 %v929, %v925
        %v1410 = vpack.c.b16 %v930, %v926
        %v1411 = vpack.c.b16 %v935, %v931
        %v1412 = vpack.c.b16 %v936, %v932
        %v1413 = vpack.c.b16 %v937, %v933
        %v1414 = vpack.c.b16 %v938, %v934
        %v1415 = vpack.c.b16 %v943, %v939
        %v1416 = vpack.c.b16 %v944, %v940
        %v1417 = vpack.c.b16 %v945, %v941
        %v1418 = vpack.c.b16 %v946, %v942
        %v1419 = vpack.c.b16 %v951, %v947
        %v1420 = vpack.c.b16 %v952, %v948
        %v1421 = vpack.c.b16 %v953, %v949
        %v1422 = vpack.c.b16 %v954, %v950
        %v1423 = vpack.c.b16 %v959, %v955
        %v1424 = vpack.c.b16 %v960, %v956
        %v1425 = vpack.c.b16 %v961, %v957
        %v1426 = vpack.c.b16 %v962, %v958
        %v1427 = vpack.c.b16 %v967, %v963
        %v1428 = vpack.c.b16 %v968, %v964
        %v1429 = vpack.c.b16 %v969, %v965
        %v1430 = vpack.c.b16 %v970, %v966
        %v1431 = vpack.c.b16 %v975, %v971
        %v1432 = vpack.c.b16 %v976, %v972
        %v1433 = vpack.c.b16 %v977, %v973
        %v1434 = vpack.c.b16 %v978, %v974
        %v1435 = vpack.c.b16 %v983, %v979
        %v1436 = vpack.c.b16 %v984, %v980
        %v1437 = vpack.c.b16 %v985, %v981
        %v1438 = vpack.c.b16 %v986, %v982
        %v1439 = vpack.c.b16 %v991, %v987
        %v1440 = vpack.c.b16 %v992, %v988
        %v1441 = vpack.c.b16 %v993, %v989
        %v1442 = vpack.c.b16 %v994, %v990
        %v1443 = vpack.c.b16 %v999, %v995
        %v1444 = vpack.c.b16 %v1000, %v996
        %v1445 = vpack.c.b16 %v1001, %v997
        %v1446 = vpack.c.b16 %v1002, %v998
        %v1447 = vpack.c.b16 %v1007, %v1003
        %v1448 = vpack.c.b16 %v1008, %v1004
        %v1449 = vpack.c.b16 %v1009, %v1005
        %v1450 = vpack.c.b16 %v1010, %v1006
        %v1451 = vpack.c.b16 %v1015, %v1011
        %v1452 = vpack.c.b16 %v1016, %v1012
        %v1453 = vpack.c.b16 %v1017, %v1013
        %v1454 = vpack.c.b16 %v1018, %v1014
        %v1455 = vpack.c.b16 %v1023, %v1019
        %v1456 = vpack.c.b16 %v1024, %v1020
        %v1457 = vpack.c.b16 %v1025, %v1021
        %v1458 = vpack.c.b16 %v1026, %v1022
        %v1459 = vpack.c.b16 %v1031, %v1027
        %v1460 = vpack.c.b16 %v1032, %v1028
        %v1461 = vpack.c.b16 %v1033, %v1029
        %v1462 = vpack.c.b16 %v1034, %v1030
        %v1463 = vpack.c.b16 %v1039, %v1035
        %v1464 = vpack.c.b16 %v1040, %v1036
        %v1465 = vpack.c.b16 %v1041, %v1037
        %v1466 = vpack.c.b16 %v1042, %v1038
        %v1467 = vpack.c.b16 %v1047, %v1043
        %v1468 = vpack.c.b16 %v1048, %v1044
        %v1469 = vpack.c.b16 %v1049, %v1045
        %v1470 = vpack.c.b16 %v1050, %v1046
        %v1471 = vpack.c.b16 %v1055, %v1051
        %v1472 = vpack.c.b16 %v1056, %v1052
        %v1473 = vpack.c.b16 %v1057, %v1053
        %v1474 = vpack.c.b16 %v1058, %v1054
        %v1475 = vpack.c.b16 %v1063, %v1059
        %v1476 = vpack.c.b16 %v1064, %v1060
        %v1477 = vpack.c.b16 %v1065, %v1061
        %v1478 = vpack.c.b16 %v1066, %v1062
        %v1479 = vpack.c.b16 %v1071, %v1067
        %v1480 = vpack.c.b16 %v1072, %v1068
        %v1481 = vpack.c.b16 %v1073, %v1069
        %v1482 = vpack.c.b16 %v1074, %v1070
        %v1483 = vpack.c.b16 %v1079, %v1075
        %v1484 = vpack.c.b16 %v1080, %v1076
        %v1485 = vpack.c.b16 %v1081, %v1077
        %v1486 = vpack.c.b16 %v1082, %v1078
        %v1487 = vpack.c.b16 %v1087, %v1083
        %v1488 = vpack.c.b16 %v1088, %v1084
        %v1489 = vpack.c.b16 %v1089, %v1085
        %v1490 = vpack.c.b16 %v1090, %v1086
        %v1491 = vpack.c.b16 %v1095, %v1091
        %v1492 = vpack.c.b16 %v1096, %v1092
        %v1493 = vpack.c.b16 %v1097, %v1093
        %v1494 = vpack.c.b16 %v1098, %v1094
        %v1495 = vpack.c.b16 %v1103, %v1099
        %v1496 = vpack.c.b16 %v1104, %v1100
        %v1497 = vpack.c.b16 %v1105, %v1101
        %v1498 = vpack.c.b16 %v1106, %v1102
        %v1499 = vpack.c.b16 %v1111, %v1107
        %v1500 = vpack.c.b16 %v1112, %v1108
        %v1501 = vpack.c.b16 %v1113, %v1109
        %v1502 = vpack.c.b16 %v1114, %v1110
        %v1503 = vpack.c.b16 %v1119, %v1115
        %v1504 = vpack.c.b16 %v1120, %v1116
        %v1505 = vpack.c.b16 %v1121, %v1117
        %v1506 = vpack.c.b16 %v1122, %v1118
        %v1507 = vpack.c.b16 %v1127, %v1123
        %v1508 = vpack.c.b16 %v1128, %v1124
        %v1509 = vpack.c.b16 %v1129, %v1125
        %v1510 = vpack.c.b16 %v1130, %v1126
        %v1511 = vpack.c.b16 %v1135, %v1131
        %v1512 = vpack.c.b16 %v1136, %v1132
        %v1513 = vpack.c.b16 %v1137, %v1133
        %v1514 = vpack.c.b16 %v1138, %v1134
        %v1515 = vpack.c.b16 %v1143, %v1139
        %v1516 = vpack.c.b16 %v1144, %v1140
        %v1517 = vpack.c.b16 %v1145, %v1141
        %v1518 = vpack.c.b16 %v1146, %v1142
        %v1519 = vpack.c.b16 %v1151, %v1147
        %v1520 = vpack.c.b16 %v1152, %v1148
        %v1521 = vpack.c.b16 %v1153, %v1149
        %v1522 = vpack.c.b16 %v1154, %v1150
        %v1523 = vpack.c.b16 %v1159, %v1155
        %v1524 = vpack.c.b16 %v1160, %v1156
        %v1525 = vpack.c.b16 %v1161, %v1157
        %v1526 = vpack.c.b16 %v1162, %v1158
        %v1527 = vpack.c.b16 %v1167, %v1163
        %v1528 = vpack.c.b16 %v1168, %v1164
        %v1529 = vpack.c.b16 %v1169, %v1165
        %v1530 = vpack.c.b16 %v1170, %v1166
        %v1531 = vpack.c.b16 %v1175, %v1171
        %v1532 = vpack.c.b16 %v1176, %v1172
        %v1533 = vpack.c.b16 %v1177, %v1173
        %v1534 = vpack.c.b16 %v1178, %v1174
        %v1535 = vpack.c.b16 %v1183, %v1179
        %v1536 = vpack.c.b16 %v1184, %v1180
        %v1537 = vpack.c.b16 %v1185, %v1181
        %v1538 = vpack.c.b16 %v1186, %v1182
        %v1539 = vpack.c.b16 %v1191, %v1187
        %v1540 = vpack.c.b16 %v1192, %v1188
        %v1541 = vpack.c.b16 %v1193, %v1189
        %v1542 = vpack.c.b16 %v1194, %v1190
        %v1543 = vpack.c.b16 %v1199, %v1195
        %v1544 = vpack.c.b16 %v1200, %v1196
        %v1545 = vpack.c.b16 %v1201, %v1197
        %v1546 = vpack.c.b16 %v1202, %v1198
        %v1547 = vpack.c.b16 %v1207, %v1203
        %v1548 = vpack.c.b16 %v1208, %v1204
        %v1549 = vpack.c.b16 %v1209, %v1205
        %v1550 = vpack.c.b16 %v1210, %v1206
        %v1551 = vpack.c.b16 %v1215, %v1211
        %v1552 = vpack.c.b16 %v1216, %v1212
        %v1553 = vpack.c.b16 %v1217, %v1213
        %v1554 = vpack.c.b16 %v1218, %v1214
        %v1555 = vpack.c.b16 %v1223, %v1219
        %v1556 = vpack.c.b16 %v1224, %v1220
        %v1557 = vpack.c.b16 %v1225, %v1221
        %v1558 = vpack.c.b16 %v1226, %v1222
        %v1559 = vpack.c.b16 %v1231, %v1227
        %v1560 = vpack.c.b16 %v1232, %v1228
        %v1561 = vpack.c.b16 %v1233, %v1229
        %v1562 = vpack.c.b16 %v1234, %v1230
        %v1563 = vpack.c.b16 %v1239, %v1235
        %v1564 = vpack.c.b16 %v1240, %v1236
        %v1565 = vpack.c.b16 %v1241, %v1237
        %v1566 = vpack.c.b16 %v1242, %v1238
        %v1567 = vpack.c.b16 %v1247, %v1243
        %v1568 = vpack.c.b16 %v1248, %v1244
        %v1569 = vpack.c.b16 %v1249, %v1245
        %v1570 = vpack.c.b16 %v1250, %v1246
        %v1571 = vpack.c.b16 %v1255, %v1251
        %v1572 = vpack.c.b16 %v1256, %v1252
        %v1573 = vpack.c.b16 %v1257, %v1253
        %v1574 = vpack.c.b16 %v1258, %v1254
        %v1575 = vpack.c.b16 %v1263, %v1259
        %v1576 = vpack.c.b16 %v1264, %v1260
        %v1577 = vpack.c.b16 %v1265, %v1261
        %v1578 = vpack.c.b16 %v1266, %v1262
        %v1579 = vpack.c.b16 %v1271, %v1267
        %v1580 = vpack.c.b16 %v1272, %v1268
        %v1581 = vpack.c.b16 %v1273, %v1269
        %v1582 = vpack.c.b16 %v1274, %v1270
        %v1583 = vpack.c.b16 %v1279, %v1275
        %v1584 = vpack.c.b16 %v1280, %v1276
        %v1585 = vpack.c.b16 %v1281, %v1277
        %v1586 = vpack.c.b16 %v1282, %v1278
        %v1587 = vpack.c.b16 %v1287, %v1283
        %v1588 = vpack.c.b16 %v1288, %v1284
        %v1589 = vpack.c.b16 %v1289, %v1285
        %v1590 = vpack.c.b16 %v1290, %v1286
        %v1591 = vpack.c.b16 %v1295, %v1291
        %v1592 = vpack.c.b16 %v1296, %v1292
        %v1593 = vpack.c.b16 %v1297, %v1293
        %v1594 = vpack.c.b16 %v1298, %v1294
        %v1595 = vpack.c.b16 %v1303, %v1299
        %v1596 = vpack.c.b16 %v1304, %v1300
        %v1597 = vpack.c.b16 %v1305, %v1301
        %v1598 = vpack.c.b16 %v1306, %v1302
        %v1599 = vpack.c.b16 %v1311, %v1307
        %v1600 = vpack.c.b16 %v1312, %v1308
        %v1601 = vpack.c.b16 %v1313, %v1309
        %v1602 = vpack.c.b16 %v1314, %v1310
        %v1603 = vpack.c.b16 %v1319, %v1315
        %v1604 = vpack.c.b16 %v1320, %v1316
        %v1605 = vpack.c.b16 %v1321, %v1317
        %v1606 = vpack.c.b16 %v1322, %v1318
        %v1607 = vpack.c.b16 %v1327, %v1323
        %v1608 = vpack.c.b16 %v1328, %v1324
        %v1609 = vpack.c.b16 %v1329, %v1325
        %v1610 = vpack.c.b16 %v1330, %v1326
        %v1611 = vpack.c.b16 %v1335, %v1331
        %v1612 = vpack.c.b16 %v1336, %v1332
        %v1613 = vpack.c.b16 %v1337, %v1333
        %v1614 = vpack.c.b16 %v1338, %v1334
        %v1615 = vpack.c.b16 %v1343, %v1339
        %v1616 = vpack.c.b16 %v1344, %v1340
        %v1617 = vpack.c.b16 %v1345, %v1341
        %v1618 = vpack.c.b16 %v1346, %v1342
        %v1619 = vpack.c.b16 %v1351, %v1347
        %v1620 = vpack.c.b16 %v1352, %v1348
        %v1621 = vpack.c.b16 %v1353, %v1349
        %v1622 = vpack.c.b16 %v1354, %v1350
        %v1623 = vpack.c.b16 %v1359, %v1355
        %v1624 = vpack.c.b16 %v1360, %v1356
        %v1625 = vpack.c.b16 %v1361, %v1357
        %v1626 = vpack.c.b16 %v1362, %v1358
        %v1627 = vpack.c.b16 %v1367, %v1363
        %v1628 = vpack.c.b16 %v1368, %v1364
        %v1629 = vpack.c.b16 %v1369, %v1365
        %v1630 = vpack.c.b16 %v1370, %v1366
        %v1631 = vpack.c.b16 %v1375, %v1371
        %v1632 = vpack.c.b16 %v1376, %v1372
        %v1633 = vpack.c.b16 %v1377, %v1373
        %v1634 = vpack.c.b16 %v1378, %v1374
        %1891 = vmatprep.subr.bf16.mxu0 %v1408
        %1892 = vmatpush1.bf16.msra.mxu0 %v1407
        %1893 = vmatprep.subr.bf16.mxu0 %v1404
        %1894 = vmatpush1.bf16.msra.mxu0 %v1403
        %1895 = vmatprep.subr.bf16.mxu0 %v1400
        %1896 = vmatpush1.bf16.msra.mxu0 %v1399
        %1897 = vmatprep.subr.bf16.mxu0 %v1396
        %1898 = vmatpush1.bf16.msra.mxu0 %v1395
        %1899 = vmatprep.subr.bf16.mxu0 %v1392
        %1900 = vmatpush1.bf16.msra.mxu0 %v1391
        %1901 = vmatprep.subr.bf16.mxu0 %v1388
        %1902 = vmatpush1.bf16.msra.mxu0 %v1387
        %1903 = vmatprep.subr.bf16.mxu0 %v1384
        %1904 = vmatpush1.bf16.msra.mxu0 %v1383
        %1905 = vmatprep.subr.bf16.mxu0 %v1380
        %1906 = vmatpush1.bf16.msra.mxu0 %v1379
        %1907 = vmatprep.subr.bf16.mxu0 %v1440
        %1908 = vmatpush2.bf16.msra.mxu0 %v1439
        %1909 = vmatprep.subr.bf16.mxu0 %v1436
        %1910 = vmatpush2.bf16.msra.mxu0 %v1435
        %1911 = vmatprep.subr.bf16.mxu0 %v1432
        %1912 = vmatpush2.bf16.msra.mxu0 %v1431
        %1913 = vmatprep.subr.bf16.mxu0 %v1428
        %1914 = vmatpush2.bf16.msra.mxu0 %v1427
        %1915 = vmatprep.subr.bf16.mxu0 %v1424
        %1916 = vmatpush2.bf16.msra.mxu0 %v1423
        %1917 = vmatprep.subr.bf16.mxu0 %v1420
        %1918 = vmatpush2.bf16.msra.mxu0 %v1419
        %1919 = vmatprep.subr.bf16.mxu0 %v1416
        %1920 = vmatpush2.bf16.msra.mxu0 %v1415
        %1921 = vmatprep.subr.bf16.mxu0 %v1412
        %1922 = vmatpush2.bf16.msra.mxu0 %v1411
        %1923 = vmatprep.mubr.bf16.mxu0 %v591
        %1924 = vmatmul.mubr.bf16.gmra.mxu0 %v577
        %v1925 = vpop.f32.mrf.mxu0
        %v1926 = vadd.f32 0.0, %v1925
        %v1927 = vpop.f32.mrf.mxu0
        %v1928 = vadd.f32 0.0, %v1927
        %v1929 = vpop.f32.mrf.mxu0
        %v1930 = vpop.f32.mrf.mxu0
        %1931 = vdwg.mxu0
        %1932 = vmatprep.subr.bf16.mxu0 %v1472
        %1933 = vmatpush1.bf16.msra.mxu0 %v1471
        %1934 = vmatprep.subr.bf16.mxu0 %v1468
        %1935 = vmatpush1.bf16.msra.mxu0 %v1467
        %1936 = vmatprep.subr.bf16.mxu0 %v1464
        %1937 = vmatpush1.bf16.msra.mxu0 %v1463
        %1938 = vmatprep.subr.bf16.mxu0 %v1460
        %1939 = vmatpush1.bf16.msra.mxu0 %v1459
        %1940 = vmatprep.subr.bf16.mxu0 %v1456
        %1941 = vmatpush1.bf16.msra.mxu0 %v1455
        %1942 = vmatprep.subr.bf16.mxu0 %v1452
        %1943 = vmatpush1.bf16.msra.mxu0 %v1451
        %1944 = vmatprep.subr.bf16.mxu0 %v1448
        %1945 = vmatpush1.bf16.msra.mxu0 %v1447
        %1946 = vmatprep.subr.bf16.mxu0 %v1444
        %1947 = vmatpush1.bf16.msra.mxu0 %v1443
        %1948 = vmatprep.subr.bf16.mxu0 %v1504
        %1949 = vmatpush2.bf16.msra.mxu0 %v1503
        %1950 = vmatprep.subr.bf16.mxu0 %v1500
        %1951 = vmatpush2.bf16.msra.mxu0 %v1499
        %1952 = vmatprep.subr.bf16.mxu0 %v1496
        %1953 = vmatpush2.bf16.msra.mxu0 %v1495
        %1954 = vmatprep.subr.bf16.mxu0 %v1492
        %1955 = vmatpush2.bf16.msra.mxu0 %v1491
        %1956 = vmatprep.subr.bf16.mxu0 %v1488
        %1957 = vmatpush2.bf16.msra.mxu0 %v1487
        %1958 = vmatprep.subr.bf16.mxu0 %v1484
        %1959 = vmatpush2.bf16.msra.mxu0 %v1483
        %1960 = vmatprep.subr.bf16.mxu0 %v1480
        %1961 = vmatpush2.bf16.msra.mxu0 %v1479
        %1962 = vmatprep.subr.bf16.mxu0 %v1476
        %1963 = vmatpush2.bf16.msra.mxu0 %v1475
        %1964 = vmatprep.mubr.bf16.mxu0 %v601
        %1965 = vmatmul.mubr.bf16.gmra.mxu0 %v599
        %v1966 = vpop.f32.mrf.mxu0
        %v1967 = vadd.f32 %v1926, %v1966
        %v1968 = vpop.f32.mrf.mxu0
        %v1969 = vadd.f32 %v1928, %v1968
        %v1970 = vpop.f32.mrf.mxu0
        %v1971 = vpop.f32.mrf.mxu0
        %1972 = vdwg.mxu0
        %1973 = vmatprep.subr.bf16.mxu0 %v1536
        %1974 = vmatpush1.bf16.msra.mxu0 %v1535
        %1975 = vmatprep.subr.bf16.mxu0 %v1532
        %1976 = vmatpush1.bf16.msra.mxu0 %v1531
        %1977 = vmatprep.subr.bf16.mxu0 %v1528
        %1978 = vmatpush1.bf16.msra.mxu0 %v1527
        %1979 = vmatprep.subr.bf16.mxu0 %v1524
        %1980 = vmatpush1.bf16.msra.mxu0 %v1523
        %1981 = vmatprep.subr.bf16.mxu0 %v1520
        %1982 = vmatpush1.bf16.msra.mxu0 %v1519
        %1983 = vmatprep.subr.bf16.mxu0 %v1516
        %1984 = vmatpush1.bf16.msra.mxu0 %v1515
        %1985 = vmatprep.subr.bf16.mxu0 %v1512
        %1986 = vmatpush1.bf16.msra.mxu0 %v1511
        %1987 = vmatprep.subr.bf16.mxu0 %v1508
        %1988 = vmatpush1.bf16.msra.mxu0 %v1507
        %1989 = vmatprep.subr.bf16.mxu0 %v1568
        %1990 = vmatpush2.bf16.msra.mxu0 %v1567
        %1991 = vmatprep.subr.bf16.mxu0 %v1564
        %1992 = vmatpush2.bf16.msra.mxu0 %v1563
        %1993 = vmatprep.subr.bf16.mxu0 %v1560
        %1994 = vmatpush2.bf16.msra.mxu0 %v1559
        %1995 = vmatprep.subr.bf16.mxu0 %v1556
        %1996 = vmatpush2.bf16.msra.mxu0 %v1555
        %1997 = vmatprep.subr.bf16.mxu0 %v1552
        %1998 = vmatpush2.bf16.msra.mxu0 %v1551
        %1999 = vmatprep.subr.bf16.mxu0 %v1548
        %2000 = vmatpush2.bf16.msra.mxu0 %v1547
        %2001 = vmatprep.subr.bf16.mxu0 %v1544
        %2002 = vmatpush2.bf16.msra.mxu0 %v1543
        %2003 = vmatprep.subr.bf16.mxu0 %v1540
        %2004 = vmatpush2.bf16.msra.mxu0 %v1539
        %2005 = vmatprep.mubr.bf16.mxu0 %v598
        %2006 = vmatmul.mubr.bf16.gmra.mxu0 %v584
        %v2007 = vpop.f32.mrf.mxu0
        %v2008 = vadd.f32 %v1967, %v2007
        %v2009 = vpop.f32.mrf.mxu0
        %v2010 = vadd.f32 %v1969, %v2009
        %v2011 = vpop.f32.mrf.mxu0
        %v2012 = vpop.f32.mrf.mxu0
        %2013 = vdwg.mxu0
        %2014 = vmatprep.subr.bf16.mxu0 %v1600
        %2015 = vmatpush1.bf16.msra.mxu0 %v1599
        %2016 = vmatprep.subr.bf16.mxu0 %v1596
        %2017 = vmatpush1.bf16.msra.mxu0 %v1595
        %2018 = vmatprep.subr.bf16.mxu0 %v1592
        %2019 = vmatpush1.bf16.msra.mxu0 %v1591
        %2020 = vmatprep.subr.bf16.mxu0 %v1588
        %2021 = vmatpush1.bf16.msra.mxu0 %v1587
        %2022 = vmatprep.subr.bf16.mxu0 %v1584
        %2023 = vmatpush1.bf16.msra.mxu0 %v1583
        %2024 = vmatprep.subr.bf16.mxu0 %v1580
        %2025 = vmatpush1.bf16.msra.mxu0 %v1579
        %2026 = vmatprep.subr.bf16.mxu0 %v1576
        %2027 = vmatpush1.bf16.msra.mxu0 %v1575
        %2028 = vmatprep.subr.bf16.mxu0 %v1572
        %2029 = vmatpush1.bf16.msra.mxu0 %v1571
        %2030 = vmatprep.subr.bf16.mxu0 %v1632
        %2031 = vmatpush2.bf16.msra.mxu0 %v1631
        %2032 = vmatprep.subr.bf16.mxu0 %v1628
        %2033 = vmatpush2.bf16.msra.mxu0 %v1627
        %2034 = vmatprep.subr.bf16.mxu0 %v1624
        %2035 = vmatpush2.bf16.msra.mxu0 %v1623
        %2036 = vmatprep.subr.bf16.mxu0 %v1620
        %2037 = vmatpush2.bf16.msra.mxu0 %v1619
        %2038 = vmatprep.subr.bf16.mxu0 %v1616
        %2039 = vmatpush2.bf16.msra.mxu0 %v1615
        %2040 = vmatprep.subr.bf16.mxu0 %v1612
        %2041 = vmatpush2.bf16.msra.mxu0 %v1611
        %2042 = vmatprep.subr.bf16.mxu0 %v1608
        %2043 = vmatpush2.bf16.msra.mxu0 %v1607
        %2044 = vmatprep.subr.bf16.mxu0 %v1604
        %2045 = vmatpush2.bf16.msra.mxu0 %v1603
        %2046 = vmatprep.mubr.bf16.mxu0 %v602
        %2047 = vmatmul.mubr.bf16.gmra.mxu0 %v600
        %v2048 = vpop.f32.mrf.mxu0
        %v2049 = vadd.f32 %v2008, %v2048
        %v2050 = vpop.f32.mrf.mxu0
        %v2051 = vadd.f32 %v2010, %v2050
        %v2052 = vpop.f32.mrf.mxu0
        %v2053 = vpop.f32.mrf.mxu0
        %2054 = vdwg.mxu0
        %2055 = vmatprep.subr.bf16.mxu0 %v1410
        %2056 = vmatpush1.bf16.msra.mxu0 %v1409
        %2057 = vmatprep.subr.bf16.mxu0 %v1406
        %2058 = vmatpush1.bf16.msra.mxu0 %v1405
        %2059 = vmatprep.subr.bf16.mxu0 %v1402
        %2060 = vmatpush1.bf16.msra.mxu0 %v1401
        %2061 = vmatprep.subr.bf16.mxu0 %v1398
        %2062 = vmatpush1.bf16.msra.mxu0 %v1397
        %2063 = vmatprep.subr.bf16.mxu0 %v1394
        %2064 = vmatpush1.bf16.msra.mxu0 %v1393
        %2065 = vmatprep.subr.bf16.mxu0 %v1390
        %2066 = vmatpush1.bf16.msra.mxu0 %v1389
        %2067 = vmatprep.subr.bf16.mxu0 %v1386
        %2068 = vmatpush1.bf16.msra.mxu0 %v1385
        %2069 = vmatprep.subr.bf16.mxu0 %v1382
        %2070 = vmatpush1.bf16.msra.mxu0 %v1381
        %2071 = vmatprep.subr.bf16.mxu0 %v1442
        %2072 = vmatpush2.bf16.msra.mxu0 %v1441
        %2073 = vmatprep.subr.bf16.mxu0 %v1438
        %2074 = vmatpush2.bf16.msra.mxu0 %v1437
        %2075 = vmatprep.subr.bf16.mxu0 %v1434
        %2076 = vmatpush2.bf16.msra.mxu0 %v1433
        %2077 = vmatprep.subr.bf16.mxu0 %v1430
        %2078 = vmatpush2.bf16.msra.mxu0 %v1429
        %2079 = vmatprep.subr.bf16.mxu0 %v1426
        %2080 = vmatpush2.bf16.msra.mxu0 %v1425
        %2081 = vmatprep.subr.bf16.mxu0 %v1422
        %2082 = vmatpush2.bf16.msra.mxu0 %v1421
        %2083 = vmatprep.subr.bf16.mxu0 %v1418
        %2084 = vmatpush2.bf16.msra.mxu0 %v1417
        %2085 = vmatprep.subr.bf16.mxu0 %v1414
        %2086 = vmatpush2.bf16.msra.mxu0 %v1413
        %2087 = vmatprep.mubr.bf16.mxu0 %v591
        %2088 = vmatmul.mubr.bf16.gmra.mxu0 %v577
        %v2089 = vpop.f32.mrf.mxu0
        %v2090 = vadd.f32 0.0, %v2089
        %v2091 = vpop.f32.mrf.mxu0
        %v2092 = vadd.f32 0.0, %v2091
        %v2093 = vpop.f32.mrf.mxu0
        %v2094 = vpop.f32.mrf.mxu0
        %2095 = vdwg.mxu0
        %2096 = vmatprep.subr.bf16.mxu0 %v1474
        %2097 = vmatpush1.bf16.msra.mxu0 %v1473
        %2098 = vmatprep.subr.bf16.mxu0 %v1470
        %2099 = vmatpush1.bf16.msra.mxu0 %v1469
        %2100 = vmatprep.subr.bf16.mxu0 %v1466
        %2101 = vmatpush1.bf16.msra.mxu0 %v1465
        %2102 = vmatprep.subr.bf16.mxu0 %v1462
        %2103 = vmatpush1.bf16.msra.mxu0 %v1461
        %2104 = vmatprep.subr.bf16.mxu0 %v1458
        %2105 = vmatpush1.bf16.msra.mxu0 %v1457
        %2106 = vmatprep.subr.bf16.mxu0 %v1454
        %2107 = vmatpush1.bf16.msra.mxu0 %v1453
        %2108 = vmatprep.subr.bf16.mxu0 %v1450
        %2109 = vmatpush1.bf16.msra.mxu0 %v1449
        %2110 = vmatprep.subr.bf16.mxu0 %v1446
        %2111 = vmatpush1.bf16.msra.mxu0 %v1445
        %2112 = vmatprep.subr.bf16.mxu0 %v1506
        %2113 = vmatpush2.bf16.msra.mxu0 %v1505
        %2114 = vmatprep.subr.bf16.mxu0 %v1502
        %2115 = vmatpush2.bf16.msra.mxu0 %v1501
        %2116 = vmatprep.subr.bf16.mxu0 %v1498
        %2117 = vmatpush2.bf16.msra.mxu0 %v1497
        %2118 = vmatprep.subr.bf16.mxu0 %v1494
        %2119 = vmatpush2.bf16.msra.mxu0 %v1493
        %2120 = vmatprep.subr.bf16.mxu0 %v1490
        %2121 = vmatpush2.bf16.msra.mxu0 %v1489
        %2122 = vmatprep.subr.bf16.mxu0 %v1486
        %2123 = vmatpush2.bf16.msra.mxu0 %v1485
        %2124 = vmatprep.subr.bf16.mxu0 %v1482
        %2125 = vmatpush2.bf16.msra.mxu0 %v1481
        %2126 = vmatprep.subr.bf16.mxu0 %v1478
        %2127 = vmatpush2.bf16.msra.mxu0 %v1477
        %2128 = vmatprep.mubr.bf16.mxu0 %v601
        %2129 = vmatmul.mubr.bf16.gmra.mxu0 %v599
        %v2130 = vpop.f32.mrf.mxu0
        %v2131 = vadd.f32 %v2090, %v2130
        %v2132 = vpop.f32.mrf.mxu0
        %v2133 = vadd.f32 %v2092, %v2132
        %v2134 = vpop.f32.mrf.mxu0
        %v2135 = vpop.f32.mrf.mxu0
        %2136 = vdwg.mxu0
        %2137 = vmatprep.subr.bf16.mxu0 %v1538
        %2138 = vmatpush1.bf16.msra.mxu0 %v1537
        %2139 = vmatprep.subr.bf16.mxu0 %v1534
        %2140 = vmatpush1.bf16.msra.mxu0 %v1533
        %2141 = vmatprep.subr.bf16.mxu0 %v1530
        %2142 = vmatpush1.bf16.msra.mxu0 %v1529
        %2143 = vmatprep.subr.bf16.mxu0 %v1526
        %2144 = vmatpush1.bf16.msra.mxu0 %v1525
        %2145 = vmatprep.subr.bf16.mxu0 %v1522
        %2146 = vmatpush1.bf16.msra.mxu0 %v1521
        %2147 = vmatprep.subr.bf16.mxu0 %v1518
        %2148 = vmatpush1.bf16.msra.mxu0 %v1517
        %2149 = vmatprep.subr.bf16.mxu0 %v1514
        %2150 = vmatpush1.bf16.msra.mxu0 %v1513
        %2151 = vmatprep.subr.bf16.mxu0 %v1510
        %2152 = vmatpush1.bf16.msra.mxu0 %v1509
        %2153 = vmatprep.subr.bf16.mxu0 %v1570
        %2154 = vmatpush2.bf16.msra.mxu0 %v1569
        %2155 = vmatprep.subr.bf16.mxu0 %v1566
        %2156 = vmatpush2.bf16.msra.mxu0 %v1565
        %2157 = vmatprep.subr.bf16.mxu0 %v1562
        %2158 = vmatpush2.bf16.msra.mxu0 %v1561
        %2159 = vmatprep.subr.bf16.mxu0 %v1558
        %2160 = vmatpush2.bf16.msra.mxu0 %v1557
        %2161 = vmatprep.subr.bf16.mxu0 %v1554
        %2162 = vmatpush2.bf16.msra.mxu0 %v1553
        %2163 = vmatprep.subr.bf16.mxu0 %v1550
        %2164 = vmatpush2.bf16.msra.mxu0 %v1549
        %2165 = vmatprep.subr.bf16.mxu0 %v1546
        %2166 = vmatpush2.bf16.msra.mxu0 %v1545
        %2167 = vmatprep.subr.bf16.mxu0 %v1542
        %2168 = vmatpush2.bf16.msra.mxu0 %v1541
        %2169 = vmatprep.mubr.bf16.mxu0 %v598
        %2170 = vmatmul.mubr.bf16.gmra.mxu0 %v584
        %v2171 = vpop.f32.mrf.mxu0
        %v2172 = vadd.f32 %v2131, %v2171
        %v2173 = vpop.f32.mrf.mxu0
        %v2174 = vadd.f32 %v2133, %v2173
        %v2175 = vpop.f32.mrf.mxu0
        %v2176 = vpop.f32.mrf.mxu0
        %2177 = vdwg.mxu0
        %2178 = vmatprep.subr.bf16.mxu0 %v1602
        %2179 = vmatpush1.bf16.msra.mxu0 %v1601
        %2180 = vmatprep.subr.bf16.mxu0 %v1598
        %2181 = vmatpush1.bf16.msra.mxu0 %v1597
        %2182 = vmatprep.subr.bf16.mxu0 %v1594
        %2183 = vmatpush1.bf16.msra.mxu0 %v1593
        %2184 = vmatprep.subr.bf16.mxu0 %v1590
        %2185 = vmatpush1.bf16.msra.mxu0 %v1589
        %2186 = vmatprep.subr.bf16.mxu0 %v1586
        %2187 = vmatpush1.bf16.msra.mxu0 %v1585
        %2188 = vmatprep.subr.bf16.mxu0 %v1582
        %2189 = vmatpush1.bf16.msra.mxu0 %v1581
        %2190 = vmatprep.subr.bf16.mxu0 %v1578
        %2191 = vmatpush1.bf16.msra.mxu0 %v1577
        %2192 = vmatprep.subr.bf16.mxu0 %v1574
        %2193 = vmatpush1.bf16.msra.mxu0 %v1573
        %2194 = vmatprep.subr.bf16.mxu0 %v1634
        %2195 = vmatpush2.bf16.msra.mxu0 %v1633
        %2196 = vmatprep.subr.bf16.mxu0 %v1630
        %2197 = vmatpush2.bf16.msra.mxu0 %v1629
        %2198 = vmatprep.subr.bf16.mxu0 %v1626
        %2199 = vmatpush2.bf16.msra.mxu0 %v1625
        %2200 = vmatprep.subr.bf16.mxu0 %v1622
        %2201 = vmatpush2.bf16.msra.mxu0 %v1621
        %2202 = vmatprep.subr.bf16.mxu0 %v1618
        %2203 = vmatpush2.bf16.msra.mxu0 %v1617
        %2204 = vmatprep.subr.bf16.mxu0 %v1614
        %2205 = vmatpush2.bf16.msra.mxu0 %v1613
        %2206 = vmatprep.subr.bf16.mxu0 %v1610
        %2207 = vmatpush2.bf16.msra.mxu0 %v1609
        %2208 = vmatprep.subr.bf16.mxu0 %v1606
        %2209 = vmatpush2.bf16.msra.mxu0 %v1605
        %2210 = vmatprep.mubr.bf16.mxu0 %v602
        %2211 = vmatmul.mubr.bf16.gmra.mxu0 %v600
        %v2212 = vpop.f32.mrf.mxu0
        %v2213 = vadd.f32 %v2172, %v2212
        %v2214 = vpop.f32.mrf.mxu0
        %v2215 = vadd.f32 %v2174, %v2214
        %v2216 = vpop.f32.mrf.mxu0
        %v2217 = vpop.f32.mrf.mxu0
        %2218 = vdwg.mxu0
        %v2223 = vcombine.low %v2049, %v2051
        %v2224 = vcombine.low %v2213, %v2215
        %v2226 = vunpack.c.l.s4 1983009808
        %v2227 = vunpack.c.0.s8 %v2226
        %v2228 = vlaneseq
        %v2229 = vshrl.u32 %v2228, 7
        %v2230 = vsub.s32 %v2227, %v2229
        %v2231 = vrot.slane %v2223, %v2230
        %v2233 = vunpack.c.l.s4 1983009808
        %v2234 = vunpack.c.0.s8 %v2233
        %v2235 = vlaneseq
        %v2236 = vshrl.u32 %v2235, 7
        %v2237 = vsub.s32 %v2234, %v2236
        %v2238 = vrot.slane %v2224, %v2237
        %v2239 = vcombine.low %v2231, %v2238
        %v2241 = vadd.f32 %v295, %v2239
        %2242 = vst [vmem:[#allocation2] sm:$0xff] %v2241
        %p2243 = scmp.eq.s32.totalorder %s19, 6
        // Predicated region
        $region53: #{cnn_forward.7} parent=47 // pred_check
          %p2244 = pneg %p2243
        $region54: #{cnn_forward.7} parent=47 // pred_check_branch
          %2246 = sbr.rel (%p2244) target = $region56
        $region55: #{cnn_forward.7} parent=47 // pred_region
          %v2247 = vld [vmem:[#allocation2] sm:$0xff]
          %v2248 = vld [vmem:[%s2] sm:$0xf]
          %v2250 = vlaneseq
          %v2251 = vshrl.u32 %v2250, 7
          %v2252 = vsub.s32 0, %v2251
          %v2253 = vrot.slane %v2248, %v2252
          %v2254 = vlaneseq
          %v2255 = vshrl.u32 %v2254, 7
          %v2256 = vsub.s32 1, %v2255
          %v2257 = vrot.slane %v2248, %v2256
          %v2258 = vlaneseq
          %v2259 = vshrl.u32 %v2258, 7
          %v2260 = vsub.s32 2, %v2259
          %v2261 = vrot.slane %v2248, %v2260
          %v2262 = vlaneseq
          %v2263 = vshrl.u32 %v2262, 7
          %v2264 = vsub.s32 3, %v2263
          %v2265 = vrot.slane %v2248, %v2264
          %v2266 = vcombine.low %v2253, %v2257
          %v2267 = vcombine.low %v2261, %v2265
          %v2269 = vunpack.c.l.s4 1983009808
          %v2270 = vunpack.c.0.s8 %v2269
          %v2271 = vlaneseq
          %v2272 = vshrl.u32 %v2271, 7
          %v2273 = vsub.s32 %v2270, %v2272
          %v2274 = vrot.slane %v2266, %v2273
          %v2276 = vunpack.c.l.s4 1983009808
          %v2277 = vunpack.c.0.s8 %v2276
          %v2278 = vlaneseq
          %v2279 = vshrl.u32 %v2278, 7
          %v2280 = vsub.s32 %v2277, %v2279
          %v2281 = vrot.slane %v2267, %v2280
          %v2282 = vcombine.low %v2274, %v2281
          %v2284 = vadd.f32 %v2247, %v2282
          %v2285 = vxor.u32 %v2284, 2147483648
          %v2286 = vmul.f32 %v2285, 1.442695
          %v2287 = vpow.pop %v2286
          %v2288 = vadd.f32 %v2287, 1.0
          %v2289 = vrcp.pop %v2288
          %v2290 = vmul.f32 1.0, %v2289
          %v2292 = vcombine.high %v2290, %v2290
          %v2294 = vunpack.c.l.s4 1983009808
          %v2295 = vunpack.c.0.s8 %v2294
          %v2296 = vlaneseq
          %v2297 = vshrl.u32 %v2296, 7
          %v2298 = vsub.s32 %v2295, %v2297
          %v2299 = vrot.slane %v2290, %v2298
          %v2301 = vunpack.c.l.s4 1983009808
          %v2302 = vunpack.c.0.s8 %v2301
          %v2303 = vlaneseq
          %v2304 = vshrl.u32 %v2303, 7
          %v2305 = vsub.s32 %v2302, %v2304
          %v2306 = vrot.slane %v2292, %v2305
          %v2307 = vcombine.high %v2299, %v2299
          %v2308 = vcombine.high %v2306, %v2306
          %v2313 = vpack.c.bf16 %v2299, %v2299
          %v2314 = vpack.c.bf16 %v2307, %v2307
          %v2315 = vpack.c.bf16 %v2306, %v2306
          %v2316 = vpack.c.bf16 %v2308, %v2308
          %v2317 = vld [vmem:[%s3] sm:$0xff]
          %v2318 = vld [vmem:[%s3 + $0x8] sm:$0xff]
          %v2319 = vld [vmem:[%s3 + $0x10] sm:$0xff]
          %v2320 = vld [vmem:[%s3 + $0x18] sm:$0xff]
          %v2321 = vld [vmem:[%s3 + $0x20] sm:$0xff]
          %v2322 = vld [vmem:[%s3 + $0x28] sm:$0xff]
          %v2323 = vld [vmem:[%s3 + $0x30] sm:$0xff]
          %v2324 = vld [vmem:[%s3 + $0x38] sm:$0xff]
          %v2325 = vld [vmem:[%s3 + $0x40] sm:$0xff]
          %v2326 = vld [vmem:[%s3 + $0x48] sm:$0xff]
          %v2327 = vld [vmem:[%s3 + $0x50] sm:$0xff]
          %v2328 = vld [vmem:[%s3 + $0x58] sm:$0xff]
          %v2329 = vld [vmem:[%s3 + $0x60] sm:$0xff]
          %v2330 = vld [vmem:[%s3 + $0x68] sm:$0xff]
          %v2331 = vld [vmem:[%s3 + $0x70] sm:$0xff]
          %v2332 = vld [vmem:[%s3 + $0x78] sm:$0xff]
          %v2333 = vld [vmem:[%s3 + $0x80] sm:$0xff]
          %v2334 = vld [vmem:[%s3 + $0x88] sm:$0xff]
          %v2335 = vld [vmem:[%s3 + $0x90] sm:$0xff]
          %v2336 = vld [vmem:[%s3 + $0x98] sm:$0xff]
          %v2337 = vld [vmem:[%s3 + $0xa0] sm:$0xff]
          %v2338 = vld [vmem:[%s3 + $0xa8] sm:$0xff]
          %v2339 = vld [vmem:[%s3 + $0xb0] sm:$0xff]
          %v2340 = vld [vmem:[%s3 + $0xb8] sm:$0xff]
          %v2341 = vld [vmem:[%s3 + $0xc0] sm:$0xff]
          %v2342 = vld [vmem:[%s3 + $0xc8] sm:$0xff]
          %v2343 = vld [vmem:[%s3 + $0xd0] sm:$0xff]
          %v2344 = vld [vmem:[%s3 + $0xd8] sm:$0xff]
          %v2345 = vld [vmem:[%s3 + $0xe0] sm:$0xff]
          %v2346 = vld [vmem:[%s3 + $0xe8] sm:$0xff]
          %v2347 = vld [vmem:[%s3 + $0xf0] sm:$0xff]
          %v2348 = vld [vmem:[%s3 + $0xf8] sm:$0xff]
          %v2349 = vld [vmem:[%s3 + $0x100] sm:$0xff]
          %v2350 = vld [vmem:[%s3 + $0x108] sm:$0xff]
          %v2351 = vld [vmem:[%s3 + $0x110] sm:$0xff]
          %v2352 = vld [vmem:[%s3 + $0x118] sm:$0xff]
          %v2353 = vld [vmem:[%s3 + $0x120] sm:$0xff]
          %v2354 = vld [vmem:[%s3 + $0x128] sm:$0xff]
          %v2355 = vld [vmem:[%s3 + $0x130] sm:$0xff]
          %v2356 = vld [vmem:[%s3 + $0x138] sm:$0xff]
          %v2357 = vld [vmem:[%s3 + $0x140] sm:$0xff]
          %v2358 = vld [vmem:[%s3 + $0x148] sm:$0xff]
          %v2359 = vld [vmem:[%s3 + $0x150] sm:$0xff]
          %v2360 = vld [vmem:[%s3 + $0x158] sm:$0xff]
          %v2361 = vld [vmem:[%s3 + $0x160] sm:$0xff]
          %v2362 = vld [vmem:[%s3 + $0x168] sm:$0xff]
          %v2363 = vld [vmem:[%s3 + $0x170] sm:$0xff]
          %v2364 = vld [vmem:[%s3 + $0x178] sm:$0xff]
          %v2365 = vld [vmem:[%s3 + $0x180] sm:$0xff]
          %v2366 = vld [vmem:[%s3 + $0x188] sm:$0xff]
          %v2367 = vld [vmem:[%s3 + $0x190] sm:$0xff]
          %v2368 = vld [vmem:[%s3 + $0x198] sm:$0xff]
          %v2369 = vld [vmem:[%s3 + $0x1a0] sm:$0xff]
          %v2370 = vld [vmem:[%s3 + $0x1a8] sm:$0xff]
          %v2371 = vld [vmem:[%s3 + $0x1b0] sm:$0xff]
          %v2372 = vld [vmem:[%s3 + $0x1b8] sm:$0xff]
          %v2373 = vld [vmem:[%s3 + $0x1c0] sm:$0xff]
          %v2374 = vld [vmem:[%s3 + $0x1c8] sm:$0xff]
          %v2375 = vld [vmem:[%s3 + $0x1d0] sm:$0xff]
          %v2376 = vld [vmem:[%s3 + $0x1d8] sm:$0xff]
          %v2377 = vld [vmem:[%s3 + $0x1e0] sm:$0xff]
          %v2378 = vld [vmem:[%s3 + $0x1e8] sm:$0xff]
          %v2379 = vld [vmem:[%s3 + $0x1f0] sm:$0xff]
          %v2380 = vld [vmem:[%s3 + $0x1f8] sm:$0xff]
          %v2381 = vld [vmem:[%s3 + $0x200] sm:$0xff]
          %v2382 = vld [vmem:[%s3 + $0x208] sm:$0xff]
          %v2383 = vld [vmem:[%s3 + $0x210] sm:$0xff]
          %v2384 = vld [vmem:[%s3 + $0x218] sm:$0xff]
          %v2385 = vld [vmem:[%s3 + $0x220] sm:$0xff]
          %v2386 = vld [vmem:[%s3 + $0x228] sm:$0xff]
          %v2387 = vld [vmem:[%s3 + $0x230] sm:$0xff]
          %v2388 = vld [vmem:[%s3 + $0x238] sm:$0xff]
          %v2389 = vld [vmem:[%s3 + $0x240] sm:$0xff]
          %v2390 = vld [vmem:[%s3 + $0x248] sm:$0xff]
          %v2391 = vld [vmem:[%s3 + $0x250] sm:$0xff]
          %v2392 = vld [vmem:[%s3 + $0x258] sm:$0xff]
          %v2393 = vld [vmem:[%s3 + $0x260] sm:$0xff]
          %v2394 = vld [vmem:[%s3 + $0x268] sm:$0xff]
          %v2395 = vld [vmem:[%s3 + $0x270] sm:$0xff]
          %v2396 = vld [vmem:[%s3 + $0x278] sm:$0xff]
          %v2397 = vld [vmem:[%s3 + $0x280] sm:$0xff]
          %v2398 = vld [vmem:[%s3 + $0x288] sm:$0xff]
          %v2399 = vld [vmem:[%s3 + $0x290] sm:$0xff]
          %v2400 = vld [vmem:[%s3 + $0x298] sm:$0xff]
          %v2401 = vld [vmem:[%s3 + $0x2a0] sm:$0xff]
          %v2402 = vld [vmem:[%s3 + $0x2a8] sm:$0xff]
          %v2403 = vld [vmem:[%s3 + $0x2b0] sm:$0xff]
          %v2404 = vld [vmem:[%s3 + $0x2b8] sm:$0xff]
          %v2405 = vld [vmem:[%s3 + $0x2c0] sm:$0xff]
          %v2406 = vld [vmem:[%s3 + $0x2c8] sm:$0xff]
          %v2407 = vld [vmem:[%s3 + $0x2d0] sm:$0xff]
          %v2408 = vld [vmem:[%s3 + $0x2d8] sm:$0xff]
          %v2409 = vld [vmem:[%s3 + $0x2e0] sm:$0xff]
          %v2410 = vld [vmem:[%s3 + $0x2e8] sm:$0xff]
          %v2411 = vld [vmem:[%s3 + $0x2f0] sm:$0xff]
          %v2412 = vld [vmem:[%s3 + $0x2f8] sm:$0xff]
          %v2413 = vld [vmem:[%s3 + $0x300] sm:$0xff]
          %v2414 = vld [vmem:[%s3 + $0x308] sm:$0xff]
          %v2415 = vld [vmem:[%s3 + $0x310] sm:$0xff]
          %v2416 = vld [vmem:[%s3 + $0x318] sm:$0xff]
          %v2417 = vld [vmem:[%s3 + $0x320] sm:$0xff]
          %v2418 = vld [vmem:[%s3 + $0x328] sm:$0xff]
          %v2419 = vld [vmem:[%s3 + $0x330] sm:$0xff]
          %v2420 = vld [vmem:[%s3 + $0x338] sm:$0xff]
          %v2421 = vld [vmem:[%s3 + $0x340] sm:$0xff]
          %v2422 = vld [vmem:[%s3 + $0x348] sm:$0xff]
          %v2423 = vld [vmem:[%s3 + $0x350] sm:$0xff]
          %v2424 = vld [vmem:[%s3 + $0x358] sm:$0xff]
          %v2425 = vld [vmem:[%s3 + $0x360] sm:$0xff]
          %v2426 = vld [vmem:[%s3 + $0x368] sm:$0xff]
          %v2427 = vld [vmem:[%s3 + $0x370] sm:$0xff]
          %v2428 = vld [vmem:[%s3 + $0x378] sm:$0xff]
          %v2429 = vld [vmem:[%s3 + $0x380] sm:$0xff]
          %v2430 = vld [vmem:[%s3 + $0x388] sm:$0xff]
          %v2431 = vld [vmem:[%s3 + $0x390] sm:$0xff]
          %v2432 = vld [vmem:[%s3 + $0x398] sm:$0xff]
          %v2433 = vld [vmem:[%s3 + $0x3a0] sm:$0xff]
          %v2434 = vld [vmem:[%s3 + $0x3a8] sm:$0xff]
          %v2435 = vld [vmem:[%s3 + $0x3b0] sm:$0xff]
          %v2436 = vld [vmem:[%s3 + $0x3b8] sm:$0xff]
          %v2437 = vld [vmem:[%s3 + $0x3c0] sm:$0xff]
          %v2438 = vld [vmem:[%s3 + $0x3c8] sm:$0xff]
          %v2439 = vld [vmem:[%s3 + $0x3d0] sm:$0xff]
          %v2440 = vld [vmem:[%s3 + $0x3d8] sm:$0xff]
          %v2441 = vld [vmem:[%s3 + $0x3e0] sm:$0xff]
          %v2442 = vld [vmem:[%s3 + $0x3e8] sm:$0xff]
          %v2443 = vld [vmem:[%s3 + $0x3f0] sm:$0xff]
          %v2444 = vld [vmem:[%s3 + $0x3f8] sm:$0xff]
          %v2445 = vld [vmem:[%s4] sm:$0xf]
          %v2447 = vlaneseq
          %v2448 = vshrl.u32 %v2447, 7
          %v2449 = vsub.s32 0, %v2448
          %v2450 = vrot.slane %v2445, %v2449
          %v2451 = vlaneseq
          %v2452 = vshrl.u32 %v2451, 7
          %v2453 = vsub.s32 1, %v2452
          %v2454 = vrot.slane %v2445, %v2453
          %v2455 = vlaneseq
          %v2456 = vshrl.u32 %v2455, 7
          %v2457 = vsub.s32 2, %v2456
          %v2458 = vrot.slane %v2445, %v2457
          %v2459 = vlaneseq
          %v2460 = vshrl.u32 %v2459, 7
          %v2461 = vsub.s32 3, %v2460
          %v2462 = vrot.slane %v2445, %v2461
          %v2595 = vunpack.c.l.b16 %v2317
          %v2596 = vunpack.c.h.b16 %v2317
          %v2597 = vunpack.c.l.b16 %v2318
          %v2598 = vunpack.c.h.b16 %v2318
          %v2599 = vunpack.c.l.b16 %v2319
          %v2600 = vunpack.c.h.b16 %v2319
          %v2601 = vunpack.c.l.b16 %v2320
          %v2602 = vunpack.c.h.b16 %v2320
          %v2603 = vunpack.c.l.b16 %v2321
          %v2604 = vunpack.c.h.b16 %v2321
          %v2605 = vunpack.c.l.b16 %v2322
          %v2606 = vunpack.c.h.b16 %v2322
          %v2607 = vunpack.c.l.b16 %v2323
          %v2608 = vunpack.c.h.b16 %v2323
          %v2609 = vunpack.c.l.b16 %v2324
          %v2610 = vunpack.c.h.b16 %v2324
          %v2611 = vunpack.c.l.b16 %v2325
          %v2612 = vunpack.c.h.b16 %v2325
          %v2613 = vunpack.c.l.b16 %v2326
          %v2614 = vunpack.c.h.b16 %v2326
          %v2615 = vunpack.c.l.b16 %v2327
          %v2616 = vunpack.c.h.b16 %v2327
          %v2617 = vunpack.c.l.b16 %v2328
          %v2618 = vunpack.c.h.b16 %v2328
          %v2619 = vunpack.c.l.b16 %v2329
          %v2620 = vunpack.c.h.b16 %v2329
          %v2621 = vunpack.c.l.b16 %v2330
          %v2622 = vunpack.c.h.b16 %v2330
          %v2623 = vunpack.c.l.b16 %v2331
          %v2624 = vunpack.c.h.b16 %v2331
          %v2625 = vunpack.c.l.b16 %v2332
          %v2626 = vunpack.c.h.b16 %v2332
          %v2627 = vunpack.c.l.b16 %v2333
          %v2628 = vunpack.c.h.b16 %v2333
          %v2629 = vunpack.c.l.b16 %v2334
          %v2630 = vunpack.c.h.b16 %v2334
          %v2631 = vunpack.c.l.b16 %v2335
          %v2632 = vunpack.c.h.b16 %v2335
          %v2633 = vunpack.c.l.b16 %v2336
          %v2634 = vunpack.c.h.b16 %v2336
          %v2635 = vunpack.c.l.b16 %v2337
          %v2636 = vunpack.c.h.b16 %v2337
          %v2637 = vunpack.c.l.b16 %v2338
          %v2638 = vunpack.c.h.b16 %v2338
          %v2639 = vunpack.c.l.b16 %v2339
          %v2640 = vunpack.c.h.b16 %v2339
          %v2641 = vunpack.c.l.b16 %v2340
          %v2642 = vunpack.c.h.b16 %v2340
          %v2643 = vunpack.c.l.b16 %v2341
          %v2644 = vunpack.c.h.b16 %v2341
          %v2645 = vunpack.c.l.b16 %v2342
          %v2646 = vunpack.c.h.b16 %v2342
          %v2647 = vunpack.c.l.b16 %v2343
          %v2648 = vunpack.c.h.b16 %v2343
          %v2649 = vunpack.c.l.b16 %v2344
          %v2650 = vunpack.c.h.b16 %v2344
          %v2651 = vunpack.c.l.b16 %v2345
          %v2652 = vunpack.c.h.b16 %v2345
          %v2653 = vunpack.c.l.b16 %v2346
          %v2654 = vunpack.c.h.b16 %v2346
          %v2655 = vunpack.c.l.b16 %v2347
          %v2656 = vunpack.c.h.b16 %v2347
          %v2657 = vunpack.c.l.b16 %v2348
          %v2658 = vunpack.c.h.b16 %v2348
          %v2659 = vunpack.c.l.b16 %v2349
          %v2660 = vunpack.c.h.b16 %v2349
          %v2661 = vunpack.c.l.b16 %v2350
          %v2662 = vunpack.c.h.b16 %v2350
          %v2663 = vunpack.c.l.b16 %v2351
          %v2664 = vunpack.c.h.b16 %v2351
          %v2665 = vunpack.c.l.b16 %v2352
          %v2666 = vunpack.c.h.b16 %v2352
          %v2667 = vunpack.c.l.b16 %v2353
          %v2668 = vunpack.c.h.b16 %v2353
          %v2669 = vunpack.c.l.b16 %v2354
          %v2670 = vunpack.c.h.b16 %v2354
          %v2671 = vunpack.c.l.b16 %v2355
          %v2672 = vunpack.c.h.b16 %v2355
          %v2673 = vunpack.c.l.b16 %v2356
          %v2674 = vunpack.c.h.b16 %v2356
          %v2675 = vunpack.c.l.b16 %v2357
          %v2676 = vunpack.c.h.b16 %v2357
          %v2677 = vunpack.c.l.b16 %v2358
          %v2678 = vunpack.c.h.b16 %v2358
          %v2679 = vunpack.c.l.b16 %v2359
          %v2680 = vunpack.c.h.b16 %v2359
          %v2681 = vunpack.c.l.b16 %v2360
          %v2682 = vunpack.c.h.b16 %v2360
          %v2683 = vunpack.c.l.b16 %v2361
          %v2684 = vunpack.c.h.b16 %v2361
          %v2685 = vunpack.c.l.b16 %v2362
          %v2686 = vunpack.c.h.b16 %v2362
          %v2687 = vunpack.c.l.b16 %v2363
          %v2688 = vunpack.c.h.b16 %v2363
          %v2689 = vunpack.c.l.b16 %v2364
          %v2690 = vunpack.c.h.b16 %v2364
          %v2691 = vunpack.c.l.b16 %v2365
          %v2692 = vunpack.c.h.b16 %v2365
          %v2693 = vunpack.c.l.b16 %v2366
          %v2694 = vunpack.c.h.b16 %v2366
          %v2695 = vunpack.c.l.b16 %v2367
          %v2696 = vunpack.c.h.b16 %v2367
          %v2697 = vunpack.c.l.b16 %v2368
          %v2698 = vunpack.c.h.b16 %v2368
          %v2699 = vunpack.c.l.b16 %v2369
          %v2700 = vunpack.c.h.b16 %v2369
          %v2701 = vunpack.c.l.b16 %v2370
          %v2702 = vunpack.c.h.b16 %v2370
          %v2703 = vunpack.c.l.b16 %v2371
          %v2704 = vunpack.c.h.b16 %v2371
          %v2705 = vunpack.c.l.b16 %v2372
          %v2706 = vunpack.c.h.b16 %v2372
          %v2707 = vunpack.c.l.b16 %v2373
          %v2708 = vunpack.c.h.b16 %v2373
          %v2709 = vunpack.c.l.b16 %v2374
          %v2710 = vunpack.c.h.b16 %v2374
          %v2711 = vunpack.c.l.b16 %v2375
          %v2712 = vunpack.c.h.b16 %v2375
          %v2713 = vunpack.c.l.b16 %v2376
          %v2714 = vunpack.c.h.b16 %v2376
          %v2715 = vunpack.c.l.b16 %v2377
          %v2716 = vunpack.c.h.b16 %v2377
          %v2717 = vunpack.c.l.b16 %v2378
          %v2718 = vunpack.c.h.b16 %v2378
          %v2719 = vunpack.c.l.b16 %v2379
          %v2720 = vunpack.c.h.b16 %v2379
          %v2721 = vunpack.c.l.b16 %v2380
          %v2722 = vunpack.c.h.b16 %v2380
          %v2723 = vunpack.c.l.b16 %v2381
          %v2724 = vunpack.c.h.b16 %v2381
          %v2725 = vunpack.c.l.b16 %v2382
          %v2726 = vunpack.c.h.b16 %v2382
          %v2727 = vunpack.c.l.b16 %v2383
          %v2728 = vunpack.c.h.b16 %v2383
          %v2729 = vunpack.c.l.b16 %v2384
          %v2730 = vunpack.c.h.b16 %v2384
          %v2731 = vunpack.c.l.b16 %v2385
          %v2732 = vunpack.c.h.b16 %v2385
          %v2733 = vunpack.c.l.b16 %v2386
          %v2734 = vunpack.c.h.b16 %v2386
          %v2735 = vunpack.c.l.b16 %v2387
          %v2736 = vunpack.c.h.b16 %v2387
          %v2737 = vunpack.c.l.b16 %v2388
          %v2738 = vunpack.c.h.b16 %v2388
          %v2739 = vunpack.c.l.b16 %v2389
          %v2740 = vunpack.c.h.b16 %v2389
          %v2741 = vunpack.c.l.b16 %v2390
          %v2742 = vunpack.c.h.b16 %v2390
          %v2743 = vunpack.c.l.b16 %v2391
          %v2744 = vunpack.c.h.b16 %v2391
          %v2745 = vunpack.c.l.b16 %v2392
          %v2746 = vunpack.c.h.b16 %v2392
          %v2747 = vunpack.c.l.b16 %v2393
          %v2748 = vunpack.c.h.b16 %v2393
          %v2749 = vunpack.c.l.b16 %v2394
          %v2750 = vunpack.c.h.b16 %v2394
          %v2751 = vunpack.c.l.b16 %v2395
          %v2752 = vunpack.c.h.b16 %v2395
          %v2753 = vunpack.c.l.b16 %v2396
          %v2754 = vunpack.c.h.b16 %v2396
          %v2755 = vunpack.c.l.b16 %v2397
          %v2756 = vunpack.c.h.b16 %v2397
          %v2757 = vunpack.c.l.b16 %v2398
          %v2758 = vunpack.c.h.b16 %v2398
          %v2759 = vunpack.c.l.b16 %v2399
          %v2760 = vunpack.c.h.b16 %v2399
          %v2761 = vunpack.c.l.b16 %v2400
          %v2762 = vunpack.c.h.b16 %v2400
          %v2763 = vunpack.c.l.b16 %v2401
          %v2764 = vunpack.c.h.b16 %v2401
          %v2765 = vunpack.c.l.b16 %v2402
          %v2766 = vunpack.c.h.b16 %v2402
          %v2767 = vunpack.c.l.b16 %v2403
          %v2768 = vunpack.c.h.b16 %v2403
          %v2769 = vunpack.c.l.b16 %v2404
          %v2770 = vunpack.c.h.b16 %v2404
          %v2771 = vunpack.c.l.b16 %v2405
          %v2772 = vunpack.c.h.b16 %v2405
          %v2773 = vunpack.c.l.b16 %v2406
          %v2774 = vunpack.c.h.b16 %v2406
          %v2775 = vunpack.c.l.b16 %v2407
          %v2776 = vunpack.c.h.b16 %v2407
          %v2777 = vunpack.c.l.b16 %v2408
          %v2778 = vunpack.c.h.b16 %v2408
          %v2779 = vunpack.c.l.b16 %v2409
          %v2780 = vunpack.c.h.b16 %v2409
          %v2781 = vunpack.c.l.b16 %v2410
          %v2782 = vunpack.c.h.b16 %v2410
          %v2783 = vunpack.c.l.b16 %v2411
          %v2784 = vunpack.c.h.b16 %v2411
          %v2785 = vunpack.c.l.b16 %v2412
          %v2786 = vunpack.c.h.b16 %v2412
          %v2787 = vunpack.c.l.b16 %v2413
          %v2788 = vunpack.c.h.b16 %v2413
          %v2789 = vunpack.c.l.b16 %v2414
          %v2790 = vunpack.c.h.b16 %v2414
          %v2791 = vunpack.c.l.b16 %v2415
          %v2792 = vunpack.c.h.b16 %v2415
          %v2793 = vunpack.c.l.b16 %v2416
          %v2794 = vunpack.c.h.b16 %v2416
          %v2795 = vunpack.c.l.b16 %v2417
          %v2796 = vunpack.c.h.b16 %v2417
          %v2797 = vunpack.c.l.b16 %v2418
          %v2798 = vunpack.c.h.b16 %v2418
          %v2799 = vunpack.c.l.b16 %v2419
          %v2800 = vunpack.c.h.b16 %v2419
          %v2801 = vunpack.c.l.b16 %v2420
          %v2802 = vunpack.c.h.b16 %v2420
          %v2803 = vunpack.c.l.b16 %v2421
          %v2804 = vunpack.c.h.b16 %v2421
          %v2805 = vunpack.c.l.b16 %v2422
          %v2806 = vunpack.c.h.b16 %v2422
          %v2807 = vunpack.c.l.b16 %v2423
          %v2808 = vunpack.c.h.b16 %v2423
          %v2809 = vunpack.c.l.b16 %v2424
          %v2810 = vunpack.c.h.b16 %v2424
          %v2811 = vunpack.c.l.b16 %v2425
          %v2812 = vunpack.c.h.b16 %v2425
          %v2813 = vunpack.c.l.b16 %v2426
          %v2814 = vunpack.c.h.b16 %v2426
          %v2815 = vunpack.c.l.b16 %v2427
          %v2816 = vunpack.c.h.b16 %v2427
          %v2817 = vunpack.c.l.b16 %v2428
          %v2818 = vunpack.c.h.b16 %v2428
          %v2819 = vunpack.c.l.b16 %v2429
          %v2820 = vunpack.c.h.b16 %v2429
          %v2821 = vunpack.c.l.b16 %v2430
          %v2822 = vunpack.c.h.b16 %v2430
          %v2823 = vunpack.c.l.b16 %v2431
          %v2824 = vunpack.c.h.b16 %v2431
          %v2825 = vunpack.c.l.b16 %v2432
          %v2826 = vunpack.c.h.b16 %v2432
          %v2827 = vunpack.c.l.b16 %v2433
          %v2828 = vunpack.c.h.b16 %v2433
          %v2829 = vunpack.c.l.b16 %v2434
          %v2830 = vunpack.c.h.b16 %v2434
          %v2831 = vunpack.c.l.b16 %v2435
          %v2832 = vunpack.c.h.b16 %v2435
          %v2833 = vunpack.c.l.b16 %v2436
          %v2834 = vunpack.c.h.b16 %v2436
          %v2835 = vunpack.c.l.b16 %v2437
          %v2836 = vunpack.c.h.b16 %v2437
          %v2837 = vunpack.c.l.b16 %v2438
          %v2838 = vunpack.c.h.b16 %v2438
          %v2839 = vunpack.c.l.b16 %v2439
          %v2840 = vunpack.c.h.b16 %v2439
          %v2841 = vunpack.c.l.b16 %v2440
          %v2842 = vunpack.c.h.b16 %v2440
          %v2843 = vunpack.c.l.b16 %v2441
          %v2844 = vunpack.c.h.b16 %v2441
          %v2845 = vunpack.c.l.b16 %v2442
          %v2846 = vunpack.c.h.b16 %v2442
          %v2847 = vunpack.c.l.b16 %v2443
          %v2848 = vunpack.c.h.b16 %v2443
          %v2849 = vunpack.c.l.b16 %v2444
          %v2850 = vunpack.c.h.b16 %v2444
          %v2851 = vpack.c.b16 %v2599, %v2595
          %v2852 = vpack.c.b16 %v2600, %v2596
          %v2853 = vpack.c.b16 %v2601, %v2597
          %v2854 = vpack.c.b16 %v2602, %v2598
          %v2855 = vpack.c.b16 %v2607, %v2603
          %v2856 = vpack.c.b16 %v2608, %v2604
          %v2857 = vpack.c.b16 %v2609, %v2605
          %v2858 = vpack.c.b16 %v2610, %v2606
          %v2859 = vpack.c.b16 %v2615, %v2611
          %v2860 = vpack.c.b16 %v2616, %v2612
          %v2861 = vpack.c.b16 %v2617, %v2613
          %v2862 = vpack.c.b16 %v2618, %v2614
          %v2863 = vpack.c.b16 %v2623, %v2619
          %v2864 = vpack.c.b16 %v2624, %v2620
          %v2865 = vpack.c.b16 %v2625, %v2621
          %v2866 = vpack.c.b16 %v2626, %v2622
          %v2867 = vpack.c.b16 %v2631, %v2627
          %v2868 = vpack.c.b16 %v2632, %v2628
          %v2869 = vpack.c.b16 %v2633, %v2629
          %v2870 = vpack.c.b16 %v2634, %v2630
          %v2871 = vpack.c.b16 %v2639, %v2635
          %v2872 = vpack.c.b16 %v2640, %v2636
          %v2873 = vpack.c.b16 %v2641, %v2637
          %v2874 = vpack.c.b16 %v2642, %v2638
          %v2875 = vpack.c.b16 %v2647, %v2643
          %v2876 = vpack.c.b16 %v2648, %v2644
          %v2877 = vpack.c.b16 %v2649, %v2645
          %v2878 = vpack.c.b16 %v2650, %v2646
          %v2879 = vpack.c.b16 %v2655, %v2651
          %v2880 = vpack.c.b16 %v2656, %v2652
          %v2881 = vpack.c.b16 %v2657, %v2653
          %v2882 = vpack.c.b16 %v2658, %v2654
          %v2883 = vpack.c.b16 %v2663, %v2659
          %v2884 = vpack.c.b16 %v2664, %v2660
          %v2885 = vpack.c.b16 %v2665, %v2661
          %v2886 = vpack.c.b16 %v2666, %v2662
          %v2887 = vpack.c.b16 %v2671, %v2667
          %v2888 = vpack.c.b16 %v2672, %v2668
          %v2889 = vpack.c.b16 %v2673, %v2669
          %v2890 = vpack.c.b16 %v2674, %v2670
          %v2891 = vpack.c.b16 %v2679, %v2675
          %v2892 = vpack.c.b16 %v2680, %v2676
          %v2893 = vpack.c.b16 %v2681, %v2677
          %v2894 = vpack.c.b16 %v2682, %v2678
          %v2895 = vpack.c.b16 %v2687, %v2683
          %v2896 = vpack.c.b16 %v2688, %v2684
          %v2897 = vpack.c.b16 %v2689, %v2685
          %v2898 = vpack.c.b16 %v2690, %v2686
          %v2899 = vpack.c.b16 %v2695, %v2691
          %v2900 = vpack.c.b16 %v2696, %v2692
          %v2901 = vpack.c.b16 %v2697, %v2693
          %v2902 = vpack.c.b16 %v2698, %v2694
          %v2903 = vpack.c.b16 %v2703, %v2699
          %v2904 = vpack.c.b16 %v2704, %v2700
          %v2905 = vpack.c.b16 %v2705, %v2701
          %v2906 = vpack.c.b16 %v2706, %v2702
          %v2907 = vpack.c.b16 %v2711, %v2707
          %v2908 = vpack.c.b16 %v2712, %v2708
          %v2909 = vpack.c.b16 %v2713, %v2709
          %v2910 = vpack.c.b16 %v2714, %v2710
          %v2911 = vpack.c.b16 %v2719, %v2715
          %v2912 = vpack.c.b16 %v2720, %v2716
          %v2913 = vpack.c.b16 %v2721, %v2717
          %v2914 = vpack.c.b16 %v2722, %v2718
          %v2915 = vpack.c.b16 %v2727, %v2723
          %v2916 = vpack.c.b16 %v2728, %v2724
          %v2917 = vpack.c.b16 %v2729, %v2725
          %v2918 = vpack.c.b16 %v2730, %v2726
          %v2919 = vpack.c.b16 %v2735, %v2731
          %v2920 = vpack.c.b16 %v2736, %v2732
          %v2921 = vpack.c.b16 %v2737, %v2733
          %v2922 = vpack.c.b16 %v2738, %v2734
          %v2923 = vpack.c.b16 %v2743, %v2739
          %v2924 = vpack.c.b16 %v2744, %v2740
          %v2925 = vpack.c.b16 %v2745, %v2741
          %v2926 = vpack.c.b16 %v2746, %v2742
          %v2927 = vpack.c.b16 %v2751, %v2747
          %v2928 = vpack.c.b16 %v2752, %v2748
          %v2929 = vpack.c.b16 %v2753, %v2749
          %v2930 = vpack.c.b16 %v2754, %v2750
          %v2931 = vpack.c.b16 %v2759, %v2755
          %v2932 = vpack.c.b16 %v2760, %v2756
          %v2933 = vpack.c.b16 %v2761, %v2757
          %v2934 = vpack.c.b16 %v2762, %v2758
          %v2935 = vpack.c.b16 %v2767, %v2763
          %v2936 = vpack.c.b16 %v2768, %v2764
          %v2937 = vpack.c.b16 %v2769, %v2765
          %v2938 = vpack.c.b16 %v2770, %v2766
          %v2939 = vpack.c.b16 %v2775, %v2771
          %v2940 = vpack.c.b16 %v2776, %v2772
          %v2941 = vpack.c.b16 %v2777, %v2773
          %v2942 = vpack.c.b16 %v2778, %v2774
          %v2943 = vpack.c.b16 %v2783, %v2779
          %v2944 = vpack.c.b16 %v2784, %v2780
          %v2945 = vpack.c.b16 %v2785, %v2781
          %v2946 = vpack.c.b16 %v2786, %v2782
          %v2947 = vpack.c.b16 %v2791, %v2787
          %v2948 = vpack.c.b16 %v2792, %v2788
          %v2949 = vpack.c.b16 %v2793, %v2789
          %v2950 = vpack.c.b16 %v2794, %v2790
          %v2951 = vpack.c.b16 %v2799, %v2795
          %v2952 = vpack.c.b16 %v2800, %v2796
          %v2953 = vpack.c.b16 %v2801, %v2797
          %v2954 = vpack.c.b16 %v2802, %v2798
          %v2955 = vpack.c.b16 %v2807, %v2803
          %v2956 = vpack.c.b16 %v2808, %v2804
          %v2957 = vpack.c.b16 %v2809, %v2805
          %v2958 = vpack.c.b16 %v2810, %v2806
          %v2959 = vpack.c.b16 %v2815, %v2811
          %v2960 = vpack.c.b16 %v2816, %v2812
          %v2961 = vpack.c.b16 %v2817, %v2813
          %v2962 = vpack.c.b16 %v2818, %v2814
          %v2963 = vpack.c.b16 %v2823, %v2819
          %v2964 = vpack.c.b16 %v2824, %v2820
          %v2965 = vpack.c.b16 %v2825, %v2821
          %v2966 = vpack.c.b16 %v2826, %v2822
          %v2967 = vpack.c.b16 %v2831, %v2827
          %v2968 = vpack.c.b16 %v2832, %v2828
          %v2969 = vpack.c.b16 %v2833, %v2829
          %v2970 = vpack.c.b16 %v2834, %v2830
          %v2971 = vpack.c.b16 %v2839, %v2835
          %v2972 = vpack.c.b16 %v2840, %v2836
          %v2973 = vpack.c.b16 %v2841, %v2837
          %v2974 = vpack.c.b16 %v2842, %v2838
          %v2975 = vpack.c.b16 %v2847, %v2843
          %v2976 = vpack.c.b16 %v2848, %v2844
          %v2977 = vpack.c.b16 %v2849, %v2845
          %v2978 = vpack.c.b16 %v2850, %v2846
          %3107 = vmatprep.subr.bf16.mxu0 %v2880
          %3108 = vmatpush1.bf16.msra.mxu0 %v2879
          %3109 = vmatprep.subr.bf16.mxu0 %v2876
          %3110 = vmatpush1.bf16.msra.mxu0 %v2875
          %3111 = vmatprep.subr.bf16.mxu0 %v2872
          %3112 = vmatpush1.bf16.msra.mxu0 %v2871
          %3113 = vmatprep.subr.bf16.mxu0 %v2868
          %3114 = vmatpush1.bf16.msra.mxu0 %v2867
          %3115 = vmatprep.subr.bf16.mxu0 %v2864
          %3116 = vmatpush1.bf16.msra.mxu0 %v2863
          %3117 = vmatprep.subr.bf16.mxu0 %v2860
          %3118 = vmatpush1.bf16.msra.mxu0 %v2859
          %3119 = vmatprep.subr.bf16.mxu0 %v2856
          %3120 = vmatpush1.bf16.msra.mxu0 %v2855
          %3121 = vmatprep.subr.bf16.mxu0 %v2852
          %3122 = vmatpush1.bf16.msra.mxu0 %v2851
          %3123 = vmatprep.subr.bf16.mxu0 %v2912
          %3124 = vmatpush2.bf16.msra.mxu0 %v2911
          %3125 = vmatprep.subr.bf16.mxu0 %v2908
          %3126 = vmatpush2.bf16.msra.mxu0 %v2907
          %3127 = vmatprep.subr.bf16.mxu0 %v2904
          %3128 = vmatpush2.bf16.msra.mxu0 %v2903
          %3129 = vmatprep.subr.bf16.mxu0 %v2900
          %3130 = vmatpush2.bf16.msra.mxu0 %v2899
          %3131 = vmatprep.subr.bf16.mxu0 %v2896
          %3132 = vmatpush2.bf16.msra.mxu0 %v2895
          %3133 = vmatprep.subr.bf16.mxu0 %v2892
          %3134 = vmatpush2.bf16.msra.mxu0 %v2891
          %3135 = vmatprep.subr.bf16.mxu0 %v2888
          %3136 = vmatpush2.bf16.msra.mxu0 %v2887
          %3137 = vmatprep.subr.bf16.mxu0 %v2884
          %3138 = vmatpush2.bf16.msra.mxu0 %v2883
          %3139 = vmatprep.mubr.bf16.mxu0 %v2314
          %3140 = vmatmul.mubr.bf16.gmra.mxu0 %v2313
          %v3141 = vpop.f32.mrf.mxu0
          %v3142 = vadd.f32 %v2450, %v3141
          %v3143 = vpop.f32.mrf.mxu0
          %v3144 = vadd.f32 %v2454, %v3143
          %v3145 = vpop.f32.mrf.mxu0
          %v3146 = vpop.f32.mrf.mxu0
          %3147 = vdwg.mxu0
          %3148 = vmatprep.subr.bf16.mxu0 %v2944
          %3149 = vmatpush1.bf16.msra.mxu0 %v2943
          %3150 = vmatprep.subr.bf16.mxu0 %v2940
          %3151 = vmatpush1.bf16.msra.mxu0 %v2939
          %3152 = vmatprep.subr.bf16.mxu0 %v2936
          %3153 = vmatpush1.bf16.msra.mxu0 %v2935
          %3154 = vmatprep.subr.bf16.mxu0 %v2932
          %3155 = vmatpush1.bf16.msra.mxu0 %v2931
          %3156 = vmatprep.subr.bf16.mxu0 %v2928
          %3157 = vmatpush1.bf16.msra.mxu0 %v2927
          %3158 = vmatprep.subr.bf16.mxu0 %v2924
          %3159 = vmatpush1.bf16.msra.mxu0 %v2923
          %3160 = vmatprep.subr.bf16.mxu0 %v2920
          %3161 = vmatpush1.bf16.msra.mxu0 %v2919
          %3162 = vmatprep.subr.bf16.mxu0 %v2916
          %3163 = vmatpush1.bf16.msra.mxu0 %v2915
          %3164 = vmatprep.subr.bf16.mxu0 %v2976
          %3165 = vmatpush2.bf16.msra.mxu0 %v2975
          %3166 = vmatprep.subr.bf16.mxu0 %v2972
          %3167 = vmatpush2.bf16.msra.mxu0 %v2971
          %3168 = vmatprep.subr.bf16.mxu0 %v2968
          %3169 = vmatpush2.bf16.msra.mxu0 %v2967
          %3170 = vmatprep.subr.bf16.mxu0 %v2964
          %3171 = vmatpush2.bf16.msra.mxu0 %v2963
          %3172 = vmatprep.subr.bf16.mxu0 %v2960
          %3173 = vmatpush2.bf16.msra.mxu0 %v2959
          %3174 = vmatprep.subr.bf16.mxu0 %v2956
          %3175 = vmatpush2.bf16.msra.mxu0 %v2955
          %3176 = vmatprep.subr.bf16.mxu0 %v2952
          %3177 = vmatpush2.bf16.msra.mxu0 %v2951
          %3178 = vmatprep.subr.bf16.mxu0 %v2948
          %3179 = vmatpush2.bf16.msra.mxu0 %v2947
          %3180 = vmatprep.mubr.bf16.mxu0 %v2316
          %3181 = vmatmul.mubr.bf16.gmra.mxu0 %v2315
          %v3182 = vpop.f32.mrf.mxu0
          %v3183 = vadd.f32 %v3142, %v3182
          %v3184 = vpop.f32.mrf.mxu0
          %v3185 = vadd.f32 %v3144, %v3184
          %v3186 = vpop.f32.mrf.mxu0
          %v3187 = vpop.f32.mrf.mxu0
          %3188 = vdwg.mxu0
          %3189 = vmatprep.subr.bf16.mxu0 %v2882
          %3190 = vmatpush1.bf16.msra.mxu0 %v2881
          %3191 = vmatprep.subr.bf16.mxu0 %v2878
          %3192 = vmatpush1.bf16.msra.mxu0 %v2877
          %3193 = vmatprep.subr.bf16.mxu0 %v2874
          %3194 = vmatpush1.bf16.msra.mxu0 %v2873
          %3195 = vmatprep.subr.bf16.mxu0 %v2870
          %3196 = vmatpush1.bf16.msra.mxu0 %v2869
          %3197 = vmatprep.subr.bf16.mxu0 %v2866
          %3198 = vmatpush1.bf16.msra.mxu0 %v2865
          %3199 = vmatprep.subr.bf16.mxu0 %v2862
          %3200 = vmatpush1.bf16.msra.mxu0 %v2861
          %3201 = vmatprep.subr.bf16.mxu0 %v2858
          %3202 = vmatpush1.bf16.msra.mxu0 %v2857
          %3203 = vmatprep.subr.bf16.mxu0 %v2854
          %3204 = vmatpush1.bf16.msra.mxu0 %v2853
          %3205 = vmatprep.subr.bf16.mxu0 %v2914
          %3206 = vmatpush2.bf16.msra.mxu0 %v2913
          %3207 = vmatprep.subr.bf16.mxu0 %v2910
          %3208 = vmatpush2.bf16.msra.mxu0 %v2909
          %3209 = vmatprep.subr.bf16.mxu0 %v2906
          %3210 = vmatpush2.bf16.msra.mxu0 %v2905
          %3211 = vmatprep.subr.bf16.mxu0 %v2902
          %3212 = vmatpush2.bf16.msra.mxu0 %v2901
          %3213 = vmatprep.subr.bf16.mxu0 %v2898
          %3214 = vmatpush2.bf16.msra.mxu0 %v2897
          %3215 = vmatprep.subr.bf16.mxu0 %v2894
          %3216 = vmatpush2.bf16.msra.mxu0 %v2893
          %3217 = vmatprep.subr.bf16.mxu0 %v2890
          %3218 = vmatpush2.bf16.msra.mxu0 %v2889
          %3219 = vmatprep.subr.bf16.mxu0 %v2886
          %3220 = vmatpush2.bf16.msra.mxu0 %v2885
          %3221 = vmatprep.mubr.bf16.mxu0 %v2314
          %3222 = vmatmul.mubr.bf16.gmra.mxu0 %v2313
          %v3223 = vpop.f32.mrf.mxu0
          %v3224 = vadd.f32 %v2458, %v3223
          %v3225 = vpop.f32.mrf.mxu0
          %v3226 = vadd.f32 %v2462, %v3225
          %v3227 = vpop.f32.mrf.mxu0
          %v3228 = vpop.f32.mrf.mxu0
          %3229 = vdwg.mxu0
          %3230 = vmatprep.subr.bf16.mxu0 %v2946
          %3231 = vmatpush1.bf16.msra.mxu0 %v2945
          %3232 = vmatprep.subr.bf16.mxu0 %v2942
          %3233 = vmatpush1.bf16.msra.mxu0 %v2941
          %3234 = vmatprep.subr.bf16.mxu0 %v2938
          %3235 = vmatpush1.bf16.msra.mxu0 %v2937
          %3236 = vmatprep.subr.bf16.mxu0 %v2934
          %3237 = vmatpush1.bf16.msra.mxu0 %v2933
          %3238 = vmatprep.subr.bf16.mxu0 %v2930
          %3239 = vmatpush1.bf16.msra.mxu0 %v2929
          %3240 = vmatprep.subr.bf16.mxu0 %v2926
          %3241 = vmatpush1.bf16.msra.mxu0 %v2925
          %3242 = vmatprep.subr.bf16.mxu0 %v2922
          %3243 = vmatpush1.bf16.msra.mxu0 %v2921
          %3244 = vmatprep.subr.bf16.mxu0 %v2918
          %3245 = vmatpush1.bf16.msra.mxu0 %v2917
          %3246 = vmatprep.subr.bf16.mxu0 %v2978
          %3247 = vmatpush2.bf16.msra.mxu0 %v2977
          %3248 = vmatprep.subr.bf16.mxu0 %v2974
          %3249 = vmatpush2.bf16.msra.mxu0 %v2973
          %3250 = vmatprep.subr.bf16.mxu0 %v2970
          %3251 = vmatpush2.bf16.msra.mxu0 %v2969
          %3252 = vmatprep.subr.bf16.mxu0 %v2966
          %3253 = vmatpush2.bf16.msra.mxu0 %v2965
          %3254 = vmatprep.subr.bf16.mxu0 %v2962
          %3255 = vmatpush2.bf16.msra.mxu0 %v2961
          %3256 = vmatprep.subr.bf16.mxu0 %v2958
          %3257 = vmatpush2.bf16.msra.mxu0 %v2957
          %3258 = vmatprep.subr.bf16.mxu0 %v2954
          %3259 = vmatpush2.bf16.msra.mxu0 %v2953
          %3260 = vmatprep.subr.bf16.mxu0 %v2950
          %3261 = vmatpush2.bf16.msra.mxu0 %v2949
          %3262 = vmatprep.mubr.bf16.mxu0 %v2316
          %3263 = vmatmul.mubr.bf16.gmra.mxu0 %v2315
          %v3264 = vpop.f32.mrf.mxu0
          %v3265 = vadd.f32 %v3224, %v3264
          %v3266 = vpop.f32.mrf.mxu0
          %v3267 = vadd.f32 %v3226, %v3266
          %v3268 = vpop.f32.mrf.mxu0
          %v3269 = vpop.f32.mrf.mxu0
          %3270 = vdwg.mxu0
          %v3271 = vxor.u32 %v3183, 2147483648
          %v3272 = vxor.u32 %v3185, 2147483648
          %v3273 = vxor.u32 %v3265, 2147483648
          %v3274 = vxor.u32 %v3267, 2147483648
          %v3275 = vmul.f32 %v3271, 1.442695
          %v3276 = vpow.pop %v3275
          %v3277 = vmul.f32 %v3272, 1.442695
          %v3278 = vpow.pop %v3277
          %v3279 = vmul.f32 %v3273, 1.442695
          %v3280 = vpow.pop %v3279
          %v3281 = vmul.f32 %v3274, 1.442695
          %v3282 = vpow.pop %v3281
          %v3283 = vadd.f32 %v3276, 1.0
          %v3284 = vadd.f32 %v3278, 1.0
          %v3285 = vadd.f32 %v3280, 1.0
          %v3286 = vadd.f32 %v3282, 1.0
          %v3287 = vrcp.pop %v3283
          %v3288 = vmul.f32 1.0, %v3287
          %v3289 = vrcp.pop %v3284
          %v3290 = vmul.f32 1.0, %v3289
          %v3291 = vrcp.pop %v3285
          %v3292 = vmul.f32 1.0, %v3291
          %v3293 = vrcp.pop %v3286
          %v3294 = vmul.f32 1.0, %v3293
          %v3295 = vpack.c.bf16 %v3288, %v3288
          %v3296 = vpack.c.bf16 %v3290, %v3290
          %v3297 = vpack.c.bf16 %v3292, %v3292
          %v3298 = vpack.c.bf16 %v3294, %v3294
          %v3299 = vld [vmem:[%s5] sm:$0xf]
          %v3300 = vld [vmem:[%s5 + $0x4] sm:$0xf]
          %v3301 = vld [vmem:[%s5 + $0x8] sm:$0xf]
          %v3302 = vld [vmem:[%s5 + $0xc] sm:$0xf]
          %v3303 = vld [vmem:[%s5 + $0x10] sm:$0xf]
          %v3304 = vld [vmem:[%s5 + $0x14] sm:$0xf]
          %v3305 = vld [vmem:[%s5 + $0x18] sm:$0xf]
          %v3306 = vld [vmem:[%s5 + $0x1c] sm:$0xf]
          %v3307 = vld [vmem:[%s5 + $0x20] sm:$0xf]
          %v3308 = vld [vmem:[%s5 + $0x24] sm:$0xf]
          %v3309 = vld [vmem:[%s5 + $0x28] sm:$0xf]
          %v3310 = vld [vmem:[%s5 + $0x2c] sm:$0xf]
          %v3311 = vld [vmem:[%s5 + $0x30] sm:$0xf]
          %v3312 = vld [vmem:[%s5 + $0x34] sm:$0xf]
          %v3313 = vld [vmem:[%s5 + $0x38] sm:$0xf]
          %v3314 = vld [vmem:[%s5 + $0x3c] sm:$0xf]
          %v3315 = vld [vmem:[%s5 + $0x40] sm:$0xf]
          %v3316 = vld [vmem:[%s5 + $0x44] sm:$0xf]
          %v3317 = vld [vmem:[%s5 + $0x48] sm:$0xf]
          %v3318 = vld [vmem:[%s5 + $0x4c] sm:$0xf]
          %v3319 = vld [vmem:[%s5 + $0x50] sm:$0xf]
          %v3320 = vld [vmem:[%s5 + $0x54] sm:$0xf]
          %v3321 = vld [vmem:[%s5 + $0x58] sm:$0xf]
          %v3322 = vld [vmem:[%s5 + $0x5c] sm:$0xf]
          %v3323 = vld [vmem:[%s5 + $0x60] sm:$0xf]
          %v3324 = vld [vmem:[%s5 + $0x64] sm:$0xf]
          %v3325 = vld [vmem:[%s5 + $0x68] sm:$0xf]
          %v3326 = vld [vmem:[%s5 + $0x6c] sm:$0xf]
          %v3327 = vld [vmem:[%s5 + $0x70] sm:$0xf]
          %v3328 = vld [vmem:[%s5 + $0x74] sm:$0xf]
          %v3329 = vld [vmem:[%s5 + $0x78] sm:$0xf]
          %v3330 = vld [vmem:[%s5 + $0x7c] sm:$0xf]
          %v3331 = vld [vmem:[%s5 + $0x80] sm:$0xf]
          %v3332 = vld [vmem:[%s5 + $0x84] sm:$0xf]
          %v3333 = vld [vmem:[%s5 + $0x88] sm:$0xf]
          %v3334 = vld [vmem:[%s5 + $0x8c] sm:$0xf]
          %v3335 = vld [vmem:[%s5 + $0x90] sm:$0xf]
          %v3336 = vld [vmem:[%s5 + $0x94] sm:$0xf]
          %v3337 = vld [vmem:[%s5 + $0x98] sm:$0xf]
          %v3338 = vld [vmem:[%s5 + $0x9c] sm:$0xf]
          %v3339 = vld [vmem:[%s5 + $0xa0] sm:$0xf]
          %v3340 = vld [vmem:[%s5 + $0xa4] sm:$0xf]
          %v3341 = vld [vmem:[%s5 + $0xa8] sm:$0xf]
          %v3342 = vld [vmem:[%s5 + $0xac] sm:$0xf]
          %v3343 = vld [vmem:[%s5 + $0xb0] sm:$0xf]
          %v3344 = vld [vmem:[%s5 + $0xb4] sm:$0xf]
          %v3345 = vld [vmem:[%s5 + $0xb8] sm:$0xf]
          %v3346 = vld [vmem:[%s5 + $0xbc] sm:$0xf]
          %v3347 = vld [vmem:[%s5 + $0xc0] sm:$0xf]
          %v3348 = vld [vmem:[%s5 + $0xc4] sm:$0xf]
          %v3349 = vld [vmem:[%s5 + $0xc8] sm:$0xf]
          %v3350 = vld [vmem:[%s5 + $0xcc] sm:$0xf]
          %v3351 = vld [vmem:[%s5 + $0xd0] sm:$0xf]
          %v3352 = vld [vmem:[%s5 + $0xd4] sm:$0xf]
          %v3353 = vld [vmem:[%s5 + $0xd8] sm:$0xf]
          %v3354 = vld [vmem:[%s5 + $0xdc] sm:$0xf]
          %v3355 = vld [vmem:[%s5 + $0xe0] sm:$0xf]
          %v3356 = vld [vmem:[%s5 + $0xe4] sm:$0xf]
          %v3357 = vld [vmem:[%s5 + $0xe8] sm:$0xf]
          %v3358 = vld [vmem:[%s5 + $0xec] sm:$0xf]
          %v3359 = vld [vmem:[%s5 + $0xf0] sm:$0xf]
          %v3360 = vld [vmem:[%s5 + $0xf4] sm:$0xf]
          %v3361 = vld [vmem:[%s5 + $0xf8] sm:$0xf]
          %v3362 = vld [vmem:[%s5 + $0xfc] sm:$0xf]
          %v3363 = vld [vmem:[%s6] sm:$0x1]
          %v3365 = vlaneseq
          %v3366 = vshrl.u32 %v3365, 7
          %v3367 = vsub.s32 0, %v3366
          %v3368 = vrot.slane %v3363, %v3367
          %v3434 = vunpack.c.l.b16 %v3299
          %v3435 = vunpack.c.l.b16 %v3300
          %v3436 = vunpack.c.l.b16 %v3301
          %v3437 = vunpack.c.l.b16 %v3302
          %v3438 = vunpack.c.l.b16 %v3303
          %v3439 = vunpack.c.l.b16 %v3304
          %v3440 = vunpack.c.l.b16 %v3305
          %v3441 = vunpack.c.l.b16 %v3306
          %v3442 = vunpack.c.l.b16 %v3307
          %v3443 = vunpack.c.l.b16 %v3308
          %v3444 = vunpack.c.l.b16 %v3309
          %v3445 = vunpack.c.l.b16 %v3310
          %v3446 = vunpack.c.l.b16 %v3311
          %v3447 = vunpack.c.l.b16 %v3312
          %v3448 = vunpack.c.l.b16 %v3313
          %v3449 = vunpack.c.l.b16 %v3314
          %v3450 = vunpack.c.l.b16 %v3315
          %v3451 = vunpack.c.l.b16 %v3316
          %v3452 = vunpack.c.l.b16 %v3317
          %v3453 = vunpack.c.l.b16 %v3318
          %v3454 = vunpack.c.l.b16 %v3319
          %v3455 = vunpack.c.l.b16 %v3320
          %v3456 = vunpack.c.l.b16 %v3321
          %v3457 = vunpack.c.l.b16 %v3322
          %v3458 = vunpack.c.l.b16 %v3323
          %v3459 = vunpack.c.l.b16 %v3324
          %v3460 = vunpack.c.l.b16 %v3325
          %v3461 = vunpack.c.l.b16 %v3326
          %v3462 = vunpack.c.l.b16 %v3327
          %v3463 = vunpack.c.l.b16 %v3328
          %v3464 = vunpack.c.l.b16 %v3329
          %v3465 = vunpack.c.l.b16 %v3330
          %v3466 = vunpack.c.l.b16 %v3331
          %v3467 = vunpack.c.l.b16 %v3332
          %v3468 = vunpack.c.l.b16 %v3333
          %v3469 = vunpack.c.l.b16 %v3334
          %v3470 = vunpack.c.l.b16 %v3335
          %v3471 = vunpack.c.l.b16 %v3336
          %v3472 = vunpack.c.l.b16 %v3337
          %v3473 = vunpack.c.l.b16 %v3338
          %v3474 = vunpack.c.l.b16 %v3339
          %v3475 = vunpack.c.l.b16 %v3340
          %v3476 = vunpack.c.l.b16 %v3341
          %v3477 = vunpack.c.l.b16 %v3342
          %v3478 = vunpack.c.l.b16 %v3343
          %v3479 = vunpack.c.l.b16 %v3344
          %v3480 = vunpack.c.l.b16 %v3345
          %v3481 = vunpack.c.l.b16 %v3346
          %v3482 = vunpack.c.l.b16 %v3347
          %v3483 = vunpack.c.l.b16 %v3348
          %v3484 = vunpack.c.l.b16 %v3349
          %v3485 = vunpack.c.l.b16 %v3350
          %v3486 = vunpack.c.l.b16 %v3351
          %v3487 = vunpack.c.l.b16 %v3352
          %v3488 = vunpack.c.l.b16 %v3353
          %v3489 = vunpack.c.l.b16 %v3354
          %v3490 = vunpack.c.l.b16 %v3355
          %v3491 = vunpack.c.l.b16 %v3356
          %v3492 = vunpack.c.l.b16 %v3357
          %v3493 = vunpack.c.l.b16 %v3358
          %v3494 = vunpack.c.l.b16 %v3359
          %v3495 = vunpack.c.l.b16 %v3360
          %v3496 = vunpack.c.l.b16 %v3361
          %v3497 = vunpack.c.l.b16 %v3362
          %v3498 = vpack.c.b16 %v3435, %v3434
          %v3499 = vpack.c.b16 %v3437, %v3436
          %v3500 = vpack.c.b16 %v3439, %v3438
          %v3501 = vpack.c.b16 %v3441, %v3440
          %v3502 = vpack.c.b16 %v3443, %v3442
          %v3503 = vpack.c.b16 %v3445, %v3444
          %v3504 = vpack.c.b16 %v3447, %v3446
          %v3505 = vpack.c.b16 %v3449, %v3448
          %v3506 = vpack.c.b16 %v3451, %v3450
          %v3507 = vpack.c.b16 %v3453, %v3452
          %v3508 = vpack.c.b16 %v3455, %v3454
          %v3509 = vpack.c.b16 %v3457, %v3456
          %v3510 = vpack.c.b16 %v3459, %v3458
          %v3511 = vpack.c.b16 %v3461, %v3460
          %v3512 = vpack.c.b16 %v3463, %v3462
          %v3513 = vpack.c.b16 %v3465, %v3464
          %v3514 = vpack.c.b16 %v3467, %v3466
          %v3515 = vpack.c.b16 %v3469, %v3468
          %v3516 = vpack.c.b16 %v3471, %v3470
          %v3517 = vpack.c.b16 %v3473, %v3472
          %v3518 = vpack.c.b16 %v3475, %v3474
          %v3519 = vpack.c.b16 %v3477, %v3476
          %v3520 = vpack.c.b16 %v3479, %v3478
          %v3521 = vpack.c.b16 %v3481, %v3480
          %v3522 = vpack.c.b16 %v3483, %v3482
          %v3523 = vpack.c.b16 %v3485, %v3484
          %v3524 = vpack.c.b16 %v3487, %v3486
          %v3525 = vpack.c.b16 %v3489, %v3488
          %v3526 = vpack.c.b16 %v3491, %v3490
          %v3527 = vpack.c.b16 %v3493, %v3492
          %v3528 = vpack.c.b16 %v3495, %v3494
          %v3529 = vpack.c.b16 %v3497, %v3496
          %3562 = vmatprep.subr.bf16.mxu0 0
          %3563 = vmatpush1.bf16.msra.mxu0 %v3505
          %3564 = vmatprep.subr.bf16.mxu0 0
          %3565 = vmatpush1.bf16.msra.mxu0 %v3504
          %3566 = vmatprep.subr.bf16.mxu0 0
          %3567 = vmatpush1.bf16.msra.mxu0 %v3503
          %3568 = vmatprep.subr.bf16.mxu0 0
          %3569 = vmatpush1.bf16.msra.mxu0 %v3502
          %3570 = vmatprep.subr.bf16.mxu0 0
          %3571 = vmatpush1.bf16.msra.mxu0 %v3501
          %3572 = vmatprep.subr.bf16.mxu0 0
          %3573 = vmatpush1.bf16.msra.mxu0 %v3500
          %3574 = vmatprep.subr.bf16.mxu0 0
          %3575 = vmatpush1.bf16.msra.mxu0 %v3499
          %3576 = vmatprep.subr.bf16.mxu0 0
          %3577 = vmatpush1.bf16.msra.mxu0 %v3498
          %3578 = vmatprep.subr.bf16.mxu0 0
          %3579 = vmatpush2.bf16.msra.mxu0 %v3513
          %3580 = vmatprep.subr.bf16.mxu0 0
          %3581 = vmatpush2.bf16.msra.mxu0 %v3512
          %3582 = vmatprep.subr.bf16.mxu0 0
          %3583 = vmatpush2.bf16.msra.mxu0 %v3511
          %3584 = vmatprep.subr.bf16.mxu0 0
          %3585 = vmatpush2.bf16.msra.mxu0 %v3510
          %3586 = vmatprep.subr.bf16.mxu0 0
          %3587 = vmatpush2.bf16.msra.mxu0 %v3509
          %3588 = vmatprep.subr.bf16.mxu0 0
          %3589 = vmatpush2.bf16.msra.mxu0 %v3508
          %3590 = vmatprep.subr.bf16.mxu0 0
          %3591 = vmatpush2.bf16.msra.mxu0 %v3507
          %3592 = vmatprep.subr.bf16.mxu0 0
          %3593 = vmatpush2.bf16.msra.mxu0 %v3506
          %3594 = vmatprep.mubr.bf16.mxu0 %v3296
          %3595 = vmatmul.mubr.bf16.gmra.mxu0 %v3295
          %v3596 = vpop.f32.mrf.mxu0
          %v3597 = vadd.f32 %v3368, %v3596
          %v3598 = vpop.f32.mrf.mxu0
          %v3599 = vpop.f32.mrf.mxu0
          %v3600 = vpop.f32.mrf.mxu0
          %3601 = vdwg.mxu0
          %3602 = vmatprep.subr.bf16.mxu0 0
          %3603 = vmatpush1.bf16.msra.mxu0 %v3521
          %3604 = vmatprep.subr.bf16.mxu0 0
          %3605 = vmatpush1.bf16.msra.mxu0 %v3520
          %3606 = vmatprep.subr.bf16.mxu0 0
          %3607 = vmatpush1.bf16.msra.mxu0 %v3519
          %3608 = vmatprep.subr.bf16.mxu0 0
          %3609 = vmatpush1.bf16.msra.mxu0 %v3518
          %3610 = vmatprep.subr.bf16.mxu0 0
          %3611 = vmatpush1.bf16.msra.mxu0 %v3517
          %3612 = vmatprep.subr.bf16.mxu0 0
          %3613 = vmatpush1.bf16.msra.mxu0 %v3516
          %3614 = vmatprep.subr.bf16.mxu0 0
          %3615 = vmatpush1.bf16.msra.mxu0 %v3515
          %3616 = vmatprep.subr.bf16.mxu0 0
          %3617 = vmatpush1.bf16.msra.mxu0 %v3514
          %3618 = vmatprep.subr.bf16.mxu0 0
          %3619 = vmatpush2.bf16.msra.mxu0 %v3529
          %3620 = vmatprep.subr.bf16.mxu0 0
          %3621 = vmatpush2.bf16.msra.mxu0 %v3528
          %3622 = vmatprep.subr.bf16.mxu0 0
          %3623 = vmatpush2.bf16.msra.mxu0 %v3527
          %3624 = vmatprep.subr.bf16.mxu0 0
          %3625 = vmatpush2.bf16.msra.mxu0 %v3526
          %3626 = vmatprep.subr.bf16.mxu0 0
          %3627 = vmatpush2.bf16.msra.mxu0 %v3525
          %3628 = vmatprep.subr.bf16.mxu0 0
          %3629 = vmatpush2.bf16.msra.mxu0 %v3524
          %3630 = vmatprep.subr.bf16.mxu0 0
          %3631 = vmatpush2.bf16.msra.mxu0 %v3523
          %3632 = vmatprep.subr.bf16.mxu0 0
          %3633 = vmatpush2.bf16.msra.mxu0 %v3522
          %3634 = vmatprep.mubr.bf16.mxu0 %v3298
          %3635 = vmatmul.mubr.bf16.gmra.mxu0 %v3297
          %v3636 = vpop.f32.mrf.mxu0
          %v3637 = vadd.f32 %v3597, %v3636
          %v3638 = vpop.f32.mrf.mxu0
          %v3639 = vpop.f32.mrf.mxu0
          %v3640 = vpop.f32.mrf.mxu0
          %3641 = vdwg.mxu0
          %v3642 = vxor.u32 %v3637, 2147483648
          %v3643 = vmul.f32 %v3642, 1.442695
          %v3644 = vpow.pop %v3643
          %v3645 = vadd.f32 %v3644, 1.0
          %v3646 = vrcp.pop %v3645
          %v3647 = vmul.f32 1.0, %v3646
          %3648 = vst [vmem:[#allocation3] sm:$0x3] %v3647
        $region56: #{cnn_forward.7} parent=47 // pred_fallthru
          _
        // Predicated region
        $region57: #{cnn_forward.7} parent=47 // pred_check
          %p3649 = pneg %p189
        $region58: #{cnn_forward.7} parent=47 // pred_check_branch
          %3651 = sbr.rel (%p3649) target = $region60
        $region59: #{cnn_forward.7} parent=47 // pred_region
          %s3653 = ssub.s32 32, 32
          %3654 = vsyncadd [#allocation4], %s3653
          %s3656 = sshll.u32 [#allocation3], 4
          %s3657 = int_to_ptr.vmem [resolvable:$true] %s3656
          %3659 = dma.vmem_to_hbm [thread:$0]  %s3657, 32, %s7, [#allocation4]
        $region60: #{cnn_forward.7} parent=47 // pred_fallthru
          _
        // Predicated region
        $region61: #{cnn_forward.7} parent=47 // pred_check
          %p3660 = pneg %p189
        $region62: #{cnn_forward.7} parent=47 // pred_check_branch
          %3662 = sbr.rel (%p3660) target = $region64
        $region63: #{cnn_forward.7} parent=47 // pred_region
          %3663 = dma.done [#allocation4], 32
        $region64: #{cnn_forward.7} parent=47 // pred_fallthru
          _
      $region48: #{cnn_forward.7} parent=5 // pred_fallthru
        _
      %p3664 = scmp.le.s32.totalorder 2, %s14
      // Predicated region
      $region65: #{cnn_forward.7} parent=5 // pred_check
        %p3665 = pneg %p3664
      $region66: #{cnn_forward.7} parent=5 // pred_check_branch
        %3667 = sbr.rel (%p3665) target = $region68
      $region67: #{cnn_forward.7} parent=5 // pred_region
        %s3668 = ssub.s32 %s14, 2
      $region68: #{cnn_forward.7} parent=5 // pred_fallthru
        _
    $region6: #{cnn_forward.7} parent=1 // loop_footer
      %s18 = sadd.s32 1, %s14
    $region7: #{cnn_forward.7} parent=1 // loop_footer_branch
      %13 = sbr.rel target = $region3
    $region8: #{cnn_forward.7} parent=1 // loop_exit
      _
    %3669 = vsyncpa [#allocation4], 1
    %s3670 = scalar_lea.sflag [#allocation4], 1
    %3671 = vsyncpa %s3670, 1

</llo_original>
